<compile_context>
chip_gen: v7x
topology: tpu7x:2x2x1
jax: 0.10.0
libtpu: 0.0.40
codegen_flags: <defaults>
</compile_context>

<pallas_src>
import functools

import jax
import jax.numpy as jnp
from jax import lax
from jax.experimental import pallas as pl
from jax.experimental.pallas import tpu as pltpu


def _round_up(x, m):
    return ((x + m - 1) // m) * m


def _pick_row_tile(m, cap=512):
    return cap if m >= cap else m


# ---------------------------------------------------------------------------
# Tiled matmul kernel (bf16 x bf16 -> f32), optional fused bias + tanh epilogue
# ---------------------------------------------------------------------------
def _matmul_kernel(*refs, k_total, tk, ragged_k, has_bias, apply_tanh,
                   out_cols, tn):
    if has_bias:
        a_ref, b_ref, bias_ref, o_ref, acc_ref = refs
    else:
        a_ref, b_ref, o_ref, acc_ref = refs
    k = pl.program_id(2)

    @pl.when(k == 0)
    def _():
        acc_ref[...] = jnp.zeros_like(acc_ref)

    a = a_ref[...]
    b = b_ref[...]
    if ragged_k:
        # Last K tile is ragged: zero the out-of-range columns/rows so garbage
        # (possibly NaN) VMEM contents cannot corrupt the accumulation.
        rem = k_total - k * tk
        a = jnp.where(lax.broadcasted_iota(jnp.int32, a.shape, 1) < rem,
                      a, jnp.zeros_like(a))
        b = jnp.where(lax.broadcasted_iota(jnp.int32, b.shape, 0) < rem,
                      b, jnp.zeros_like(b))
    acc_ref[...] += jnp.dot(a, b, preferred_element_type=jnp.float32)

    @pl.when(k == pl.num_programs(2) - 1)
    def _():
        val = acc_ref[...]
        if has_bias:
            val = val + bias_ref[...]
        if apply_tanh:
            val = jnp.tanh(val)
        if out_cols < tn:
            val = val[:, :out_cols]
        o_ref[...] = val.astype(o_ref.dtype)


def pallas_matmul(a, b, n_true, *, bias=None, tanh=False):
    """a: (M, K) bf16 im2col slab, b: (K, Np) bf16 weight with Np % 128 == 0.

    Returns (M, n_true) f32.  Ragged M/K tiles are handled without padding the
    (large) activation operand; only the last K tile is masked in-kernel.
    """
    M, K = a.shape
    Kb, Np = b.shape
    assert K == Kb and Np % 128 == 0 and n_true <= Np

    tm = _pick_row_tile(M, 512)
    tk = K if K <= 512 else 512
    tn = 256 if Np % 256 == 0 else 128
    grid = (pl.cdiv(M, tm), Np // tn, pl.cdiv(K, tk))
    ragged_k = (K % tk) != 0
    out_cols = min(tn, n_true)

    kernel = functools.partial(
        _matmul_kernel, k_total=K, tk=tk, ragged_k=ragged_k,
        has_bias=bias is not None, apply_tanh=tanh, out_cols=out_cols, tn=tn)

    in_specs = [
        pl.BlockSpec((tm, tk), lambda i, j, k: (i, k)),
        pl.BlockSpec((tk, tn), lambda i, j, k: (k, j)),
    ]
    inputs = [a, b]
    if bias is not None:
        in_specs.append(pl.BlockSpec((1, tn), lambda i, j, k: (0, j)))
        inputs.append(bias)

    return pl.pallas_call(
        kernel,
        out_shape=jax.ShapeDtypeStruct((M, n_true), jnp.float32),
        grid_spec=pltpu.PrefetchScalarGridSpec(
            num_scalar_prefetch=0,
            grid=grid,
            in_specs=in_specs,
            out_specs=pl.BlockSpec((tm, out_cols), lambda i, j, k: (i, j)),
            scratch_shapes=[pltpu.VMEM((tm, tn), jnp.float32)],
        ),
        compiler_params=pltpu.CompilerParams(
            dimension_semantics=("parallel", "parallel", "arbitrary")),
    )(*inputs)


# ---------------------------------------------------------------------------
# Tiled BatchNorm (training-mode batch stats) + ReLU / residual
# ---------------------------------------------------------------------------
def _bn_stats_kernel(x_ref, s_ref, sq_ref, *, m_total, tm, ragged_m):
    i = pl.program_id(0)

    @pl.when(i == 0)
    def _():
        s_ref[...] = jnp.zeros_like(s_ref)
        sq_ref[...] = jnp.zeros_like(sq_ref)

    x = x_ref[...]
    if ragged_m:
        rem = m_total - i * tm
        x = jnp.where(lax.broadcasted_iota(jnp.int32, x.shape, 0) < rem,
                      x, jnp.zeros_like(x))
    s_ref[...] += jnp.sum(x, axis=0, keepdims=True)
    sq_ref[...] += jnp.sum(x * x, axis=0, keepdims=True)


def _bn_apply_kernel(*refs, act, has_residual):
    if has_residual:
        x_ref, s_ref, b_ref, r_ref, o_ref = refs
    else:
        x_ref, s_ref, b_ref, o_ref = refs
    y = x_ref[...] * s_ref[...] + b_ref[...]
    if act == "relu":
        y = jnp.maximum(y, 0.0)
    if has_residual:
        y = y + r_ref[...]
    o_ref[...] = y


def batchnorm_pallas(x_nhwc, gamma, beta, *, act="none", residual=None,
                     eps=1e-5):
    """BatchNorm2d with training-mode (biased) batch statistics."""
    N, H, W, C = x_nhwc.shape
    M = N * H * W
    x2 = x_nhwc.reshape(M, C)
    tm = _pick_row_tile(M, 512)
    ragged_m = (M % tm) != 0
    grid = (pl.cdiv(M, tm),)

    # Pass 1: per-channel sum / sum-of-squares reduction (accumulated in the
    # resident output block; reduction axis -> "arbitrary").
    s, sq = pl.pallas_call(
        functools.partial(_bn_stats_kernel, m_total=M, tm=tm,
                          ragged_m=ragged_m),
        out_shape=(jax.ShapeDtypeStruct((1, C), jnp.float32),
                   jax.ShapeDtypeStruct((1, C), jnp.float32)),
        grid_spec=pltpu.PrefetchScalarGridSpec(
            num_scalar_prefetch=0,
            grid=grid,
            in_specs=[pl.BlockSpec((tm, C), lambda i: (i, 0))],
            out_specs=(pl.BlockSpec((1, C), lambda i: (0, 0)),
                       pl.BlockSpec((1, C), lambda i: (0, 0))),
        ),
        compiler_params=pltpu.CompilerParams(
            dimension_semantics=("arbitrary",)),
    )(x2)

    mean = s / M
    var = jnp.maximum(sq / M - mean * mean, 0.0)  # biased variance
    scale = gamma.reshape(1, C).astype(jnp.float32) * lax.rsqrt(var + eps)
    shift = beta.reshape(1, C).astype(jnp.float32) - mean * scale

    # Pass 2: tiled normalize + affine (+ ReLU / residual).
    inputs = [x2, scale, shift]
    in_specs = [pl.BlockSpec((tm, C), lambda i: (i, 0)),
                pl.BlockSpec((1, C), lambda i: (0, 0)),
                pl.BlockSpec((1, C), lambda i: (0, 0))]
    if residual is not None:
        inputs.append(residual.reshape(M, C))
        in_specs.append(pl.BlockSpec((tm, C), lambda i: (i, 0)))

    out = pl.pallas_call(
        functools.partial(_bn_apply_kernel, act=act,
                          has_residual=residual is not None),
        out_shape=jax.ShapeDtypeStruct((M, C), jnp.float32),
        grid_spec=pltpu.PrefetchScalarGridSpec(
            num_scalar_prefetch=0,
            grid=grid,
            in_specs=in_specs,
            out_specs=pl.BlockSpec((tm, C), lambda i: (i, 0)),
        ),
        compiler_params=pltpu.CompilerParams(
            dimension_semantics=("parallel",)),
    )(*inputs)
    return out.reshape(N, H, W, C)


# ---------------------------------------------------------------------------
# Convolutions via im2col (bf16) + Pallas matmul
# ---------------------------------------------------------------------------
def conv2d(x_nhwc, cw, *, stride=1, pad_reflect=0, pad_zero=0, bias=None,
           tanh=False):
    """cw: prepared weight dict (see prepare_generator_params); no bias unless
    passed explicitly (final layer, fused with tanh in the matmul epilogue)."""
    x = x_nhwc.astype(jnp.bfloat16)
    if pad_reflect:
        p = pad_reflect
        x = jnp.pad(x, ((0, 0), (p, p), (p, p), (0, 0)), mode="reflect")
    if pad_zero:
        p = pad_zero
        x = jnp.pad(x, ((0, 0), (p, p), (p, p), (0, 0)))
    N, Hp, Wp, Cin = x.shape
    kh, kw, cout = cw["kh"], cw["kw"], cw["cout"]
    Ho = (Hp - kh) // stride + 1
    Wo = (Wp - kw) // stride + 1
    patches = [x[:, i:i + stride * Ho:stride, j:j + stride * Wo:stride, :]
               for i in range(kh) for j in range(kw)]
    a = jnp.stack(patches, axis=3).reshape(N * Ho * Wo, kh * kw * Cin)
    out = pallas_matmul(a, cw["w"], cout, bias=bias, tanh=tanh)
    return out.reshape(N, Ho, Wo, cout)


def conv_transpose2d(x_nhwc, cw):
    """3x3 / stride-2 / pad-1 / out-pad-1 ConvTranspose2d via sub-pixel
    decomposition: one matmul on the undilated input against a (4*Cin, 4*Cout)
    block weight; the 4 sub-pixel outputs are interleaved to (N, 2H, 2W, C)."""
    x = x_nhwc.astype(jnp.bfloat16)
    N, H, W, Cin = x.shape
    cout = cw["cout"]
    xp = jnp.pad(x, ((0, 0), (0, 1), (0, 1), (0, 0)))
    taps = [xp[:, 0:H, 0:W, :], xp[:, 0:H, 1:W + 1, :],
            xp[:, 1:H + 1, 0:W, :], xp[:, 1:H + 1, 1:W + 1, :]]
    a = jnp.stack(taps, axis=3).reshape(N * H * W, 4 * Cin)
    out = pallas_matmul(a, cw["w"], 4 * cout)            # (N*H*W, 4*Cout)
    out = out.reshape(N, H, W, 2, 2, cout)
    out = jnp.transpose(out, (0, 1, 3, 2, 4, 5)).reshape(N, 2 * H, 2 * W, cout)
    return out


# ---------------------------------------------------------------------------
# ResNet generator (netG='resnet_9', norm='batch', use_dropout=False)
# ---------------------------------------------------------------------------
N_BLOCKS = 9


def init_generator_params(key, nc, ngf, init_gain=0.02):
    """init_type='normal': conv W ~ N(0, 0.02); BN gamma ~ N(1, 0.02), beta=0."""
    keys = iter(jax.random.split(key, 64))

    def conv_w(shape):
        return init_gain * jax.random.normal(next(keys), shape, jnp.float32)

    def bn(c):
        g = 1.0 + init_gain * jax.random.normal(next(keys), (c,), jnp.float32)
        return g, jnp.zeros((c,), jnp.float32)

    p = {}
    p["c0_w"] = conv_w((ngf, nc, 7, 7))
    p["bn0_g"], p["bn0_b"] = bn(ngf)
    p["d1_w"] = conv_w((2 * ngf, ngf, 3, 3))
    p["bnd1_g"], p["bnd1_b"] = bn(2 * ngf)
    p["d2_w"] = conv_w((4 * ngf, 2 * ngf, 3, 3))
    p["bnd2_g"], p["bnd2_b"] = bn(4 * ngf)
    blocks = []
    for _ in range(N_BLOCKS):
        g1, b1 = bn(4 * ngf)
        g2, b2 = bn(4 * ngf)
        blocks.append(dict(
            w1=conv_w((4 * ngf, 4 * ngf, 3, 3)), g1=g1, b1=b1,
            w2=conv_w((4 * ngf, 4 * ngf, 3, 3)), g2=g2, b2=b2))
    p["blocks"] = blocks
    p["u1_w"] = conv_w((4 * ngf, 2 * ngf, 3, 3))  # ConvTranspose (Cin,Cout,kh,kw)
    p["bnu1_g"], p["bnu1_b"] = bn(2 * ngf)
    p["u2_w"] = conv_w((2 * ngf, ngf, 3, 3))
    p["bnu2_g"], p["bnu2_b"] = bn(ngf)
    p["cf_w"] = conv_w((nc, ngf, 7, 7))
    p["cf_b"] = jnp.zeros((nc,), jnp.float32)  # bias=True on final conv
    return p


def _prep_conv_w(w):
    cout, cin, kh, kw = w.shape
    wmat = jnp.transpose(w, (2, 3, 1, 0)).reshape(kh * kw * cin, cout)
    npad = _round_up(cout, 128)
    wmat = jnp.pad(wmat, ((0, 0), (0, npad - cout))).astype(jnp.bfloat16)
    return {"w": wmat, "kh": kh, "kw": kw, "cout": cout}


def _prep_convT_w(w):
    # PyTorch ConvTranspose2d weight layout (Cin, Cout, 3, 3).
    cin, cout = int(w.shape[0]), int(w.shape[1])
    wb = jnp.zeros((4 * cin, 4 * cout), jnp.float32)
    # taps: 0=(u,v) 1=(u,v+1) 2=(u+1,v) 3=(u+1,v+1); sub-pixel index = 2*r + s.
    for tap, sub, ki, kj in [
            (0, 0, 1, 1),
            (0, 1, 1, 2), (1, 1, 1, 0),
            (0, 2, 2, 1), (2, 2, 0, 1),
            (0, 3, 2, 2), (1, 3, 2, 0), (2, 3, 0, 2), (3, 3, 0, 0)]:
        wb = wb.at[tap * cin:(tap + 1) * cin,
                   sub * cout:(sub + 1) * cout].set(w[:, :, ki, kj])
    npad = _round_up(4 * cout, 128)
    wb = jnp.pad(wb, ((0, 0), (0, npad - 4 * cout))).astype(jnp.bfloat16)
    return {"w": wb, "cout": cout}


def prepare_generator_params(p):
    """Hoist all weight transposes / flips / padding / bf16 casts out of the
    per-image forward (done once per generator)."""
    pp = {
        "c0": _prep_conv_w(p["c0_w"]),
        "bn0_g": p["bn0_g"], "bn0_b": p["bn0_b"],
        "d1": _prep_conv_w(p["d1_w"]),
        "bnd1_g": p["bnd1_g"], "bnd1_b": p["bnd1_b"],
        "d2": _prep_conv_w(p["d2_w"]),
        "bnd2_g": p["bnd2_g"], "bnd2_b": p["bnd2_b"],
        "u1": _prep_convT_w(p["u1_w"]),
        "bnu1_g": p["bnu1_g"], "bnu1_b": p["bnu1_b"],
        "u2": _prep_convT_w(p["u2_w"]),
        "bnu2_g": p["bnu2_g"], "bnu2_b": p["bnu2_b"],
        "cf": _prep_conv_w(p["cf_w"]),
    }
    npad = int(pp["cf"]["w"].shape[1])
    nc = int(p["cf_b"].shape[0])
    pp["cf_b"] = jnp.pad(p["cf_b"], (0, npad - nc)).reshape(1, npad)
    pp["blocks"] = [
        dict(c1=_prep_conv_w(b["w1"]), g1=b["g1"], b1=b["b1"],
             c2=_prep_conv_w(b["w2"]), g2=b["g2"], b2=b["b2"])
        for b in p["blocks"]]
    return pp


def generator_forward(pp, x_nchw):
    x = jnp.transpose(x_nchw, (0, 2, 3, 1)).astype(jnp.float32)  # -> NHWC

    # ReflectionPad(3) + Conv7x7 + BN + ReLU
    y = conv2d(x, pp["c0"], stride=1, pad_reflect=3)
    y = batchnorm_pallas(y, pp["bn0_g"], pp["bn0_b"], act="relu")
    # 2 downsampling convs (stride 2, k=3, pad 1) + BN + ReLU
    y = conv2d(y, pp["d1"], stride=2, pad_zero=1)
    y = batchnorm_pallas(y, pp["bnd1_g"], pp["bnd1_b"], act="relu")
    y = conv2d(y, pp["d2"], stride=2, pad_zero=1)
    y = batchnorm_pallas(y, pp["bnd2_g"], pp["bnd2_b"], act="relu")
    # 9 ResNet blocks: y + BN(conv(ReLU(BN(conv(pad(y))))))
    for blk in pp["blocks"]:
        h = conv2d(y, blk["c1"], stride=1, pad_reflect=1)
        h = batchnorm_pallas(h, blk["g1"], blk["b1"], act="relu")
        h = conv2d(h, blk["c2"], stride=1, pad_reflect=1)
        y = batchnorm_pallas(h, blk["g2"], blk["b2"], act="none", residual=y)
    # 2 upsampling transposed convs + BN + ReLU
    y = conv_transpose2d(y, pp["u1"])
    y = batchnorm_pallas(y, pp["bnu1_g"], pp["bnu1_b"], act="relu")
    y = conv_transpose2d(y, pp["u2"])
    y = batchnorm_pallas(y, pp["bnu2_g"], pp["bnu2_b"], act="relu")
    # ReflectionPad(3) + Conv7x7 + bias + Tanh (fused in the matmul epilogue)
    y = conv2d(y, pp["cf"], stride=1, pad_reflect=3, bias=pp["cf_b"], tanh=True)

    return jnp.transpose(y, (0, 3, 1, 2))  # -> NCHW


def make_generator(params):
    pp = prepare_generator_params(params)

    @jax.jit
    def fwd(x_nchw):
        return generator_forward(pp, x_nchw)

    return fwd


# ---------------------------------------------------------------------------
# CycleGAN forward
# ---------------------------------------------------------------------------
def cyclegan_forward(netG_A, netG_B, real_A, real_B):
    fake_B = netG_A(real_A)
    recy_A = netG_B(fake_B)
    fake_A = netG_B(real_B)
    recy_B = netG_A(fake_A)
    return fake_B, recy_A, fake_A, recy_B


if __name__ == "__main__":
    key = jax.random.PRNGKey(0)
    k_pa, k_pb, k_a, k_b = jax.random.split(key, 4)

    # small shapes: batch=2, input_nc=output_nc=3, ngf=8, spatial=16x16
    nc, ngf, batch, spatial = 3, 8, 2, 16
    params_A = init_generator_params(k_pa, nc, ngf)
    params_B = init_generator_params(k_pb, nc, ngf)
    real_A = jax.random.normal(k_a, (batch, nc, spatial, spatial), jnp.float32)
    real_B = jax.random.normal(k_b, (batch, nc, spatial, spatial), jnp.float32)

    netG_A = make_generator(params_A)
    netG_B = make_generator(params_B)

    fake_B, recy_A, fake_A, recy_B = cyclegan_forward(
        netG_A, netG_B, real_A, real_B)
    jax.block_until_ready((fake_B, recy_A, fake_A, recy_B))

    assert fake_B.shape == real_A.shape and recy_A.shape == real_A.shape
    assert fake_A.shape == real_B.shape and recy_B.shape == real_B.shape
    assert bool(jnp.all(jnp.isfinite(fake_B)))
    print("KERNEL_OK")
</pallas_src>

<mosaic_0001>
module attributes {stable_mosaic.version = 11 : i64} {
  func.func @_matmul_kernel(%arg0: i32, %arg1: i32, %arg2: i32, %arg3: memref<512x147xbf16, #tpu.memory_space<vmem>>, %arg4: memref<147x128xbf16, #tpu.memory_space<vmem>>, %arg5: memref<512x8xf32, #tpu.memory_space<vmem>>, %arg6: memref<512x128xf32, #tpu.memory_space<vmem>>) attributes {dimension_semantics = [#tpu.dimension_semantics<parallel>, #tpu.dimension_semantics<parallel>, #tpu.dimension_semantics<arbitrary>], iteration_bounds = array<i64: 1, 1, 1>, scalar_prefetch = 0 : i64, scratch_operands = 1 : i64, tpu.core_type = #tpu.core_type<tc>, window_params = [{transform_indices = @transform_0, window_bounds = array<i64: 512, 147>}, {transform_indices = @transform_1, window_bounds = array<i64: 147, 128>}, {transform_indices = @transform_2, window_bounds = array<i64: 512, 8>}]} {
    %c0_i32 = arith.constant 0 : i32
    %0 = arith.cmpi eq, %arg2, %c0_i32 : i32
    %1 = arith.extui %0 : i1 to i32
    %c0_i32_0 = arith.constant 0 : i32
    %2 = arith.cmpi ne, %1, %c0_i32_0 : i32
    scf.if %2 {
      %cst_10 = arith.constant 0.000000e+00 : f32
      %12 = vector.broadcast %cst_10 : f32 to vector<512x128xf32>
      %c0_11 = arith.constant 0 : index
      %c0_12 = arith.constant 0 : index
      %13 = vector.load %arg6[%c0_11, %c0_12] : memref<512x128xf32, #tpu.memory_space<vmem>>, vector<512x128xf32>
      tpu.vector_store %arg6[%c0_11, %c0_12], %12 {strides = array<i32>} : memref<512x128xf32, #tpu.memory_space<vmem>>, vector<512x128xf32>,
    } else {
    }
    %c0 = arith.constant 0 : index
    %c0_1 = arith.constant 0 : index
    %3 = vector.load %arg3[%c0, %c0_1] : memref<512x147xbf16, #tpu.memory_space<vmem>>, vector<512x147xbf16>
    %c0_2 = arith.constant 0 : index
    %c0_3 = arith.constant 0 : index
    %4 = vector.load %arg4[%c0_2, %c0_3] : memref<147x128xbf16, #tpu.memory_space<vmem>>, vector<147x128xbf16>
    %c0_4 = arith.constant 0 : index
    %c0_5 = arith.constant 0 : index
    %5 = vector.load %arg6[%c0_4, %c0_5] : memref<512x128xf32, #tpu.memory_space<vmem>>, vector<512x128xf32>
    %cst = arith.constant dense<0.000000e+00> : vector<512x128xf32>
    %6 = tpu.matmul %3, %4, %cst {dimension_numbers = #tpu.dot_dimension_numbers<[1], [0], [0], [1], [0, 0, 1, 1], [], []>} : vector<512x147xbf16>, vector<147x128xbf16>, vector<512x128xf32> -> vector<512x128xf32>
    %7 = arith.addf %5, %6 : vector<512x128xf32>
    %c0_6 = arith.constant 0 : index
    %c0_7 = arith.constant 0 : index
    %8 = vector.load %arg6[%c0_6, %c0_7] : memref<512x128xf32, #tpu.memory_space<vmem>>, vector<512x128xf32>
    tpu.vector_store %arg6[%c0_6, %c0_7], %7 {strides = array<i32>} : memref<512x128xf32, #tpu.memory_space<vmem>>, vector<512x128xf32>,
    %c0_i32_8 = arith.constant 0 : i32
    %9 = arith.cmpi eq, %arg2, %c0_i32_8 : i32
    %10 = arith.extui %9 : i1 to i32
    %c0_i32_9 = arith.constant 0 : i32
    %11 = arith.cmpi ne, %10, %c0_i32_9 : i32
    scf.if %11 {
      %c0_10 = arith.constant 0 : index
      %c0_11 = arith.constant 0 : index
      %12 = vector.load %arg6[%c0_10, %c0_11] : memref<512x128xf32, #tpu.memory_space<vmem>>, vector<512x128xf32>
      %13 = vector.extract_strided_slice %12 {offsets = [0, 0], sizes = [512, 8], strides = [1, 1]} : vector<512x128xf32> to vector<512x8xf32>
      %c0_12 = arith.constant 0 : index
      %c0_13 = arith.constant 0 : index
      %14 = vector.load %arg5[%c0_12, %c0_13] : memref<512x8xf32, #tpu.memory_space<vmem>>, vector<512x8xf32>
      tpu.vector_store %arg5[%c0_12, %c0_13], %13 {strides = array<i32>} : memref<512x8xf32, #tpu.memory_space<vmem>>, vector<512x8xf32>,
    } else {
    }
    return
  }
  func.func @transform_0(%arg0: i32, %arg1: i32, %arg2: i32) -> (i32, i32) {
    %c0_i32 = arith.constant 0 : i32
    return %arg0, %arg2 : i32, i32
  }
  func.func @transform_1(%arg0: i32, %arg1: i32, %arg2: i32) -> (i32, i32) {
    %c0_i32 = arith.constant 0 : i32
    return %arg2, %arg1 : i32, i32
  }
  func.func @transform_2(%arg0: i32, %arg1: i32, %arg2: i32) -> (i32, i32) {
    %c0_i32 = arith.constant 0 : i32
    return %arg0, %arg1 : i32, i32
  }
}

module attributes {stable_mosaic.version = 11 : i64} {
  func.func @_bn_stats_kernel(%arg0: i32, %arg1: memref<512x8xf32, #tpu.memory_space<vmem>>, %arg2: memref<1x8xf32, #tpu.memory_space<vmem>>, %arg3: memref<1x8xf32, #tpu.memory_space<vmem>>) attributes {dimension_semantics = [#tpu.dimension_semantics<arbitrary>], iteration_bounds = array<i64: 1>, scalar_prefetch = 0 : i64, scratch_operands = 0 : i64, tpu.core_type = #tpu.core_type<tc>, window_params = [{transform_indices = @transform_0, window_bounds = array<i64: 512, 8>}, {pipeline_mode = #tpu.pipeline_mode<synchronous>, transform_indices = @transform_1, window_bounds = array<i64: 1, 8>}, {pipeline_mode = #tpu.pipeline_mode<synchronous>, transform_indices = @transform_2, window_bounds = array<i64: 1, 8>}]} {
    %c0_i32 = arith.constant 0 : i32
    %0 = arith.cmpi eq, %arg0, %c0_i32 : i32
    %1 = arith.extui %0 : i1 to i32
    %c0_i32_0 = arith.constant 0 : i32
    %2 = arith.cmpi ne, %1, %c0_i32_0 : i32
    scf.if %2 {
      %cst_11 = arith.constant 0.000000e+00 : f32
      %15 = vector.broadcast %cst_11 : f32 to vector<1x8xf32>
      %c0_12 = arith.constant 0 : index
      %c0_13 = arith.constant 0 : index
      %16 = vector.load %arg2[%c0_12, %c0_13] : memref<1x8xf32, #tpu.memory_space<vmem>>, vector<1x8xf32>
      tpu.vector_store %arg2[%c0_12, %c0_13], %15 {strides = array<i32>} : memref<1x8xf32, #tpu.memory_space<vmem>>, vector<1x8xf32>,
      %cst_14 = arith.constant 0.000000e+00 : f32
      %17 = vector.broadcast %cst_14 : f32 to vector<1x8xf32>
      %c0_15 = arith.constant 0 : index
      %c0_16 = arith.constant 0 : index
      %18 = vector.load %arg3[%c0_15, %c0_16] : memref<1x8xf32, #tpu.memory_space<vmem>>, vector<1x8xf32>
      tpu.vector_store %arg3[%c0_15, %c0_16], %17 {strides = array<i32>} : memref<1x8xf32, #tpu.memory_space<vmem>>, vector<1x8xf32>,
    } else {
    }
    %c0 = arith.constant 0 : index
    %c0_1 = arith.constant 0 : index
    %3 = vector.load %arg1[%c0, %c0_1] : memref<512x8xf32, #tpu.memory_space<vmem>>, vector<512x8xf32>
    %c0_2 = arith.constant 0 : index
    %c0_3 = arith.constant 0 : index
    %4 = vector.load %arg2[%c0_2, %c0_3] : memref<1x8xf32, #tpu.memory_space<vmem>>, vector<1x8xf32>
    %cst = arith.constant dense<0.000000e+00> : vector<8xf32>
    %5 = vector.multi_reduction <add>, %3, %cst [0] : vector<512x8xf32> to vector<8xf32>
    %6 = vector.shape_cast %5 : vector<8xf32> to vector<1x8xf32>
    %7 = arith.addf %4, %6 : vector<1x8xf32>
    %c0_4 = arith.constant 0 : index
    %c0_5 = arith.constant 0 : index
    %8 = vector.load %arg2[%c0_4, %c0_5] : memref<1x8xf32, #tpu.memory_space<vmem>>, vector<1x8xf32>
    tpu.vector_store %arg2[%c0_4, %c0_5], %7 {strides = array<i32>} : memref<1x8xf32, #tpu.memory_space<vmem>>, vector<1x8xf32>,
    %c0_6 = arith.constant 0 : index
    %c0_7 = arith.constant 0 : index
    %9 = vector.load %arg3[%c0_6, %c0_7] : memref<1x8xf32, #tpu.memory_space<vmem>>, vector<1x8xf32>
    %10 = arith.mulf %3, %3 : vector<512x8xf32>
    %cst_8 = arith.constant dense<0.000000e+00> : vector<8xf32>
    %11 = vector.multi_reduction <add>, %10, %cst_8 [0] : vector<512x8xf32> to vector<8xf32>
    %12 = vector.shape_cast %11 : vector<8xf32> to vector<1x8xf32>
    %13 = arith.addf %9, %12 : vector<1x8xf32>
    %c0_9 = arith.constant 0 : index
    %c0_10 = arith.constant 0 : index
    %14 = vector.load %arg3[%c0_9, %c0_10] : memref<1x8xf32, #tpu.memory_space<vmem>>, vector<1x8xf32>
    tpu.vector_store %arg3[%c0_9, %c0_10], %13 {strides = array<i32>} : memref<1x8xf32, #tpu.memory_space<vmem>>, vector<1x8xf32>,
    return
  }
  func.func @transform_0(%arg0: i32) -> (i32, i32) {
    %c0_i32 = arith.constant 0 : i32
    %c0_i32_0 = arith.constant 0 : i32
    return %arg0, %c0_i32 : i32, i32
  }
  func.func @transform_1(%arg0: i32) -> (i32, i32) {
    %c0_i32 = arith.constant 0 : i32
    %c0_i32_0 = arith.constant 0 : i32
    %c0_i32_1 = arith.constant 0 : i32
    return %c0_i32, %c0_i32_0 : i32, i32
  }
  func.func @transform_2(%arg0: i32) -> (i32, i32) {
    %c0_i32 = arith.constant 0 : i32
    %c0_i32_0 = arith.constant 0 : i32
    %c0_i32_1 = arith.constant 0 : i32
    return %c0_i32, %c0_i32_0 : i32, i32
  }
}

module attributes {stable_mosaic.version = 11 : i64} {
  func.func @_bn_apply_kernel(%arg0: i32, %arg1: memref<512x8xf32, #tpu.memory_space<vmem>>, %arg2: memref<1x8xf32, #tpu.memory_space<vmem>>, %arg3: memref<1x8xf32, #tpu.memory_space<vmem>>, %arg4: memref<512x8xf32, #tpu.memory_space<vmem>>) attributes {dimension_semantics = [#tpu.dimension_semantics<parallel>], iteration_bounds = array<i64: 1>, scalar_prefetch = 0 : i64, scratch_operands = 0 : i64, tpu.core_type = #tpu.core_type<tc>, window_params = [{transform_indices = @transform_0, window_bounds = array<i64: 512, 8>}, {pipeline_mode = #tpu.pipeline_mode<synchronous>, transform_indices = @transform_1, window_bounds = array<i64: 1, 8>}, {pipeline_mode = #tpu.pipeline_mode<synchronous>, transform_indices = @transform_2, window_bounds = array<i64: 1, 8>}, {transform_indices = @transform_3, window_bounds = array<i64: 512, 8>}]} {
    %c0 = arith.constant 0 : index
    %c0_0 = arith.constant 0 : index
    %0 = vector.load %arg1[%c0, %c0_0] : memref<512x8xf32, #tpu.memory_space<vmem>>, vector<512x8xf32>
    %c0_1 = arith.constant 0 : index
    %c0_2 = arith.constant 0 : index
    %1 = vector.load %arg2[%c0_1, %c0_2] : memref<1x8xf32, #tpu.memory_space<vmem>>, vector<1x8xf32>
    %2 = vector.broadcast %1 : vector<1x8xf32> to vector<512x8xf32>
    %3 = arith.mulf %0, %2 : vector<512x8xf32>
    %c0_3 = arith.constant 0 : index
    %c0_4 = arith.constant 0 : index
    %4 = vector.load %arg3[%c0_3, %c0_4] : memref<1x8xf32, #tpu.memory_space<vmem>>, vector<1x8xf32>
    %5 = vector.broadcast %4 : vector<1x8xf32> to vector<512x8xf32>
    %6 = arith.addf %3, %5 : vector<512x8xf32>
    %cst = arith.constant 0.000000e+00 : f32
    %7 = vector.broadcast %cst : f32 to vector<512x8xf32>
    %8 = arith.maximumf %6, %7 : vector<512x8xf32>
    %c0_5 = arith.constant 0 : index
    %c0_6 = arith.constant 0 : index
    %9 = vector.load %arg4[%c0_5, %c0_6] : memref<512x8xf32, #tpu.memory_space<vmem>>, vector<512x8xf32>
    tpu.vector_store %arg4[%c0_5, %c0_6], %8 {strides = array<i32>} : memref<512x8xf32, #tpu.memory_space<vmem>>, vector<512x8xf32>,
    return
  }
  func.func @transform_0(%arg0: i32) -> (i32, i32) {
    %c0_i32 = arith.constant 0 : i32
    %c0_i32_0 = arith.constant 0 : i32
    return %arg0, %c0_i32 : i32, i32
  }
  func.func @transform_1(%arg0: i32) -> (i32, i32) {
    %c0_i32 = arith.constant 0 : i32
    %c0_i32_0 = arith.constant 0 : i32
    %c0_i32_1 = arith.constant 0 : i32
    return %c0_i32, %c0_i32_0 : i32, i32
  }
  func.func @transform_2(%arg0: i32) -> (i32, i32) {
    %c0_i32 = arith.constant 0 : i32
    %c0_i32_0 = arith.constant 0 : i32
    %c0_i32_1 = arith.constant 0 : i32
    return %c0_i32, %c0_i32_0 : i32, i32
  }
  func.func @transform_3(%arg0: i32) -> (i32, i32) {
    %c0_i32 = arith.constant 0 : i32
    %c0_i32_0 = arith.constant 0 : i32
    return %arg0, %c0_i32 : i32, i32
  }
}

module attributes {stable_mosaic.version = 11 : i64} {
  func.func @_matmul_kernel(%arg0: i32, %arg1: i32, %arg2: i32, %arg3: memref<128x72xbf16, #tpu.memory_space<vmem>>, %arg4: memref<72x128xbf16, #tpu.memory_space<vmem>>, %arg5: memref<128x16xf32, #tpu.memory_space<vmem>>, %arg6: memref<128x128xf32, #tpu.memory_space<vmem>>) attributes {dimension_semantics = [#tpu.dimension_semantics<parallel>, #tpu.dimension_semantics<parallel>, #tpu.dimension_semantics<arbitrary>], iteration_bounds = array<i64: 1, 1, 1>, scalar_prefetch = 0 : i64, scratch_operands = 1 : i64, tpu.core_type = #tpu.core_type<tc>, window_params = [{transform_indices = @transform_0, window_bounds = array<i64: 128, 72>}, {transform_indices = @transform_1, window_bounds = array<i64: 72, 128>}, {transform_indices = @transform_2, window_bounds = array<i64: 128, 16>}]} {
    %c0_i32 = arith.constant 0 : i32
    %0 = arith.cmpi eq, %arg2, %c0_i32 : i32
    %1 = arith.extui %0 : i1 to i32
    %c0_i32_0 = arith.constant 0 : i32
    %2 = arith.cmpi ne, %1, %c0_i32_0 : i32
    scf.if %2 {
      %cst_10 = arith.constant 0.000000e+00 : f32
      %12 = vector.broadcast %cst_10 : f32 to vector<128x128xf32>
      %c0_11 = arith.constant 0 : index
      %c0_12 = arith.constant 0 : index
      %13 = vector.load %arg6[%c0_11, %c0_12] : memref<128x128xf32, #tpu.memory_space<vmem>>, vector<128x128xf32>
      tpu.vector_store %arg6[%c0_11, %c0_12], %12 {strides = array<i32>} : memref<128x128xf32, #tpu.memory_space<vmem>>, vector<128x128xf32>,
    } else {
    }
    %c0 = arith.constant 0 : index
    %c0_1 = arith.constant 0 : index
    %3 = vector.load %arg3[%c0, %c0_1] : memref<128x72xbf16, #tpu.memory_space<vmem>>, vector<128x72xbf16>
    %c0_2 = arith.constant 0 : index
    %c0_3 = arith.constant 0 : index
    %4 = vector.load %arg4[%c0_2, %c0_3] : memref<72x128xbf16, #tpu.memory_space<vmem>>, vector<72x128xbf16>
    %c0_4 = arith.constant 0 : index
    %c0_5 = arith.constant 0 : index
    %5 = vector.load %arg6[%c0_4, %c0_5] : memref<128x128xf32, #tpu.memory_space<vmem>>, vector<128x128xf32>
    %cst = arith.constant dense<0.000000e+00> : vector<128x128xf32>
    %6 = tpu.matmul %3, %4, %cst {dimension_numbers = #tpu.dot_dimension_numbers<[1], [0], [0], [1], [0, 0, 1, 1], [], []>} : vector<128x72xbf16>, vector<72x128xbf16>, vector<128x128xf32> -> vector<128x128xf32>
    %7 = arith.addf %5, %6 : vector<128x128xf32>
    %c0_6 = arith.constant 0 : index
    %c0_7 = arith.constant 0 : index
    %8 = vector.load %arg6[%c0_6, %c0_7] : memref<128x128xf32, #tpu.memory_space<vmem>>, vector<128x128xf32>
    tpu.vector_store %arg6[%c0_6, %c0_7], %7 {strides = array<i32>} : memref<128x128xf32, #tpu.memory_space<vmem>>, vector<128x128xf32>,
    %c0_i32_8 = arith.constant 0 : i32
    %9 = arith.cmpi eq, %arg2, %c0_i32_8 : i32
    %10 = arith.extui %9 : i1 to i32
    %c0_i32_9 = arith.constant 0 : i32
    %11 = arith.cmpi ne, %10, %c0_i32_9 : i32
    scf.if %11 {
      %c0_10 = arith.constant 0 : index
      %c0_11 = arith.constant 0 : index
      %12 = vector.load %arg6[%c0_10, %c0_11] : memref<128x128xf32, #tpu.memory_space<vmem>>, vector<128x128xf32>
      %13 = vector.extract_strided_slice %12 {offsets = [0, 0], sizes = [128, 16], strides = [1, 1]} : vector<128x128xf32> to vector<128x16xf32>
      %c0_12 = arith.constant 0 : index
      %c0_13 = arith.constant 0 : index
      %14 = vector.load %arg5[%c0_12, %c0_13] : memref<128x16xf32, #tpu.memory_space<vmem>>, vector<128x16xf32>
      tpu.vector_store %arg5[%c0_12, %c0_13], %13 {strides = array<i32>} : memref<128x16xf32, #tpu.memory_space<vmem>>, vector<128x16xf32>,
    } else {
    }
    return
  }
  func.func @transform_0(%arg0: i32, %arg1: i32, %arg2: i32) -> (i32, i32) {
    %c0_i32 = arith.constant 0 : i32
    return %arg0, %arg2 : i32, i32
  }
  func.func @transform_1(%arg0: i32, %arg1: i32, %arg2: i32) -> (i32, i32) {
    %c0_i32 = arith.constant 0 : i32
    return %arg2, %arg1 : i32, i32
  }
  func.func @transform_2(%arg0: i32, %arg1: i32, %arg2: i32) -> (i32, i32) {
    %c0_i32 = arith.constant 0 : i32
    return %arg0, %arg1 : i32, i32
  }
}

module attributes {stable_mosaic.version = 11 : i64} {
  func.func @_bn_stats_kernel(%arg0: i32, %arg1: memref<128x16xf32, #tpu.memory_space<vmem>>, %arg2: memref<1x16xf32, #tpu.memory_space<vmem>>, %arg3: memref<1x16xf32, #tpu.memory_space<vmem>>) attributes {dimension_semantics = [#tpu.dimension_semantics<arbitrary>], iteration_bounds = array<i64: 1>, scalar_prefetch = 0 : i64, scratch_operands = 0 : i64, tpu.core_type = #tpu.core_type<tc>, window_params = [{transform_indices = @transform_0, window_bounds = array<i64: 128, 16>}, {pipeline_mode = #tpu.pipeline_mode<synchronous>, transform_indices = @transform_1, window_bounds = array<i64: 1, 16>}, {pipeline_mode = #tpu.pipeline_mode<synchronous>, transform_indices = @transform_2, window_bounds = array<i64: 1, 16>}]} {
    %c0_i32 = arith.constant 0 : i32
    %0 = arith.cmpi eq, %arg0, %c0_i32 : i32
    %1 = arith.extui %0 : i1 to i32
    %c0_i32_0 = arith.constant 0 : i32
    %2 = arith.cmpi ne, %1, %c0_i32_0 : i32
    scf.if %2 {
      %cst_11 = arith.constant 0.000000e+00 : f32
      %15 = vector.broadcast %cst_11 : f32 to vector<1x16xf32>
      %c0_12 = arith.constant 0 : index
      %c0_13 = arith.constant 0 : index
      %16 = vector.load %arg2[%c0_12, %c0_13] : memref<1x16xf32, #tpu.memory_space<vmem>>, vector<1x16xf32>
      tpu.vector_store %arg2[%c0_12, %c0_13], %15 {strides = array<i32>} : memref<1x16xf32, #tpu.memory_space<vmem>>, vector<1x16xf32>,
      %cst_14 = arith.constant 0.000000e+00 : f32
      %17 = vector.broadcast %cst_14 : f32 to vector<1x16xf32>
      %c0_15 = arith.constant 0 : index
      %c0_16 = arith.constant 0 : index
      %18 = vector.load %arg3[%c0_15, %c0_16] : memref<1x16xf32, #tpu.memory_space<vmem>>, vector<1x16xf32>
      tpu.vector_store %arg3[%c0_15, %c0_16], %17 {strides = array<i32>} : memref<1x16xf32, #tpu.memory_space<vmem>>, vector<1x16xf32>,
    } else {
    }
    %c0 = arith.constant 0 : index
    %c0_1 = arith.constant 0 : index
    %3 = vector.load %arg1[%c0, %c0_1] : memref<128x16xf32, #tpu.memory_space<vmem>>, vector<128x16xf32>
    %c0_2 = arith.constant 0 : index
    %c0_3 = arith.constant 0 : index
    %4 = vector.load %arg2[%c0_2, %c0_3] : memref<1x16xf32, #tpu.memory_space<vmem>>, vector<1x16xf32>
    %cst = arith.constant dense<0.000000e+00> : vector<16xf32>
    %5 = vector.multi_reduction <add>, %3, %cst [0] : vector<128x16xf32> to vector<16xf32>
    %6 = vector.shape_cast %5 : vector<16xf32> to vector<1x16xf32>
    %7 = arith.addf %4, %6 : vector<1x16xf32>
    %c0_4 = arith.constant 0 : index
    %c0_5 = arith.constant 0 : index
    %8 = vector.load %arg2[%c0_4, %c0_5] : memref<1x16xf32, #tpu.memory_space<vmem>>, vector<1x16xf32>
    tpu.vector_store %arg2[%c0_4, %c0_5], %7 {strides = array<i32>} : memref<1x16xf32, #tpu.memory_space<vmem>>, vector<1x16xf32>,
    %c0_6 = arith.constant 0 : index
    %c0_7 = arith.constant 0 : index
    %9 = vector.load %arg3[%c0_6, %c0_7] : memref<1x16xf32, #tpu.memory_space<vmem>>, vector<1x16xf32>
    %10 = arith.mulf %3, %3 : vector<128x16xf32>
    %cst_8 = arith.constant dense<0.000000e+00> : vector<16xf32>
    %11 = vector.multi_reduction <add>, %10, %cst_8 [0] : vector<128x16xf32> to vector<16xf32>
    %12 = vector.shape_cast %11 : vector<16xf32> to vector<1x16xf32>
    %13 = arith.addf %9, %12 : vector<1x16xf32>
    %c0_9 = arith.constant 0 : index
    %c0_10 = arith.constant 0 : index
    %14 = vector.load %arg3[%c0_9, %c0_10] : memref<1x16xf32, #tpu.memory_space<vmem>>, vector<1x16xf32>
    tpu.vector_store %arg3[%c0_9, %c0_10], %13 {strides = array<i32>} : memref<1x16xf32, #tpu.memory_space<vmem>>, vector<1x16xf32>,
    return
  }
  func.func @transform_0(%arg0: i32) -> (i32, i32) {
    %c0_i32 = arith.constant 0 : i32
    %c0_i32_0 = arith.constant 0 : i32
    return %arg0, %c0_i32 : i32, i32
  }
  func.func @transform_1(%arg0: i32) -> (i32, i32) {
    %c0_i32 = arith.constant 0 : i32
    %c0_i32_0 = arith.constant 0 : i32
    %c0_i32_1 = arith.constant 0 : i32
    return %c0_i32, %c0_i32_0 : i32, i32
  }
  func.func @transform_2(%arg0: i32) -> (i32, i32) {
    %c0_i32 = arith.constant 0 : i32
    %c0_i32_0 = arith.constant 0 : i32
    %c0_i32_1 = arith.constant 0 : i32
    return %c0_i32, %c0_i32_0 : i32, i32
  }
}

module attributes {stable_mosaic.version = 11 : i64} {
  func.func @_bn_apply_kernel(%arg0: i32, %arg1: memref<128x16xf32, #tpu.memory_space<vmem>>, %arg2: memref<1x16xf32, #tpu.memory_space<vmem>>, %arg3: memref<1x16xf32, #tpu.memory_space<vmem>>, %arg4: memref<128x16xf32, #tpu.memory_space<vmem>>) attributes {dimension_semantics = [#tpu.dimension_semantics<parallel>], iteration_bounds = array<i64: 1>, scalar_prefetch = 0 : i64, scratch_operands = 0 : i64, tpu.core_type = #tpu.core_type<tc>, window_params = [{transform_indices = @transform_0, window_bounds = array<i64: 128, 16>}, {pipeline_mode = #tpu.pipeline_mode<synchronous>, transform_indices = @transform_1, window_bounds = array<i64: 1, 16>}, {pipeline_mode = #tpu.pipeline_mode<synchronous>, transform_indices = @transform_2, window_bounds = array<i64: 1, 16>}, {transform_indices = @transform_3, window_bounds = array<i64: 128, 16>}]} {
    %c0 = arith.constant 0 : index
    %c0_0 = arith.constant 0 : index
    %0 = vector.load %arg1[%c0, %c0_0] : memref<128x16xf32, #tpu.memory_space<vmem>>, vector<128x16xf32>
    %c0_1 = arith.constant 0 : index
    %c0_2 = arith.constant 0 : index
    %1 = vector.load %arg2[%c0_1, %c0_2] : memref<1x16xf32, #tpu.memory_space<vmem>>, vector<1x16xf32>
    %2 = vector.broadcast %1 : vector<1x16xf32> to vector<128x16xf32>
    %3 = arith.mulf %0, %2 : vector<128x16xf32>
    %c0_3 = arith.constant 0 : index
    %c0_4 = arith.constant 0 : index
    %4 = vector.load %arg3[%c0_3, %c0_4] : memref<1x16xf32, #tpu.memory_space<vmem>>, vector<1x16xf32>
    %5 = vector.broadcast %4 : vector<1x16xf32> to vector<128x16xf32>
    %6 = arith.addf %3, %5 : vector<128x16xf32>
    %cst = arith.constant 0.000000e+00 : f32
    %7 = vector.broadcast %cst : f32 to vector<128x16xf32>
    %8 = arith.maximumf %6, %7 : vector<128x16xf32>
    %c0_5 = arith.constant 0 : index
    %c0_6 = arith.constant 0 : index
    %9 = vector.load %arg4[%c0_5, %c0_6] : memref<128x16xf32, #tpu.memory_space<vmem>>, vector<128x16xf32>
    tpu.vector_store %arg4[%c0_5, %c0_6], %8 {strides = array<i32>} : memref<128x16xf32, #tpu.memory_space<vmem>>, vector<128x16xf32>,
    return
  }
  func.func @transform_0(%arg0: i32) -> (i32, i32) {
    %c0_i32 = arith.constant 0 : i32
    %c0_i32_0 = arith.constant 0 : i32
    return %arg0, %c0_i32 : i32, i32
  }
  func.func @transform_1(%arg0: i32) -> (i32, i32) {
    %c0_i32 = arith.constant 0 : i32
    %c0_i32_0 = arith.constant 0 : i32
    %c0_i32_1 = arith.constant 0 : i32
    return %c0_i32, %c0_i32_0 : i32, i32
  }
  func.func @transform_2(%arg0: i32) -> (i32, i32) {
    %c0_i32 = arith.constant 0 : i32
    %c0_i32_0 = arith.constant 0 : i32
    %c0_i32_1 = arith.constant 0 : i32
    return %c0_i32, %c0_i32_0 : i32, i32
  }
  func.func @transform_3(%arg0: i32) -> (i32, i32) {
    %c0_i32 = arith.constant 0 : i32
    %c0_i32_0 = arith.constant 0 : i32
    return %arg0, %c0_i32 : i32, i32
  }
}

module attributes {stable_mosaic.version = 11 : i64} {
  func.func @_matmul_kernel(%arg0: i32, %arg1: i32, %arg2: i32, %arg3: memref<32x144xbf16, #tpu.memory_space<vmem>>, %arg4: memref<144x128xbf16, #tpu.memory_space<vmem>>, %arg5: memref<32x32xf32, #tpu.memory_space<vmem>>, %arg6: memref<32x128xf32, #tpu.memory_space<vmem>>) attributes {dimension_semantics = [#tpu.dimension_semantics<parallel>, #tpu.dimension_semantics<parallel>, #tpu.dimension_semantics<arbitrary>], iteration_bounds = array<i64: 1, 1, 1>, scalar_prefetch = 0 : i64, scratch_operands = 1 : i64, tpu.core_type = #tpu.core_type<tc>, window_params = [{transform_indices = @transform_0, window_bounds = array<i64: 32, 144>}, {transform_indices = @transform_1, window_bounds = array<i64: 144, 128>}, {transform_indices = @transform_2, window_bounds = array<i64: 32, 32>}]} {
    %c0_i32 = arith.constant 0 : i32
    %0 = arith.cmpi eq, %arg2, %c0_i32 : i32
    %1 = arith.extui %0 : i1 to i32
    %c0_i32_0 = arith.constant 0 : i32
    %2 = arith.cmpi ne, %1, %c0_i32_0 : i32
    scf.if %2 {
      %cst_10 = arith.constant 0.000000e+00 : f32
      %12 = vector.broadcast %cst_10 : f32 to vector<32x128xf32>
      %c0_11 = arith.constant 0 : index
      %c0_12 = arith.constant 0 : index
      %13 = vector.load %arg6[%c0_11, %c0_12] : memref<32x128xf32, #tpu.memory_space<vmem>>, vector<32x128xf32>
      tpu.vector_store %arg6[%c0_11, %c0_12], %12 {strides = array<i32>} : memref<32x128xf32, #tpu.memory_space<vmem>>, vector<32x128xf32>,
    } else {
    }
    %c0 = arith.constant 0 : index
    %c0_1 = arith.constant 0 : index
    %3 = vector.load %arg3[%c0, %c0_1] : memref<32x144xbf16, #tpu.memory_space<vmem>>, vector<32x144xbf16>
    %c0_2 = arith.constant 0 : index
    %c0_3 = arith.constant 0 : index
    %4 = vector.load %arg4[%c0_2, %c0_3] : memref<144x128xbf16, #tpu.memory_space<vmem>>, vector<144x128xbf16>
    %c0_4 = arith.constant 0 : index
    %c0_5 = arith.constant 0 : index
    %5 = vector.load %arg6[%c0_4, %c0_5] : memref<32x128xf32, #tpu.memory_space<vmem>>, vector<32x128xf32>
    %cst = arith.constant dense<0.000000e+00> : vector<32x128xf32>
    %6 = tpu.matmul %3, %4, %cst {dimension_numbers = #tpu.dot_dimension_numbers<[1], [0], [0], [1], [0, 0, 1, 1], [], []>} : vector<32x144xbf16>, vector<144x128xbf16>, vector<32x128xf32> -> vector<32x128xf32>
    %7 = arith.addf %5, %6 : vector<32x128xf32>
    %c0_6 = arith.constant 0 : index
    %c0_7 = arith.constant 0 : index
    %8 = vector.load %arg6[%c0_6, %c0_7] : memref<32x128xf32, #tpu.memory_space<vmem>>, vector<32x128xf32>
    tpu.vector_store %arg6[%c0_6, %c0_7], %7 {strides = array<i32>} : memref<32x128xf32, #tpu.memory_space<vmem>>, vector<32x128xf32>,
    %c0_i32_8 = arith.constant 0 : i32
    %9 = arith.cmpi eq, %arg2, %c0_i32_8 : i32
    %10 = arith.extui %9 : i1 to i32
    %c0_i32_9 = arith.constant 0 : i32
    %11 = arith.cmpi ne, %10, %c0_i32_9 : i32
    scf.if %11 {
      %c0_10 = arith.constant 0 : index
      %c0_11 = arith.constant 0 : index
      %12 = vector.load %arg6[%c0_10, %c0_11] : memref<32x128xf32, #tpu.memory_space<vmem>>, vector<32x128xf32>
      %13 = vector.extract_strided_slice %12 {offsets = [0, 0], sizes = [32, 32], strides = [1, 1]} : vector<32x128xf32> to vector<32x32xf32>
      %c0_12 = arith.constant 0 : index
      %c0_13 = arith.constant 0 : index
      %14 = vector.load %arg5[%c0_12, %c0_13] : memref<32x32xf32, #tpu.memory_space<vmem>>, vector<32x32xf32>
      tpu.vector_store %arg5[%c0_12, %c0_13], %13 {strides = array<i32>} : memref<32x32xf32, #tpu.memory_space<vmem>>, vector<32x32xf32>,
    } else {
    }
    return
  }
  func.func @transform_0(%arg0: i32, %arg1: i32, %arg2: i32) -> (i32, i32) {
    %c0_i32 = arith.constant 0 : i32
    return %arg0, %arg2 : i32, i32
  }
  func.func @transform_1(%arg0: i32, %arg1: i32, %arg2: i32) -> (i32, i32) {
    %c0_i32 = arith.constant 0 : i32
    return %arg2, %arg1 : i32, i32
  }
  func.func @transform_2(%arg0: i32, %arg1: i32, %arg2: i32) -> (i32, i32) {
    %c0_i32 = arith.constant 0 : i32
    return %arg0, %arg1 : i32, i32
  }
}

module attributes {stable_mosaic.version = 11 : i64} {
  func.func @_bn_stats_kernel(%arg0: i32, %arg1: memref<32x32xf32, #tpu.memory_space<vmem>>, %arg2: memref<1x32xf32, #tpu.memory_space<vmem>>, %arg3: memref<1x32xf32, #tpu.memory_space<vmem>>) attributes {dimension_semantics = [#tpu.dimension_semantics<arbitrary>], iteration_bounds = array<i64: 1>, scalar_prefetch = 0 : i64, scratch_operands = 0 : i64, tpu.core_type = #tpu.core_type<tc>, window_params = [{transform_indices = @transform_0, window_bounds = array<i64: 32, 32>}, {pipeline_mode = #tpu.pipeline_mode<synchronous>, transform_indices = @transform_1, window_bounds = array<i64: 1, 32>}, {pipeline_mode = #tpu.pipeline_mode<synchronous>, transform_indices = @transform_2, window_bounds = array<i64: 1, 32>}]} {
    %c0_i32 = arith.constant 0 : i32
    %0 = arith.cmpi eq, %arg0, %c0_i32 : i32
    %1 = arith.extui %0 : i1 to i32
    %c0_i32_0 = arith.constant 0 : i32
    %2 = arith.cmpi ne, %1, %c0_i32_0 : i32
    scf.if %2 {
      %cst_11 = arith.constant 0.000000e+00 : f32
      %15 = vector.broadcast %cst_11 : f32 to vector<1x32xf32>
      %c0_12 = arith.constant 0 : index
      %c0_13 = arith.constant 0 : index
      %16 = vector.load %arg2[%c0_12, %c0_13] : memref<1x32xf32, #tpu.memory_space<vmem>>, vector<1x32xf32>
      tpu.vector_store %arg2[%c0_12, %c0_13], %15 {strides = array<i32>} : memref<1x32xf32, #tpu.memory_space<vmem>>, vector<1x32xf32>,
      %cst_14 = arith.constant 0.000000e+00 : f32
      %17 = vector.broadcast %cst_14 : f32 to vector<1x32xf32>
      %c0_15 = arith.constant 0 : index
      %c0_16 = arith.constant 0 : index
      %18 = vector.load %arg3[%c0_15, %c0_16] : memref<1x32xf32, #tpu.memory_space<vmem>>, vector<1x32xf32>
      tpu.vector_store %arg3[%c0_15, %c0_16], %17 {strides = array<i32>} : memref<1x32xf32, #tpu.memory_space<vmem>>, vector<1x32xf32>,
    } else {
    }
    %c0 = arith.constant 0 : index
    %c0_1 = arith.constant 0 : index
    %3 = vector.load %arg1[%c0, %c0_1] : memref<32x32xf32, #tpu.memory_space<vmem>>, vector<32x32xf32>
    %c0_2 = arith.constant 0 : index
    %c0_3 = arith.constant 0 : index
    %4 = vector.load %arg2[%c0_2, %c0_3] : memref<1x32xf32, #tpu.memory_space<vmem>>, vector<1x32xf32>
    %cst = arith.constant dense<0.000000e+00> : vector<32xf32>
    %5 = vector.multi_reduction <add>, %3, %cst [0] : vector<32x32xf32> to vector<32xf32>
    %6 = vector.shape_cast %5 : vector<32xf32> to vector<1x32xf32>
    %7 = arith.addf %4, %6 : vector<1x32xf32>
    %c0_4 = arith.constant 0 : index
    %c0_5 = arith.constant 0 : index
    %8 = vector.load %arg2[%c0_4, %c0_5] : memref<1x32xf32, #tpu.memory_space<vmem>>, vector<1x32xf32>
    tpu.vector_store %arg2[%c0_4, %c0_5], %7 {strides = array<i32>} : memref<1x32xf32, #tpu.memory_space<vmem>>, vector<1x32xf32>,
    %c0_6 = arith.constant 0 : index
    %c0_7 = arith.constant 0 : index
    %9 = vector.load %arg3[%c0_6, %c0_7] : memref<1x32xf32, #tpu.memory_space<vmem>>, vector<1x32xf32>
    %10 = arith.mulf %3, %3 : vector<32x32xf32>
    %cst_8 = arith.constant dense<0.000000e+00> : vector<32xf32>
    %11 = vector.multi_reduction <add>, %10, %cst_8 [0] : vector<32x32xf32> to vector<32xf32>
    %12 = vector.shape_cast %11 : vector<32xf32> to vector<1x32xf32>
    %13 = arith.addf %9, %12 : vector<1x32xf32>
    %c0_9 = arith.constant 0 : index
    %c0_10 = arith.constant 0 : index
    %14 = vector.load %arg3[%c0_9, %c0_10] : memref<1x32xf32, #tpu.memory_space<vmem>>, vector<1x32xf32>
    tpu.vector_store %arg3[%c0_9, %c0_10], %13 {strides = array<i32>} : memref<1x32xf32, #tpu.memory_space<vmem>>, vector<1x32xf32>,
    return
  }
  func.func @transform_0(%arg0: i32) -> (i32, i32) {
    %c0_i32 = arith.constant 0 : i32
    %c0_i32_0 = arith.constant 0 : i32
    return %arg0, %c0_i32 : i32, i32
  }
  func.func @transform_1(%arg0: i32) -> (i32, i32) {
    %c0_i32 = arith.constant 0 : i32
    %c0_i32_0 = arith.constant 0 : i32
    %c0_i32_1 = arith.constant 0 : i32
    return %c0_i32, %c0_i32_0 : i32, i32
  }
  func.func @transform_2(%arg0: i32) -> (i32, i32) {
    %c0_i32 = arith.constant 0 : i32
    %c0_i32_0 = arith.constant 0 : i32
    %c0_i32_1 = arith.constant 0 : i32
    return %c0_i32, %c0_i32_0 : i32, i32
  }
}

module attributes {stable_mosaic.version = 11 : i64} {
  func.func @_bn_apply_kernel(%arg0: i32, %arg1: memref<32x32xf32, #tpu.memory_space<vmem>>, %arg2: memref<1x32xf32, #tpu.memory_space<vmem>>, %arg3: memref<1x32xf32, #tpu.memory_space<vmem>>, %arg4: memref<32x32xf32, #tpu.memory_space<vmem>>) attributes {dimension_semantics = [#tpu.dimension_semantics<parallel>], iteration_bounds = array<i64: 1>, scalar_prefetch = 0 : i64, scratch_operands = 0 : i64, tpu.core_type = #tpu.core_type<tc>, window_params = [{transform_indices = @transform_0, window_bounds = array<i64: 32, 32>}, {pipeline_mode = #tpu.pipeline_mode<synchronous>, transform_indices = @transform_1, window_bounds = array<i64: 1, 32>}, {pipeline_mode = #tpu.pipeline_mode<synchronous>, transform_indices = @transform_2, window_bounds = array<i64: 1, 32>}, {transform_indices = @transform_3, window_bounds = array<i64: 32, 32>}]} {
    %c0 = arith.constant 0 : index
    %c0_0 = arith.constant 0 : index
    %0 = vector.load %arg1[%c0, %c0_0] : memref<32x32xf32, #tpu.memory_space<vmem>>, vector<32x32xf32>
    %c0_1 = arith.constant 0 : index
    %c0_2 = arith.constant 0 : index
    %1 = vector.load %arg2[%c0_1, %c0_2] : memref<1x32xf32, #tpu.memory_space<vmem>>, vector<1x32xf32>
    %2 = vector.broadcast %1 : vector<1x32xf32> to vector<32x32xf32>
    %3 = arith.mulf %0, %2 : vector<32x32xf32>
    %c0_3 = arith.constant 0 : index
    %c0_4 = arith.constant 0 : index
    %4 = vector.load %arg3[%c0_3, %c0_4] : memref<1x32xf32, #tpu.memory_space<vmem>>, vector<1x32xf32>
    %5 = vector.broadcast %4 : vector<1x32xf32> to vector<32x32xf32>
    %6 = arith.addf %3, %5 : vector<32x32xf32>
    %cst = arith.constant 0.000000e+00 : f32
    %7 = vector.broadcast %cst : f32 to vector<32x32xf32>
    %8 = arith.maximumf %6, %7 : vector<32x32xf32>
    %c0_5 = arith.constant 0 : index
    %c0_6 = arith.constant 0 : index
    %9 = vector.load %arg4[%c0_5, %c0_6] : memref<32x32xf32, #tpu.memory_space<vmem>>, vector<32x32xf32>
    tpu.vector_store %arg4[%c0_5, %c0_6], %8 {strides = array<i32>} : memref<32x32xf32, #tpu.memory_space<vmem>>, vector<32x32xf32>,
    return
  }
  func.func @transform_0(%arg0: i32) -> (i32, i32) {
    %c0_i32 = arith.constant 0 : i32
    %c0_i32_0 = arith.constant 0 : i32
    return %arg0, %c0_i32 : i32, i32
  }
  func.func @transform_1(%arg0: i32) -> (i32, i32) {
    %c0_i32 = arith.constant 0 : i32
    %c0_i32_0 = arith.constant 0 : i32
    %c0_i32_1 = arith.constant 0 : i32
    return %c0_i32, %c0_i32_0 : i32, i32
  }
  func.func @transform_2(%arg0: i32) -> (i32, i32) {
    %c0_i32 = arith.constant 0 : i32
    %c0_i32_0 = arith.constant 0 : i32
    %c0_i32_1 = arith.constant 0 : i32
    return %c0_i32, %c0_i32_0 : i32, i32
  }
  func.func @transform_3(%arg0: i32) -> (i32, i32) {
    %c0_i32 = arith.constant 0 : i32
    %c0_i32_0 = arith.constant 0 : i32
    return %arg0, %c0_i32 : i32, i32
  }
}

module attributes {stable_mosaic.version = 11 : i64} {
  func.func @_matmul_kernel(%arg0: i32, %arg1: i32, %arg2: i32, %arg3: memref<32x288xbf16, #tpu.memory_space<vmem>>, %arg4: memref<288x128xbf16, #tpu.memory_space<vmem>>, %arg5: memref<32x32xf32, #tpu.memory_space<vmem>>, %arg6: memref<32x128xf32, #tpu.memory_space<vmem>>) attributes {dimension_semantics = [#tpu.dimension_semantics<parallel>, #tpu.dimension_semantics<parallel>, #tpu.dimension_semantics<arbitrary>], iteration_bounds = array<i64: 1, 1, 1>, scalar_prefetch = 0 : i64, scratch_operands = 1 : i64, tpu.core_type = #tpu.core_type<tc>, window_params = [{transform_indices = @transform_0, window_bounds = array<i64: 32, 288>}, {transform_indices = @transform_1, window_bounds = array<i64: 288, 128>}, {transform_indices = @transform_2, window_bounds = array<i64: 32, 32>}]} {
    %c0_i32 = arith.constant 0 : i32
    %0 = arith.cmpi eq, %arg2, %c0_i32 : i32
    %1 = arith.extui %0 : i1 to i32
    %c0_i32_0 = arith.constant 0 : i32
    %2 = arith.cmpi ne, %1, %c0_i32_0 : i32
    scf.if %2 {
      %cst_10 = arith.constant 0.000000e+00 : f32
      %12 = vector.broadcast %cst_10 : f32 to vector<32x128xf32>
      %c0_11 = arith.constant 0 : index
      %c0_12 = arith.constant 0 : index
      %13 = vector.load %arg6[%c0_11, %c0_12] : memref<32x128xf32, #tpu.memory_space<vmem>>, vector<32x128xf32>
      tpu.vector_store %arg6[%c0_11, %c0_12], %12 {strides = array<i32>} : memref<32x128xf32, #tpu.memory_space<vmem>>, vector<32x128xf32>,
    } else {
    }
    %c0 = arith.constant 0 : index
    %c0_1 = arith.constant 0 : index
    %3 = vector.load %arg3[%c0, %c0_1] : memref<32x288xbf16, #tpu.memory_space<vmem>>, vector<32x288xbf16>
    %c0_2 = arith.constant 0 : index
    %c0_3 = arith.constant 0 : index
    %4 = vector.load %arg4[%c0_2, %c0_3] : memref<288x128xbf16, #tpu.memory_space<vmem>>, vector<288x128xbf16>
    %c0_4 = arith.constant 0 : index
    %c0_5 = arith.constant 0 : index
    %5 = vector.load %arg6[%c0_4, %c0_5] : memref<32x128xf32, #tpu.memory_space<vmem>>, vector<32x128xf32>
    %cst = arith.constant dense<0.000000e+00> : vector<32x128xf32>
    %6 = tpu.matmul %3, %4, %cst {dimension_numbers = #tpu.dot_dimension_numbers<[1], [0], [0], [1], [0, 0, 1, 1], [], []>} : vector<32x288xbf16>, vector<288x128xbf16>, vector<32x128xf32> -> vector<32x128xf32>
    %7 = arith.addf %5, %6 : vector<32x128xf32>
    %c0_6 = arith.constant 0 : index
    %c0_7 = arith.constant 0 : index
    %8 = vector.load %arg6[%c0_6, %c0_7] : memref<32x128xf32, #tpu.memory_space<vmem>>, vector<32x128xf32>
    tpu.vector_store %arg6[%c0_6, %c0_7], %7 {strides = array<i32>} : memref<32x128xf32, #tpu.memory_space<vmem>>, vector<32x128xf32>,
    %c0_i32_8 = arith.constant 0 : i32
    %9 = arith.cmpi eq, %arg2, %c0_i32_8 : i32
    %10 = arith.extui %9 : i1 to i32
    %c0_i32_9 = arith.constant 0 : i32
    %11 = arith.cmpi ne, %10, %c0_i32_9 : i32
    scf.if %11 {
      %c0_10 = arith.constant 0 : index
      %c0_11 = arith.constant 0 : index
      %12 = vector.load %arg6[%c0_10, %c0_11] : memref<32x128xf32, #tpu.memory_space<vmem>>, vector<32x128xf32>
      %13 = vector.extract_strided_slice %12 {offsets = [0, 0], sizes = [32, 32], strides = [1, 1]} : vector<32x128xf32> to vector<32x32xf32>
      %c0_12 = arith.constant 0 : index
      %c0_13 = arith.constant 0 : index
      %14 = vector.load %arg5[%c0_12, %c0_13] : memref<32x32xf32, #tpu.memory_space<vmem>>, vector<32x32xf32>
      tpu.vector_store %arg5[%c0_12, %c0_13], %13 {strides = array<i32>} : memref<32x32xf32, #tpu.memory_space<vmem>>, vector<32x32xf32>,
    } else {
    }
    return
  }
  func.func @transform_0(%arg0: i32, %arg1: i32, %arg2: i32) -> (i32, i32) {
    %c0_i32 = arith.constant 0 : i32
    return %arg0, %arg2 : i32, i32
  }
  func.func @transform_1(%arg0: i32, %arg1: i32, %arg2: i32) -> (i32, i32) {
    %c0_i32 = arith.constant 0 : i32
    return %arg2, %arg1 : i32, i32
  }
  func.func @transform_2(%arg0: i32, %arg1: i32, %arg2: i32) -> (i32, i32) {
    %c0_i32 = arith.constant 0 : i32
    return %arg0, %arg1 : i32, i32
  }
}

module attributes {stable_mosaic.version = 11 : i64} {
  func.func @_bn_apply_kernel(%arg0: i32, %arg1: memref<32x32xf32, #tpu.memory_space<vmem>>, %arg2: memref<1x32xf32, #tpu.memory_space<vmem>>, %arg3: memref<1x32xf32, #tpu.memory_space<vmem>>, %arg4: memref<32x32xf32, #tpu.memory_space<vmem>>, %arg5: memref<32x32xf32, #tpu.memory_space<vmem>>) attributes {dimension_semantics = [#tpu.dimension_semantics<parallel>], iteration_bounds = array<i64: 1>, scalar_prefetch = 0 : i64, scratch_operands = 0 : i64, tpu.core_type = #tpu.core_type<tc>, window_params = [{transform_indices = @transform_0, window_bounds = array<i64: 32, 32>}, {pipeline_mode = #tpu.pipeline_mode<synchronous>, transform_indices = @transform_1, window_bounds = array<i64: 1, 32>}, {pipeline_mode = #tpu.pipeline_mode<synchronous>, transform_indices = @transform_2, window_bounds = array<i64: 1, 32>}, {transform_indices = @transform_3, window_bounds = array<i64: 32, 32>}, {transform_indices = @transform_4, window_bounds = array<i64: 32, 32>}]} {
    %c0 = arith.constant 0 : index
    %c0_0 = arith.constant 0 : index
    %0 = vector.load %arg1[%c0, %c0_0] : memref<32x32xf32, #tpu.memory_space<vmem>>, vector<32x32xf32>
    %c0_1 = arith.constant 0 : index
    %c0_2 = arith.constant 0 : index
    %1 = vector.load %arg2[%c0_1, %c0_2] : memref<1x32xf32, #tpu.memory_space<vmem>>, vector<1x32xf32>
    %2 = vector.broadcast %1 : vector<1x32xf32> to vector<32x32xf32>
    %3 = arith.mulf %0, %2 : vector<32x32xf32>
    %c0_3 = arith.constant 0 : index
    %c0_4 = arith.constant 0 : index
    %4 = vector.load %arg3[%c0_3, %c0_4] : memref<1x32xf32, #tpu.memory_space<vmem>>, vector<1x32xf32>
    %5 = vector.broadcast %4 : vector<1x32xf32> to vector<32x32xf32>
    %6 = arith.addf %3, %5 : vector<32x32xf32>
    %c0_5 = arith.constant 0 : index
    %c0_6 = arith.constant 0 : index
    %7 = vector.load %arg4[%c0_5, %c0_6] : memref<32x32xf32, #tpu.memory_space<vmem>>, vector<32x32xf32>
    %8 = arith.addf %6, %7 : vector<32x32xf32>
    %c0_7 = arith.constant 0 : index
    %c0_8 = arith.constant 0 : index
    %9 = vector.load %arg5[%c0_7, %c0_8] : memref<32x32xf32, #tpu.memory_space<vmem>>, vector<32x32xf32>
    tpu.vector_store %arg5[%c0_7, %c0_8], %8 {strides = array<i32>} : memref<32x32xf32, #tpu.memory_space<vmem>>, vector<32x32xf32>,
    return
  }
  func.func @transform_0(%arg0: i32) -> (i32, i32) {
    %c0_i32 = arith.constant 0 : i32
    %c0_i32_0 = arith.constant 0 : i32
    return %arg0, %c0_i32 : i32, i32
  }
  func.func @transform_1(%arg0: i32) -> (i32, i32) {
    %c0_i32 = arith.constant 0 : i32
    %c0_i32_0 = arith.constant 0 : i32
    %c0_i32_1 = arith.constant 0 : i32
    return %c0_i32, %c0_i32_0 : i32, i32
  }
  func.func @transform_2(%arg0: i32) -> (i32, i32) {
    %c0_i32 = arith.constant 0 : i32
    %c0_i32_0 = arith.constant 0 : i32
    %c0_i32_1 = arith.constant 0 : i32
    return %c0_i32, %c0_i32_0 : i32, i32
  }
  func.func @transform_3(%arg0: i32) -> (i32, i32) {
    %c0_i32 = arith.constant 0 : i32
    %c0_i32_0 = arith.constant 0 : i32
    return %arg0, %c0_i32 : i32, i32
  }
  func.func @transform_4(%arg0: i32) -> (i32, i32) {
    %c0_i32 = arith.constant 0 : i32
    %c0_i32_0 = arith.constant 0 : i32
    return %arg0, %c0_i32 : i32, i32
  }
}

module attributes {stable_mosaic.version = 11 : i64} {
  func.func @_matmul_kernel(%arg0: i32, %arg1: i32, %arg2: i32, %arg3: memref<32x128xbf16, #tpu.memory_space<vmem>>, %arg4: memref<128x128xbf16, #tpu.memory_space<vmem>>, %arg5: memref<32x64xf32, #tpu.memory_space<vmem>>, %arg6: memref<32x128xf32, #tpu.memory_space<vmem>>) attributes {dimension_semantics = [#tpu.dimension_semantics<parallel>, #tpu.dimension_semantics<parallel>, #tpu.dimension_semantics<arbitrary>], iteration_bounds = array<i64: 1, 1, 1>, scalar_prefetch = 0 : i64, scratch_operands = 1 : i64, tpu.core_type = #tpu.core_type<tc>, window_params = [{transform_indices = @transform_0, window_bounds = array<i64: 32, 128>}, {transform_indices = @transform_1, window_bounds = array<i64: 128, 128>}, {transform_indices = @transform_2, window_bounds = array<i64: 32, 64>}]} {
    %c0_i32 = arith.constant 0 : i32
    %0 = arith.cmpi eq, %arg2, %c0_i32 : i32
    %1 = arith.extui %0 : i1 to i32
    %c0_i32_0 = arith.constant 0 : i32
    %2 = arith.cmpi ne, %1, %c0_i32_0 : i32
    scf.if %2 {
      %cst_10 = arith.constant 0.000000e+00 : f32
      %12 = vector.broadcast %cst_10 : f32 to vector<32x128xf32>
      %c0_11 = arith.constant 0 : index
      %c0_12 = arith.constant 0 : index
      %13 = vector.load %arg6[%c0_11, %c0_12] : memref<32x128xf32, #tpu.memory_space<vmem>>, vector<32x128xf32>
      tpu.vector_store %arg6[%c0_11, %c0_12], %12 {strides = array<i32>} : memref<32x128xf32, #tpu.memory_space<vmem>>, vector<32x128xf32>,
    } else {
    }
    %c0 = arith.constant 0 : index
    %c0_1 = arith.constant 0 : index
    %3 = vector.load %arg3[%c0, %c0_1] : memref<32x128xbf16, #tpu.memory_space<vmem>>, vector<32x128xbf16>
    %c0_2 = arith.constant 0 : index
    %c0_3 = arith.constant 0 : index
    %4 = vector.load %arg4[%c0_2, %c0_3] : memref<128x128xbf16, #tpu.memory_space<vmem>>, vector<128x128xbf16>
    %c0_4 = arith.constant 0 : index
    %c0_5 = arith.constant 0 : index
    %5 = vector.load %arg6[%c0_4, %c0_5] : memref<32x128xf32, #tpu.memory_space<vmem>>, vector<32x128xf32>
    %cst = arith.constant dense<0.000000e+00> : vector<32x128xf32>
    %6 = tpu.matmul %3, %4, %cst {dimension_numbers = #tpu.dot_dimension_numbers<[1], [0], [0], [1], [0, 0, 1, 1], [], []>} : vector<32x128xbf16>, vector<128x128xbf16>, vector<32x128xf32> -> vector<32x128xf32>
    %7 = arith.addf %5, %6 : vector<32x128xf32>
    %c0_6 = arith.constant 0 : index
    %c0_7 = arith.constant 0 : index
    %8 = vector.load %arg6[%c0_6, %c0_7] : memref<32x128xf32, #tpu.memory_space<vmem>>, vector<32x128xf32>
    tpu.vector_store %arg6[%c0_6, %c0_7], %7 {strides = array<i32>} : memref<32x128xf32, #tpu.memory_space<vmem>>, vector<32x128xf32>,
    %c0_i32_8 = arith.constant 0 : i32
    %9 = arith.cmpi eq, %arg2, %c0_i32_8 : i32
    %10 = arith.extui %9 : i1 to i32
    %c0_i32_9 = arith.constant 0 : i32
    %11 = arith.cmpi ne, %10, %c0_i32_9 : i32
    scf.if %11 {
      %c0_10 = arith.constant 0 : index
      %c0_11 = arith.constant 0 : index
      %12 = vector.load %arg6[%c0_10, %c0_11] : memref<32x128xf32, #tpu.memory_space<vmem>>, vector<32x128xf32>
      %13 = vector.extract_strided_slice %12 {offsets = [0, 0], sizes = [32, 64], strides = [1, 1]} : vector<32x128xf32> to vector<32x64xf32>
      %c0_12 = arith.constant 0 : index
      %c0_13 = arith.constant 0 : index
      %14 = vector.load %arg5[%c0_12, %c0_13] : memref<32x64xf32, #tpu.memory_space<vmem>>, vector<32x64xf32>
      tpu.vector_store %arg5[%c0_12, %c0_13], %13 {strides = array<i32>} : memref<32x64xf32, #tpu.memory_space<vmem>>, vector<32x64xf32>,
    } else {
    }
    return
  }
  func.func @transform_0(%arg0: i32, %arg1: i32, %arg2: i32) -> (i32, i32) {
    %c0_i32 = arith.constant 0 : i32
    return %arg0, %arg2 : i32, i32
  }
  func.func @transform_1(%arg0: i32, %arg1: i32, %arg2: i32) -> (i32, i32) {
    %c0_i32 = arith.constant 0 : i32
    return %arg2, %arg1 : i32, i32
  }
  func.func @transform_2(%arg0: i32, %arg1: i32, %arg2: i32) -> (i32, i32) {
    %c0_i32 = arith.constant 0 : i32
    return %arg0, %arg1 : i32, i32
  }
}

module attributes {stable_mosaic.version = 11 : i64} {
  func.func @_matmul_kernel(%arg0: i32, %arg1: i32, %arg2: i32, %arg3: memref<128x64xbf16, #tpu.memory_space<vmem>>, %arg4: memref<64x128xbf16, #tpu.memory_space<vmem>>, %arg5: memref<128x32xf32, #tpu.memory_space<vmem>>, %arg6: memref<128x128xf32, #tpu.memory_space<vmem>>) attributes {dimension_semantics = [#tpu.dimension_semantics<parallel>, #tpu.dimension_semantics<parallel>, #tpu.dimension_semantics<arbitrary>], iteration_bounds = array<i64: 1, 1, 1>, scalar_prefetch = 0 : i64, scratch_operands = 1 : i64, tpu.core_type = #tpu.core_type<tc>, window_params = [{transform_indices = @transform_0, window_bounds = array<i64: 128, 64>}, {transform_indices = @transform_1, window_bounds = array<i64: 64, 128>}, {transform_indices = @transform_2, window_bounds = array<i64: 128, 32>}]} {
    %c0_i32 = arith.constant 0 : i32
    %0 = arith.cmpi eq, %arg2, %c0_i32 : i32
    %1 = arith.extui %0 : i1 to i32
    %c0_i32_0 = arith.constant 0 : i32
    %2 = arith.cmpi ne, %1, %c0_i32_0 : i32
    scf.if %2 {
      %cst_10 = arith.constant 0.000000e+00 : f32
      %12 = vector.broadcast %cst_10 : f32 to vector<128x128xf32>
      %c0_11 = arith.constant 0 : index
      %c0_12 = arith.constant 0 : index
      %13 = vector.load %arg6[%c0_11, %c0_12] : memref<128x128xf32, #tpu.memory_space<vmem>>, vector<128x128xf32>
      tpu.vector_store %arg6[%c0_11, %c0_12], %12 {strides = array<i32>} : memref<128x128xf32, #tpu.memory_space<vmem>>, vector<128x128xf32>,
    } else {
    }
    %c0 = arith.constant 0 : index
    %c0_1 = arith.constant 0 : index
    %3 = vector.load %arg3[%c0, %c0_1] : memref<128x64xbf16, #tpu.memory_space<vmem>>, vector<128x64xbf16>
    %c0_2 = arith.constant 0 : index
    %c0_3 = arith.constant 0 : index
    %4 = vector.load %arg4[%c0_2, %c0_3] : memref<64x128xbf16, #tpu.memory_space<vmem>>, vector<64x128xbf16>
    %c0_4 = arith.constant 0 : index
    %c0_5 = arith.constant 0 : index
    %5 = vector.load %arg6[%c0_4, %c0_5] : memref<128x128xf32, #tpu.memory_space<vmem>>, vector<128x128xf32>
    %cst = arith.constant dense<0.000000e+00> : vector<128x128xf32>
    %6 = tpu.matmul %3, %4, %cst {dimension_numbers = #tpu.dot_dimension_numbers<[1], [0], [0], [1], [0, 0, 1, 1], [], []>} : vector<128x64xbf16>, vector<64x128xbf16>, vector<128x128xf32> -> vector<128x128xf32>
    %7 = arith.addf %5, %6 : vector<128x128xf32>
    %c0_6 = arith.constant 0 : index
    %c0_7 = arith.constant 0 : index
    %8 = vector.load %arg6[%c0_6, %c0_7] : memref<128x128xf32, #tpu.memory_space<vmem>>, vector<128x128xf32>
    tpu.vector_store %arg6[%c0_6, %c0_7], %7 {strides = array<i32>} : memref<128x128xf32, #tpu.memory_space<vmem>>, vector<128x128xf32>,
    %c0_i32_8 = arith.constant 0 : i32
    %9 = arith.cmpi eq, %arg2, %c0_i32_8 : i32
    %10 = arith.extui %9 : i1 to i32
    %c0_i32_9 = arith.constant 0 : i32
    %11 = arith.cmpi ne, %10, %c0_i32_9 : i32
    scf.if %11 {
      %c0_10 = arith.constant 0 : index
      %c0_11 = arith.constant 0 : index
      %12 = vector.load %arg6[%c0_10, %c0_11] : memref<128x128xf32, #tpu.memory_space<vmem>>, vector<128x128xf32>
      %13 = vector.extract_strided_slice %12 {offsets = [0, 0], sizes = [128, 32], strides = [1, 1]} : vector<128x128xf32> to vector<128x32xf32>
      %c0_12 = arith.constant 0 : index
      %c0_13 = arith.constant 0 : index
      %14 = vector.load %arg5[%c0_12, %c0_13] : memref<128x32xf32, #tpu.memory_space<vmem>>, vector<128x32xf32>
      tpu.vector_store %arg5[%c0_12, %c0_13], %13 {strides = array<i32>} : memref<128x32xf32, #tpu.memory_space<vmem>>, vector<128x32xf32>,
    } else {
    }
    return
  }
  func.func @transform_0(%arg0: i32, %arg1: i32, %arg2: i32) -> (i32, i32) {
    %c0_i32 = arith.constant 0 : i32
    return %arg0, %arg2 : i32, i32
  }
  func.func @transform_1(%arg0: i32, %arg1: i32, %arg2: i32) -> (i32, i32) {
    %c0_i32 = arith.constant 0 : i32
    return %arg2, %arg1 : i32, i32
  }
  func.func @transform_2(%arg0: i32, %arg1: i32, %arg2: i32) -> (i32, i32) {
    %c0_i32 = arith.constant 0 : i32
    return %arg0, %arg1 : i32, i32
  }
}

module attributes {stable_mosaic.version = 11 : i64} {
  func.func @_matmul_kernel(%arg0: i32, %arg1: i32, %arg2: i32, %arg3: memref<512x392xbf16, #tpu.memory_space<vmem>>, %arg4: memref<392x128xbf16, #tpu.memory_space<vmem>>, %arg5: memref<1x128xf32, #tpu.memory_space<vmem>>, %arg6: memref<512x3xf32, #tpu.memory_space<vmem>>, %arg7: memref<512x128xf32, #tpu.memory_space<vmem>>) attributes {dimension_semantics = [#tpu.dimension_semantics<parallel>, #tpu.dimension_semantics<parallel>, #tpu.dimension_semantics<arbitrary>], iteration_bounds = array<i64: 1, 1, 1>, scalar_prefetch = 0 : i64, scratch_operands = 1 : i64, tpu.core_type = #tpu.core_type<tc>, window_params = [{transform_indices = @transform_0, window_bounds = array<i64: 512, 392>}, {transform_indices = @transform_1, window_bounds = array<i64: 392, 128>}, {transform_indices = @transform_2, window_bounds = array<i64: 1, 128>}, {transform_indices = @transform_3, window_bounds = array<i64: 512, 3>}]} {
    %c0_i32 = arith.constant 0 : i32
    %0 = arith.cmpi eq, %arg2, %c0_i32 : i32
    %1 = arith.extui %0 : i1 to i32
    %c0_i32_0 = arith.constant 0 : i32
    %2 = arith.cmpi ne, %1, %c0_i32_0 : i32
    scf.if %2 {
      %cst_10 = arith.constant 0.000000e+00 : f32
      %12 = vector.broadcast %cst_10 : f32 to vector<512x128xf32>
      %c0_11 = arith.constant 0 : index
      %c0_12 = arith.constant 0 : index
      %13 = vector.load %arg7[%c0_11, %c0_12] : memref<512x128xf32, #tpu.memory_space<vmem>>, vector<512x128xf32>
      tpu.vector_store %arg7[%c0_11, %c0_12], %12 {strides = array<i32>} : memref<512x128xf32, #tpu.memory_space<vmem>>, vector<512x128xf32>,
    } else {
    }
    %c0 = arith.constant 0 : index
    %c0_1 = arith.constant 0 : index
    %3 = vector.load %arg3[%c0, %c0_1] : memref<512x392xbf16, #tpu.memory_space<vmem>>, vector<512x392xbf16>
    %c0_2 = arith.constant 0 : index
    %c0_3 = arith.constant 0 : index
    %4 = vector.load %arg4[%c0_2, %c0_3] : memref<392x128xbf16, #tpu.memory_space<vmem>>, vector<392x128xbf16>
    %c0_4 = arith.constant 0 : index
    %c0_5 = arith.constant 0 : index
    %5 = vector.load %arg7[%c0_4, %c0_5] : memref<512x128xf32, #tpu.memory_space<vmem>>, vector<512x128xf32>
    %cst = arith.constant dense<0.000000e+00> : vector<512x128xf32>
    %6 = tpu.matmul %3, %4, %cst {dimension_numbers = #tpu.dot_dimension_numbers<[1], [0], [0], [1], [0, 0, 1, 1], [], []>} : vector<512x392xbf16>, vector<392x128xbf16>, vector<512x128xf32> -> vector<512x128xf32>
    %7 = arith.addf %5, %6 : vector<512x128xf32>
    %c0_6 = arith.constant 0 : index
    %c0_7 = arith.constant 0 : index
    %8 = vector.load %arg7[%c0_6, %c0_7] : memref<512x128xf32, #tpu.memory_space<vmem>>, vector<512x128xf32>
    tpu.vector_store %arg7[%c0_6, %c0_7], %7 {strides = array<i32>} : memref<512x128xf32, #tpu.memory_space<vmem>>, vector<512x128xf32>,
    %c0_i32_8 = arith.constant 0 : i32
    %9 = arith.cmpi eq, %arg2, %c0_i32_8 : i32
    %10 = arith.extui %9 : i1 to i32
    %c0_i32_9 = arith.constant 0 : i32
    %11 = arith.cmpi ne, %10, %c0_i32_9 : i32
    scf.if %11 {
      %c0_10 = arith.constant 0 : index
      %c0_11 = arith.constant 0 : index
      %12 = vector.load %arg7[%c0_10, %c0_11] : memref<512x128xf32, #tpu.memory_space<vmem>>, vector<512x128xf32>
      %c0_12 = arith.constant 0 : index
      %c0_13 = arith.constant 0 : index
      %13 = vector.load %arg5[%c0_12, %c0_13] : memref<1x128xf32, #tpu.memory_space<vmem>>, vector<1x128xf32>
      %14 = vector.broadcast %13 : vector<1x128xf32> to vector<512x128xf32>
      %15 = arith.addf %12, %14 : vector<512x128xf32>
      %16 = math.tanh %15 : vector<512x128xf32>
      %17 = vector.extract_strided_slice %16 {offsets = [0, 0], sizes = [512, 3], strides = [1, 1]} : vector<512x128xf32> to vector<512x3xf32>
      %c0_14 = arith.constant 0 : index
      %c0_15 = arith.constant 0 : index
      %18 = vector.load %arg6[%c0_14, %c0_15] : memref<512x3xf32, #tpu.memory_space<vmem>>, vector<512x3xf32>
      tpu.vector_store %arg6[%c0_14, %c0_15], %17 {strides = array<i32>} : memref<512x3xf32, #tpu.memory_space<vmem>>, vector<512x3xf32>,
    } else {
    }
    return
  }
  func.func @transform_0(%arg0: i32, %arg1: i32, %arg2: i32) -> (i32, i32) {
    %c0_i32 = arith.constant 0 : i32
    return %arg0, %arg2 : i32, i32
  }
  func.func @transform_1(%arg0: i32, %arg1: i32, %arg2: i32) -> (i32, i32) {
    %c0_i32 = arith.constant 0 : i32
    return %arg2, %arg1 : i32, i32
  }
  func.func @transform_2(%arg0: i32, %arg1: i32, %arg2: i32) -> (i32, i32) {
    %c0_i32 = arith.constant 0 : i32
    %c0_i32_0 = arith.constant 0 : i32
    return %c0_i32, %arg1 : i32, i32
  }
  func.func @transform_3(%arg0: i32, %arg1: i32, %arg2: i32) -> (i32, i32) {
    %c0_i32 = arith.constant 0 : i32
    return %arg0, %arg1 : i32, i32
  }
}

</mosaic_0001>

<llo_original>
// kernel: fwd.71
$region0: #{fwd.71}
  #allocation0 [shape = 'u32[]', space=smem, size = 0x4, offset = 0x4, fixed_abs, tag = 'smem constant byte address 0x4 - core index']
  #allocation1 [shape = 'u32[144,128]{1,0:T(1,128)}', space=vmem, size = 0x12000, scoped, tag = 'internal scratch']
  %s0 = inlined_call_operand.vmem [shape: f32[512,8], index: 0, kind: input, shape index: {}]
  %s1 = inlined_call_operand.vmem [shape: f32[1,8], index: 1, kind: output, shape index: {0}]
  %s2 = inlined_call_operand.vmem [shape: f32[1,8], index: 2, kind: output, shape index: {1}]
  %3 = xla_tuple %s1, %s2
  %s4 = sld [smem:[#allocation0]]
  $region26: #{fwd.71} parent=0
    _
  %s6 = ssub.s32 1, %s4
  %s7 = scalar_select 0, %s6, %s4
  // Predicated region
  $region2: #{fwd.71} parent=0 // pred_check
    _
  $region3: #{fwd.71} parent=0 // pred_check_branch
    %9 = sbr.rel (0) target = $region5
  $region4: #{fwd.71} parent=0 // pred_region
    _
  $region5: #{fwd.71} parent=0 // pred_fallthru
    _
  %p10 = scmp.eq.s32.totalorder 0, 0
  // Predicated region
  $region6: #{fwd.71} parent=0 // pred_check
    %p11 = pneg %p10
  $region7: #{fwd.71} parent=0 // pred_check_branch
    %13 = sbr.rel (%p11) target = $region9
  $region8: #{fwd.71} parent=0 // pred_region
    %vm14 = vcmask 57344
    %15 = vst.msk [vmem:[%s1] sm:$0x1] %vm14, 0.0
    %16 = vst.msk [vmem:[%s2] sm:$0x1] %vm14, 0.0
  $region9: #{fwd.71} parent=0 // pred_fallthru
    _
  %v17 = vld [vmem:[%s0] sm:$0xff]
  %v18 = vld [vmem:[%s0 + $0x8] sm:$0xff]
  %v19 = vld [vmem:[%s0 + $0x10] sm:$0xff]
  %v20 = vld [vmem:[%s0 + $0x18] sm:$0xff]
  %v21 = vld [vmem:[%s0 + $0x20] sm:$0xff]
  %v22 = vld [vmem:[%s0 + $0x28] sm:$0xff]
  %v23 = vld [vmem:[%s0 + $0x30] sm:$0xff]
  %v24 = vld [vmem:[%s0 + $0x38] sm:$0xff]
  %v25 = vld [vmem:[%s0 + $0x40] sm:$0xff]
  %v26 = vld [vmem:[%s0 + $0x48] sm:$0xff]
  %v27 = vld [vmem:[%s0 + $0x50] sm:$0xff]
  %v28 = vld [vmem:[%s0 + $0x58] sm:$0xff]
  %v29 = vld [vmem:[%s0 + $0x60] sm:$0xff]
  %v30 = vld [vmem:[%s0 + $0x68] sm:$0xff]
  %v31 = vld [vmem:[%s0 + $0x70] sm:$0xff]
  %v32 = vld [vmem:[%s0 + $0x78] sm:$0xff]
  %v33 = vld [vmem:[%s0 + $0x80] sm:$0xff]
  %v34 = vld [vmem:[%s0 + $0x88] sm:$0xff]
  %v35 = vld [vmem:[%s0 + $0x90] sm:$0xff]
  %v36 = vld [vmem:[%s0 + $0x98] sm:$0xff]
  %v37 = vld [vmem:[%s0 + $0xa0] sm:$0xff]
  %v38 = vld [vmem:[%s0 + $0xa8] sm:$0xff]
  %v39 = vld [vmem:[%s0 + $0xb0] sm:$0xff]
  %v40 = vld [vmem:[%s0 + $0xb8] sm:$0xff]
  %v41 = vld [vmem:[%s0 + $0xc0] sm:$0xff]
  %v42 = vld [vmem:[%s0 + $0xc8] sm:$0xff]
  %v43 = vld [vmem:[%s0 + $0xd0] sm:$0xff]
  %v44 = vld [vmem:[%s0 + $0xd8] sm:$0xff]
  %v45 = vld [vmem:[%s0 + $0xe0] sm:$0xff]
  %v46 = vld [vmem:[%s0 + $0xe8] sm:$0xff]
  %v47 = vld [vmem:[%s0 + $0xf0] sm:$0xff]
  %v48 = vld [vmem:[%s0 + $0xf8] sm:$0xff]
  %v49 = vld [vmem:[%s0 + $0x100] sm:$0xff]
  %v50 = vld [vmem:[%s0 + $0x108] sm:$0xff]
  %v51 = vld [vmem:[%s0 + $0x110] sm:$0xff]
  %v52 = vld [vmem:[%s0 + $0x118] sm:$0xff]
  %v53 = vld [vmem:[%s0 + $0x120] sm:$0xff]
  %v54 = vld [vmem:[%s0 + $0x128] sm:$0xff]
  %v55 = vld [vmem:[%s0 + $0x130] sm:$0xff]
  %v56 = vld [vmem:[%s0 + $0x138] sm:$0xff]
  %v57 = vld [vmem:[%s0 + $0x140] sm:$0xff]
  %v58 = vld [vmem:[%s0 + $0x148] sm:$0xff]
  %v59 = vld [vmem:[%s0 + $0x150] sm:$0xff]
  %v60 = vld [vmem:[%s0 + $0x158] sm:$0xff]
  %v61 = vld [vmem:[%s0 + $0x160] sm:$0xff]
  %v62 = vld [vmem:[%s0 + $0x168] sm:$0xff]
  %v63 = vld [vmem:[%s0 + $0x170] sm:$0xff]
  %v64 = vld [vmem:[%s0 + $0x178] sm:$0xff]
  %v65 = vld [vmem:[%s0 + $0x180] sm:$0xff]
  %v66 = vld [vmem:[%s0 + $0x188] sm:$0xff]
  %v67 = vld [vmem:[%s0 + $0x190] sm:$0xff]
  %v68 = vld [vmem:[%s0 + $0x198] sm:$0xff]
  %v69 = vld [vmem:[%s0 + $0x1a0] sm:$0xff]
  %v70 = vld [vmem:[%s0 + $0x1a8] sm:$0xff]
  %v71 = vld [vmem:[%s0 + $0x1b0] sm:$0xff]
  %v72 = vld [vmem:[%s0 + $0x1b8] sm:$0xff]
  %v73 = vld [vmem:[%s0 + $0x1c0] sm:$0xff]
  %v74 = vld [vmem:[%s0 + $0x1c8] sm:$0xff]
  %v75 = vld [vmem:[%s0 + $0x1d0] sm:$0xff]
  %v76 = vld [vmem:[%s0 + $0x1d8] sm:$0xff]
  %v77 = vld [vmem:[%s0 + $0x1e0] sm:$0xff]
  %v78 = vld [vmem:[%s0 + $0x1e8] sm:$0xff]
  %v79 = vld [vmem:[%s0 + $0x1f0] sm:$0xff]
  %v80 = vld [vmem:[%s0 + $0x1f8] sm:$0xff]
  %v81 = vld [vmem:[%s1] sm:$0x1]
  %vm82 = vcmask 64512
  %v83 = vsel %vm82, %v17, 0.0
  %v84 = vsel %vm82, %v18, 0.0
  %v85 = vadd.f32 %v83, %v84
  %v86 = vsel %vm82, %v19, 0.0
  %v87 = vadd.f32 %v85, %v86
  %v88 = vsel %vm82, %v20, 0.0
  %v89 = vadd.f32 %v87, %v88
  %v90 = vsel %vm82, %v21, 0.0
  %v91 = vadd.f32 %v89, %v90
  %v92 = vsel %vm82, %v22, 0.0
  %v93 = vadd.f32 %v91, %v92
  %v94 = vsel %vm82, %v23, 0.0
  %v95 = vadd.f32 %v93, %v94
  %v96 = vsel %vm82, %v24, 0.0
  %v97 = vadd.f32 %v95, %v96
  %v98 = vsel %vm82, %v25, 0.0
  %v99 = vadd.f32 %v97, %v98
  %v100 = vsel %vm82, %v26, 0.0
  %v101 = vadd.f32 %v99, %v100
  %v102 = vsel %vm82, %v27, 0.0
  %v103 = vadd.f32 %v101, %v102
  %v104 = vsel %vm82, %v28, 0.0
  %v105 = vadd.f32 %v103, %v104
  %v106 = vsel %vm82, %v29, 0.0
  %v107 = vadd.f32 %v105, %v106
  %v108 = vsel %vm82, %v30, 0.0
  %v109 = vadd.f32 %v107, %v108
  %v110 = vsel %vm82, %v31, 0.0
  %v111 = vadd.f32 %v109, %v110
  %v112 = vsel %vm82, %v32, 0.0
  %v113 = vadd.f32 %v111, %v112
  %v114 = vsel %vm82, %v33, 0.0
  %v115 = vadd.f32 %v113, %v114
  %v116 = vsel %vm82, %v34, 0.0
  %v117 = vadd.f32 %v115, %v116
  %v118 = vsel %vm82, %v35, 0.0
  %v119 = vadd.f32 %v117, %v118
  %v120 = vsel %vm82, %v36, 0.0
  %v121 = vadd.f32 %v119, %v120
  %v122 = vsel %vm82, %v37, 0.0
  %v123 = vadd.f32 %v121, %v122
  %v124 = vsel %vm82, %v38, 0.0
  %v125 = vadd.f32 %v123, %v124
  %v126 = vsel %vm82, %v39, 0.0
  %v127 = vadd.f32 %v125, %v126
  %v128 = vsel %vm82, %v40, 0.0
  %v129 = vadd.f32 %v127, %v128
  %v130 = vsel %vm82, %v41, 0.0
  %v131 = vadd.f32 %v129, %v130
  %v132 = vsel %vm82, %v42, 0.0
  %v133 = vadd.f32 %v131, %v132
  %v134 = vsel %vm82, %v43, 0.0
  %v135 = vadd.f32 %v133, %v134
  %v136 = vsel %vm82, %v44, 0.0
  %v137 = vadd.f32 %v135, %v136
  %v138 = vsel %vm82, %v45, 0.0
  %v139 = vadd.f32 %v137, %v138
  %v140 = vsel %vm82, %v46, 0.0
  %v141 = vadd.f32 %v139, %v140
  %v142 = vsel %vm82, %v47, 0.0
  %v143 = vadd.f32 %v141, %v142
  %v144 = vsel %vm82, %v48, 0.0
  %v145 = vadd.f32 %v143, %v144
  %v146 = vsel %vm82, %v49, 0.0
  %v147 = vadd.f32 %v145, %v146
  %v148 = vsel %vm82, %v50, 0.0
  %v149 = vadd.f32 %v147, %v148
  %v150 = vsel %vm82, %v51, 0.0
  %v151 = vadd.f32 %v149, %v150
  %v152 = vsel %vm82, %v52, 0.0
  %v153 = vadd.f32 %v151, %v152
  %v154 = vsel %vm82, %v53, 0.0
  %v155 = vadd.f32 %v153, %v154
  %v156 = vsel %vm82, %v54, 0.0
  %v157 = vadd.f32 %v155, %v156
  %v158 = vsel %vm82, %v55, 0.0
  %v159 = vadd.f32 %v157, %v158
  %v160 = vsel %vm82, %v56, 0.0
  %v161 = vadd.f32 %v159, %v160
  %v162 = vsel %vm82, %v57, 0.0
  %v163 = vadd.f32 %v161, %v162
  %v164 = vsel %vm82, %v58, 0.0
  %v165 = vadd.f32 %v163, %v164
  %v166 = vsel %vm82, %v59, 0.0
  %v167 = vadd.f32 %v165, %v166
  %v168 = vsel %vm82, %v60, 0.0
  %v169 = vadd.f32 %v167, %v168
  %v170 = vsel %vm82, %v61, 0.0
  %v171 = vadd.f32 %v169, %v170
  %v172 = vsel %vm82, %v62, 0.0
  %v173 = vadd.f32 %v171, %v172
  %v174 = vsel %vm82, %v63, 0.0
  %v175 = vadd.f32 %v173, %v174
  %v176 = vsel %vm82, %v64, 0.0
  %v177 = vadd.f32 %v175, %v176
  %v178 = vsel %vm82, %v65, 0.0
  %v179 = vadd.f32 %v177, %v178
  %v180 = vsel %vm82, %v66, 0.0
  %v181 = vadd.f32 %v179, %v180
  %v182 = vsel %vm82, %v67, 0.0
  %v183 = vadd.f32 %v181, %v182
  %v184 = vsel %vm82, %v68, 0.0
  %v185 = vadd.f32 %v183, %v184
  %v186 = vsel %vm82, %v69, 0.0
  %v187 = vadd.f32 %v185, %v186
  %v188 = vsel %vm82, %v70, 0.0
  %v189 = vadd.f32 %v187, %v188
  %v190 = vsel %vm82, %v71, 0.0
  %v191 = vadd.f32 %v189, %v190
  %v192 = vsel %vm82, %v72, 0.0
  %v193 = vadd.f32 %v191, %v192
  %v194 = vsel %vm82, %v73, 0.0
  %v195 = vadd.f32 %v193, %v194
  %v196 = vsel %vm82, %v74, 0.0
  %v197 = vadd.f32 %v195, %v196
  %v198 = vsel %vm82, %v75, 0.0
  %v199 = vadd.f32 %v197, %v198
  %v200 = vsel %vm82, %v76, 0.0
  %v201 = vadd.f32 %v199, %v200
  %v202 = vsel %vm82, %v77, 0.0
  %v203 = vadd.f32 %v201, %v202
  %v204 = vsel %vm82, %v78, 0.0
  %v205 = vadd.f32 %v203, %v204
  %v206 = vsel %vm82, %v79, 0.0
  %v207 = vadd.f32 %v205, %v206
  %v208 = vsel %vm82, %v80, 0.0
  %v209 = vadd.f32 %v207, %v208
  %v210 = vrot.slane %v209, 4
  %v211 = vadd.f32 %v209, %v210
  %v212 = vrot.slane %v211, 2
  %v213 = vadd.f32 %v211, %v212
  %v214 = vrot.slane %v213, 1
  %v215 = vadd.f32 %v213, %v214
  %v216 = vadd.f32 %v81, %v215
  %vm217 = vcmask 57344
  %218 = vst.msk [vmem:[%s1] sm:$0x1] %vm217, %v216
  %v219 = vld [vmem:[%s2] sm:$0x1]
  %v220 = vmul.f32 %v17, %v17
  %v221 = vmul.f32 %v18, %v18
  %v222 = vmul.f32 %v19, %v19
  %v223 = vmul.f32 %v20, %v20
  %v224 = vmul.f32 %v21, %v21
  %v225 = vmul.f32 %v22, %v22
  %v226 = vmul.f32 %v23, %v23
  %v227 = vmul.f32 %v24, %v24
  %v228 = vmul.f32 %v25, %v25
  %v229 = vmul.f32 %v26, %v26
  %v230 = vmul.f32 %v27, %v27
  %v231 = vmul.f32 %v28, %v28
  %v232 = vmul.f32 %v29, %v29
  %v233 = vmul.f32 %v30, %v30
  %v234 = vmul.f32 %v31, %v31
  %v235 = vmul.f32 %v32, %v32
  %v236 = vmul.f32 %v33, %v33
  %v237 = vmul.f32 %v34, %v34
  %v238 = vmul.f32 %v35, %v35
  %v239 = vmul.f32 %v36, %v36
  %v240 = vmul.f32 %v37, %v37
  %v241 = vmul.f32 %v38, %v38
  %v242 = vmul.f32 %v39, %v39
  %v243 = vmul.f32 %v40, %v40
  %v244 = vmul.f32 %v41, %v41
  %v245 = vmul.f32 %v42, %v42
  %v246 = vmul.f32 %v43, %v43
  %v247 = vmul.f32 %v44, %v44
  %v248 = vmul.f32 %v45, %v45
  %v249 = vmul.f32 %v46, %v46
  %v250 = vmul.f32 %v47, %v47
  %v251 = vmul.f32 %v48, %v48
  %v252 = vmul.f32 %v49, %v49
  %v253 = vmul.f32 %v50, %v50
  %v254 = vmul.f32 %v51, %v51
  %v255 = vmul.f32 %v52, %v52
  %v256 = vmul.f32 %v53, %v53
  %v257 = vmul.f32 %v54, %v54
  %v258 = vmul.f32 %v55, %v55
  %v259 = vmul.f32 %v56, %v56
  %v260 = vmul.f32 %v57, %v57
  %v261 = vmul.f32 %v58, %v58
  %v262 = vmul.f32 %v59, %v59
  %v263 = vmul.f32 %v60, %v60
  %v264 = vmul.f32 %v61, %v61
  %v265 = vmul.f32 %v62, %v62
  %v266 = vmul.f32 %v63, %v63
  %v267 = vmul.f32 %v64, %v64
  %v268 = vmul.f32 %v65, %v65
  %v269 = vmul.f32 %v66, %v66
  %v270 = vmul.f32 %v67, %v67
  %v271 = vmul.f32 %v68, %v68
  %v272 = vmul.f32 %v69, %v69
  %v273 = vmul.f32 %v70, %v70
  %v274 = vmul.f32 %v71, %v71
  %v275 = vmul.f32 %v72, %v72
  %v276 = vmul.f32 %v73, %v73
  %v277 = vmul.f32 %v74, %v74
  %v278 = vmul.f32 %v75, %v75
  %v279 = vmul.f32 %v76, %v76
  %v280 = vmul.f32 %v77, %v77
  %v281 = vmul.f32 %v78, %v78
  %v282 = vmul.f32 %v79, %v79
  %v283 = vmul.f32 %v80, %v80
  %v284 = vsel %vm82, %v220, 0.0
  %v285 = vsel %vm82, %v221, 0.0
  %v286 = vadd.f32 %v284, %v285
  %v287 = vsel %vm82, %v222, 0.0
  %v288 = vadd.f32 %v286, %v287
  %v289 = vsel %vm82, %v223, 0.0
  %v290 = vadd.f32 %v288, %v289
  %v291 = vsel %vm82, %v224, 0.0
  %v292 = vadd.f32 %v290, %v291
  %v293 = vsel %vm82, %v225, 0.0
  %v294 = vadd.f32 %v292, %v293
  %v295 = vsel %vm82, %v226, 0.0
  %v296 = vadd.f32 %v294, %v295
  %v297 = vsel %vm82, %v227, 0.0
  %v298 = vadd.f32 %v296, %v297
  %v299 = vsel %vm82, %v228, 0.0
  %v300 = vadd.f32 %v298, %v299
  %v301 = vsel %vm82, %v229, 0.0
  %v302 = vadd.f32 %v300, %v301
  %v303 = vsel %vm82, %v230, 0.0
  %v304 = vadd.f32 %v302, %v303
  %v305 = vsel %vm82, %v231, 0.0
  %v306 = vadd.f32 %v304, %v305
  %v307 = vsel %vm82, %v232, 0.0
  %v308 = vadd.f32 %v306, %v307
  %v309 = vsel %vm82, %v233, 0.0
  %v310 = vadd.f32 %v308, %v309
  %v311 = vsel %vm82, %v234, 0.0
  %v312 = vadd.f32 %v310, %v311
  %v313 = vsel %vm82, %v235, 0.0
  %v314 = vadd.f32 %v312, %v313
  %v315 = vsel %vm82, %v236, 0.0
  %v316 = vadd.f32 %v314, %v315
  %v317 = vsel %vm82, %v237, 0.0
  %v318 = vadd.f32 %v316, %v317
  %v319 = vsel %vm82, %v238, 0.0
  %v320 = vadd.f32 %v318, %v319
  %v321 = vsel %vm82, %v239, 0.0
  %v322 = vadd.f32 %v320, %v321
  %v323 = vsel %vm82, %v240, 0.0
  %v324 = vadd.f32 %v322, %v323
  %v325 = vsel %vm82, %v241, 0.0
  %v326 = vadd.f32 %v324, %v325
  %v327 = vsel %vm82, %v242, 0.0
  %v328 = vadd.f32 %v326, %v327
  %v329 = vsel %vm82, %v243, 0.0
  %v330 = vadd.f32 %v328, %v329
  %v331 = vsel %vm82, %v244, 0.0
  %v332 = vadd.f32 %v330, %v331
  %v333 = vsel %vm82, %v245, 0.0
  %v334 = vadd.f32 %v332, %v333
  %v335 = vsel %vm82, %v246, 0.0
  %v336 = vadd.f32 %v334, %v335
  %v337 = vsel %vm82, %v247, 0.0
  %v338 = vadd.f32 %v336, %v337
  %v339 = vsel %vm82, %v248, 0.0
  %v340 = vadd.f32 %v338, %v339
  %v341 = vsel %vm82, %v249, 0.0
  %v342 = vadd.f32 %v340, %v341
  %v343 = vsel %vm82, %v250, 0.0
  %v344 = vadd.f32 %v342, %v343
  %v345 = vsel %vm82, %v251, 0.0
  %v346 = vadd.f32 %v344, %v345
  %v347 = vsel %vm82, %v252, 0.0
  %v348 = vadd.f32 %v346, %v347
  %v349 = vsel %vm82, %v253, 0.0
  %v350 = vadd.f32 %v348, %v349
  %v351 = vsel %vm82, %v254, 0.0
  %v352 = vadd.f32 %v350, %v351
  %v353 = vsel %vm82, %v255, 0.0
  %v354 = vadd.f32 %v352, %v353
  %v355 = vsel %vm82, %v256, 0.0
  %v356 = vadd.f32 %v354, %v355
  %v357 = vsel %vm82, %v257, 0.0
  %v358 = vadd.f32 %v356, %v357
  %v359 = vsel %vm82, %v258, 0.0
  %v360 = vadd.f32 %v358, %v359
  %v361 = vsel %vm82, %v259, 0.0
  %v362 = vadd.f32 %v360, %v361
  %v363 = vsel %vm82, %v260, 0.0
  %v364 = vadd.f32 %v362, %v363
  %v365 = vsel %vm82, %v261, 0.0
  %v366 = vadd.f32 %v364, %v365
  %v367 = vsel %vm82, %v262, 0.0
  %v368 = vadd.f32 %v366, %v367
  %v369 = vsel %vm82, %v263, 0.0
  %v370 = vadd.f32 %v368, %v369
  %v371 = vsel %vm82, %v264, 0.0
  %v372 = vadd.f32 %v370, %v371
  %v373 = vsel %vm82, %v265, 0.0
  %v374 = vadd.f32 %v372, %v373
  %v375 = vsel %vm82, %v266, 0.0
  %v376 = vadd.f32 %v374, %v375
  %v377 = vsel %vm82, %v267, 0.0
  %v378 = vadd.f32 %v376, %v377
  %v379 = vsel %vm82, %v268, 0.0
  %v380 = vadd.f32 %v378, %v379
  %v381 = vsel %vm82, %v269, 0.0
  %v382 = vadd.f32 %v380, %v381
  %v383 = vsel %vm82, %v270, 0.0
  %v384 = vadd.f32 %v382, %v383
  %v385 = vsel %vm82, %v271, 0.0
  %v386 = vadd.f32 %v384, %v385
  %v387 = vsel %vm82, %v272, 0.0
  %v388 = vadd.f32 %v386, %v387
  %v389 = vsel %vm82, %v273, 0.0
  %v390 = vadd.f32 %v388, %v389
  %v391 = vsel %vm82, %v274, 0.0
  %v392 = vadd.f32 %v390, %v391
  %v393 = vsel %vm82, %v275, 0.0
  %v394 = vadd.f32 %v392, %v393
  %v395 = vsel %vm82, %v276, 0.0
  %v396 = vadd.f32 %v394, %v395
  %v397 = vsel %vm82, %v277, 0.0
  %v398 = vadd.f32 %v396, %v397
  %v399 = vsel %vm82, %v278, 0.0
  %v400 = vadd.f32 %v398, %v399
  %v401 = vsel %vm82, %v279, 0.0
  %v402 = vadd.f32 %v400, %v401
  %v403 = vsel %vm82, %v280, 0.0
  %v404 = vadd.f32 %v402, %v403
  %v405 = vsel %vm82, %v281, 0.0
  %v406 = vadd.f32 %v404, %v405
  %v407 = vsel %vm82, %v282, 0.0
  %v408 = vadd.f32 %v406, %v407
  %v409 = vsel %vm82, %v283, 0.0
  %v410 = vadd.f32 %v408, %v409
  %v411 = vrot.slane %v410, 4
  %v412 = vadd.f32 %v410, %v411
  %v413 = vrot.slane %v412, 2
  %v414 = vadd.f32 %v412, %v413
  %v415 = vrot.slane %v414, 1
  %v416 = vadd.f32 %v414, %v415
  %v417 = vadd.f32 %v219, %v416
  %418 = vst.msk [vmem:[%s2] sm:$0x1] %vm217, %v417
  // Predicated region
  $region10: #{fwd.71} parent=0 // pred_check
    _
  $region11: #{fwd.71} parent=0 // pred_check_branch
    %420 = sbr.rel (0) target = $region13
  $region12: #{fwd.71} parent=0 // pred_region
    _
  $region13: #{fwd.71} parent=0 // pred_fallthru
    _
  // Predicated region
  $region14: #{fwd.71} parent=0 // pred_check
    _
  $region15: #{fwd.71} parent=0 // pred_check_branch
    %422 = sbr.rel (0) target = $region17
  $region16: #{fwd.71} parent=0 // pred_region
    _
  $region17: #{fwd.71} parent=0 // pred_fallthru
    _
  // Predicated region
  $region18: #{fwd.71} parent=0 // pred_check
    _
  $region19: #{fwd.71} parent=0 // pred_check_branch
    %424 = sbr.rel (0) target = $region21
  $region20: #{fwd.71} parent=0 // pred_region
    _
  $region21: #{fwd.71} parent=0 // pred_fallthru
    _
  // Predicated region
  $region22: #{fwd.71} parent=0 // pred_check
    _
  $region23: #{fwd.71} parent=0 // pred_check_branch
    %426 = sbr.rel (0) target = $region25
  $region24: #{fwd.71} parent=0 // pred_region
    _
  $region25: #{fwd.71} parent=0 // pred_fallthru
    _

// kernel: fwd.70
$region0: #{fwd.70}
  #allocation0 [shape = 'u32[]', space=smem, size = 0x4, offset = 0x4, fixed_abs, tag = 'smem constant byte address 0x4 - core index']
  #allocation1 [shape = 'u32[144,128]{1,0:T(1,128)}', space=vmem, size = 0x12000, scoped, tag = 'internal scratch']
  #allocation2 [shape = 'f32[512,128]{1,0:T(8,128)}', space=vmem, size = 0x40000, scoped, tag = 'scratch operand']
  %s0 = inlined_call_operand.vmem [shape: bf16[512,147], index: 0, kind: input, shape index: {}]
  %s1 = inlined_call_operand.vmem [shape: bf16[147,128], index: 1, kind: input, shape index: {}]
  %s2 = inlined_call_operand.vmem [shape: f32[512,8], index: 2, kind: output, shape index: {}]
  %s3 = sld [smem:[#allocation0]]
  $region26: #{fwd.70} parent=0
    _
  %s5 = ssub.s32 1, %s3
  %s6 = scalar_select 0, %s5, %s3
  // Predicated region
  $region2: #{fwd.70} parent=0 // pred_check
    _
  $region3: #{fwd.70} parent=0 // pred_check_branch
    %8 = sbr.rel (0) target = $region5
  $region4: #{fwd.70} parent=0 // pred_region
    _
  $region5: #{fwd.70} parent=0 // pred_fallthru
    _
  // Predicated region
  $region6: #{fwd.70} parent=0 // pred_check
    _
  $region7: #{fwd.70} parent=0 // pred_check_branch
    %10 = sbr.rel (0) target = $region9
  $region8: #{fwd.70} parent=0 // pred_region
    _
  $region9: #{fwd.70} parent=0 // pred_fallthru
    _
  %p12 = scmp.eq.s32.totalorder 0, 0
  // Predicated region
  $region10: #{fwd.70} parent=0 // pred_check
    %p13 = pneg %p12
  $region11: #{fwd.70} parent=0 // pred_check_branch
    %15 = sbr.rel (%p13) target = $region13
  $region12: #{fwd.70} parent=0 // pred_region
    %16 = vst [vmem:[#allocation2] sm:$0xff] 0.0
    %17 = vst [vmem:[#allocation2 + $0x8] sm:$0xff] 0.0
    %18 = vst [vmem:[#allocation2 + $0x10] sm:$0xff] 0.0
    %19 = vst [vmem:[#allocation2 + $0x18] sm:$0xff] 0.0
    %20 = vst [vmem:[#allocation2 + $0x20] sm:$0xff] 0.0
    %21 = vst [vmem:[#allocation2 + $0x28] sm:$0xff] 0.0
    %22 = vst [vmem:[#allocation2 + $0x30] sm:$0xff] 0.0
    %23 = vst [vmem:[#allocation2 + $0x38] sm:$0xff] 0.0
    %24 = vst [vmem:[#allocation2 + $0x40] sm:$0xff] 0.0
    %25 = vst [vmem:[#allocation2 + $0x48] sm:$0xff] 0.0
    %26 = vst [vmem:[#allocation2 + $0x50] sm:$0xff] 0.0
    %27 = vst [vmem:[#allocation2 + $0x58] sm:$0xff] 0.0
    %28 = vst [vmem:[#allocation2 + $0x60] sm:$0xff] 0.0
    %29 = vst [vmem:[#allocation2 + $0x68] sm:$0xff] 0.0
    %30 = vst [vmem:[#allocation2 + $0x70] sm:$0xff] 0.0
    %31 = vst [vmem:[#allocation2 + $0x78] sm:$0xff] 0.0
    %32 = vst [vmem:[#allocation2 + $0x80] sm:$0xff] 0.0
    %33 = vst [vmem:[#allocation2 + $0x88] sm:$0xff] 0.0
    %34 = vst [vmem:[#allocation2 + $0x90] sm:$0xff] 0.0
    %35 = vst [vmem:[#allocation2 + $0x98] sm:$0xff] 0.0
    %36 = vst [vmem:[#allocation2 + $0xa0] sm:$0xff] 0.0
    %37 = vst [vmem:[#allocation2 + $0xa8] sm:$0xff] 0.0
    %38 = vst [vmem:[#allocation2 + $0xb0] sm:$0xff] 0.0
    %39 = vst [vmem:[#allocation2 + $0xb8] sm:$0xff] 0.0
    %40 = vst [vmem:[#allocation2 + $0xc0] sm:$0xff] 0.0
    %41 = vst [vmem:[#allocation2 + $0xc8] sm:$0xff] 0.0
    %42 = vst [vmem:[#allocation2 + $0xd0] sm:$0xff] 0.0
    %43 = vst [vmem:[#allocation2 + $0xd8] sm:$0xff] 0.0
    %44 = vst [vmem:[#allocation2 + $0xe0] sm:$0xff] 0.0
    %45 = vst [vmem:[#allocation2 + $0xe8] sm:$0xff] 0.0
    %46 = vst [vmem:[#allocation2 + $0xf0] sm:$0xff] 0.0
    %47 = vst [vmem:[#allocation2 + $0xf8] sm:$0xff] 0.0
    %48 = vst [vmem:[#allocation2 + $0x100] sm:$0xff] 0.0
    %49 = vst [vmem:[#allocation2 + $0x108] sm:$0xff] 0.0
    %50 = vst [vmem:[#allocation2 + $0x110] sm:$0xff] 0.0
    %51 = vst [vmem:[#allocation2 + $0x118] sm:$0xff] 0.0
    %52 = vst [vmem:[#allocation2 + $0x120] sm:$0xff] 0.0
    %53 = vst [vmem:[#allocation2 + $0x128] sm:$0xff] 0.0
    %54 = vst [vmem:[#allocation2 + $0x130] sm:$0xff] 0.0
    %55 = vst [vmem:[#allocation2 + $0x138] sm:$0xff] 0.0
    %56 = vst [vmem:[#allocation2 + $0x140] sm:$0xff] 0.0
    %57 = vst [vmem:[#allocation2 + $0x148] sm:$0xff] 0.0
    %58 = vst [vmem:[#allocation2 + $0x150] sm:$0xff] 0.0
    %59 = vst [vmem:[#allocation2 + $0x158] sm:$0xff] 0.0
    %60 = vst [vmem:[#allocation2 + $0x160] sm:$0xff] 0.0
    %61 = vst [vmem:[#allocation2 + $0x168] sm:$0xff] 0.0
    %62 = vst [vmem:[#allocation2 + $0x170] sm:$0xff] 0.0
    %63 = vst [vmem:[#allocation2 + $0x178] sm:$0xff] 0.0
    %64 = vst [vmem:[#allocation2 + $0x180] sm:$0xff] 0.0
    %65 = vst [vmem:[#allocation2 + $0x188] sm:$0xff] 0.0
    %66 = vst [vmem:[#allocation2 + $0x190] sm:$0xff] 0.0
    %67 = vst [vmem:[#allocation2 + $0x198] sm:$0xff] 0.0
    %68 = vst [vmem:[#allocation2 + $0x1a0] sm:$0xff] 0.0
    %69 = vst [vmem:[#allocation2 + $0x1a8] sm:$0xff] 0.0
    %70 = vst [vmem:[#allocation2 + $0x1b0] sm:$0xff] 0.0
    %71 = vst [vmem:[#allocation2 + $0x1b8] sm:$0xff] 0.0
    %72 = vst [vmem:[#allocation2 + $0x1c0] sm:$0xff] 0.0
    %73 = vst [vmem:[#allocation2 + $0x1c8] sm:$0xff] 0.0
    %74 = vst [vmem:[#allocation2 + $0x1d0] sm:$0xff] 0.0
    %75 = vst [vmem:[#allocation2 + $0x1d8] sm:$0xff] 0.0
    %76 = vst [vmem:[#allocation2 + $0x1e0] sm:$0xff] 0.0
    %77 = vst [vmem:[#allocation2 + $0x1e8] sm:$0xff] 0.0
    %78 = vst [vmem:[#allocation2 + $0x1f0] sm:$0xff] 0.0
    %79 = vst [vmem:[#allocation2 + $0x1f8] sm:$0xff] 0.0
  $region13: #{fwd.70} parent=0 // pred_fallthru
    _
  %v80 = vld [vmem:[%s0] sm:$0xff]
  %v81 = vld [vmem:[%s0 + $0x8] sm:$0xff]
  %v82 = vld [vmem:[%s0 + $0x10] sm:$0xff]
  %v83 = vld [vmem:[%s0 + $0x18] sm:$0xff]
  %v84 = vld [vmem:[%s0 + $0x20] sm:$0xff]
  %v85 = vld [vmem:[%s0 + $0x28] sm:$0xff]
  %v86 = vld [vmem:[%s0 + $0x30] sm:$0xff]
  %v87 = vld [vmem:[%s0 + $0x38] sm:$0xff]
  %v88 = vld [vmem:[%s0 + $0x40] sm:$0xff]
  %v89 = vld [vmem:[%s0 + $0x48] sm:$0xff]
  %v90 = vld [vmem:[%s0 + $0x50] sm:$0xff]
  %v91 = vld [vmem:[%s0 + $0x58] sm:$0xff]
  %v92 = vld [vmem:[%s0 + $0x60] sm:$0xff]
  %v93 = vld [vmem:[%s0 + $0x68] sm:$0xff]
  %v94 = vld [vmem:[%s0 + $0x70] sm:$0xff]
  %v95 = vld [vmem:[%s0 + $0x78] sm:$0xff]
  %v96 = vld [vmem:[%s0 + $0x80] sm:$0xff]
  %v97 = vld [vmem:[%s0 + $0x88] sm:$0xff]
  %v98 = vld [vmem:[%s0 + $0x90] sm:$0xff]
  %v99 = vld [vmem:[%s0 + $0x98] sm:$0xff]
  %v100 = vld [vmem:[%s0 + $0xa0] sm:$0xff]
  %v101 = vld [vmem:[%s0 + $0xa8] sm:$0xff]
  %v102 = vld [vmem:[%s0 + $0xb0] sm:$0xff]
  %v103 = vld [vmem:[%s0 + $0xb8] sm:$0xff]
  %v104 = vld [vmem:[%s0 + $0xc0] sm:$0xff]
  %v105 = vld [vmem:[%s0 + $0xc8] sm:$0xff]
  %v106 = vld [vmem:[%s0 + $0xd0] sm:$0xff]
  %v107 = vld [vmem:[%s0 + $0xd8] sm:$0xff]
  %v108 = vld [vmem:[%s0 + $0xe0] sm:$0xff]
  %v109 = vld [vmem:[%s0 + $0xe8] sm:$0xff]
  %v110 = vld [vmem:[%s0 + $0xf0] sm:$0xff]
  %v111 = vld [vmem:[%s0 + $0xf8] sm:$0xff]
  %v112 = vld [vmem:[%s0 + $0x100] sm:$0xff]
  %v113 = vld [vmem:[%s0 + $0x108] sm:$0xff]
  %v114 = vld [vmem:[%s0 + $0x110] sm:$0xff]
  %v115 = vld [vmem:[%s0 + $0x118] sm:$0xff]
  %v116 = vld [vmem:[%s0 + $0x120] sm:$0xff]
  %v117 = vld [vmem:[%s0 + $0x128] sm:$0xff]
  %v118 = vld [vmem:[%s0 + $0x130] sm:$0xff]
  %v119 = vld [vmem:[%s0 + $0x138] sm:$0xff]
  %v120 = vld [vmem:[%s0 + $0x140] sm:$0xff]
  %v121 = vld [vmem:[%s0 + $0x148] sm:$0xff]
  %v122 = vld [vmem:[%s0 + $0x150] sm:$0xff]
  %v123 = vld [vmem:[%s0 + $0x158] sm:$0xff]
  %v124 = vld [vmem:[%s0 + $0x160] sm:$0xff]
  %v125 = vld [vmem:[%s0 + $0x168] sm:$0xff]
  %v126 = vld [vmem:[%s0 + $0x170] sm:$0xff]
  %v127 = vld [vmem:[%s0 + $0x178] sm:$0xff]
  %v128 = vld [vmem:[%s0 + $0x180] sm:$0xff]
  %v129 = vld [vmem:[%s0 + $0x188] sm:$0xff]
  %v130 = vld [vmem:[%s0 + $0x190] sm:$0xff]
  %v131 = vld [vmem:[%s0 + $0x198] sm:$0xff]
  %v132 = vld [vmem:[%s0 + $0x1a0] sm:$0xff]
  %v133 = vld [vmem:[%s0 + $0x1a8] sm:$0xff]
  %v134 = vld [vmem:[%s0 + $0x1b0] sm:$0xff]
  %v135 = vld [vmem:[%s0 + $0x1b8] sm:$0xff]
  %v136 = vld [vmem:[%s0 + $0x1c0] sm:$0xff]
  %v137 = vld [vmem:[%s0 + $0x1c8] sm:$0xff]
  %v138 = vld [vmem:[%s0 + $0x1d0] sm:$0xff]
  %v139 = vld [vmem:[%s0 + $0x1d8] sm:$0xff]
  %v140 = vld [vmem:[%s0 + $0x1e0] sm:$0xff]
  %v141 = vld [vmem:[%s0 + $0x1e8] sm:$0xff]
  %v142 = vld [vmem:[%s0 + $0x1f0] sm:$0xff]
  %v143 = vld [vmem:[%s0 + $0x1f8] sm:$0xff]
  %v144 = vld [vmem:[%s1] sm:$0xf]
  %v145 = vld [vmem:[%s1 + $0x4] sm:$0xf]
  %v146 = vld [vmem:[%s1 + $0x8] sm:$0xf]
  %v147 = vld [vmem:[%s1 + $0xc] sm:$0xf]
  %v148 = vld [vmem:[%s1 + $0x10] sm:$0xf]
  %v149 = vld [vmem:[%s1 + $0x14] sm:$0xf]
  %v150 = vld [vmem:[%s1 + $0x18] sm:$0xf]
  %v151 = vld [vmem:[%s1 + $0x1c] sm:$0xf]
  %v152 = vld [vmem:[%s1 + $0x20] sm:$0xf]
  %v153 = vld [vmem:[%s1 + $0x24] sm:$0xf]
  %v154 = vld [vmem:[%s1 + $0x28] sm:$0xf]
  %v155 = vld [vmem:[%s1 + $0x2c] sm:$0xf]
  %v156 = vld [vmem:[%s1 + $0x30] sm:$0xf]
  %v157 = vld [vmem:[%s1 + $0x34] sm:$0xf]
  %v158 = vld [vmem:[%s1 + $0x38] sm:$0xf]
  %v159 = vld [vmem:[%s1 + $0x3c] sm:$0xf]
  %v160 = vld [vmem:[%s1 + $0x40] sm:$0xf]
  %v161 = vld [vmem:[%s1 + $0x44] sm:$0xf]
  %v162 = vld [vmem:[%s1 + $0x48] sm:$0x3]
  %v163 = vld [vmem:[#allocation2] sm:$0xff]
  %v164 = vld [vmem:[#allocation2 + $0x8] sm:$0xff]
  %v165 = vld [vmem:[#allocation2 + $0x10] sm:$0xff]
  %v166 = vld [vmem:[#allocation2 + $0x18] sm:$0xff]
  %v167 = vld [vmem:[#allocation2 + $0x20] sm:$0xff]
  %v168 = vld [vmem:[#allocation2 + $0x28] sm:$0xff]
  %v169 = vld [vmem:[#allocation2 + $0x30] sm:$0xff]
  %v170 = vld [vmem:[#allocation2 + $0x38] sm:$0xff]
  %v171 = vld [vmem:[#allocation2 + $0x40] sm:$0xff]
  %v172 = vld [vmem:[#allocation2 + $0x48] sm:$0xff]
  %v173 = vld [vmem:[#allocation2 + $0x50] sm:$0xff]
  %v174 = vld [vmem:[#allocation2 + $0x58] sm:$0xff]
  %v175 = vld [vmem:[#allocation2 + $0x60] sm:$0xff]
  %v176 = vld [vmem:[#allocation2 + $0x68] sm:$0xff]
  %v177 = vld [vmem:[#allocation2 + $0x70] sm:$0xff]
  %v178 = vld [vmem:[#allocation2 + $0x78] sm:$0xff]
  %v179 = vld [vmem:[#allocation2 + $0x80] sm:$0xff]
  %v180 = vld [vmem:[#allocation2 + $0x88] sm:$0xff]
  %v181 = vld [vmem:[#allocation2 + $0x90] sm:$0xff]
  %v182 = vld [vmem:[#allocation2 + $0x98] sm:$0xff]
  %v183 = vld [vmem:[#allocation2 + $0xa0] sm:$0xff]
  %v184 = vld [vmem:[#allocation2 + $0xa8] sm:$0xff]
  %v185 = vld [vmem:[#allocation2 + $0xb0] sm:$0xff]
  %v186 = vld [vmem:[#allocation2 + $0xb8] sm:$0xff]
  %v187 = vld [vmem:[#allocation2 + $0xc0] sm:$0xff]
  %v188 = vld [vmem:[#allocation2 + $0xc8] sm:$0xff]
  %v189 = vld [vmem:[#allocation2 + $0xd0] sm:$0xff]
  %v190 = vld [vmem:[#allocation2 + $0xd8] sm:$0xff]
  %v191 = vld [vmem:[#allocation2 + $0xe0] sm:$0xff]
  %v192 = vld [vmem:[#allocation2 + $0xe8] sm:$0xff]
  %v193 = vld [vmem:[#allocation2 + $0xf0] sm:$0xff]
  %v194 = vld [vmem:[#allocation2 + $0xf8] sm:$0xff]
  %v195 = vld [vmem:[#allocation2 + $0x100] sm:$0xff]
  %v196 = vld [vmem:[#allocation2 + $0x108] sm:$0xff]
  %v197 = vld [vmem:[#allocation2 + $0x110] sm:$0xff]
  %v198 = vld [vmem:[#allocation2 + $0x118] sm:$0xff]
  %v199 = vld [vmem:[#allocation2 + $0x120] sm:$0xff]
  %v200 = vld [vmem:[#allocation2 + $0x128] sm:$0xff]
  %v201 = vld [vmem:[#allocation2 + $0x130] sm:$0xff]
  %v202 = vld [vmem:[#allocation2 + $0x138] sm:$0xff]
  %v203 = vld [vmem:[#allocation2 + $0x140] sm:$0xff]
  %v204 = vld [vmem:[#allocation2 + $0x148] sm:$0xff]
  %v205 = vld [vmem:[#allocation2 + $0x150] sm:$0xff]
  %v206 = vld [vmem:[#allocation2 + $0x158] sm:$0xff]
  %v207 = vld [vmem:[#allocation2 + $0x160] sm:$0xff]
  %v208 = vld [vmem:[#allocation2 + $0x168] sm:$0xff]
  %v209 = vld [vmem:[#allocation2 + $0x170] sm:$0xff]
  %v210 = vld [vmem:[#allocation2 + $0x178] sm:$0xff]
  %v211 = vld [vmem:[#allocation2 + $0x180] sm:$0xff]
  %v212 = vld [vmem:[#allocation2 + $0x188] sm:$0xff]
  %v213 = vld [vmem:[#allocation2 + $0x190] sm:$0xff]
  %v214 = vld [vmem:[#allocation2 + $0x198] sm:$0xff]
  %v215 = vld [vmem:[#allocation2 + $0x1a0] sm:$0xff]
  %v216 = vld [vmem:[#allocation2 + $0x1a8] sm:$0xff]
  %v217 = vld [vmem:[#allocation2 + $0x1b0] sm:$0xff]
  %v218 = vld [vmem:[#allocation2 + $0x1b8] sm:$0xff]
  %v219 = vld [vmem:[#allocation2 + $0x1c0] sm:$0xff]
  %v220 = vld [vmem:[#allocation2 + $0x1c8] sm:$0xff]
  %v221 = vld [vmem:[#allocation2 + $0x1d0] sm:$0xff]
  %v222 = vld [vmem:[#allocation2 + $0x1d8] sm:$0xff]
  %v223 = vld [vmem:[#allocation2 + $0x1e0] sm:$0xff]
  %v224 = vld [vmem:[#allocation2 + $0x1e8] sm:$0xff]
  %v225 = vld [vmem:[#allocation2 + $0x1f0] sm:$0xff]
  %v226 = vld [vmem:[#allocation2 + $0x1f8] sm:$0xff]
  %v291 = vunpack.c.l.b16 %v80
  %v292 = vunpack.c.h.b16 %v80
  %v293 = vunpack.c.l.b16 %v81
  %v294 = vunpack.c.h.b16 %v81
  %v295 = vunpack.c.l.b16 %v82
  %v296 = vunpack.c.h.b16 %v82
  %v297 = vunpack.c.l.b16 %v83
  %v298 = vunpack.c.h.b16 %v83
  %v299 = vunpack.c.l.b16 %v84
  %v300 = vunpack.c.h.b16 %v84
  %v301 = vunpack.c.l.b16 %v85
  %v302 = vunpack.c.h.b16 %v85
  %v303 = vunpack.c.l.b16 %v86
  %v304 = vunpack.c.h.b16 %v86
  %v305 = vunpack.c.l.b16 %v87
  %v306 = vunpack.c.h.b16 %v87
  %v307 = vunpack.c.l.b16 %v88
  %v308 = vunpack.c.h.b16 %v88
  %v309 = vunpack.c.l.b16 %v89
  %v310 = vunpack.c.h.b16 %v89
  %v311 = vunpack.c.l.b16 %v90
  %v312 = vunpack.c.h.b16 %v90
  %v313 = vunpack.c.l.b16 %v91
  %v314 = vunpack.c.h.b16 %v91
  %v315 = vunpack.c.l.b16 %v92
  %v316 = vunpack.c.h.b16 %v92
  %v317 = vunpack.c.l.b16 %v93
  %v318 = vunpack.c.h.b16 %v93
  %v319 = vunpack.c.l.b16 %v94
  %v320 = vunpack.c.h.b16 %v94
  %v321 = vunpack.c.l.b16 %v95
  %v322 = vunpack.c.h.b16 %v95
  %v323 = vunpack.c.l.b16 %v96
  %v324 = vunpack.c.h.b16 %v96
  %v325 = vunpack.c.l.b16 %v97
  %v326 = vunpack.c.h.b16 %v97
  %v327 = vunpack.c.l.b16 %v98
  %v328 = vunpack.c.h.b16 %v98
  %v329 = vunpack.c.l.b16 %v99
  %v330 = vunpack.c.h.b16 %v99
  %v331 = vunpack.c.l.b16 %v100
  %v332 = vunpack.c.h.b16 %v100
  %v333 = vunpack.c.l.b16 %v101
  %v334 = vunpack.c.h.b16 %v101
  %v335 = vunpack.c.l.b16 %v102
  %v336 = vunpack.c.h.b16 %v102
  %v337 = vunpack.c.l.b16 %v103
  %v338 = vunpack.c.h.b16 %v103
  %v339 = vunpack.c.l.b16 %v104
  %v340 = vunpack.c.h.b16 %v104
  %v341 = vunpack.c.l.b16 %v105
  %v342 = vunpack.c.h.b16 %v105
  %v343 = vunpack.c.l.b16 %v106
  %v344 = vunpack.c.h.b16 %v106
  %v345 = vunpack.c.l.b16 %v107
  %v346 = vunpack.c.h.b16 %v107
  %v347 = vunpack.c.l.b16 %v108
  %v348 = vunpack.c.h.b16 %v108
  %v349 = vunpack.c.l.b16 %v109
  %v350 = vunpack.c.h.b16 %v109
  %v351 = vunpack.c.l.b16 %v110
  %v352 = vunpack.c.h.b16 %v110
  %v353 = vunpack.c.l.b16 %v111
  %v354 = vunpack.c.h.b16 %v111
  %v355 = vunpack.c.l.b16 %v112
  %v356 = vunpack.c.h.b16 %v112
  %v357 = vunpack.c.l.b16 %v113
  %v358 = vunpack.c.h.b16 %v113
  %v359 = vunpack.c.l.b16 %v114
  %v360 = vunpack.c.h.b16 %v114
  %v361 = vunpack.c.l.b16 %v115
  %v362 = vunpack.c.h.b16 %v115
  %v363 = vunpack.c.l.b16 %v116
  %v364 = vunpack.c.h.b16 %v116
  %v365 = vunpack.c.l.b16 %v117
  %v366 = vunpack.c.h.b16 %v117
  %v367 = vunpack.c.l.b16 %v118
  %v368 = vunpack.c.h.b16 %v118
  %v369 = vunpack.c.l.b16 %v119
  %v370 = vunpack.c.h.b16 %v119
  %v371 = vunpack.c.l.b16 %v120
  %v372 = vunpack.c.h.b16 %v120
  %v373 = vunpack.c.l.b16 %v121
  %v374 = vunpack.c.h.b16 %v121
  %v375 = vunpack.c.l.b16 %v122
  %v376 = vunpack.c.h.b16 %v122
  %v377 = vunpack.c.l.b16 %v123
  %v378 = vunpack.c.h.b16 %v123
  %v379 = vunpack.c.l.b16 %v124
  %v380 = vunpack.c.h.b16 %v124
  %v381 = vunpack.c.l.b16 %v125
  %v382 = vunpack.c.h.b16 %v125
  %v383 = vunpack.c.l.b16 %v126
  %v384 = vunpack.c.h.b16 %v126
  %v385 = vunpack.c.l.b16 %v127
  %v386 = vunpack.c.h.b16 %v127
  %v387 = vunpack.c.l.b16 %v128
  %v388 = vunpack.c.h.b16 %v128
  %v389 = vunpack.c.l.b16 %v129
  %v390 = vunpack.c.h.b16 %v129
  %v391 = vunpack.c.l.b16 %v130
  %v392 = vunpack.c.h.b16 %v130
  %v393 = vunpack.c.l.b16 %v131
  %v394 = vunpack.c.h.b16 %v131
  %v395 = vunpack.c.l.b16 %v132
  %v396 = vunpack.c.h.b16 %v132
  %v397 = vunpack.c.l.b16 %v133
  %v398 = vunpack.c.h.b16 %v133
  %v399 = vunpack.c.l.b16 %v134
  %v400 = vunpack.c.h.b16 %v134
  %v401 = vunpack.c.l.b16 %v135
  %v402 = vunpack.c.h.b16 %v135
  %v403 = vunpack.c.l.b16 %v136
  %v404 = vunpack.c.h.b16 %v136
  %v405 = vunpack.c.l.b16 %v137
  %v406 = vunpack.c.h.b16 %v137
  %v407 = vunpack.c.l.b16 %v138
  %v408 = vunpack.c.h.b16 %v138
  %v409 = vunpack.c.l.b16 %v139
  %v410 = vunpack.c.h.b16 %v139
  %v411 = vunpack.c.l.b16 %v140
  %v412 = vunpack.c.h.b16 %v140
  %v413 = vunpack.c.l.b16 %v141
  %v414 = vunpack.c.h.b16 %v141
  %v415 = vunpack.c.l.b16 %v142
  %v416 = vunpack.c.h.b16 %v142
  %v417 = vunpack.c.l.b16 %v143
  %v418 = vunpack.c.h.b16 %v143
  %v419 = vpack.c.b16 %v293, %v291
  %v420 = vpack.c.b16 %v294, %v292
  %v421 = vpack.c.b16 %v297, %v295
  %v422 = vpack.c.b16 %v298, %v296
  %v423 = vpack.c.b16 %v301, %v299
  %v424 = vpack.c.b16 %v302, %v300
  %v425 = vpack.c.b16 %v305, %v303
  %v426 = vpack.c.b16 %v306, %v304
  %v427 = vpack.c.b16 %v309, %v307
  %v428 = vpack.c.b16 %v310, %v308
  %v429 = vpack.c.b16 %v313, %v311
  %v430 = vpack.c.b16 %v314, %v312
  %v431 = vpack.c.b16 %v317, %v315
  %v432 = vpack.c.b16 %v318, %v316
  %v433 = vpack.c.b16 %v321, %v319
  %v434 = vpack.c.b16 %v322, %v320
  %v435 = vpack.c.b16 %v325, %v323
  %v436 = vpack.c.b16 %v326, %v324
  %v437 = vpack.c.b16 %v329, %v327
  %v438 = vpack.c.b16 %v330, %v328
  %v439 = vpack.c.b16 %v333, %v331
  %v440 = vpack.c.b16 %v334, %v332
  %v441 = vpack.c.b16 %v337, %v335
  %v442 = vpack.c.b16 %v338, %v336
  %v443 = vpack.c.b16 %v341, %v339
  %v444 = vpack.c.b16 %v342, %v340
  %v445 = vpack.c.b16 %v345, %v343
  %v446 = vpack.c.b16 %v346, %v344
  %v447 = vpack.c.b16 %v349, %v347
  %v448 = vpack.c.b16 %v350, %v348
  %v449 = vpack.c.b16 %v353, %v351
  %v450 = vpack.c.b16 %v354, %v352
  %v451 = vpack.c.b16 %v357, %v355
  %v452 = vpack.c.b16 %v358, %v356
  %v453 = vpack.c.b16 %v361, %v359
  %v454 = vpack.c.b16 %v362, %v360
  %v455 = vpack.c.b16 %v365, %v363
  %v456 = vpack.c.b16 %v366, %v364
  %v457 = vpack.c.b16 %v369, %v367
  %v458 = vpack.c.b16 %v370, %v368
  %v459 = vpack.c.b16 %v373, %v371
  %v460 = vpack.c.b16 %v374, %v372
  %v461 = vpack.c.b16 %v377, %v375
  %v462 = vpack.c.b16 %v378, %v376
  %v463 = vpack.c.b16 %v381, %v379
  %v464 = vpack.c.b16 %v382, %v380
  %v465 = vpack.c.b16 %v385, %v383
  %v466 = vpack.c.b16 %v386, %v384
  %v467 = vpack.c.b16 %v389, %v387
  %v468 = vpack.c.b16 %v390, %v388
  %v469 = vpack.c.b16 %v393, %v391
  %v470 = vpack.c.b16 %v394, %v392
  %v471 = vpack.c.b16 %v397, %v395
  %v472 = vpack.c.b16 %v398, %v396
  %v473 = vpack.c.b16 %v401, %v399
  %v474 = vpack.c.b16 %v402, %v400
  %v475 = vpack.c.b16 %v405, %v403
  %v476 = vpack.c.b16 %v406, %v404
  %v477 = vpack.c.b16 %v409, %v407
  %v478 = vpack.c.b16 %v410, %v408
  %v479 = vpack.c.b16 %v413, %v411
  %v480 = vpack.c.b16 %v414, %v412
  %v481 = vpack.c.b16 %v417, %v415
  %v482 = vpack.c.b16 %v418, %v416
  %v534 = vunpack.c.l.b16 %v144
  %v535 = vunpack.c.l.b16 %v145
  %v536 = vunpack.c.l.b16 %v146
  %v537 = vunpack.c.l.b16 %v147
  %v538 = vunpack.c.l.b16 %v148
  %v539 = vunpack.c.l.b16 %v149
  %v540 = vunpack.c.l.b16 %v150
  %v541 = vunpack.c.l.b16 %v151
  %v542 = vunpack.c.l.b16 %v152
  %v543 = vunpack.c.l.b16 %v153
  %v544 = vunpack.c.l.b16 %v154
  %v545 = vunpack.c.l.b16 %v155
  %v546 = vunpack.c.l.b16 %v156
  %v547 = vunpack.c.l.b16 %v157
  %v548 = vunpack.c.l.b16 %v158
  %v549 = vunpack.c.l.b16 %v159
  %v550 = vunpack.c.l.b16 %v160
  %v551 = vunpack.c.l.b16 %v161
  %v552 = vunpack.c.l.b16 %v162
  %v553 = vpack.c.b16 %v535, %v534
  %v554 = vpack.c.b16 %v537, %v536
  %v555 = vpack.c.b16 %v539, %v538
  %v556 = vpack.c.b16 %v541, %v540
  %v557 = vpack.c.b16 %v543, %v542
  %v558 = vpack.c.b16 %v545, %v544
  %v559 = vpack.c.b16 %v547, %v546
  %v560 = vpack.c.b16 %v549, %v548
  %v561 = vpack.c.b16 %v551, %v550
  %v562 = vpack.c.b16 %v552, %v552
  %vm572 = vcmask 154624
  %v574 = vsel %vm572, %v420, 0
  %v577 = vsel %vm572, %v422, 0
  %v580 = vsel %vm572, %v424, 0
  %v583 = vsel %vm572, %v426, 0
  %v586 = vsel %vm572, %v428, 0
  %v589 = vsel %vm572, %v430, 0
  %v592 = vsel %vm572, %v432, 0
  %v595 = vsel %vm572, %v434, 0
  %v598 = vsel %vm572, %v436, 0
  %v601 = vsel %vm572, %v438, 0
  %v604 = vsel %vm572, %v440, 0
  %v607 = vsel %vm572, %v442, 0
  %v610 = vsel %vm572, %v444, 0
  %v613 = vsel %vm572, %v446, 0
  %v616 = vsel %vm572, %v448, 0
  %v619 = vsel %vm572, %v450, 0
  %v622 = vsel %vm572, %v452, 0
  %v625 = vsel %vm572, %v454, 0
  %v628 = vsel %vm572, %v456, 0
  %v631 = vsel %vm572, %v458, 0
  %v634 = vsel %vm572, %v460, 0
  %v637 = vsel %vm572, %v462, 0
  %v640 = vsel %vm572, %v464, 0
  %v643 = vsel %vm572, %v466, 0
  %v646 = vsel %vm572, %v468, 0
  %v649 = vsel %vm572, %v470, 0
  %v652 = vsel %vm572, %v472, 0
  %v655 = vsel %vm572, %v474, 0
  %v658 = vsel %vm572, %v476, 0
  %v661 = vsel %vm572, %v478, 0
  %v664 = vsel %vm572, %v480, 0
  %v667 = vsel %vm572, %v482, 0
  %vm669 = vcmask 1040384
  %vm670 = vcmask 1041408
  %v671 = vsel %vm669, 4294967295, 65535
  %v672 = vsel %vm670, %v671, 0
  %v674 = vand.u32 %v562, %v672
  %676 = vmatprep.subr.bf16.mxu0 0
  %677 = vmatpush1.bf16.msra.mxu0 %v553
  %678 = vmatprep.subr.bf16.mxu0 0
  %679 = vmatpush1.bf16.msra.mxu0 %v554
  %680 = vmatprep.subr.bf16.mxu0 0
  %681 = vmatpush1.bf16.msra.mxu0 %v555
  %682 = vmatprep.subr.bf16.mxu0 0
  %683 = vmatpush1.bf16.msra.mxu0 %v556
  %684 = vmatprep.subr.bf16.mxu0 0
  %685 = vmatpush1.bf16.msra.mxu0 %v557
  %686 = vmatprep.subr.bf16.mxu0 0
  %687 = vmatpush1.bf16.msra.mxu0 %v558
  %688 = vmatprep.subr.bf16.mxu0 0
  %689 = vmatpush1.bf16.msra.mxu0 %v559
  %690 = vmatprep.subr.bf16.mxu0 0
  %691 = vmatpush1.bf16.msra.mxu0 %v560
  %692 = vmatprep.subr.bf16.mxu0 0
  %693 = vmatpush1.bf16.msra.mxu0 %v561
  %694 = vmatprep.subr.bf16.mxu0 0
  %695 = vmatpush1.bf16.msra.mxu0 %v674
  %696 = vmatprep.subr.bf16.mxu0 0
  %697 = vmatpush1.bf16.msra.mxu0 0
  %698 = vmatprep.subr.bf16.mxu0 0
  %699 = vmatpush1.bf16.msra.mxu0 0
  %700 = vmatprep.subr.bf16.mxu0 0
  %701 = vmatpush1.bf16.msra.mxu0 0
  %702 = vmatprep.subr.bf16.mxu0 0
  %703 = vmatpush1.bf16.msra.mxu0 0
  %704 = vmatprep.subr.bf16.mxu0 0
  %705 = vmatpush1.bf16.msra.mxu0 0
  %706 = vmatprep.subr.bf16.mxu0 0
  %707 = vmatpush1.bf16.msra.mxu0 0
  %708 = vmatprep.mubr.bf16.mxu0 %v574
  %709 = vmatmul.mubr.bf16.gmra.mrb[0].mxu0 %v419
  %v710 = vpop.f32.mrb[0].mxu0
  %v711 = vadd.f32 0.0, %v710
  %v712 = vpop.f32.mrb[0].mxu0
  %v713 = vpop.f32.mrb[0].mxu0
  %v714 = vadd.f32 0.0, %v713
  %v715 = vpop.f32.mrb[0].mxu0
  %716 = vmatprep.mubr.bf16.mxu0 %v577
  %717 = vmatmul.mubr.bf16.gmra.mrb[0].mxu0 %v421
  %v718 = vpop.f32.mrb[0].mxu0
  %v719 = vadd.f32 0.0, %v718
  %v720 = vpop.f32.mrb[0].mxu0
  %v721 = vpop.f32.mrb[0].mxu0
  %v722 = vadd.f32 0.0, %v721
  %v723 = vpop.f32.mrb[0].mxu0
  %724 = vmatprep.mubr.bf16.mxu0 %v580
  %725 = vmatmul.mubr.bf16.gmra.mrb[0].mxu0 %v423
  %v726 = vpop.f32.mrb[0].mxu0
  %v727 = vadd.f32 0.0, %v726
  %v728 = vpop.f32.mrb[0].mxu0
  %v729 = vpop.f32.mrb[0].mxu0
  %v730 = vadd.f32 0.0, %v729
  %v731 = vpop.f32.mrb[0].mxu0
  %732 = vmatprep.mubr.bf16.mxu0 %v583
  %733 = vmatmul.mubr.bf16.gmra.mrb[0].mxu0 %v425
  %v734 = vpop.f32.mrb[0].mxu0
  %v735 = vadd.f32 0.0, %v734
  %v736 = vpop.f32.mrb[0].mxu0
  %v737 = vpop.f32.mrb[0].mxu0
  %v738 = vadd.f32 0.0, %v737
  %v739 = vpop.f32.mrb[0].mxu0
  %740 = vmatprep.mubr.bf16.mxu0 %v586
  %741 = vmatmul.mubr.bf16.gmra.mrb[0].mxu0 %v427
  %v742 = vpop.f32.mrb[0].mxu0
  %v743 = vadd.f32 0.0, %v742
  %v744 = vpop.f32.mrb[0].mxu0
  %v745 = vpop.f32.mrb[0].mxu0
  %v746 = vadd.f32 0.0, %v745
  %v747 = vpop.f32.mrb[0].mxu0
  %748 = vmatprep.mubr.bf16.mxu0 %v589
  %749 = vmatmul.mubr.bf16.gmra.mrb[0].mxu0 %v429
  %v750 = vpop.f32.mrb[0].mxu0
  %v751 = vadd.f32 0.0, %v750
  %v752 = vpop.f32.mrb[0].mxu0
  %v753 = vpop.f32.mrb[0].mxu0
  %v754 = vadd.f32 0.0, %v753
  %v755 = vpop.f32.mrb[0].mxu0
  %756 = vmatprep.mubr.bf16.mxu0 %v592
  %757 = vmatmul.mubr.bf16.gmra.mrb[0].mxu0 %v431
  %v758 = vpop.f32.mrb[0].mxu0
  %v759 = vadd.f32 0.0, %v758
  %v760 = vpop.f32.mrb[0].mxu0
  %v761 = vpop.f32.mrb[0].mxu0
  %v762 = vadd.f32 0.0, %v761
  %v763 = vpop.f32.mrb[0].mxu0
  %764 = vmatprep.mubr.bf16.mxu0 %v595
  %765 = vmatmul.mubr.bf16.gmra.mrb[0].mxu0 %v433
  %v766 = vpop.f32.mrb[0].mxu0
  %v767 = vadd.f32 0.0, %v766
  %v768 = vpop.f32.mrb[0].mxu0
  %v769 = vpop.f32.mrb[0].mxu0
  %v770 = vadd.f32 0.0, %v769
  %v771 = vpop.f32.mrb[0].mxu0
  %772 = vmatprep.mubr.bf16.mxu0 %v598
  %773 = vmatmul.mubr.bf16.gmra.mrb[0].mxu0 %v435
  %v774 = vpop.f32.mrb[0].mxu0
  %v775 = vadd.f32 0.0, %v774
  %v776 = vpop.f32.mrb[0].mxu0
  %v777 = vpop.f32.mrb[0].mxu0
  %v778 = vadd.f32 0.0, %v777
  %v779 = vpop.f32.mrb[0].mxu0
  %780 = vmatprep.mubr.bf16.mxu0 %v601
  %781 = vmatmul.mubr.bf16.gmra.mrb[0].mxu0 %v437
  %v782 = vpop.f32.mrb[0].mxu0
  %v783 = vadd.f32 0.0, %v782
  %v784 = vpop.f32.mrb[0].mxu0
  %v785 = vpop.f32.mrb[0].mxu0
  %v786 = vadd.f32 0.0, %v785
  %v787 = vpop.f32.mrb[0].mxu0
  %788 = vmatprep.mubr.bf16.mxu0 %v604
  %789 = vmatmul.mubr.bf16.gmra.mrb[0].mxu0 %v439
  %v790 = vpop.f32.mrb[0].mxu0
  %v791 = vadd.f32 0.0, %v790
  %v792 = vpop.f32.mrb[0].mxu0
  %v793 = vpop.f32.mrb[0].mxu0
  %v794 = vadd.f32 0.0, %v793
  %v795 = vpop.f32.mrb[0].mxu0
  %796 = vmatprep.mubr.bf16.mxu0 %v607
  %797 = vmatmul.mubr.bf16.gmra.mrb[0].mxu0 %v441
  %v798 = vpop.f32.mrb[0].mxu0
  %v799 = vadd.f32 0.0, %v798
  %v800 = vpop.f32.mrb[0].mxu0
  %v801 = vpop.f32.mrb[0].mxu0
  %v802 = vadd.f32 0.0, %v801
  %v803 = vpop.f32.mrb[0].mxu0
  %804 = vmatprep.mubr.bf16.mxu0 %v610
  %805 = vmatmul.mubr.bf16.gmra.mrb[0].mxu0 %v443
  %v806 = vpop.f32.mrb[0].mxu0
  %v807 = vadd.f32 0.0, %v806
  %v808 = vpop.f32.mrb[0].mxu0
  %v809 = vpop.f32.mrb[0].mxu0
  %v810 = vadd.f32 0.0, %v809
  %v811 = vpop.f32.mrb[0].mxu0
  %812 = vmatprep.mubr.bf16.mxu0 %v613
  %813 = vmatmul.mubr.bf16.gmra.mrb[0].mxu0 %v445
  %v814 = vpop.f32.mrb[0].mxu0
  %v815 = vadd.f32 0.0, %v814
  %v816 = vpop.f32.mrb[0].mxu0
  %v817 = vpop.f32.mrb[0].mxu0
  %v818 = vadd.f32 0.0, %v817
  %v819 = vpop.f32.mrb[0].mxu0
  %820 = vmatprep.mubr.bf16.mxu0 %v616
  %821 = vmatmul.mubr.bf16.gmra.mrb[0].mxu0 %v447
  %v822 = vpop.f32.mrb[0].mxu0
  %v823 = vadd.f32 0.0, %v822
  %v824 = vpop.f32.mrb[0].mxu0
  %v825 = vpop.f32.mrb[0].mxu0
  %v826 = vadd.f32 0.0, %v825
  %v827 = vpop.f32.mrb[0].mxu0
  %828 = vmatprep.mubr.bf16.mxu0 %v619
  %829 = vmatmul.mubr.bf16.gmra.mrb[0].mxu0 %v449
  %v830 = vpop.f32.mrb[0].mxu0
  %v831 = vadd.f32 0.0, %v830
  %v832 = vpop.f32.mrb[0].mxu0
  %v833 = vpop.f32.mrb[0].mxu0
  %v834 = vadd.f32 0.0, %v833
  %v835 = vpop.f32.mrb[0].mxu0
  %836 = vmatprep.mubr.bf16.mxu0 %v622
  %837 = vmatmul.mubr.bf16.gmra.mrb[0].mxu0 %v451
  %v838 = vpop.f32.mrb[0].mxu0
  %v839 = vadd.f32 0.0, %v838
  %v840 = vpop.f32.mrb[0].mxu0
  %v841 = vpop.f32.mrb[0].mxu0
  %v842 = vadd.f32 0.0, %v841
  %v843 = vpop.f32.mrb[0].mxu0
  %844 = vmatprep.mubr.bf16.mxu0 %v625
  %845 = vmatmul.mubr.bf16.gmra.mrb[0].mxu0 %v453
  %v846 = vpop.f32.mrb[0].mxu0
  %v847 = vadd.f32 0.0, %v846
  %v848 = vpop.f32.mrb[0].mxu0
  %v849 = vpop.f32.mrb[0].mxu0
  %v850 = vadd.f32 0.0, %v849
  %v851 = vpop.f32.mrb[0].mxu0
  %852 = vmatprep.mubr.bf16.mxu0 %v628
  %853 = vmatmul.mubr.bf16.gmra.mrb[0].mxu0 %v455
  %v854 = vpop.f32.mrb[0].mxu0
  %v855 = vadd.f32 0.0, %v854
  %v856 = vpop.f32.mrb[0].mxu0
  %v857 = vpop.f32.mrb[0].mxu0
  %v858 = vadd.f32 0.0, %v857
  %v859 = vpop.f32.mrb[0].mxu0
  %860 = vmatprep.mubr.bf16.mxu0 %v631
  %861 = vmatmul.mubr.bf16.gmra.mrb[0].mxu0 %v457
  %v862 = vpop.f32.mrb[0].mxu0
  %v863 = vadd.f32 0.0, %v862
  %v864 = vpop.f32.mrb[0].mxu0
  %v865 = vpop.f32.mrb[0].mxu0
  %v866 = vadd.f32 0.0, %v865
  %v867 = vpop.f32.mrb[0].mxu0
  %868 = vmatprep.mubr.bf16.mxu0 %v634
  %869 = vmatmul.mubr.bf16.gmra.mrb[0].mxu0 %v459
  %v870 = vpop.f32.mrb[0].mxu0
  %v871 = vadd.f32 0.0, %v870
  %v872 = vpop.f32.mrb[0].mxu0
  %v873 = vpop.f32.mrb[0].mxu0
  %v874 = vadd.f32 0.0, %v873
  %v875 = vpop.f32.mrb[0].mxu0
  %876 = vmatprep.mubr.bf16.mxu0 %v637
  %877 = vmatmul.mubr.bf16.gmra.mrb[0].mxu0 %v461
  %v878 = vpop.f32.mrb[0].mxu0
  %v879 = vadd.f32 0.0, %v878
  %v880 = vpop.f32.mrb[0].mxu0
  %v881 = vpop.f32.mrb[0].mxu0
  %v882 = vadd.f32 0.0, %v881
  %v883 = vpop.f32.mrb[0].mxu0
  %884 = vmatprep.mubr.bf16.mxu0 %v640
  %885 = vmatmul.mubr.bf16.gmra.mrb[0].mxu0 %v463
  %v886 = vpop.f32.mrb[0].mxu0
  %v887 = vadd.f32 0.0, %v886
  %v888 = vpop.f32.mrb[0].mxu0
  %v889 = vpop.f32.mrb[0].mxu0
  %v890 = vadd.f32 0.0, %v889
  %v891 = vpop.f32.mrb[0].mxu0
  %892 = vmatprep.mubr.bf16.mxu0 %v643
  %893 = vmatmul.mubr.bf16.gmra.mrb[0].mxu0 %v465
  %v894 = vpop.f32.mrb[0].mxu0
  %v895 = vadd.f32 0.0, %v894
  %v896 = vpop.f32.mrb[0].mxu0
  %v897 = vpop.f32.mrb[0].mxu0
  %v898 = vadd.f32 0.0, %v897
  %v899 = vpop.f32.mrb[0].mxu0
  %900 = vmatprep.mubr.bf16.mxu0 %v646
  %901 = vmatmul.mubr.bf16.gmra.mrb[0].mxu0 %v467
  %v902 = vpop.f32.mrb[0].mxu0
  %v903 = vadd.f32 0.0, %v902
  %v904 = vpop.f32.mrb[0].mxu0
  %v905 = vpop.f32.mrb[0].mxu0
  %v906 = vadd.f32 0.0, %v905
  %v907 = vpop.f32.mrb[0].mxu0
  %908 = vmatprep.mubr.bf16.mxu0 %v649
  %909 = vmatmul.mubr.bf16.gmra.mrb[0].mxu0 %v469
  %v910 = vpop.f32.mrb[0].mxu0
  %v911 = vadd.f32 0.0, %v910
  %v912 = vpop.f32.mrb[0].mxu0
  %v913 = vpop.f32.mrb[0].mxu0
  %v914 = vadd.f32 0.0, %v913
  %v915 = vpop.f32.mrb[0].mxu0
  %916 = vmatprep.mubr.bf16.mxu0 %v652
  %917 = vmatmul.mubr.bf16.gmra.mrb[0].mxu0 %v471
  %v918 = vpop.f32.mrb[0].mxu0
  %v919 = vadd.f32 0.0, %v918
  %v920 = vpop.f32.mrb[0].mxu0
  %v921 = vpop.f32.mrb[0].mxu0
  %v922 = vadd.f32 0.0, %v921
  %v923 = vpop.f32.mrb[0].mxu0
  %924 = vmatprep.mubr.bf16.mxu0 %v655
  %925 = vmatmul.mubr.bf16.gmra.mrb[0].mxu0 %v473
  %v926 = vpop.f32.mrb[0].mxu0
  %v927 = vadd.f32 0.0, %v926
  %v928 = vpop.f32.mrb[0].mxu0
  %v929 = vpop.f32.mrb[0].mxu0
  %v930 = vadd.f32 0.0, %v929
  %v931 = vpop.f32.mrb[0].mxu0
  %932 = vmatprep.mubr.bf16.mxu0 %v658
  %933 = vmatmul.mubr.bf16.gmra.mrb[0].mxu0 %v475
  %v934 = vpop.f32.mrb[0].mxu0
  %v935 = vadd.f32 0.0, %v934
  %v936 = vpop.f32.mrb[0].mxu0
  %v937 = vpop.f32.mrb[0].mxu0
  %v938 = vadd.f32 0.0, %v937
  %v939 = vpop.f32.mrb[0].mxu0
  %940 = vmatprep.mubr.bf16.mxu0 %v661
  %941 = vmatmul.mubr.bf16.gmra.mrb[0].mxu0 %v477
  %v942 = vpop.f32.mrb[0].mxu0
  %v943 = vadd.f32 0.0, %v942
  %v944 = vpop.f32.mrb[0].mxu0
  %v945 = vpop.f32.mrb[0].mxu0
  %v946 = vadd.f32 0.0, %v945
  %v947 = vpop.f32.mrb[0].mxu0
  %948 = vmatprep.mubr.bf16.mxu0 %v664
  %949 = vmatmul.mubr.bf16.gmra.mrb[0].mxu0 %v479
  %v950 = vpop.f32.mrb[0].mxu0
  %v951 = vadd.f32 0.0, %v950
  %v952 = vpop.f32.mrb[0].mxu0
  %v953 = vpop.f32.mrb[0].mxu0
  %v954 = vadd.f32 0.0, %v953
  %v955 = vpop.f32.mrb[0].mxu0
  %956 = vmatprep.mubr.bf16.mxu0 %v667
  %957 = vmatmul.mubr.bf16.gmra.mrb[0].mxu0 %v481
  %v958 = vpop.f32.mrb[0].mxu0
  %v959 = vadd.f32 0.0, %v958
  %v960 = vpop.f32.mrb[0].mxu0
  %v961 = vpop.f32.mrb[0].mxu0
  %v962 = vadd.f32 0.0, %v961
  %v963 = vpop.f32.mrb[0].mxu0
  %964 = vdwg.mxu0
  %v965 = vadd.f32 %v163, %v711
  %v966 = vadd.f32 %v164, %v714
  %v967 = vadd.f32 %v165, %v719
  %v968 = vadd.f32 %v166, %v722
  %v969 = vadd.f32 %v167, %v727
  %v970 = vadd.f32 %v168, %v730
  %v971 = vadd.f32 %v169, %v735
  %v972 = vadd.f32 %v170, %v738
  %v973 = vadd.f32 %v171, %v743
  %v974 = vadd.f32 %v172, %v746
  %v975 = vadd.f32 %v173, %v751
  %v976 = vadd.f32 %v174, %v754
  %v977 = vadd.f32 %v175, %v759
  %v978 = vadd.f32 %v176, %v762
  %v979 = vadd.f32 %v177, %v767
  %v980 = vadd.f32 %v178, %v770
  %v981 = vadd.f32 %v179, %v775
  %v982 = vadd.f32 %v180, %v778
  %v983 = vadd.f32 %v181, %v783
  %v984 = vadd.f32 %v182, %v786
  %v985 = vadd.f32 %v183, %v791
  %v986 = vadd.f32 %v184, %v794
  %v987 = vadd.f32 %v185, %v799
  %v988 = vadd.f32 %v186, %v802
  %v989 = vadd.f32 %v187, %v807
  %v990 = vadd.f32 %v188, %v810
  %v991 = vadd.f32 %v189, %v815
  %v992 = vadd.f32 %v190, %v818
  %v993 = vadd.f32 %v191, %v823
  %v994 = vadd.f32 %v192, %v826
  %v995 = vadd.f32 %v193, %v831
  %v996 = vadd.f32 %v194, %v834
  %v997 = vadd.f32 %v195, %v839
  %v998 = vadd.f32 %v196, %v842
  %v999 = vadd.f32 %v197, %v847
  %v1000 = vadd.f32 %v198, %v850
  %v1001 = vadd.f32 %v199, %v855
  %v1002 = vadd.f32 %v200, %v858
  %v1003 = vadd.f32 %v201, %v863
  %v1004 = vadd.f32 %v202, %v866
  %v1005 = vadd.f32 %v203, %v871
  %v1006 = vadd.f32 %v204, %v874
  %v1007 = vadd.f32 %v205, %v879
  %v1008 = vadd.f32 %v206, %v882
  %v1009 = vadd.f32 %v207, %v887
  %v1010 = vadd.f32 %v208, %v890
  %v1011 = vadd.f32 %v209, %v895
  %v1012 = vadd.f32 %v210, %v898
  %v1013 = vadd.f32 %v211, %v903
  %v1014 = vadd.f32 %v212, %v906
  %v1015 = vadd.f32 %v213, %v911
  %v1016 = vadd.f32 %v214, %v914
  %v1017 = vadd.f32 %v215, %v919
  %v1018 = vadd.f32 %v216, %v922
  %v1019 = vadd.f32 %v217, %v927
  %v1020 = vadd.f32 %v218, %v930
  %v1021 = vadd.f32 %v219, %v935
  %v1022 = vadd.f32 %v220, %v938
  %v1023 = vadd.f32 %v221, %v943
  %v1024 = vadd.f32 %v222, %v946
  %v1025 = vadd.f32 %v223, %v951
  %v1026 = vadd.f32 %v224, %v954
  %v1027 = vadd.f32 %v225, %v959
  %v1028 = vadd.f32 %v226, %v962
  %1029 = vst [vmem:[#allocation2] sm:$0xff] %v965
  %1030 = vst [vmem:[#allocation2 + $0x8] sm:$0xff] %v966
  %1031 = vst [vmem:[#allocation2 + $0x10] sm:$0xff] %v967
  %1032 = vst [vmem:[#allocation2 + $0x18] sm:$0xff] %v968
  %1033 = vst [vmem:[#allocation2 + $0x20] sm:$0xff] %v969
  %1034 = vst [vmem:[#allocation2 + $0x28] sm:$0xff] %v970
  %1035 = vst [vmem:[#allocation2 + $0x30] sm:$0xff] %v971
  %1036 = vst [vmem:[#allocation2 + $0x38] sm:$0xff] %v972
  %1037 = vst [vmem:[#allocation2 + $0x40] sm:$0xff] %v973
  %1038 = vst [vmem:[#allocation2 + $0x48] sm:$0xff] %v974
  %1039 = vst [vmem:[#allocation2 + $0x50] sm:$0xff] %v975
  %1040 = vst [vmem:[#allocation2 + $0x58] sm:$0xff] %v976
  %1041 = vst [vmem:[#allocation2 + $0x60] sm:$0xff] %v977
  %1042 = vst [vmem:[#allocation2 + $0x68] sm:$0xff] %v978
  %1043 = vst [vmem:[#allocation2 + $0x70] sm:$0xff] %v979
  %1044 = vst [vmem:[#allocation2 + $0x78] sm:$0xff] %v980
  %1045 = vst [vmem:[#allocation2 + $0x80] sm:$0xff] %v981
  %1046 = vst [vmem:[#allocation2 + $0x88] sm:$0xff] %v982
  %1047 = vst [vmem:[#allocation2 + $0x90] sm:$0xff] %v983
  %1048 = vst [vmem:[#allocation2 + $0x98] sm:$0xff] %v984
  %1049 = vst [vmem:[#allocation2 + $0xa0] sm:$0xff] %v985
  %1050 = vst [vmem:[#allocation2 + $0xa8] sm:$0xff] %v986
  %1051 = vst [vmem:[#allocation2 + $0xb0] sm:$0xff] %v987
  %1052 = vst [vmem:[#allocation2 + $0xb8] sm:$0xff] %v988
  %1053 = vst [vmem:[#allocation2 + $0xc0] sm:$0xff] %v989
  %1054 = vst [vmem:[#allocation2 + $0xc8] sm:$0xff] %v990
  %1055 = vst [vmem:[#allocation2 + $0xd0] sm:$0xff] %v991
  %1056 = vst [vmem:[#allocation2 + $0xd8] sm:$0xff] %v992
  %1057 = vst [vmem:[#allocation2 + $0xe0] sm:$0xff] %v993
  %1058 = vst [vmem:[#allocation2 + $0xe8] sm:$0xff] %v994
  %1059 = vst [vmem:[#allocation2 + $0xf0] sm:$0xff] %v995
  %1060 = vst [vmem:[#allocation2 + $0xf8] sm:$0xff] %v996
  %1061 = vst [vmem:[#allocation2 + $0x100] sm:$0xff] %v997
  %1062 = vst [vmem:[#allocation2 + $0x108] sm:$0xff] %v998
  %1063 = vst [vmem:[#allocation2 + $0x110] sm:$0xff] %v999
  %1064 = vst [vmem:[#allocation2 + $0x118] sm:$0xff] %v1000
  %1065 = vst [vmem:[#allocation2 + $0x120] sm:$0xff] %v1001
  %1066 = vst [vmem:[#allocation2 + $0x128] sm:$0xff] %v1002
  %1067 = vst [vmem:[#allocation2 + $0x130] sm:$0xff] %v1003
  %1068 = vst [vmem:[#allocation2 + $0x138] sm:$0xff] %v1004
  %1069 = vst [vmem:[#allocation2 + $0x140] sm:$0xff] %v1005
  %1070 = vst [vmem:[#allocation2 + $0x148] sm:$0xff] %v1006
  %1071 = vst [vmem:[#allocation2 + $0x150] sm:$0xff] %v1007
  %1072 = vst [vmem:[#allocation2 + $0x158] sm:$0xff] %v1008
  %1073 = vst [vmem:[#allocation2 + $0x160] sm:$0xff] %v1009
  %1074 = vst [vmem:[#allocation2 + $0x168] sm:$0xff] %v1010
  %1075 = vst [vmem:[#allocation2 + $0x170] sm:$0xff] %v1011
  %1076 = vst [vmem:[#allocation2 + $0x178] sm:$0xff] %v1012
  %1077 = vst [vmem:[#allocation2 + $0x180] sm:$0xff] %v1013
  %1078 = vst [vmem:[#allocation2 + $0x188] sm:$0xff] %v1014
  %1079 = vst [vmem:[#allocation2 + $0x190] sm:$0xff] %v1015
  %1080 = vst [vmem:[#allocation2 + $0x198] sm:$0xff] %v1016
  %1081 = vst [vmem:[#allocation2 + $0x1a0] sm:$0xff] %v1017
  %1082 = vst [vmem:[#allocation2 + $0x1a8] sm:$0xff] %v1018
  %1083 = vst [vmem:[#allocation2 + $0x1b0] sm:$0xff] %v1019
  %1084 = vst [vmem:[#allocation2 + $0x1b8] sm:$0xff] %v1020
  %1085 = vst [vmem:[#allocation2 + $0x1c0] sm:$0xff] %v1021
  %1086 = vst [vmem:[#allocation2 + $0x1c8] sm:$0xff] %v1022
  %1087 = vst [vmem:[#allocation2 + $0x1d0] sm:$0xff] %v1023
  %1088 = vst [vmem:[#allocation2 + $0x1d8] sm:$0xff] %v1024
  %1089 = vst [vmem:[#allocation2 + $0x1e0] sm:$0xff] %v1025
  %1090 = vst [vmem:[#allocation2 + $0x1e8] sm:$0xff] %v1026
  %1091 = vst [vmem:[#allocation2 + $0x1f0] sm:$0xff] %v1027
  %1092 = vst [vmem:[#allocation2 + $0x1f8] sm:$0xff] %v1028
  // Predicated region
  $region14: #{fwd.70} parent=0 // pred_check
    %p1093 = pneg %p12
  $region15: #{fwd.70} parent=0 // pred_check_branch
    %1095 = sbr.rel (%p1093) target = $region17
  $region16: #{fwd.70} parent=0 // pred_region
    %v1096 = vld [vmem:[#allocation2] sm:$0xff]
    %v1097 = vld [vmem:[#allocation2 + $0x8] sm:$0xff]
    %v1098 = vld [vmem:[#allocation2 + $0x10] sm:$0xff]
    %v1099 = vld [vmem:[#allocation2 + $0x18] sm:$0xff]
    %v1100 = vld [vmem:[#allocation2 + $0x20] sm:$0xff]
    %v1101 = vld [vmem:[#allocation2 + $0x28] sm:$0xff]
    %v1102 = vld [vmem:[#allocation2 + $0x30] sm:$0xff]
    %v1103 = vld [vmem:[#allocation2 + $0x38] sm:$0xff]
    %v1104 = vld [vmem:[#allocation2 + $0x40] sm:$0xff]
    %v1105 = vld [vmem:[#allocation2 + $0x48] sm:$0xff]
    %v1106 = vld [vmem:[#allocation2 + $0x50] sm:$0xff]
    %v1107 = vld [vmem:[#allocation2 + $0x58] sm:$0xff]
    %v1108 = vld [vmem:[#allocation2 + $0x60] sm:$0xff]
    %v1109 = vld [vmem:[#allocation2 + $0x68] sm:$0xff]
    %v1110 = vld [vmem:[#allocation2 + $0x70] sm:$0xff]
    %v1111 = vld [vmem:[#allocation2 + $0x78] sm:$0xff]
    %v1112 = vld [vmem:[#allocation2 + $0x80] sm:$0xff]
    %v1113 = vld [vmem:[#allocation2 + $0x88] sm:$0xff]
    %v1114 = vld [vmem:[#allocation2 + $0x90] sm:$0xff]
    %v1115 = vld [vmem:[#allocation2 + $0x98] sm:$0xff]
    %v1116 = vld [vmem:[#allocation2 + $0xa0] sm:$0xff]
    %v1117 = vld [vmem:[#allocation2 + $0xa8] sm:$0xff]
    %v1118 = vld [vmem:[#allocation2 + $0xb0] sm:$0xff]
    %v1119 = vld [vmem:[#allocation2 + $0xb8] sm:$0xff]
    %v1120 = vld [vmem:[#allocation2 + $0xc0] sm:$0xff]
    %v1121 = vld [vmem:[#allocation2 + $0xc8] sm:$0xff]
    %v1122 = vld [vmem:[#allocation2 + $0xd0] sm:$0xff]
    %v1123 = vld [vmem:[#allocation2 + $0xd8] sm:$0xff]
    %v1124 = vld [vmem:[#allocation2 + $0xe0] sm:$0xff]
    %v1125 = vld [vmem:[#allocation2 + $0xe8] sm:$0xff]
    %v1126 = vld [vmem:[#allocation2 + $0xf0] sm:$0xff]
    %v1127 = vld [vmem:[#allocation2 + $0xf8] sm:$0xff]
    %v1128 = vld [vmem:[#allocation2 + $0x100] sm:$0xff]
    %v1129 = vld [vmem:[#allocation2 + $0x108] sm:$0xff]
    %v1130 = vld [vmem:[#allocation2 + $0x110] sm:$0xff]
    %v1131 = vld [vmem:[#allocation2 + $0x118] sm:$0xff]
    %v1132 = vld [vmem:[#allocation2 + $0x120] sm:$0xff]
    %v1133 = vld [vmem:[#allocation2 + $0x128] sm:$0xff]
    %v1134 = vld [vmem:[#allocation2 + $0x130] sm:$0xff]
    %v1135 = vld [vmem:[#allocation2 + $0x138] sm:$0xff]
    %v1136 = vld [vmem:[#allocation2 + $0x140] sm:$0xff]
    %v1137 = vld [vmem:[#allocation2 + $0x148] sm:$0xff]
    %v1138 = vld [vmem:[#allocation2 + $0x150] sm:$0xff]
    %v1139 = vld [vmem:[#allocation2 + $0x158] sm:$0xff]
    %v1140 = vld [vmem:[#allocation2 + $0x160] sm:$0xff]
    %v1141 = vld [vmem:[#allocation2 + $0x168] sm:$0xff]
    %v1142 = vld [vmem:[#allocation2 + $0x170] sm:$0xff]
    %v1143 = vld [vmem:[#allocation2 + $0x178] sm:$0xff]
    %v1144 = vld [vmem:[#allocation2 + $0x180] sm:$0xff]
    %v1145 = vld [vmem:[#allocation2 + $0x188] sm:$0xff]
    %v1146 = vld [vmem:[#allocation2 + $0x190] sm:$0xff]
    %v1147 = vld [vmem:[#allocation2 + $0x198] sm:$0xff]
    %v1148 = vld [vmem:[#allocation2 + $0x1a0] sm:$0xff]
    %v1149 = vld [vmem:[#allocation2 + $0x1a8] sm:$0xff]
    %v1150 = vld [vmem:[#allocation2 + $0x1b0] sm:$0xff]
    %v1151 = vld [vmem:[#allocation2 + $0x1b8] sm:$0xff]
    %v1152 = vld [vmem:[#allocation2 + $0x1c0] sm:$0xff]
    %v1153 = vld [vmem:[#allocation2 + $0x1c8] sm:$0xff]
    %v1154 = vld [vmem:[#allocation2 + $0x1d0] sm:$0xff]
    %v1155 = vld [vmem:[#allocation2 + $0x1d8] sm:$0xff]
    %v1156 = vld [vmem:[#allocation2 + $0x1e0] sm:$0xff]
    %v1157 = vld [vmem:[#allocation2 + $0x1e8] sm:$0xff]
    %v1158 = vld [vmem:[#allocation2 + $0x1f0] sm:$0xff]
    %v1159 = vld [vmem:[#allocation2 + $0x1f8] sm:$0xff]
    %vm1160 = vcmask 64512
    %1161 = vst.msk [vmem:[%s2] sm:$0xff] %vm1160, %v1096
    %1162 = vst.msk [vmem:[%s2 + $0x8] sm:$0xff] %vm1160, %v1097
    %1163 = vst.msk [vmem:[%s2 + $0x10] sm:$0xff] %vm1160, %v1098
    %1164 = vst.msk [vmem:[%s2 + $0x18] sm:$0xff] %vm1160, %v1099
    %1165 = vst.msk [vmem:[%s2 + $0x20] sm:$0xff] %vm1160, %v1100
    %1166 = vst.msk [vmem:[%s2 + $0x28] sm:$0xff] %vm1160, %v1101
    %1167 = vst.msk [vmem:[%s2 + $0x30] sm:$0xff] %vm1160, %v1102
    %1168 = vst.msk [vmem:[%s2 + $0x38] sm:$0xff] %vm1160, %v1103
    %1169 = vst.msk [vmem:[%s2 + $0x40] sm:$0xff] %vm1160, %v1104
    %1170 = vst.msk [vmem:[%s2 + $0x48] sm:$0xff] %vm1160, %v1105
    %1171 = vst.msk [vmem:[%s2 + $0x50] sm:$0xff] %vm1160, %v1106
    %1172 = vst.msk [vmem:[%s2 + $0x58] sm:$0xff] %vm1160, %v1107
    %1173 = vst.msk [vmem:[%s2 + $0x60] sm:$0xff] %vm1160, %v1108
    %1174 = vst.msk [vmem:[%s2 + $0x68] sm:$0xff] %vm1160, %v1109
    %1175 = vst.msk [vmem:[%s2 + $0x70] sm:$0xff] %vm1160, %v1110
    %1176 = vst.msk [vmem:[%s2 + $0x78] sm:$0xff] %vm1160, %v1111
    %1177 = vst.msk [vmem:[%s2 + $0x80] sm:$0xff] %vm1160, %v1112
    %1178 = vst.msk [vmem:[%s2 + $0x88] sm:$0xff] %vm1160, %v1113
    %1179 = vst.msk [vmem:[%s2 + $0x90] sm:$0xff] %vm1160, %v1114
    %1180 = vst.msk [vmem:[%s2 + $0x98] sm:$0xff] %vm1160, %v1115
    %1181 = vst.msk [vmem:[%s2 + $0xa0] sm:$0xff] %vm1160, %v1116
    %1182 = vst.msk [vmem:[%s2 + $0xa8] sm:$0xff] %vm1160, %v1117
    %1183 = vst.msk [vmem:[%s2 + $0xb0] sm:$0xff] %vm1160, %v1118
    %1184 = vst.msk [vmem:[%s2 + $0xb8] sm:$0xff] %vm1160, %v1119
    %1185 = vst.msk [vmem:[%s2 + $0xc0] sm:$0xff] %vm1160, %v1120
    %1186 = vst.msk [vmem:[%s2 + $0xc8] sm:$0xff] %vm1160, %v1121
    %1187 = vst.msk [vmem:[%s2 + $0xd0] sm:$0xff] %vm1160, %v1122
    %1188 = vst.msk [vmem:[%s2 + $0xd8] sm:$0xff] %vm1160, %v1123
    %1189 = vst.msk [vmem:[%s2 + $0xe0] sm:$0xff] %vm1160, %v1124
    %1190 = vst.msk [vmem:[%s2 + $0xe8] sm:$0xff] %vm1160, %v1125
    %1191 = vst.msk [vmem:[%s2 + $0xf0] sm:$0xff] %vm1160, %v1126
    %1192 = vst.msk [vmem:[%s2 + $0xf8] sm:$0xff] %vm1160, %v1127
    %1193 = vst.msk [vmem:[%s2 + $0x100] sm:$0xff] %vm1160, %v1128
    %1194 = vst.msk [vmem:[%s2 + $0x108] sm:$0xff] %vm1160, %v1129
    %1195 = vst.msk [vmem:[%s2 + $0x110] sm:$0xff] %vm1160, %v1130
    %1196 = vst.msk [vmem:[%s2 + $0x118] sm:$0xff] %vm1160, %v1131
    %1197 = vst.msk [vmem:[%s2 + $0x120] sm:$0xff] %vm1160, %v1132
    %1198 = vst.msk [vmem:[%s2 + $0x128] sm:$0xff] %vm1160, %v1133
    %1199 = vst.msk [vmem:[%s2 + $0x130] sm:$0xff] %vm1160, %v1134
    %1200 = vst.msk [vmem:[%s2 + $0x138] sm:$0xff] %vm1160, %v1135
    %1201 = vst.msk [vmem:[%s2 + $0x140] sm:$0xff] %vm1160, %v1136
    %1202 = vst.msk [vmem:[%s2 + $0x148] sm:$0xff] %vm1160, %v1137
    %1203 = vst.msk [vmem:[%s2 + $0x150] sm:$0xff] %vm1160, %v1138
    %1204 = vst.msk [vmem:[%s2 + $0x158] sm:$0xff] %vm1160, %v1139
    %1205 = vst.msk [vmem:[%s2 + $0x160] sm:$0xff] %vm1160, %v1140
    %1206 = vst.msk [vmem:[%s2 + $0x168] sm:$0xff] %vm1160, %v1141
    %1207 = vst.msk [vmem:[%s2 + $0x170] sm:$0xff] %vm1160, %v1142
    %1208 = vst.msk [vmem:[%s2 + $0x178] sm:$0xff] %vm1160, %v1143
    %1209 = vst.msk [vmem:[%s2 + $0x180] sm:$0xff] %vm1160, %v1144
    %1210 = vst.msk [vmem:[%s2 + $0x188] sm:$0xff] %vm1160, %v1145
    %1211 = vst.msk [vmem:[%s2 + $0x190] sm:$0xff] %vm1160, %v1146
    %1212 = vst.msk [vmem:[%s2 + $0x198] sm:$0xff] %vm1160, %v1147
    %1213 = vst.msk [vmem:[%s2 + $0x1a0] sm:$0xff] %vm1160, %v1148
    %1214 = vst.msk [vmem:[%s2 + $0x1a8] sm:$0xff] %vm1160, %v1149
    %1215 = vst.msk [vmem:[%s2 + $0x1b0] sm:$0xff] %vm1160, %v1150
    %1216 = vst.msk [vmem:[%s2 + $0x1b8] sm:$0xff] %vm1160, %v1151
    %1217 = vst.msk [vmem:[%s2 + $0x1c0] sm:$0xff] %vm1160, %v1152
    %1218 = vst.msk [vmem:[%s2 + $0x1c8] sm:$0xff] %vm1160, %v1153
    %1219 = vst.msk [vmem:[%s2 + $0x1d0] sm:$0xff] %vm1160, %v1154
    %1220 = vst.msk [vmem:[%s2 + $0x1d8] sm:$0xff] %vm1160, %v1155
    %1221 = vst.msk [vmem:[%s2 + $0x1e0] sm:$0xff] %vm1160, %v1156
    %1222 = vst.msk [vmem:[%s2 + $0x1e8] sm:$0xff] %vm1160, %v1157
    %1223 = vst.msk [vmem:[%s2 + $0x1f0] sm:$0xff] %vm1160, %v1158
    %1224 = vst.msk [vmem:[%s2 + $0x1f8] sm:$0xff] %vm1160, %v1159
  $region17: #{fwd.70} parent=0 // pred_fallthru
    _
  // Predicated region
  $region18: #{fwd.70} parent=0 // pred_check
    _
  $region19: #{fwd.70} parent=0 // pred_check_branch
    %1226 = sbr.rel (0) target = $region21
  $region20: #{fwd.70} parent=0 // pred_region
    _
  $region21: #{fwd.70} parent=0 // pred_fallthru
    _
  // Predicated region
  $region22: #{fwd.70} parent=0 // pred_check
    _
  $region23: #{fwd.70} parent=0 // pred_check_branch
    %1228 = sbr.rel (0) target = $region25
  $region24: #{fwd.70} parent=0 // pred_region
    _
  $region25: #{fwd.70} parent=0 // pred_fallthru
    _

// kernel: fwd.72
$region0: #{fwd.72}
  #allocation0 [shape = 'u32[]', space=smem, size = 0x4, offset = 0x4, fixed_abs, tag = 'smem constant byte address 0x4 - core index']
  #allocation1 [shape = 'u32[144,128]{1,0:T(1,128)}', space=vmem, size = 0x12000, scoped, tag = 'internal scratch']
  %s0 = inlined_call_operand.vmem [shape: f32[512,8], index: 0, kind: input, shape index: {}]
  %s1 = inlined_call_operand.vmem [shape: f32[1,8], index: 1, kind: input, shape index: {}]
  %s2 = inlined_call_operand.vmem [shape: f32[1,8], index: 2, kind: input, shape index: {}]
  %s3 = inlined_call_operand.vmem [shape: f32[512,8], index: 3, kind: output, shape index: {}]
  %s4 = sld [smem:[#allocation0]]
  $region22: #{fwd.72} parent=0
    _
  %s6 = ssub.s32 1, %s4
  %s7 = scalar_select 0, %s6, %s4
  // Predicated region
  $region2: #{fwd.72} parent=0 // pred_check
    _
  $region3: #{fwd.72} parent=0 // pred_check_branch
    %9 = sbr.rel (0) target = $region5
  $region4: #{fwd.72} parent=0 // pred_region
    _
  $region5: #{fwd.72} parent=0 // pred_fallthru
    _
  // Predicated region
  $region6: #{fwd.72} parent=0 // pred_check
    _
  $region7: #{fwd.72} parent=0 // pred_check_branch
    %11 = sbr.rel (0) target = $region9
  $region8: #{fwd.72} parent=0 // pred_region
    _
  $region9: #{fwd.72} parent=0 // pred_fallthru
    _
  // Predicated region
  $region10: #{fwd.72} parent=0 // pred_check
    _
  $region11: #{fwd.72} parent=0 // pred_check_branch
    %13 = sbr.rel (0) target = $region13
  $region12: #{fwd.72} parent=0 // pred_region
    _
  $region13: #{fwd.72} parent=0 // pred_fallthru
    _
  %v14 = vld [vmem:[%s0] sm:$0xff]
  %v15 = vld [vmem:[%s0 + $0x8] sm:$0xff]
  %v16 = vld [vmem:[%s0 + $0x10] sm:$0xff]
  %v17 = vld [vmem:[%s0 + $0x18] sm:$0xff]
  %v18 = vld [vmem:[%s0 + $0x20] sm:$0xff]
  %v19 = vld [vmem:[%s0 + $0x28] sm:$0xff]
  %v20 = vld [vmem:[%s0 + $0x30] sm:$0xff]
  %v21 = vld [vmem:[%s0 + $0x38] sm:$0xff]
  %v22 = vld [vmem:[%s0 + $0x40] sm:$0xff]
  %v23 = vld [vmem:[%s0 + $0x48] sm:$0xff]
  %v24 = vld [vmem:[%s0 + $0x50] sm:$0xff]
  %v25 = vld [vmem:[%s0 + $0x58] sm:$0xff]
  %v26 = vld [vmem:[%s0 + $0x60] sm:$0xff]
  %v27 = vld [vmem:[%s0 + $0x68] sm:$0xff]
  %v28 = vld [vmem:[%s0 + $0x70] sm:$0xff]
  %v29 = vld [vmem:[%s0 + $0x78] sm:$0xff]
  %v30 = vld [vmem:[%s0 + $0x80] sm:$0xff]
  %v31 = vld [vmem:[%s0 + $0x88] sm:$0xff]
  %v32 = vld [vmem:[%s0 + $0x90] sm:$0xff]
  %v33 = vld [vmem:[%s0 + $0x98] sm:$0xff]
  %v34 = vld [vmem:[%s0 + $0xa0] sm:$0xff]
  %v35 = vld [vmem:[%s0 + $0xa8] sm:$0xff]
  %v36 = vld [vmem:[%s0 + $0xb0] sm:$0xff]
  %v37 = vld [vmem:[%s0 + $0xb8] sm:$0xff]
  %v38 = vld [vmem:[%s0 + $0xc0] sm:$0xff]
  %v39 = vld [vmem:[%s0 + $0xc8] sm:$0xff]
  %v40 = vld [vmem:[%s0 + $0xd0] sm:$0xff]
  %v41 = vld [vmem:[%s0 + $0xd8] sm:$0xff]
  %v42 = vld [vmem:[%s0 + $0xe0] sm:$0xff]
  %v43 = vld [vmem:[%s0 + $0xe8] sm:$0xff]
  %v44 = vld [vmem:[%s0 + $0xf0] sm:$0xff]
  %v45 = vld [vmem:[%s0 + $0xf8] sm:$0xff]
  %v46 = vld [vmem:[%s0 + $0x100] sm:$0xff]
  %v47 = vld [vmem:[%s0 + $0x108] sm:$0xff]
  %v48 = vld [vmem:[%s0 + $0x110] sm:$0xff]
  %v49 = vld [vmem:[%s0 + $0x118] sm:$0xff]
  %v50 = vld [vmem:[%s0 + $0x120] sm:$0xff]
  %v51 = vld [vmem:[%s0 + $0x128] sm:$0xff]
  %v52 = vld [vmem:[%s0 + $0x130] sm:$0xff]
  %v53 = vld [vmem:[%s0 + $0x138] sm:$0xff]
  %v54 = vld [vmem:[%s0 + $0x140] sm:$0xff]
  %v55 = vld [vmem:[%s0 + $0x148] sm:$0xff]
  %v56 = vld [vmem:[%s0 + $0x150] sm:$0xff]
  %v57 = vld [vmem:[%s0 + $0x158] sm:$0xff]
  %v58 = vld [vmem:[%s0 + $0x160] sm:$0xff]
  %v59 = vld [vmem:[%s0 + $0x168] sm:$0xff]
  %v60 = vld [vmem:[%s0 + $0x170] sm:$0xff]
  %v61 = vld [vmem:[%s0 + $0x178] sm:$0xff]
  %v62 = vld [vmem:[%s0 + $0x180] sm:$0xff]
  %v63 = vld [vmem:[%s0 + $0x188] sm:$0xff]
  %v64 = vld [vmem:[%s0 + $0x190] sm:$0xff]
  %v65 = vld [vmem:[%s0 + $0x198] sm:$0xff]
  %v66 = vld [vmem:[%s0 + $0x1a0] sm:$0xff]
  %v67 = vld [vmem:[%s0 + $0x1a8] sm:$0xff]
  %v68 = vld [vmem:[%s0 + $0x1b0] sm:$0xff]
  %v69 = vld [vmem:[%s0 + $0x1b8] sm:$0xff]
  %v70 = vld [vmem:[%s0 + $0x1c0] sm:$0xff]
  %v71 = vld [vmem:[%s0 + $0x1c8] sm:$0xff]
  %v72 = vld [vmem:[%s0 + $0x1d0] sm:$0xff]
  %v73 = vld [vmem:[%s0 + $0x1d8] sm:$0xff]
  %v74 = vld [vmem:[%s0 + $0x1e0] sm:$0xff]
  %v75 = vld [vmem:[%s0 + $0x1e8] sm:$0xff]
  %v76 = vld [vmem:[%s0 + $0x1f0] sm:$0xff]
  %v77 = vld [vmem:[%s0 + $0x1f8] sm:$0xff]
  %v78 = vld [vmem:[%s1] sm:$0x1]
  %v80 = vlaneseq
  %v81 = vshrl.u32 %v80, 7
  %v82 = vsub.s32 0, %v81
  %v83 = vrot.slane %v78, %v82
  %v85 = vmul.f32 %v14, %v83
  %v86 = vmul.f32 %v15, %v83
  %v87 = vmul.f32 %v16, %v83
  %v88 = vmul.f32 %v17, %v83
  %v89 = vmul.f32 %v18, %v83
  %v90 = vmul.f32 %v19, %v83
  %v91 = vmul.f32 %v20, %v83
  %v92 = vmul.f32 %v21, %v83
  %v93 = vmul.f32 %v22, %v83
  %v94 = vmul.f32 %v23, %v83
  %v95 = vmul.f32 %v24, %v83
  %v96 = vmul.f32 %v25, %v83
  %v97 = vmul.f32 %v26, %v83
  %v98 = vmul.f32 %v27, %v83
  %v99 = vmul.f32 %v28, %v83
  %v100 = vmul.f32 %v29, %v83
  %v101 = vmul.f32 %v30, %v83
  %v102 = vmul.f32 %v31, %v83
  %v103 = vmul.f32 %v32, %v83
  %v104 = vmul.f32 %v33, %v83
  %v105 = vmul.f32 %v34, %v83
  %v106 = vmul.f32 %v35, %v83
  %v107 = vmul.f32 %v36, %v83
  %v108 = vmul.f32 %v37, %v83
  %v109 = vmul.f32 %v38, %v83
  %v110 = vmul.f32 %v39, %v83
  %v111 = vmul.f32 %v40, %v83
  %v112 = vmul.f32 %v41, %v83
  %v113 = vmul.f32 %v42, %v83
  %v114 = vmul.f32 %v43, %v83
  %v115 = vmul.f32 %v44, %v83
  %v116 = vmul.f32 %v45, %v83
  %v117 = vmul.f32 %v46, %v83
  %v118 = vmul.f32 %v47, %v83
  %v119 = vmul.f32 %v48, %v83
  %v120 = vmul.f32 %v49, %v83
  %v121 = vmul.f32 %v50, %v83
  %v122 = vmul.f32 %v51, %v83
  %v123 = vmul.f32 %v52, %v83
  %v124 = vmul.f32 %v53, %v83
  %v125 = vmul.f32 %v54, %v83
  %v126 = vmul.f32 %v55, %v83
  %v127 = vmul.f32 %v56, %v83
  %v128 = vmul.f32 %v57, %v83
  %v129 = vmul.f32 %v58, %v83
  %v130 = vmul.f32 %v59, %v83
  %v131 = vmul.f32 %v60, %v83
  %v132 = vmul.f32 %v61, %v83
  %v133 = vmul.f32 %v62, %v83
  %v134 = vmul.f32 %v63, %v83
  %v135 = vmul.f32 %v64, %v83
  %v136 = vmul.f32 %v65, %v83
  %v137 = vmul.f32 %v66, %v83
  %v138 = vmul.f32 %v67, %v83
  %v139 = vmul.f32 %v68, %v83
  %v140 = vmul.f32 %v69, %v83
  %v141 = vmul.f32 %v70, %v83
  %v142 = vmul.f32 %v71, %v83
  %v143 = vmul.f32 %v72, %v83
  %v144 = vmul.f32 %v73, %v83
  %v145 = vmul.f32 %v74, %v83
  %v146 = vmul.f32 %v75, %v83
  %v147 = vmul.f32 %v76, %v83
  %v148 = vmul.f32 %v77, %v83
  %v149 = vld [vmem:[%s2] sm:$0x1]
  %v151 = vlaneseq
  %v152 = vshrl.u32 %v151, 7
  %v153 = vsub.s32 0, %v152
  %v154 = vrot.slane %v149, %v153
  %v156 = vadd.f32 %v85, %v154
  %v157 = vadd.f32 %v86, %v154
  %v158 = vadd.f32 %v87, %v154
  %v159 = vadd.f32 %v88, %v154
  %v160 = vadd.f32 %v89, %v154
  %v161 = vadd.f32 %v90, %v154
  %v162 = vadd.f32 %v91, %v154
  %v163 = vadd.f32 %v92, %v154
  %v164 = vadd.f32 %v93, %v154
  %v165 = vadd.f32 %v94, %v154
  %v166 = vadd.f32 %v95, %v154
  %v167 = vadd.f32 %v96, %v154
  %v168 = vadd.f32 %v97, %v154
  %v169 = vadd.f32 %v98, %v154
  %v170 = vadd.f32 %v99, %v154
  %v171 = vadd.f32 %v100, %v154
  %v172 = vadd.f32 %v101, %v154
  %v173 = vadd.f32 %v102, %v154
  %v174 = vadd.f32 %v103, %v154
  %v175 = vadd.f32 %v104, %v154
  %v176 = vadd.f32 %v105, %v154
  %v177 = vadd.f32 %v106, %v154
  %v178 = vadd.f32 %v107, %v154
  %v179 = vadd.f32 %v108, %v154
  %v180 = vadd.f32 %v109, %v154
  %v181 = vadd.f32 %v110, %v154
  %v182 = vadd.f32 %v111, %v154
  %v183 = vadd.f32 %v112, %v154
  %v184 = vadd.f32 %v113, %v154
  %v185 = vadd.f32 %v114, %v154
  %v186 = vadd.f32 %v115, %v154
  %v187 = vadd.f32 %v116, %v154
  %v188 = vadd.f32 %v117, %v154
  %v189 = vadd.f32 %v118, %v154
  %v190 = vadd.f32 %v119, %v154
  %v191 = vadd.f32 %v120, %v154
  %v192 = vadd.f32 %v121, %v154
  %v193 = vadd.f32 %v122, %v154
  %v194 = vadd.f32 %v123, %v154
  %v195 = vadd.f32 %v124, %v154
  %v196 = vadd.f32 %v125, %v154
  %v197 = vadd.f32 %v126, %v154
  %v198 = vadd.f32 %v127, %v154
  %v199 = vadd.f32 %v128, %v154
  %v200 = vadd.f32 %v129, %v154
  %v201 = vadd.f32 %v130, %v154
  %v202 = vadd.f32 %v131, %v154
  %v203 = vadd.f32 %v132, %v154
  %v204 = vadd.f32 %v133, %v154
  %v205 = vadd.f32 %v134, %v154
  %v206 = vadd.f32 %v135, %v154
  %v207 = vadd.f32 %v136, %v154
  %v208 = vadd.f32 %v137, %v154
  %v209 = vadd.f32 %v138, %v154
  %v210 = vadd.f32 %v139, %v154
  %v211 = vadd.f32 %v140, %v154
  %v212 = vadd.f32 %v141, %v154
  %v213 = vadd.f32 %v142, %v154
  %v214 = vadd.f32 %v143, %v154
  %v215 = vadd.f32 %v144, %v154
  %v216 = vadd.f32 %v145, %v154
  %v217 = vadd.f32 %v146, %v154
  %v218 = vadd.f32 %v147, %v154
  %v219 = vadd.f32 %v148, %v154
  %v220 = vmax.f32 %v156, 0.0
  %v221 = vmax.f32 %v157, 0.0
  %v222 = vmax.f32 %v158, 0.0
  %v223 = vmax.f32 %v159, 0.0
  %v224 = vmax.f32 %v160, 0.0
  %v225 = vmax.f32 %v161, 0.0
  %v226 = vmax.f32 %v162, 0.0
  %v227 = vmax.f32 %v163, 0.0
  %v228 = vmax.f32 %v164, 0.0
  %v229 = vmax.f32 %v165, 0.0
  %v230 = vmax.f32 %v166, 0.0
  %v231 = vmax.f32 %v167, 0.0
  %v232 = vmax.f32 %v168, 0.0
  %v233 = vmax.f32 %v169, 0.0
  %v234 = vmax.f32 %v170, 0.0
  %v235 = vmax.f32 %v171, 0.0
  %v236 = vmax.f32 %v172, 0.0
  %v237 = vmax.f32 %v173, 0.0
  %v238 = vmax.f32 %v174, 0.0
  %v239 = vmax.f32 %v175, 0.0
  %v240 = vmax.f32 %v176, 0.0
  %v241 = vmax.f32 %v177, 0.0
  %v242 = vmax.f32 %v178, 0.0
  %v243 = vmax.f32 %v179, 0.0
  %v244 = vmax.f32 %v180, 0.0
  %v245 = vmax.f32 %v181, 0.0
  %v246 = vmax.f32 %v182, 0.0
  %v247 = vmax.f32 %v183, 0.0
  %v248 = vmax.f32 %v184, 0.0
  %v249 = vmax.f32 %v185, 0.0
  %v250 = vmax.f32 %v186, 0.0
  %v251 = vmax.f32 %v187, 0.0
  %v252 = vmax.f32 %v188, 0.0
  %v253 = vmax.f32 %v189, 0.0
  %v254 = vmax.f32 %v190, 0.0
  %v255 = vmax.f32 %v191, 0.0
  %v256 = vmax.f32 %v192, 0.0
  %v257 = vmax.f32 %v193, 0.0
  %v258 = vmax.f32 %v194, 0.0
  %v259 = vmax.f32 %v195, 0.0
  %v260 = vmax.f32 %v196, 0.0
  %v261 = vmax.f32 %v197, 0.0
  %v262 = vmax.f32 %v198, 0.0
  %v263 = vmax.f32 %v199, 0.0
  %v264 = vmax.f32 %v200, 0.0
  %v265 = vmax.f32 %v201, 0.0
  %v266 = vmax.f32 %v202, 0.0
  %v267 = vmax.f32 %v203, 0.0
  %v268 = vmax.f32 %v204, 0.0
  %v269 = vmax.f32 %v205, 0.0
  %v270 = vmax.f32 %v206, 0.0
  %v271 = vmax.f32 %v207, 0.0
  %v272 = vmax.f32 %v208, 0.0
  %v273 = vmax.f32 %v209, 0.0
  %v274 = vmax.f32 %v210, 0.0
  %v275 = vmax.f32 %v211, 0.0
  %v276 = vmax.f32 %v212, 0.0
  %v277 = vmax.f32 %v213, 0.0
  %v278 = vmax.f32 %v214, 0.0
  %v279 = vmax.f32 %v215, 0.0
  %v280 = vmax.f32 %v216, 0.0
  %v281 = vmax.f32 %v217, 0.0
  %v282 = vmax.f32 %v218, 0.0
  %v283 = vmax.f32 %v219, 0.0
  %vm284 = vcmask 64512
  %285 = vst.msk [vmem:[%s3] sm:$0xff] %vm284, %v220
  %286 = vst.msk [vmem:[%s3 + $0x8] sm:$0xff] %vm284, %v221
  %287 = vst.msk [vmem:[%s3 + $0x10] sm:$0xff] %vm284, %v222
  %288 = vst.msk [vmem:[%s3 + $0x18] sm:$0xff] %vm284, %v223
  %289 = vst.msk [vmem:[%s3 + $0x20] sm:$0xff] %vm284, %v224
  %290 = vst.msk [vmem:[%s3 + $0x28] sm:$0xff] %vm284, %v225
  %291 = vst.msk [vmem:[%s3 + $0x30] sm:$0xff] %vm284, %v226
  %292 = vst.msk [vmem:[%s3 + $0x38] sm:$0xff] %vm284, %v227
  %293 = vst.msk [vmem:[%s3 + $0x40] sm:$0xff] %vm284, %v228
  %294 = vst.msk [vmem:[%s3 + $0x48] sm:$0xff] %vm284, %v229
  %295 = vst.msk [vmem:[%s3 + $0x50] sm:$0xff] %vm284, %v230
  %296 = vst.msk [vmem:[%s3 + $0x58] sm:$0xff] %vm284, %v231
  %297 = vst.msk [vmem:[%s3 + $0x60] sm:$0xff] %vm284, %v232
  %298 = vst.msk [vmem:[%s3 + $0x68] sm:$0xff] %vm284, %v233
  %299 = vst.msk [vmem:[%s3 + $0x70] sm:$0xff] %vm284, %v234
  %300 = vst.msk [vmem:[%s3 + $0x78] sm:$0xff] %vm284, %v235
  %301 = vst.msk [vmem:[%s3 + $0x80] sm:$0xff] %vm284, %v236
  %302 = vst.msk [vmem:[%s3 + $0x88] sm:$0xff] %vm284, %v237
  %303 = vst.msk [vmem:[%s3 + $0x90] sm:$0xff] %vm284, %v238
  %304 = vst.msk [vmem:[%s3 + $0x98] sm:$0xff] %vm284, %v239
  %305 = vst.msk [vmem:[%s3 + $0xa0] sm:$0xff] %vm284, %v240
  %306 = vst.msk [vmem:[%s3 + $0xa8] sm:$0xff] %vm284, %v241
  %307 = vst.msk [vmem:[%s3 + $0xb0] sm:$0xff] %vm284, %v242
  %308 = vst.msk [vmem:[%s3 + $0xb8] sm:$0xff] %vm284, %v243
  %309 = vst.msk [vmem:[%s3 + $0xc0] sm:$0xff] %vm284, %v244
  %310 = vst.msk [vmem:[%s3 + $0xc8] sm:$0xff] %vm284, %v245
  %311 = vst.msk [vmem:[%s3 + $0xd0] sm:$0xff] %vm284, %v246
  %312 = vst.msk [vmem:[%s3 + $0xd8] sm:$0xff] %vm284, %v247
  %313 = vst.msk [vmem:[%s3 + $0xe0] sm:$0xff] %vm284, %v248
  %314 = vst.msk [vmem:[%s3 + $0xe8] sm:$0xff] %vm284, %v249
  %315 = vst.msk [vmem:[%s3 + $0xf0] sm:$0xff] %vm284, %v250
  %316 = vst.msk [vmem:[%s3 + $0xf8] sm:$0xff] %vm284, %v251
  %317 = vst.msk [vmem:[%s3 + $0x100] sm:$0xff] %vm284, %v252
  %318 = vst.msk [vmem:[%s3 + $0x108] sm:$0xff] %vm284, %v253
  %319 = vst.msk [vmem:[%s3 + $0x110] sm:$0xff] %vm284, %v254
  %320 = vst.msk [vmem:[%s3 + $0x118] sm:$0xff] %vm284, %v255
  %321 = vst.msk [vmem:[%s3 + $0x120] sm:$0xff] %vm284, %v256
  %322 = vst.msk [vmem:[%s3 + $0x128] sm:$0xff] %vm284, %v257
  %323 = vst.msk [vmem:[%s3 + $0x130] sm:$0xff] %vm284, %v258
  %324 = vst.msk [vmem:[%s3 + $0x138] sm:$0xff] %vm284, %v259
  %325 = vst.msk [vmem:[%s3 + $0x140] sm:$0xff] %vm284, %v260
  %326 = vst.msk [vmem:[%s3 + $0x148] sm:$0xff] %vm284, %v261
  %327 = vst.msk [vmem:[%s3 + $0x150] sm:$0xff] %vm284, %v262
  %328 = vst.msk [vmem:[%s3 + $0x158] sm:$0xff] %vm284, %v263
  %329 = vst.msk [vmem:[%s3 + $0x160] sm:$0xff] %vm284, %v264
  %330 = vst.msk [vmem:[%s3 + $0x168] sm:$0xff] %vm284, %v265
  %331 = vst.msk [vmem:[%s3 + $0x170] sm:$0xff] %vm284, %v266
  %332 = vst.msk [vmem:[%s3 + $0x178] sm:$0xff] %vm284, %v267
  %333 = vst.msk [vmem:[%s3 + $0x180] sm:$0xff] %vm284, %v268
  %334 = vst.msk [vmem:[%s3 + $0x188] sm:$0xff] %vm284, %v269
  %335 = vst.msk [vmem:[%s3 + $0x190] sm:$0xff] %vm284, %v270
  %336 = vst.msk [vmem:[%s3 + $0x198] sm:$0xff] %vm284, %v271
  %337 = vst.msk [vmem:[%s3 + $0x1a0] sm:$0xff] %vm284, %v272
  %338 = vst.msk [vmem:[%s3 + $0x1a8] sm:$0xff] %vm284, %v273
  %339 = vst.msk [vmem:[%s3 + $0x1b0] sm:$0xff] %vm284, %v274
  %340 = vst.msk [vmem:[%s3 + $0x1b8] sm:$0xff] %vm284, %v275
  %341 = vst.msk [vmem:[%s3 + $0x1c0] sm:$0xff] %vm284, %v276
  %342 = vst.msk [vmem:[%s3 + $0x1c8] sm:$0xff] %vm284, %v277
  %343 = vst.msk [vmem:[%s3 + $0x1d0] sm:$0xff] %vm284, %v278
  %344 = vst.msk [vmem:[%s3 + $0x1d8] sm:$0xff] %vm284, %v279
  %345 = vst.msk [vmem:[%s3 + $0x1e0] sm:$0xff] %vm284, %v280
  %346 = vst.msk [vmem:[%s3 + $0x1e8] sm:$0xff] %vm284, %v281
  %347 = vst.msk [vmem:[%s3 + $0x1f0] sm:$0xff] %vm284, %v282
  %348 = vst.msk [vmem:[%s3 + $0x1f8] sm:$0xff] %vm284, %v283
  // Predicated region
  $region14: #{fwd.72} parent=0 // pred_check
    _
  $region15: #{fwd.72} parent=0 // pred_check_branch
    %350 = sbr.rel (0) target = $region17
  $region16: #{fwd.72} parent=0 // pred_region
    _
  $region17: #{fwd.72} parent=0 // pred_fallthru
    _
  // Predicated region
  $region18: #{fwd.72} parent=0 // pred_check
    _
  $region19: #{fwd.72} parent=0 // pred_check_branch
    %352 = sbr.rel (0) target = $region21
  $region20: #{fwd.72} parent=0 // pred_region
    _
  $region21: #{fwd.72} parent=0 // pred_fallthru
    _

// kernel: fwd.73
$region0: #{fwd.73}
  #allocation0 [shape = 'u32[]', space=smem, size = 0x4, offset = 0x4, fixed_abs, tag = 'smem constant byte address 0x4 - core index']
  #allocation1 [shape = 'u32[144,128]{1,0:T(1,128)}', space=vmem, size = 0x12000, scoped, tag = 'internal scratch']
  #allocation2 [shape = 'f32[128,128]{1,0:T(8,128)}', space=vmem, size = 0x10000, scoped, tag = 'scratch operand']
  %s0 = inlined_call_operand.vmem [shape: bf16[128,72], index: 0, kind: input, shape index: {}]
  %s1 = inlined_call_operand.vmem [shape: bf16[72,128], index: 1, kind: input, shape index: {}]
  %s2 = inlined_call_operand.vmem [shape: f32[128,16], index: 2, kind: output, shape index: {}]
  %s3 = sld [smem:[#allocation0]]
  $region26: #{fwd.73} parent=0
    _
  %s5 = ssub.s32 1, %s3
  %s6 = scalar_select 0, %s5, %s3
  // Predicated region
  $region2: #{fwd.73} parent=0 // pred_check
    _
  $region3: #{fwd.73} parent=0 // pred_check_branch
    %8 = sbr.rel (0) target = $region5
  $region4: #{fwd.73} parent=0 // pred_region
    _
  $region5: #{fwd.73} parent=0 // pred_fallthru
    _
  // Predicated region
  $region6: #{fwd.73} parent=0 // pred_check
    _
  $region7: #{fwd.73} parent=0 // pred_check_branch
    %10 = sbr.rel (0) target = $region9
  $region8: #{fwd.73} parent=0 // pred_region
    _
  $region9: #{fwd.73} parent=0 // pred_fallthru
    _
  %p12 = scmp.eq.s32.totalorder 0, 0
  // Predicated region
  $region10: #{fwd.73} parent=0 // pred_check
    %p13 = pneg %p12
  $region11: #{fwd.73} parent=0 // pred_check_branch
    %15 = sbr.rel (%p13) target = $region13
  $region12: #{fwd.73} parent=0 // pred_region
    %16 = vst [vmem:[#allocation2] sm:$0xff] 0.0
    %17 = vst [vmem:[#allocation2 + $0x8] sm:$0xff] 0.0
    %18 = vst [vmem:[#allocation2 + $0x10] sm:$0xff] 0.0
    %19 = vst [vmem:[#allocation2 + $0x18] sm:$0xff] 0.0
    %20 = vst [vmem:[#allocation2 + $0x20] sm:$0xff] 0.0
    %21 = vst [vmem:[#allocation2 + $0x28] sm:$0xff] 0.0
    %22 = vst [vmem:[#allocation2 + $0x30] sm:$0xff] 0.0
    %23 = vst [vmem:[#allocation2 + $0x38] sm:$0xff] 0.0
    %24 = vst [vmem:[#allocation2 + $0x40] sm:$0xff] 0.0
    %25 = vst [vmem:[#allocation2 + $0x48] sm:$0xff] 0.0
    %26 = vst [vmem:[#allocation2 + $0x50] sm:$0xff] 0.0
    %27 = vst [vmem:[#allocation2 + $0x58] sm:$0xff] 0.0
    %28 = vst [vmem:[#allocation2 + $0x60] sm:$0xff] 0.0
    %29 = vst [vmem:[#allocation2 + $0x68] sm:$0xff] 0.0
    %30 = vst [vmem:[#allocation2 + $0x70] sm:$0xff] 0.0
    %31 = vst [vmem:[#allocation2 + $0x78] sm:$0xff] 0.0
  $region13: #{fwd.73} parent=0 // pred_fallthru
    _
  %v32 = vld [vmem:[%s0] sm:$0xf]
  %v33 = vld [vmem:[%s0 + $0x4] sm:$0xf]
  %v34 = vld [vmem:[%s0 + $0x8] sm:$0xf]
  %v35 = vld [vmem:[%s0 + $0xc] sm:$0xf]
  %v36 = vld [vmem:[%s0 + $0x10] sm:$0xf]
  %v37 = vld [vmem:[%s0 + $0x14] sm:$0xf]
  %v38 = vld [vmem:[%s0 + $0x18] sm:$0xf]
  %v39 = vld [vmem:[%s0 + $0x1c] sm:$0xf]
  %v40 = vld [vmem:[%s0 + $0x20] sm:$0xf]
  %v41 = vld [vmem:[%s0 + $0x24] sm:$0xf]
  %v42 = vld [vmem:[%s0 + $0x28] sm:$0xf]
  %v43 = vld [vmem:[%s0 + $0x2c] sm:$0xf]
  %v44 = vld [vmem:[%s0 + $0x30] sm:$0xf]
  %v45 = vld [vmem:[%s0 + $0x34] sm:$0xf]
  %v46 = vld [vmem:[%s0 + $0x38] sm:$0xf]
  %v47 = vld [vmem:[%s0 + $0x3c] sm:$0xf]
  %v48 = vld [vmem:[%s1] sm:$0xf]
  %v49 = vld [vmem:[%s1 + $0x4] sm:$0xf]
  %v50 = vld [vmem:[%s1 + $0x8] sm:$0xf]
  %v51 = vld [vmem:[%s1 + $0xc] sm:$0xf]
  %v52 = vld [vmem:[%s1 + $0x10] sm:$0xf]
  %v53 = vld [vmem:[%s1 + $0x14] sm:$0xf]
  %v54 = vld [vmem:[%s1 + $0x18] sm:$0xf]
  %v55 = vld [vmem:[%s1 + $0x1c] sm:$0xf]
  %v56 = vld [vmem:[%s1 + $0x20] sm:$0xf]
  %v57 = vld [vmem:[#allocation2] sm:$0xff]
  %v58 = vld [vmem:[#allocation2 + $0x8] sm:$0xff]
  %v59 = vld [vmem:[#allocation2 + $0x10] sm:$0xff]
  %v60 = vld [vmem:[#allocation2 + $0x18] sm:$0xff]
  %v61 = vld [vmem:[#allocation2 + $0x20] sm:$0xff]
  %v62 = vld [vmem:[#allocation2 + $0x28] sm:$0xff]
  %v63 = vld [vmem:[#allocation2 + $0x30] sm:$0xff]
  %v64 = vld [vmem:[#allocation2 + $0x38] sm:$0xff]
  %v65 = vld [vmem:[#allocation2 + $0x40] sm:$0xff]
  %v66 = vld [vmem:[#allocation2 + $0x48] sm:$0xff]
  %v67 = vld [vmem:[#allocation2 + $0x50] sm:$0xff]
  %v68 = vld [vmem:[#allocation2 + $0x58] sm:$0xff]
  %v69 = vld [vmem:[#allocation2 + $0x60] sm:$0xff]
  %v70 = vld [vmem:[#allocation2 + $0x68] sm:$0xff]
  %v71 = vld [vmem:[#allocation2 + $0x70] sm:$0xff]
  %v72 = vld [vmem:[#allocation2 + $0x78] sm:$0xff]
  %v89 = vunpack.c.l.b16 %v32
  %v90 = vunpack.c.l.b16 %v33
  %v91 = vunpack.c.l.b16 %v34
  %v92 = vunpack.c.l.b16 %v35
  %v93 = vunpack.c.l.b16 %v36
  %v94 = vunpack.c.l.b16 %v37
  %v95 = vunpack.c.l.b16 %v38
  %v96 = vunpack.c.l.b16 %v39
  %v97 = vunpack.c.l.b16 %v40
  %v98 = vunpack.c.l.b16 %v41
  %v99 = vunpack.c.l.b16 %v42
  %v100 = vunpack.c.l.b16 %v43
  %v101 = vunpack.c.l.b16 %v44
  %v102 = vunpack.c.l.b16 %v45
  %v103 = vunpack.c.l.b16 %v46
  %v104 = vunpack.c.l.b16 %v47
  %v105 = vpack.c.b16 %v90, %v89
  %v106 = vpack.c.b16 %v92, %v91
  %v107 = vpack.c.b16 %v94, %v93
  %v108 = vpack.c.b16 %v96, %v95
  %v109 = vpack.c.b16 %v98, %v97
  %v110 = vpack.c.b16 %v100, %v99
  %v111 = vpack.c.b16 %v102, %v101
  %v112 = vpack.c.b16 %v104, %v103
  %v122 = vunpack.c.l.b16 %v48
  %v123 = vunpack.c.l.b16 %v49
  %v124 = vunpack.c.l.b16 %v50
  %v125 = vunpack.c.l.b16 %v51
  %v126 = vunpack.c.l.b16 %v52
  %v127 = vunpack.c.l.b16 %v53
  %v128 = vunpack.c.l.b16 %v54
  %v129 = vunpack.c.l.b16 %v55
  %v130 = vunpack.c.l.b16 %v56
  %v131 = vpack.c.b16 %v123, %v122
  %v132 = vpack.c.b16 %v125, %v124
  %v133 = vpack.c.b16 %v127, %v126
  %v134 = vpack.c.b16 %v129, %v128
  %v135 = vpack.c.b16 %v130, %v130
  %vm140 = vcmask 588800
  %v142 = vsel %vm140, %v105, 0
  %v145 = vsel %vm140, %v106, 0
  %v148 = vsel %vm140, %v107, 0
  %v151 = vsel %vm140, %v108, 0
  %v154 = vsel %vm140, %v109, 0
  %v157 = vsel %vm140, %v110, 0
  %v160 = vsel %vm140, %v111, 0
  %v163 = vsel %vm140, %v112, 0
  %vm165 = vcmask 1043456
  %v167 = vsel %vm165, %v135, 0
  %169 = vmatprep.subr.bf16.mxu0 0
  %170 = vmatpush1.bf16.msra.mxu0 %v131
  %171 = vmatprep.subr.bf16.mxu0 0
  %172 = vmatpush1.bf16.msra.mxu0 %v132
  %173 = vmatprep.subr.bf16.mxu0 0
  %174 = vmatpush1.bf16.msra.mxu0 %v133
  %175 = vmatprep.subr.bf16.mxu0 0
  %176 = vmatpush1.bf16.msra.mxu0 %v134
  %177 = vmatprep.subr.bf16.mxu0 0
  %178 = vmatpush1.bf16.msra.mxu0 %v167
  %179 = vmatprep.subr.bf16.mxu0 0
  %180 = vmatpush1.bf16.msra.mxu0 0
  %181 = vmatprep.subr.bf16.mxu0 0
  %182 = vmatpush1.bf16.msra.mxu0 0
  %183 = vmatprep.subr.bf16.mxu0 0
  %184 = vmatpush1.bf16.msra.mxu0 0
  %185 = vmatprep.subr.bf16.mxu0 0
  %186 = vmatpush1.bf16.msra.mxu0 0
  %187 = vmatprep.subr.bf16.mxu0 0
  %188 = vmatpush1.bf16.msra.mxu0 0
  %189 = vmatprep.subr.bf16.mxu0 0
  %190 = vmatpush1.bf16.msra.mxu0 0
  %191 = vmatprep.subr.bf16.mxu0 0
  %192 = vmatpush1.bf16.msra.mxu0 0
  %193 = vmatprep.subr.bf16.mxu0 0
  %194 = vmatpush1.bf16.msra.mxu0 0
  %195 = vmatprep.subr.bf16.mxu0 0
  %196 = vmatpush1.bf16.msra.mxu0 0
  %197 = vmatprep.subr.bf16.mxu0 0
  %198 = vmatpush1.bf16.msra.mxu0 0
  %199 = vmatprep.subr.bf16.mxu0 0
  %200 = vmatpush1.bf16.msra.mxu0 0
  %201 = vmatprep.mubr.bf16.mxu0 0
  %202 = vmatmul.mubr.bf16.gmra.mrb[0].mxu0 %v142
  %v203 = vpop.f32.mrb[0].mxu0
  %v204 = vadd.f32 0.0, %v203
  %v205 = vpop.f32.mrb[0].mxu0
  %v206 = vpop.f32.mrb[0].mxu0
  %v207 = vadd.f32 0.0, %v206
  %v208 = vpop.f32.mrb[0].mxu0
  %209 = vmatprep.mubr.bf16.mxu0 0
  %210 = vmatmul.mubr.bf16.gmra.mrb[0].mxu0 %v145
  %v211 = vpop.f32.mrb[0].mxu0
  %v212 = vadd.f32 0.0, %v211
  %v213 = vpop.f32.mrb[0].mxu0
  %v214 = vpop.f32.mrb[0].mxu0
  %v215 = vadd.f32 0.0, %v214
  %v216 = vpop.f32.mrb[0].mxu0
  %217 = vmatprep.mubr.bf16.mxu0 0
  %218 = vmatmul.mubr.bf16.gmra.mrb[0].mxu0 %v148
  %v219 = vpop.f32.mrb[0].mxu0
  %v220 = vadd.f32 0.0, %v219
  %v221 = vpop.f32.mrb[0].mxu0
  %v222 = vpop.f32.mrb[0].mxu0
  %v223 = vadd.f32 0.0, %v222
  %v224 = vpop.f32.mrb[0].mxu0
  %225 = vmatprep.mubr.bf16.mxu0 0
  %226 = vmatmul.mubr.bf16.gmra.mrb[0].mxu0 %v151
  %v227 = vpop.f32.mrb[0].mxu0
  %v228 = vadd.f32 0.0, %v227
  %v229 = vpop.f32.mrb[0].mxu0
  %v230 = vpop.f32.mrb[0].mxu0
  %v231 = vadd.f32 0.0, %v230
  %v232 = vpop.f32.mrb[0].mxu0
  %233 = vmatprep.mubr.bf16.mxu0 0
  %234 = vmatmul.mubr.bf16.gmra.mrb[0].mxu0 %v154
  %v235 = vpop.f32.mrb[0].mxu0
  %v236 = vadd.f32 0.0, %v235
  %v237 = vpop.f32.mrb[0].mxu0
  %v238 = vpop.f32.mrb[0].mxu0
  %v239 = vadd.f32 0.0, %v238
  %v240 = vpop.f32.mrb[0].mxu0
  %241 = vmatprep.mubr.bf16.mxu0 0
  %242 = vmatmul.mubr.bf16.gmra.mrb[0].mxu0 %v157
  %v243 = vpop.f32.mrb[0].mxu0
  %v244 = vadd.f32 0.0, %v243
  %v245 = vpop.f32.mrb[0].mxu0
  %v246 = vpop.f32.mrb[0].mxu0
  %v247 = vadd.f32 0.0, %v246
  %v248 = vpop.f32.mrb[0].mxu0
  %249 = vmatprep.mubr.bf16.mxu0 0
  %250 = vmatmul.mubr.bf16.gmra.mrb[0].mxu0 %v160
  %v251 = vpop.f32.mrb[0].mxu0
  %v252 = vadd.f32 0.0, %v251
  %v253 = vpop.f32.mrb[0].mxu0
  %v254 = vpop.f32.mrb[0].mxu0
  %v255 = vadd.f32 0.0, %v254
  %v256 = vpop.f32.mrb[0].mxu0
  %257 = vmatprep.mubr.bf16.mxu0 0
  %258 = vmatmul.mubr.bf16.gmra.mrb[0].mxu0 %v163
  %v259 = vpop.f32.mrb[0].mxu0
  %v260 = vadd.f32 0.0, %v259
  %v261 = vpop.f32.mrb[0].mxu0
  %v262 = vpop.f32.mrb[0].mxu0
  %v263 = vadd.f32 0.0, %v262
  %v264 = vpop.f32.mrb[0].mxu0
  %265 = vdwg.mxu0
  %v266 = vadd.f32 %v57, %v204
  %v267 = vadd.f32 %v58, %v207
  %v268 = vadd.f32 %v59, %v212
  %v269 = vadd.f32 %v60, %v215
  %v270 = vadd.f32 %v61, %v220
  %v271 = vadd.f32 %v62, %v223
  %v272 = vadd.f32 %v63, %v228
  %v273 = vadd.f32 %v64, %v231
  %v274 = vadd.f32 %v65, %v236
  %v275 = vadd.f32 %v66, %v239
  %v276 = vadd.f32 %v67, %v244
  %v277 = vadd.f32 %v68, %v247
  %v278 = vadd.f32 %v69, %v252
  %v279 = vadd.f32 %v70, %v255
  %v280 = vadd.f32 %v71, %v260
  %v281 = vadd.f32 %v72, %v263
  %282 = vst [vmem:[#allocation2] sm:$0xff] %v266
  %283 = vst [vmem:[#allocation2 + $0x8] sm:$0xff] %v267
  %284 = vst [vmem:[#allocation2 + $0x10] sm:$0xff] %v268
  %285 = vst [vmem:[#allocation2 + $0x18] sm:$0xff] %v269
  %286 = vst [vmem:[#allocation2 + $0x20] sm:$0xff] %v270
  %287 = vst [vmem:[#allocation2 + $0x28] sm:$0xff] %v271
  %288 = vst [vmem:[#allocation2 + $0x30] sm:$0xff] %v272
  %289 = vst [vmem:[#allocation2 + $0x38] sm:$0xff] %v273
  %290 = vst [vmem:[#allocation2 + $0x40] sm:$0xff] %v274
  %291 = vst [vmem:[#allocation2 + $0x48] sm:$0xff] %v275
  %292 = vst [vmem:[#allocation2 + $0x50] sm:$0xff] %v276
  %293 = vst [vmem:[#allocation2 + $0x58] sm:$0xff] %v277
  %294 = vst [vmem:[#allocation2 + $0x60] sm:$0xff] %v278
  %295 = vst [vmem:[#allocation2 + $0x68] sm:$0xff] %v279
  %296 = vst [vmem:[#allocation2 + $0x70] sm:$0xff] %v280
  %297 = vst [vmem:[#allocation2 + $0x78] sm:$0xff] %v281
  // Predicated region
  $region14: #{fwd.73} parent=0 // pred_check
    %p298 = pneg %p12
  $region15: #{fwd.73} parent=0 // pred_check_branch
    %300 = sbr.rel (%p298) target = $region17
  $region16: #{fwd.73} parent=0 // pred_region
    %v301 = vld [vmem:[#allocation2] sm:$0xff]
    %v302 = vld [vmem:[#allocation2 + $0x8] sm:$0xff]
    %v303 = vld [vmem:[#allocation2 + $0x10] sm:$0xff]
    %v304 = vld [vmem:[#allocation2 + $0x18] sm:$0xff]
    %v305 = vld [vmem:[#allocation2 + $0x20] sm:$0xff]
    %v306 = vld [vmem:[#allocation2 + $0x28] sm:$0xff]
    %v307 = vld [vmem:[#allocation2 + $0x30] sm:$0xff]
    %v308 = vld [vmem:[#allocation2 + $0x38] sm:$0xff]
    %v309 = vld [vmem:[#allocation2 + $0x40] sm:$0xff]
    %v310 = vld [vmem:[#allocation2 + $0x48] sm:$0xff]
    %v311 = vld [vmem:[#allocation2 + $0x50] sm:$0xff]
    %v312 = vld [vmem:[#allocation2 + $0x58] sm:$0xff]
    %v313 = vld [vmem:[#allocation2 + $0x60] sm:$0xff]
    %v314 = vld [vmem:[#allocation2 + $0x68] sm:$0xff]
    %v315 = vld [vmem:[#allocation2 + $0x70] sm:$0xff]
    %v316 = vld [vmem:[#allocation2 + $0x78] sm:$0xff]
    %vm317 = vcmask 130048
    %318 = vst.msk [vmem:[%s2] sm:$0xff] %vm317, %v301
    %319 = vst.msk [vmem:[%s2 + $0x8] sm:$0xff] %vm317, %v302
    %320 = vst.msk [vmem:[%s2 + $0x10] sm:$0xff] %vm317, %v303
    %321 = vst.msk [vmem:[%s2 + $0x18] sm:$0xff] %vm317, %v304
    %322 = vst.msk [vmem:[%s2 + $0x20] sm:$0xff] %vm317, %v305
    %323 = vst.msk [vmem:[%s2 + $0x28] sm:$0xff] %vm317, %v306
    %324 = vst.msk [vmem:[%s2 + $0x30] sm:$0xff] %vm317, %v307
    %325 = vst.msk [vmem:[%s2 + $0x38] sm:$0xff] %vm317, %v308
    %326 = vst.msk [vmem:[%s2 + $0x40] sm:$0xff] %vm317, %v309
    %327 = vst.msk [vmem:[%s2 + $0x48] sm:$0xff] %vm317, %v310
    %328 = vst.msk [vmem:[%s2 + $0x50] sm:$0xff] %vm317, %v311
    %329 = vst.msk [vmem:[%s2 + $0x58] sm:$0xff] %vm317, %v312
    %330 = vst.msk [vmem:[%s2 + $0x60] sm:$0xff] %vm317, %v313
    %331 = vst.msk [vmem:[%s2 + $0x68] sm:$0xff] %vm317, %v314
    %332 = vst.msk [vmem:[%s2 + $0x70] sm:$0xff] %vm317, %v315
    %333 = vst.msk [vmem:[%s2 + $0x78] sm:$0xff] %vm317, %v316
  $region17: #{fwd.73} parent=0 // pred_fallthru
    _
  // Predicated region
  $region18: #{fwd.73} parent=0 // pred_check
    _
  $region19: #{fwd.73} parent=0 // pred_check_branch
    %335 = sbr.rel (0) target = $region21
  $region20: #{fwd.73} parent=0 // pred_region
    _
  $region21: #{fwd.73} parent=0 // pred_fallthru
    _
  // Predicated region
  $region22: #{fwd.73} parent=0 // pred_check
    _
  $region23: #{fwd.73} parent=0 // pred_check_branch
    %337 = sbr.rel (0) target = $region25
  $region24: #{fwd.73} parent=0 // pred_region
    _
  $region25: #{fwd.73} parent=0 // pred_fallthru
    _

// kernel: fwd.74
$region0: #{fwd.74}
  #allocation0 [shape = 'u32[]', space=smem, size = 0x4, offset = 0x4, fixed_abs, tag = 'smem constant byte address 0x4 - core index']
  #allocation1 [shape = 'u32[144,128]{1,0:T(1,128)}', space=vmem, size = 0x12000, scoped, tag = 'internal scratch']
  %s0 = inlined_call_operand.vmem [shape: f32[128,16], index: 0, kind: input, shape index: {}]
  %s1 = inlined_call_operand.vmem [shape: f32[1,16], index: 1, kind: output, shape index: {0}]
  %s2 = inlined_call_operand.vmem [shape: f32[1,16], index: 2, kind: output, shape index: {1}]
  %3 = xla_tuple %s1, %s2
  %s4 = sld [smem:[#allocation0]]
  $region26: #{fwd.74} parent=0
    _
  %s6 = ssub.s32 1, %s4
  %s7 = scalar_select 0, %s6, %s4
  // Predicated region
  $region2: #{fwd.74} parent=0 // pred_check
    _
  $region3: #{fwd.74} parent=0 // pred_check_branch
    %9 = sbr.rel (0) target = $region5
  $region4: #{fwd.74} parent=0 // pred_region
    _
  $region5: #{fwd.74} parent=0 // pred_fallthru
    _
  %p10 = scmp.eq.s32.totalorder 0, 0
  // Predicated region
  $region6: #{fwd.74} parent=0 // pred_check
    %p11 = pneg %p10
  $region7: #{fwd.74} parent=0 // pred_check_branch
    %13 = sbr.rel (%p11) target = $region9
  $region8: #{fwd.74} parent=0 // pred_region
    %vm14 = vcmask 122880
    %15 = vst.msk [vmem:[%s1] sm:$0x1] %vm14, 0.0
    %16 = vst.msk [vmem:[%s2] sm:$0x1] %vm14, 0.0
  $region9: #{fwd.74} parent=0 // pred_fallthru
    _
  %v17 = vld [vmem:[%s0] sm:$0xff]
  %v18 = vld [vmem:[%s0 + $0x8] sm:$0xff]
  %v19 = vld [vmem:[%s0 + $0x10] sm:$0xff]
  %v20 = vld [vmem:[%s0 + $0x18] sm:$0xff]
  %v21 = vld [vmem:[%s0 + $0x20] sm:$0xff]
  %v22 = vld [vmem:[%s0 + $0x28] sm:$0xff]
  %v23 = vld [vmem:[%s0 + $0x30] sm:$0xff]
  %v24 = vld [vmem:[%s0 + $0x38] sm:$0xff]
  %v25 = vld [vmem:[%s0 + $0x40] sm:$0xff]
  %v26 = vld [vmem:[%s0 + $0x48] sm:$0xff]
  %v27 = vld [vmem:[%s0 + $0x50] sm:$0xff]
  %v28 = vld [vmem:[%s0 + $0x58] sm:$0xff]
  %v29 = vld [vmem:[%s0 + $0x60] sm:$0xff]
  %v30 = vld [vmem:[%s0 + $0x68] sm:$0xff]
  %v31 = vld [vmem:[%s0 + $0x70] sm:$0xff]
  %v32 = vld [vmem:[%s0 + $0x78] sm:$0xff]
  %v33 = vld [vmem:[%s1] sm:$0x1]
  %vm34 = vcmask 130048
  %v35 = vsel %vm34, %v17, 0.0
  %v36 = vsel %vm34, %v18, 0.0
  %v37 = vadd.f32 %v35, %v36
  %v38 = vsel %vm34, %v19, 0.0
  %v39 = vadd.f32 %v37, %v38
  %v40 = vsel %vm34, %v20, 0.0
  %v41 = vadd.f32 %v39, %v40
  %v42 = vsel %vm34, %v21, 0.0
  %v43 = vadd.f32 %v41, %v42
  %v44 = vsel %vm34, %v22, 0.0
  %v45 = vadd.f32 %v43, %v44
  %v46 = vsel %vm34, %v23, 0.0
  %v47 = vadd.f32 %v45, %v46
  %v48 = vsel %vm34, %v24, 0.0
  %v49 = vadd.f32 %v47, %v48
  %v50 = vsel %vm34, %v25, 0.0
  %v51 = vadd.f32 %v49, %v50
  %v52 = vsel %vm34, %v26, 0.0
  %v53 = vadd.f32 %v51, %v52
  %v54 = vsel %vm34, %v27, 0.0
  %v55 = vadd.f32 %v53, %v54
  %v56 = vsel %vm34, %v28, 0.0
  %v57 = vadd.f32 %v55, %v56
  %v58 = vsel %vm34, %v29, 0.0
  %v59 = vadd.f32 %v57, %v58
  %v60 = vsel %vm34, %v30, 0.0
  %v61 = vadd.f32 %v59, %v60
  %v62 = vsel %vm34, %v31, 0.0
  %v63 = vadd.f32 %v61, %v62
  %v64 = vsel %vm34, %v32, 0.0
  %v65 = vadd.f32 %v63, %v64
  %v66 = vrot.slane %v65, 4
  %v67 = vadd.f32 %v65, %v66
  %v68 = vrot.slane %v67, 2
  %v69 = vadd.f32 %v67, %v68
  %v70 = vrot.slane %v69, 1
  %v71 = vadd.f32 %v69, %v70
  %v72 = vadd.f32 %v33, %v71
  %vm73 = vcmask 122880
  %74 = vst.msk [vmem:[%s1] sm:$0x1] %vm73, %v72
  %v75 = vld [vmem:[%s2] sm:$0x1]
  %v76 = vmul.f32 %v17, %v17
  %v77 = vmul.f32 %v18, %v18
  %v78 = vmul.f32 %v19, %v19
  %v79 = vmul.f32 %v20, %v20
  %v80 = vmul.f32 %v21, %v21
  %v81 = vmul.f32 %v22, %v22
  %v82 = vmul.f32 %v23, %v23
  %v83 = vmul.f32 %v24, %v24
  %v84 = vmul.f32 %v25, %v25
  %v85 = vmul.f32 %v26, %v26
  %v86 = vmul.f32 %v27, %v27
  %v87 = vmul.f32 %v28, %v28
  %v88 = vmul.f32 %v29, %v29
  %v89 = vmul.f32 %v30, %v30
  %v90 = vmul.f32 %v31, %v31
  %v91 = vmul.f32 %v32, %v32
  %v92 = vsel %vm34, %v76, 0.0
  %v93 = vsel %vm34, %v77, 0.0
  %v94 = vadd.f32 %v92, %v93
  %v95 = vsel %vm34, %v78, 0.0
  %v96 = vadd.f32 %v94, %v95
  %v97 = vsel %vm34, %v79, 0.0
  %v98 = vadd.f32 %v96, %v97
  %v99 = vsel %vm34, %v80, 0.0
  %v100 = vadd.f32 %v98, %v99
  %v101 = vsel %vm34, %v81, 0.0
  %v102 = vadd.f32 %v100, %v101
  %v103 = vsel %vm34, %v82, 0.0
  %v104 = vadd.f32 %v102, %v103
  %v105 = vsel %vm34, %v83, 0.0
  %v106 = vadd.f32 %v104, %v105
  %v107 = vsel %vm34, %v84, 0.0
  %v108 = vadd.f32 %v106, %v107
  %v109 = vsel %vm34, %v85, 0.0
  %v110 = vadd.f32 %v108, %v109
  %v111 = vsel %vm34, %v86, 0.0
  %v112 = vadd.f32 %v110, %v111
  %v113 = vsel %vm34, %v87, 0.0
  %v114 = vadd.f32 %v112, %v113
  %v115 = vsel %vm34, %v88, 0.0
  %v116 = vadd.f32 %v114, %v115
  %v117 = vsel %vm34, %v89, 0.0
  %v118 = vadd.f32 %v116, %v117
  %v119 = vsel %vm34, %v90, 0.0
  %v120 = vadd.f32 %v118, %v119
  %v121 = vsel %vm34, %v91, 0.0
  %v122 = vadd.f32 %v120, %v121
  %v123 = vrot.slane %v122, 4
  %v124 = vadd.f32 %v122, %v123
  %v125 = vrot.slane %v124, 2
  %v126 = vadd.f32 %v124, %v125
  %v127 = vrot.slane %v126, 1
  %v128 = vadd.f32 %v126, %v127
  %v129 = vadd.f32 %v75, %v128
  %130 = vst.msk [vmem:[%s2] sm:$0x1] %vm73, %v129
  // Predicated region
  $region10: #{fwd.74} parent=0 // pred_check
    _
  $region11: #{fwd.74} parent=0 // pred_check_branch
    %132 = sbr.rel (0) target = $region13
  $region12: #{fwd.74} parent=0 // pred_region
    _
  $region13: #{fwd.74} parent=0 // pred_fallthru
    _
  // Predicated region
  $region14: #{fwd.74} parent=0 // pred_check
    _
  $region15: #{fwd.74} parent=0 // pred_check_branch
    %134 = sbr.rel (0) target = $region17
  $region16: #{fwd.74} parent=0 // pred_region
    _
  $region17: #{fwd.74} parent=0 // pred_fallthru
    _
  // Predicated region
  $region18: #{fwd.74} parent=0 // pred_check
    _
  $region19: #{fwd.74} parent=0 // pred_check_branch
    %136 = sbr.rel (0) target = $region21
  $region20: #{fwd.74} parent=0 // pred_region
    _
  $region21: #{fwd.74} parent=0 // pred_fallthru
    _
  // Predicated region
  $region22: #{fwd.74} parent=0 // pred_check
    _
  $region23: #{fwd.74} parent=0 // pred_check_branch
    %138 = sbr.rel (0) target = $region25
  $region24: #{fwd.74} parent=0 // pred_region
    _
  $region25: #{fwd.74} parent=0 // pred_fallthru
    _

// kernel: fwd.75
$region0: #{fwd.75}
  #allocation0 [shape = 'u32[]', space=smem, size = 0x4, offset = 0x4, fixed_abs, tag = 'smem constant byte address 0x4 - core index']
  #allocation1 [shape = 'u32[144,128]{1,0:T(1,128)}', space=vmem, size = 0x12000, scoped, tag = 'internal scratch']
  %s0 = inlined_call_operand.vmem [shape: f32[128,16], index: 0, kind: input, shape index: {}]
  %s1 = inlined_call_operand.vmem [shape: f32[1,16], index: 1, kind: input, shape index: {}]
  %s2 = inlined_call_operand.vmem [shape: f32[1,16], index: 2, kind: input, shape index: {}]
  %s3 = inlined_call_operand.vmem [shape: f32[128,16], index: 3, kind: output, shape index: {}]
  %s4 = sld [smem:[#allocation0]]
  $region22: #{fwd.75} parent=0
    _
  %s6 = ssub.s32 1, %s4
  %s7 = scalar_select 0, %s6, %s4
  // Predicated region
  $region2: #{fwd.75} parent=0 // pred_check
    _
  $region3: #{fwd.75} parent=0 // pred_check_branch
    %9 = sbr.rel (0) target = $region5
  $region4: #{fwd.75} parent=0 // pred_region
    _
  $region5: #{fwd.75} parent=0 // pred_fallthru
    _
  // Predicated region
  $region6: #{fwd.75} parent=0 // pred_check
    _
  $region7: #{fwd.75} parent=0 // pred_check_branch
    %11 = sbr.rel (0) target = $region9
  $region8: #{fwd.75} parent=0 // pred_region
    _
  $region9: #{fwd.75} parent=0 // pred_fallthru
    _
  // Predicated region
  $region10: #{fwd.75} parent=0 // pred_check
    _
  $region11: #{fwd.75} parent=0 // pred_check_branch
    %13 = sbr.rel (0) target = $region13
  $region12: #{fwd.75} parent=0 // pred_region
    _
  $region13: #{fwd.75} parent=0 // pred_fallthru
    _
  %v14 = vld [vmem:[%s0] sm:$0xff]
  %v15 = vld [vmem:[%s0 + $0x8] sm:$0xff]
  %v16 = vld [vmem:[%s0 + $0x10] sm:$0xff]
  %v17 = vld [vmem:[%s0 + $0x18] sm:$0xff]
  %v18 = vld [vmem:[%s0 + $0x20] sm:$0xff]
  %v19 = vld [vmem:[%s0 + $0x28] sm:$0xff]
  %v20 = vld [vmem:[%s0 + $0x30] sm:$0xff]
  %v21 = vld [vmem:[%s0 + $0x38] sm:$0xff]
  %v22 = vld [vmem:[%s0 + $0x40] sm:$0xff]
  %v23 = vld [vmem:[%s0 + $0x48] sm:$0xff]
  %v24 = vld [vmem:[%s0 + $0x50] sm:$0xff]
  %v25 = vld [vmem:[%s0 + $0x58] sm:$0xff]
  %v26 = vld [vmem:[%s0 + $0x60] sm:$0xff]
  %v27 = vld [vmem:[%s0 + $0x68] sm:$0xff]
  %v28 = vld [vmem:[%s0 + $0x70] sm:$0xff]
  %v29 = vld [vmem:[%s0 + $0x78] sm:$0xff]
  %v30 = vld [vmem:[%s1] sm:$0x1]
  %v32 = vlaneseq
  %v33 = vshrl.u32 %v32, 7
  %v34 = vsub.s32 0, %v33
  %v35 = vrot.slane %v30, %v34
  %v37 = vmul.f32 %v14, %v35
  %v38 = vmul.f32 %v15, %v35
  %v39 = vmul.f32 %v16, %v35
  %v40 = vmul.f32 %v17, %v35
  %v41 = vmul.f32 %v18, %v35
  %v42 = vmul.f32 %v19, %v35
  %v43 = vmul.f32 %v20, %v35
  %v44 = vmul.f32 %v21, %v35
  %v45 = vmul.f32 %v22, %v35
  %v46 = vmul.f32 %v23, %v35
  %v47 = vmul.f32 %v24, %v35
  %v48 = vmul.f32 %v25, %v35
  %v49 = vmul.f32 %v26, %v35
  %v50 = vmul.f32 %v27, %v35
  %v51 = vmul.f32 %v28, %v35
  %v52 = vmul.f32 %v29, %v35
  %v53 = vld [vmem:[%s2] sm:$0x1]
  %v55 = vlaneseq
  %v56 = vshrl.u32 %v55, 7
  %v57 = vsub.s32 0, %v56
  %v58 = vrot.slane %v53, %v57
  %v60 = vadd.f32 %v37, %v58
  %v61 = vadd.f32 %v38, %v58
  %v62 = vadd.f32 %v39, %v58
  %v63 = vadd.f32 %v40, %v58
  %v64 = vadd.f32 %v41, %v58
  %v65 = vadd.f32 %v42, %v58
  %v66 = vadd.f32 %v43, %v58
  %v67 = vadd.f32 %v44, %v58
  %v68 = vadd.f32 %v45, %v58
  %v69 = vadd.f32 %v46, %v58
  %v70 = vadd.f32 %v47, %v58
  %v71 = vadd.f32 %v48, %v58
  %v72 = vadd.f32 %v49, %v58
  %v73 = vadd.f32 %v50, %v58
  %v74 = vadd.f32 %v51, %v58
  %v75 = vadd.f32 %v52, %v58
  %v76 = vmax.f32 %v60, 0.0
  %v77 = vmax.f32 %v61, 0.0
  %v78 = vmax.f32 %v62, 0.0
  %v79 = vmax.f32 %v63, 0.0
  %v80 = vmax.f32 %v64, 0.0
  %v81 = vmax.f32 %v65, 0.0
  %v82 = vmax.f32 %v66, 0.0
  %v83 = vmax.f32 %v67, 0.0
  %v84 = vmax.f32 %v68, 0.0
  %v85 = vmax.f32 %v69, 0.0
  %v86 = vmax.f32 %v70, 0.0
  %v87 = vmax.f32 %v71, 0.0
  %v88 = vmax.f32 %v72, 0.0
  %v89 = vmax.f32 %v73, 0.0
  %v90 = vmax.f32 %v74, 0.0
  %v91 = vmax.f32 %v75, 0.0
  %vm92 = vcmask 130048
  %93 = vst.msk [vmem:[%s3] sm:$0xff] %vm92, %v76
  %94 = vst.msk [vmem:[%s3 + $0x8] sm:$0xff] %vm92, %v77
  %95 = vst.msk [vmem:[%s3 + $0x10] sm:$0xff] %vm92, %v78
  %96 = vst.msk [vmem:[%s3 + $0x18] sm:$0xff] %vm92, %v79
  %97 = vst.msk [vmem:[%s3 + $0x20] sm:$0xff] %vm92, %v80
  %98 = vst.msk [vmem:[%s3 + $0x28] sm:$0xff] %vm92, %v81
  %99 = vst.msk [vmem:[%s3 + $0x30] sm:$0xff] %vm92, %v82
  %100 = vst.msk [vmem:[%s3 + $0x38] sm:$0xff] %vm92, %v83
  %101 = vst.msk [vmem:[%s3 + $0x40] sm:$0xff] %vm92, %v84
  %102 = vst.msk [vmem:[%s3 + $0x48] sm:$0xff] %vm92, %v85
  %103 = vst.msk [vmem:[%s3 + $0x50] sm:$0xff] %vm92, %v86
  %104 = vst.msk [vmem:[%s3 + $0x58] sm:$0xff] %vm92, %v87
  %105 = vst.msk [vmem:[%s3 + $0x60] sm:$0xff] %vm92, %v88
  %106 = vst.msk [vmem:[%s3 + $0x68] sm:$0xff] %vm92, %v89
  %107 = vst.msk [vmem:[%s3 + $0x70] sm:$0xff] %vm92, %v90
  %108 = vst.msk [vmem:[%s3 + $0x78] sm:$0xff] %vm92, %v91
  // Predicated region
  $region14: #{fwd.75} parent=0 // pred_check
    _
  $region15: #{fwd.75} parent=0 // pred_check_branch
    %110 = sbr.rel (0) target = $region17
  $region16: #{fwd.75} parent=0 // pred_region
    _
  $region17: #{fwd.75} parent=0 // pred_fallthru
    _
  // Predicated region
  $region18: #{fwd.75} parent=0 // pred_check
    _
  $region19: #{fwd.75} parent=0 // pred_check_branch
    %112 = sbr.rel (0) target = $region21
  $region20: #{fwd.75} parent=0 // pred_region
    _
  $region21: #{fwd.75} parent=0 // pred_fallthru
    _

// kernel: fwd.76
$region0: #{fwd.76}
  #allocation0 [shape = 'u32[]', space=smem, size = 0x4, offset = 0x4, fixed_abs, tag = 'smem constant byte address 0x4 - core index']
  #allocation1 [shape = 'u32[144,128]{1,0:T(1,128)}', space=vmem, size = 0x12000, scoped, tag = 'internal scratch']
  #allocation2 [shape = 'f32[32,128]{1,0:T(8,128)}', space=vmem, size = 0x4000, scoped, tag = 'scratch operand']
  %s0 = inlined_call_operand.vmem [shape: bf16[32,144], index: 0, kind: input, shape index: {}]
  %s1 = inlined_call_operand.vmem [shape: bf16[144,128], index: 1, kind: input, shape index: {}]
  %s2 = inlined_call_operand.vmem [shape: f32[32,32], index: 2, kind: output, shape index: {}]
  %s3 = sld [smem:[#allocation0]]
  $region26: #{fwd.76} parent=0
    _
  %s5 = ssub.s32 1, %s3
  %s6 = scalar_select 0, %s5, %s3
  // Predicated region
  $region2: #{fwd.76} parent=0 // pred_check
    _
  $region3: #{fwd.76} parent=0 // pred_check_branch
    %8 = sbr.rel (0) target = $region5
  $region4: #{fwd.76} parent=0 // pred_region
    _
  $region5: #{fwd.76} parent=0 // pred_fallthru
    _
  // Predicated region
  $region6: #{fwd.76} parent=0 // pred_check
    _
  $region7: #{fwd.76} parent=0 // pred_check_branch
    %10 = sbr.rel (0) target = $region9
  $region8: #{fwd.76} parent=0 // pred_region
    _
  $region9: #{fwd.76} parent=0 // pred_fallthru
    _
  %p12 = scmp.eq.s32.totalorder 0, 0
  // Predicated region
  $region10: #{fwd.76} parent=0 // pred_check
    %p13 = pneg %p12
  $region11: #{fwd.76} parent=0 // pred_check_branch
    %15 = sbr.rel (%p13) target = $region13
  $region12: #{fwd.76} parent=0 // pred_region
    %16 = vst [vmem:[#allocation2] sm:$0xff] 0.0
    %17 = vst [vmem:[#allocation2 + $0x8] sm:$0xff] 0.0
    %18 = vst [vmem:[#allocation2 + $0x10] sm:$0xff] 0.0
    %19 = vst [vmem:[#allocation2 + $0x18] sm:$0xff] 0.0
  $region13: #{fwd.76} parent=0 // pred_fallthru
    _
  %v20 = vld [vmem:[%s0] sm:$0xff]
  %v21 = vld [vmem:[%s0 + $0x8] sm:$0xff]
  %v22 = vld [vmem:[%s0 + $0x10] sm:$0xff]
  %v23 = vld [vmem:[%s0 + $0x18] sm:$0xff]
  %v24 = vld [vmem:[%s1] sm:$0xf]
  %v25 = vld [vmem:[%s1 + $0x4] sm:$0xf]
  %v26 = vld [vmem:[%s1 + $0x8] sm:$0xf]
  %v27 = vld [vmem:[%s1 + $0xc] sm:$0xf]
  %v28 = vld [vmem:[%s1 + $0x10] sm:$0xf]
  %v29 = vld [vmem:[%s1 + $0x14] sm:$0xf]
  %v30 = vld [vmem:[%s1 + $0x18] sm:$0xf]
  %v31 = vld [vmem:[%s1 + $0x1c] sm:$0xf]
  %v32 = vld [vmem:[%s1 + $0x20] sm:$0xf]
  %v33 = vld [vmem:[%s1 + $0x24] sm:$0xf]
  %v34 = vld [vmem:[%s1 + $0x28] sm:$0xf]
  %v35 = vld [vmem:[%s1 + $0x2c] sm:$0xf]
  %v36 = vld [vmem:[%s1 + $0x30] sm:$0xf]
  %v37 = vld [vmem:[%s1 + $0x34] sm:$0xf]
  %v38 = vld [vmem:[%s1 + $0x38] sm:$0xf]
  %v39 = vld [vmem:[%s1 + $0x3c] sm:$0xf]
  %v40 = vld [vmem:[%s1 + $0x40] sm:$0xf]
  %v41 = vld [vmem:[%s1 + $0x44] sm:$0xf]
  %v42 = vld [vmem:[#allocation2] sm:$0xff]
  %v43 = vld [vmem:[#allocation2 + $0x8] sm:$0xff]
  %v44 = vld [vmem:[#allocation2 + $0x10] sm:$0xff]
  %v45 = vld [vmem:[#allocation2 + $0x18] sm:$0xff]
  %v50 = vunpack.c.l.b16 %v20
  %v51 = vunpack.c.h.b16 %v20
  %v52 = vunpack.c.l.b16 %v21
  %v53 = vunpack.c.h.b16 %v21
  %v54 = vunpack.c.l.b16 %v22
  %v55 = vunpack.c.h.b16 %v22
  %v56 = vunpack.c.l.b16 %v23
  %v57 = vunpack.c.h.b16 %v23
  %v58 = vpack.c.b16 %v52, %v50
  %v59 = vpack.c.b16 %v53, %v51
  %v60 = vpack.c.b16 %v56, %v54
  %v61 = vpack.c.b16 %v57, %v55
  %v82 = vunpack.c.l.b16 %v24
  %v83 = vunpack.c.l.b16 %v25
  %v84 = vunpack.c.l.b16 %v26
  %v85 = vunpack.c.l.b16 %v27
  %v86 = vunpack.c.l.b16 %v28
  %v87 = vunpack.c.l.b16 %v29
  %v88 = vunpack.c.l.b16 %v30
  %v89 = vunpack.c.l.b16 %v31
  %v90 = vunpack.c.l.b16 %v32
  %v91 = vunpack.c.l.b16 %v33
  %v92 = vunpack.c.l.b16 %v34
  %v93 = vunpack.c.l.b16 %v35
  %v94 = vunpack.c.l.b16 %v36
  %v95 = vunpack.c.l.b16 %v37
  %v96 = vunpack.c.l.b16 %v38
  %v97 = vunpack.c.l.b16 %v39
  %v98 = vunpack.c.l.b16 %v40
  %v99 = vunpack.c.l.b16 %v41
  %v100 = vpack.c.b16 %v83, %v82
  %v101 = vpack.c.b16 %v85, %v84
  %v102 = vpack.c.b16 %v87, %v86
  %v103 = vpack.c.b16 %v89, %v88
  %v104 = vpack.c.b16 %v91, %v90
  %v105 = vpack.c.b16 %v93, %v92
  %v106 = vpack.c.b16 %v95, %v94
  %v107 = vpack.c.b16 %v97, %v96
  %v108 = vpack.c.b16 %v99, %v98
  %vm118 = vcmask 130048
  %v120 = vsel %vm118, %v59, 0
  %v123 = vsel %vm118, %v61, 0
  %125 = vmatprep.subr.bf16.mxu0 0
  %126 = vmatpush1.bf16.msra.mxu0 %v100
  %127 = vmatprep.subr.bf16.mxu0 0
  %128 = vmatpush1.bf16.msra.mxu0 %v101
  %129 = vmatprep.subr.bf16.mxu0 0
  %130 = vmatpush1.bf16.msra.mxu0 %v102
  %131 = vmatprep.subr.bf16.mxu0 0
  %132 = vmatpush1.bf16.msra.mxu0 %v103
  %133 = vmatprep.subr.bf16.mxu0 0
  %134 = vmatpush1.bf16.msra.mxu0 %v104
  %135 = vmatprep.subr.bf16.mxu0 0
  %136 = vmatpush1.bf16.msra.mxu0 %v105
  %137 = vmatprep.subr.bf16.mxu0 0
  %138 = vmatpush1.bf16.msra.mxu0 %v106
  %139 = vmatprep.subr.bf16.mxu0 0
  %140 = vmatpush1.bf16.msra.mxu0 %v107
  %141 = vmatprep.subr.bf16.mxu0 0
  %142 = vmatpush1.bf16.msra.mxu0 %v108
  %143 = vmatprep.subr.bf16.mxu0 0
  %144 = vmatpush1.bf16.msra.mxu0 0
  %145 = vmatprep.subr.bf16.mxu0 0
  %146 = vmatpush1.bf16.msra.mxu0 0
  %147 = vmatprep.subr.bf16.mxu0 0
  %148 = vmatpush1.bf16.msra.mxu0 0
  %149 = vmatprep.subr.bf16.mxu0 0
  %150 = vmatpush1.bf16.msra.mxu0 0
  %151 = vmatprep.subr.bf16.mxu0 0
  %152 = vmatpush1.bf16.msra.mxu0 0
  %153 = vmatprep.subr.bf16.mxu0 0
  %154 = vmatpush1.bf16.msra.mxu0 0
  %155 = vmatprep.subr.bf16.mxu0 0
  %156 = vmatpush1.bf16.msra.mxu0 0
  %157 = vmatprep.mubr.bf16.mxu0 %v120
  %158 = vmatmul.mubr.bf16.gmra.mrb[0].mxu0 %v58
  %v159 = vpop.f32.mrb[0].mxu0
  %v160 = vadd.f32 0.0, %v159
  %v161 = vpop.f32.mrb[0].mxu0
  %v162 = vpop.f32.mrb[0].mxu0
  %v163 = vadd.f32 0.0, %v162
  %v164 = vpop.f32.mrb[0].mxu0
  %165 = vmatprep.mubr.bf16.mxu0 %v123
  %166 = vmatmul.mubr.bf16.gmra.mrb[0].mxu0 %v60
  %v167 = vpop.f32.mrb[0].mxu0
  %v168 = vadd.f32 0.0, %v167
  %v169 = vpop.f32.mrb[0].mxu0
  %v170 = vpop.f32.mrb[0].mxu0
  %v171 = vadd.f32 0.0, %v170
  %v172 = vpop.f32.mrb[0].mxu0
  %173 = vdwg.mxu0
  %v174 = vadd.f32 %v42, %v160
  %v175 = vadd.f32 %v43, %v163
  %v176 = vadd.f32 %v44, %v168
  %v177 = vadd.f32 %v45, %v171
  %178 = vst [vmem:[#allocation2] sm:$0xff] %v174
  %179 = vst [vmem:[#allocation2 + $0x8] sm:$0xff] %v175
  %180 = vst [vmem:[#allocation2 + $0x10] sm:$0xff] %v176
  %181 = vst [vmem:[#allocation2 + $0x18] sm:$0xff] %v177
  // Predicated region
  $region14: #{fwd.76} parent=0 // pred_check
    %p182 = pneg %p12
  $region15: #{fwd.76} parent=0 // pred_check_branch
    %184 = sbr.rel (%p182) target = $region17
  $region16: #{fwd.76} parent=0 // pred_region
    %v185 = vld [vmem:[#allocation2] sm:$0xff]
    %v186 = vld [vmem:[#allocation2 + $0x8] sm:$0xff]
    %v187 = vld [vmem:[#allocation2 + $0x10] sm:$0xff]
    %v188 = vld [vmem:[#allocation2 + $0x18] sm:$0xff]
    %vm189 = vcmask 261120
    %190 = vst.msk [vmem:[%s2] sm:$0xff] %vm189, %v185
    %191 = vst.msk [vmem:[%s2 + $0x8] sm:$0xff] %vm189, %v186
    %192 = vst.msk [vmem:[%s2 + $0x10] sm:$0xff] %vm189, %v187
    %193 = vst.msk [vmem:[%s2 + $0x18] sm:$0xff] %vm189, %v188
  $region17: #{fwd.76} parent=0 // pred_fallthru
    _
  // Predicated region
  $region18: #{fwd.76} parent=0 // pred_check
    _
  $region19: #{fwd.76} parent=0 // pred_check_branch
    %195 = sbr.rel (0) target = $region21
  $region20: #{fwd.76} parent=0 // pred_region
    _
  $region21: #{fwd.76} parent=0 // pred_fallthru
    _
  // Predicated region
  $region22: #{fwd.76} parent=0 // pred_check
    _
  $region23: #{fwd.76} parent=0 // pred_check_branch
    %197 = sbr.rel (0) target = $region25
  $region24: #{fwd.76} parent=0 // pred_region
    _
  $region25: #{fwd.76} parent=0 // pred_fallthru
    _

// kernel: fwd.77
$region0: #{fwd.77}
  #allocation0 [shape = 'u32[]', space=smem, size = 0x4, offset = 0x4, fixed_abs, tag = 'smem constant byte address 0x4 - core index']
  #allocation1 [shape = 'u32[144,128]{1,0:T(1,128)}', space=vmem, size = 0x12000, scoped, tag = 'internal scratch']
  %s0 = inlined_call_operand.vmem [shape: f32[32,32], index: 0, kind: input, shape index: {}]
  %s1 = inlined_call_operand.vmem [shape: f32[1,32], index: 1, kind: output, shape index: {0}]
  %s2 = inlined_call_operand.vmem [shape: f32[1,32], index: 2, kind: output, shape index: {1}]
  %3 = xla_tuple %s1, %s2
  %s4 = sld [smem:[#allocation0]]
  $region26: #{fwd.77} parent=0
    _
  %s6 = ssub.s32 1, %s4
  %s7 = scalar_select 0, %s6, %s4
  // Predicated region
  $region2: #{fwd.77} parent=0 // pred_check
    _
  $region3: #{fwd.77} parent=0 // pred_check_branch
    %9 = sbr.rel (0) target = $region5
  $region4: #{fwd.77} parent=0 // pred_region
    _
  $region5: #{fwd.77} parent=0 // pred_fallthru
    _
  %p10 = scmp.eq.s32.totalorder 0, 0
  // Predicated region
  $region6: #{fwd.77} parent=0 // pred_check
    %p11 = pneg %p10
  $region7: #{fwd.77} parent=0 // pred_check_branch
    %13 = sbr.rel (%p11) target = $region9
  $region8: #{fwd.77} parent=0 // pred_region
    %vm14 = vcmask 253952
    %15 = vst.msk [vmem:[%s1] sm:$0x1] %vm14, 0.0
    %16 = vst.msk [vmem:[%s2] sm:$0x1] %vm14, 0.0
  $region9: #{fwd.77} parent=0 // pred_fallthru
    _
  %v17 = vld [vmem:[%s0] sm:$0xff]
  %v18 = vld [vmem:[%s0 + $0x8] sm:$0xff]
  %v19 = vld [vmem:[%s0 + $0x10] sm:$0xff]
  %v20 = vld [vmem:[%s0 + $0x18] sm:$0xff]
  %v21 = vld [vmem:[%s1] sm:$0x1]
  %vm22 = vcmask 261120
  %v23 = vsel %vm22, %v17, 0.0
  %v24 = vsel %vm22, %v18, 0.0
  %v25 = vadd.f32 %v23, %v24
  %v26 = vsel %vm22, %v19, 0.0
  %v27 = vadd.f32 %v25, %v26
  %v28 = vsel %vm22, %v20, 0.0
  %v29 = vadd.f32 %v27, %v28
  %v30 = vrot.slane %v29, 4
  %v31 = vadd.f32 %v29, %v30
  %v32 = vrot.slane %v31, 2
  %v33 = vadd.f32 %v31, %v32
  %v34 = vrot.slane %v33, 1
  %v35 = vadd.f32 %v33, %v34
  %v36 = vadd.f32 %v21, %v35
  %vm37 = vcmask 253952
  %38 = vst.msk [vmem:[%s1] sm:$0x1] %vm37, %v36
  %v39 = vld [vmem:[%s2] sm:$0x1]
  %v40 = vmul.f32 %v17, %v17
  %v41 = vmul.f32 %v18, %v18
  %v42 = vmul.f32 %v19, %v19
  %v43 = vmul.f32 %v20, %v20
  %v44 = vsel %vm22, %v40, 0.0
  %v45 = vsel %vm22, %v41, 0.0
  %v46 = vadd.f32 %v44, %v45
  %v47 = vsel %vm22, %v42, 0.0
  %v48 = vadd.f32 %v46, %v47
  %v49 = vsel %vm22, %v43, 0.0
  %v50 = vadd.f32 %v48, %v49
  %v51 = vrot.slane %v50, 4
  %v52 = vadd.f32 %v50, %v51
  %v53 = vrot.slane %v52, 2
  %v54 = vadd.f32 %v52, %v53
  %v55 = vrot.slane %v54, 1
  %v56 = vadd.f32 %v54, %v55
  %v57 = vadd.f32 %v39, %v56
  %58 = vst.msk [vmem:[%s2] sm:$0x1] %vm37, %v57
  // Predicated region
  $region10: #{fwd.77} parent=0 // pred_check
    _
  $region11: #{fwd.77} parent=0 // pred_check_branch
    %60 = sbr.rel (0) target = $region13
  $region12: #{fwd.77} parent=0 // pred_region
    _
  $region13: #{fwd.77} parent=0 // pred_fallthru
    _
  // Predicated region
  $region14: #{fwd.77} parent=0 // pred_check
    _
  $region15: #{fwd.77} parent=0 // pred_check_branch
    %62 = sbr.rel (0) target = $region17
  $region16: #{fwd.77} parent=0 // pred_region
    _
  $region17: #{fwd.77} parent=0 // pred_fallthru
    _
  // Predicated region
  $region18: #{fwd.77} parent=0 // pred_check
    _
  $region19: #{fwd.77} parent=0 // pred_check_branch
    %64 = sbr.rel (0) target = $region21
  $region20: #{fwd.77} parent=0 // pred_region
    _
  $region21: #{fwd.77} parent=0 // pred_fallthru
    _
  // Predicated region
  $region22: #{fwd.77} parent=0 // pred_check
    _
  $region23: #{fwd.77} parent=0 // pred_check_branch
    %66 = sbr.rel (0) target = $region25
  $region24: #{fwd.77} parent=0 // pred_region
    _
  $region25: #{fwd.77} parent=0 // pred_fallthru
    _

// kernel: fwd.78
$region0: #{fwd.78}
  #allocation0 [shape = 'u32[]', space=smem, size = 0x4, offset = 0x4, fixed_abs, tag = 'smem constant byte address 0x4 - core index']
  #allocation1 [shape = 'u32[144,128]{1,0:T(1,128)}', space=vmem, size = 0x12000, scoped, tag = 'internal scratch']
  %s0 = inlined_call_operand.vmem [shape: f32[32,32], index: 0, kind: input, shape index: {}]
  %s1 = inlined_call_operand.vmem [shape: f32[1,32], index: 1, kind: input, shape index: {}]
  %s2 = inlined_call_operand.vmem [shape: f32[1,32], index: 2, kind: input, shape index: {}]
  %s3 = inlined_call_operand.vmem [shape: f32[32,32], index: 3, kind: output, shape index: {}]
  %s4 = sld [smem:[#allocation0]]
  $region22: #{fwd.78} parent=0
    _
  %s6 = ssub.s32 1, %s4
  %s7 = scalar_select 0, %s6, %s4
  // Predicated region
  $region2: #{fwd.78} parent=0 // pred_check
    _
  $region3: #{fwd.78} parent=0 // pred_check_branch
    %9 = sbr.rel (0) target = $region5
  $region4: #{fwd.78} parent=0 // pred_region
    _
  $region5: #{fwd.78} parent=0 // pred_fallthru
    _
  // Predicated region
  $region6: #{fwd.78} parent=0 // pred_check
    _
  $region7: #{fwd.78} parent=0 // pred_check_branch
    %11 = sbr.rel (0) target = $region9
  $region8: #{fwd.78} parent=0 // pred_region
    _
  $region9: #{fwd.78} parent=0 // pred_fallthru
    _
  // Predicated region
  $region10: #{fwd.78} parent=0 // pred_check
    _
  $region11: #{fwd.78} parent=0 // pred_check_branch
    %13 = sbr.rel (0) target = $region13
  $region12: #{fwd.78} parent=0 // pred_region
    _
  $region13: #{fwd.78} parent=0 // pred_fallthru
    _
  %v14 = vld [vmem:[%s0] sm:$0xff]
  %v15 = vld [vmem:[%s0 + $0x8] sm:$0xff]
  %v16 = vld [vmem:[%s0 + $0x10] sm:$0xff]
  %v17 = vld [vmem:[%s0 + $0x18] sm:$0xff]
  %v18 = vld [vmem:[%s1] sm:$0x1]
  %v20 = vlaneseq
  %v21 = vshrl.u32 %v20, 7
  %v22 = vsub.s32 0, %v21
  %v23 = vrot.slane %v18, %v22
  %v25 = vmul.f32 %v14, %v23
  %v26 = vmul.f32 %v15, %v23
  %v27 = vmul.f32 %v16, %v23
  %v28 = vmul.f32 %v17, %v23
  %v29 = vld [vmem:[%s2] sm:$0x1]
  %v31 = vlaneseq
  %v32 = vshrl.u32 %v31, 7
  %v33 = vsub.s32 0, %v32
  %v34 = vrot.slane %v29, %v33
  %v36 = vadd.f32 %v25, %v34
  %v37 = vadd.f32 %v26, %v34
  %v38 = vadd.f32 %v27, %v34
  %v39 = vadd.f32 %v28, %v34
  %v40 = vmax.f32 %v36, 0.0
  %v41 = vmax.f32 %v37, 0.0
  %v42 = vmax.f32 %v38, 0.0
  %v43 = vmax.f32 %v39, 0.0
  %vm44 = vcmask 261120
  %45 = vst.msk [vmem:[%s3] sm:$0xff] %vm44, %v40
  %46 = vst.msk [vmem:[%s3 + $0x8] sm:$0xff] %vm44, %v41
  %47 = vst.msk [vmem:[%s3 + $0x10] sm:$0xff] %vm44, %v42
  %48 = vst.msk [vmem:[%s3 + $0x18] sm:$0xff] %vm44, %v43
  // Predicated region
  $region14: #{fwd.78} parent=0 // pred_check
    _
  $region15: #{fwd.78} parent=0 // pred_check_branch
    %50 = sbr.rel (0) target = $region17
  $region16: #{fwd.78} parent=0 // pred_region
    _
  $region17: #{fwd.78} parent=0 // pred_fallthru
    _
  // Predicated region
  $region18: #{fwd.78} parent=0 // pred_check
    _
  $region19: #{fwd.78} parent=0 // pred_check_branch
    %52 = sbr.rel (0) target = $region21
  $region20: #{fwd.78} parent=0 // pred_region
    _
  $region21: #{fwd.78} parent=0 // pred_fallthru
    _

// kernel: fwd.79
$region0: #{fwd.79}
  #allocation0 [shape = 'u32[]', space=smem, size = 0x4, offset = 0x4, fixed_abs, tag = 'smem constant byte address 0x4 - core index']
  #allocation1 [shape = 'u32[144,128]{1,0:T(1,128)}', space=vmem, size = 0x12000, scoped, tag = 'internal scratch']
  #allocation2 [shape = 'f32[32,128]{1,0:T(8,128)}', space=vmem, size = 0x4000, scoped, tag = 'scratch operand']
  %s0 = inlined_call_operand.vmem [shape: bf16[32,288], index: 0, kind: input, shape index: {}]
  %s1 = inlined_call_operand.vmem [shape: bf16[288,128], index: 1, kind: input, shape index: {}]
  %s2 = inlined_call_operand.vmem [shape: f32[32,32], index: 2, kind: output, shape index: {}]
  %s3 = sld [smem:[#allocation0]]
  $region26: #{fwd.79} parent=0
    _
  %s5 = ssub.s32 1, %s3
  %s6 = scalar_select 0, %s5, %s3
  // Predicated region
  $region2: #{fwd.79} parent=0 // pred_check
    _
  $region3: #{fwd.79} parent=0 // pred_check_branch
    %8 = sbr.rel (0) target = $region5
  $region4: #{fwd.79} parent=0 // pred_region
    _
  $region5: #{fwd.79} parent=0 // pred_fallthru
    _
  // Predicated region
  $region6: #{fwd.79} parent=0 // pred_check
    _
  $region7: #{fwd.79} parent=0 // pred_check_branch
    %10 = sbr.rel (0) target = $region9
  $region8: #{fwd.79} parent=0 // pred_region
    _
  $region9: #{fwd.79} parent=0 // pred_fallthru
    _
  %p12 = scmp.eq.s32.totalorder 0, 0
  // Predicated region
  $region10: #{fwd.79} parent=0 // pred_check
    %p13 = pneg %p12
  $region11: #{fwd.79} parent=0 // pred_check_branch
    %15 = sbr.rel (%p13) target = $region13
  $region12: #{fwd.79} parent=0 // pred_region
    %16 = vst [vmem:[#allocation2] sm:$0xff] 0.0
    %17 = vst [vmem:[#allocation2 + $0x8] sm:$0xff] 0.0
    %18 = vst [vmem:[#allocation2 + $0x10] sm:$0xff] 0.0
    %19 = vst [vmem:[#allocation2 + $0x18] sm:$0xff] 0.0
  $region13: #{fwd.79} parent=0 // pred_fallthru
    _
  %v20 = vld [vmem:[%s0] sm:$0xff]
  %v21 = vld [vmem:[%s0 + $0x8] sm:$0xf]
  %v22 = vld [vmem:[%s0 + $0xc] sm:$0xff]
  %v23 = vld [vmem:[%s0 + $0x14] sm:$0xf]
  %v24 = vld [vmem:[%s0 + $0x18] sm:$0xff]
  %v25 = vld [vmem:[%s0 + $0x20] sm:$0xf]
  %v26 = vld [vmem:[%s0 + $0x24] sm:$0xff]
  %v27 = vld [vmem:[%s0 + $0x2c] sm:$0xf]
  %v28 = vld [vmem:[%s1] sm:$0xf]
  %v29 = vld [vmem:[%s1 + $0x4] sm:$0xf]
  %v30 = vld [vmem:[%s1 + $0x8] sm:$0xf]
  %v31 = vld [vmem:[%s1 + $0xc] sm:$0xf]
  %v32 = vld [vmem:[%s1 + $0x10] sm:$0xf]
  %v33 = vld [vmem:[%s1 + $0x14] sm:$0xf]
  %v34 = vld [vmem:[%s1 + $0x18] sm:$0xf]
  %v35 = vld [vmem:[%s1 + $0x1c] sm:$0xf]
  %v36 = vld [vmem:[%s1 + $0x20] sm:$0xf]
  %v37 = vld [vmem:[%s1 + $0x24] sm:$0xf]
  %v38 = vld [vmem:[%s1 + $0x28] sm:$0xf]
  %v39 = vld [vmem:[%s1 + $0x2c] sm:$0xf]
  %v40 = vld [vmem:[%s1 + $0x30] sm:$0xf]
  %v41 = vld [vmem:[%s1 + $0x34] sm:$0xf]
  %v42 = vld [vmem:[%s1 + $0x38] sm:$0xf]
  %v43 = vld [vmem:[%s1 + $0x3c] sm:$0xf]
  %v44 = vld [vmem:[%s1 + $0x40] sm:$0xf]
  %v45 = vld [vmem:[%s1 + $0x44] sm:$0xf]
  %v46 = vld [vmem:[%s1 + $0x48] sm:$0xf]
  %v47 = vld [vmem:[%s1 + $0x4c] sm:$0xf]
  %v48 = vld [vmem:[%s1 + $0x50] sm:$0xf]
  %v49 = vld [vmem:[%s1 + $0x54] sm:$0xf]
  %v50 = vld [vmem:[%s1 + $0x58] sm:$0xf]
  %v51 = vld [vmem:[%s1 + $0x5c] sm:$0xf]
  %v52 = vld [vmem:[%s1 + $0x60] sm:$0xf]
  %v53 = vld [vmem:[%s1 + $0x64] sm:$0xf]
  %v54 = vld [vmem:[%s1 + $0x68] sm:$0xf]
  %v55 = vld [vmem:[%s1 + $0x6c] sm:$0xf]
  %v56 = vld [vmem:[%s1 + $0x70] sm:$0xf]
  %v57 = vld [vmem:[%s1 + $0x74] sm:$0xf]
  %v58 = vld [vmem:[%s1 + $0x78] sm:$0xf]
  %v59 = vld [vmem:[%s1 + $0x7c] sm:$0xf]
  %v60 = vld [vmem:[%s1 + $0x80] sm:$0xf]
  %v61 = vld [vmem:[%s1 + $0x84] sm:$0xf]
  %v62 = vld [vmem:[%s1 + $0x88] sm:$0xf]
  %v63 = vld [vmem:[%s1 + $0x8c] sm:$0xf]
  %v64 = vld [vmem:[#allocation2] sm:$0xff]
  %v65 = vld [vmem:[#allocation2 + $0x8] sm:$0xff]
  %v66 = vld [vmem:[#allocation2 + $0x10] sm:$0xff]
  %v67 = vld [vmem:[#allocation2 + $0x18] sm:$0xff]
  %v76 = vunpack.c.l.b16 %v20
  %v77 = vunpack.c.h.b16 %v20
  %v78 = vunpack.c.l.b16 %v21
  %v79 = vunpack.c.l.b16 %v22
  %v80 = vunpack.c.h.b16 %v22
  %v81 = vunpack.c.l.b16 %v23
  %v82 = vunpack.c.l.b16 %v24
  %v83 = vunpack.c.h.b16 %v24
  %v84 = vunpack.c.l.b16 %v25
  %v85 = vunpack.c.l.b16 %v26
  %v86 = vunpack.c.h.b16 %v26
  %v87 = vunpack.c.l.b16 %v27
  %v88 = vpack.c.b16 %v79, %v76
  %v89 = vpack.c.b16 %v80, %v77
  %v90 = vpack.c.b16 %v81, %v78
  %v91 = vpack.c.b16 %v85, %v82
  %v92 = vpack.c.b16 %v86, %v83
  %v93 = vpack.c.b16 %v87, %v84
  %v134 = vunpack.c.l.b16 %v28
  %v135 = vunpack.c.l.b16 %v29
  %v136 = vunpack.c.l.b16 %v30
  %v137 = vunpack.c.l.b16 %v31
  %v138 = vunpack.c.l.b16 %v32
  %v139 = vunpack.c.l.b16 %v33
  %v140 = vunpack.c.l.b16 %v34
  %v141 = vunpack.c.l.b16 %v35
  %v142 = vunpack.c.l.b16 %v36
  %v143 = vunpack.c.l.b16 %v37
  %v144 = vunpack.c.l.b16 %v38
  %v145 = vunpack.c.l.b16 %v39
  %v146 = vunpack.c.l.b16 %v40
  %v147 = vunpack.c.l.b16 %v41
  %v148 = vunpack.c.l.b16 %v42
  %v149 = vunpack.c.l.b16 %v43
  %v150 = vunpack.c.l.b16 %v44
  %v151 = vunpack.c.l.b16 %v45
  %v152 = vunpack.c.l.b16 %v46
  %v153 = vunpack.c.l.b16 %v47
  %v154 = vunpack.c.l.b16 %v48
  %v155 = vunpack.c.l.b16 %v49
  %v156 = vunpack.c.l.b16 %v50
  %v157 = vunpack.c.l.b16 %v51
  %v158 = vunpack.c.l.b16 %v52
  %v159 = vunpack.c.l.b16 %v53
  %v160 = vunpack.c.l.b16 %v54
  %v161 = vunpack.c.l.b16 %v55
  %v162 = vunpack.c.l.b16 %v56
  %v163 = vunpack.c.l.b16 %v57
  %v164 = vunpack.c.l.b16 %v58
  %v165 = vunpack.c.l.b16 %v59
  %v166 = vunpack.c.l.b16 %v60
  %v167 = vunpack.c.l.b16 %v61
  %v168 = vunpack.c.l.b16 %v62
  %v169 = vunpack.c.l.b16 %v63
  %v170 = vpack.c.b16 %v135, %v134
  %v171 = vpack.c.b16 %v137, %v136
  %v172 = vpack.c.b16 %v139, %v138
  %v173 = vpack.c.b16 %v141, %v140
  %v174 = vpack.c.b16 %v143, %v142
  %v175 = vpack.c.b16 %v145, %v144
  %v176 = vpack.c.b16 %v147, %v146
  %v177 = vpack.c.b16 %v149, %v148
  %v178 = vpack.c.b16 %v151, %v150
  %v179 = vpack.c.b16 %v153, %v152
  %v180 = vpack.c.b16 %v155, %v154
  %v181 = vpack.c.b16 %v157, %v156
  %v182 = vpack.c.b16 %v159, %v158
  %v183 = vpack.c.b16 %v161, %v160
  %v184 = vpack.c.b16 %v163, %v162
  %v185 = vpack.c.b16 %v165, %v164
  %v186 = vpack.c.b16 %v167, %v166
  %v187 = vpack.c.b16 %v169, %v168
  %vm206 = vcmask 261120
  %v208 = vsel %vm206, %v90, 0
  %v211 = vsel %vm206, %v93, 0
  %213 = vmatprep.subr.bf16.mxu0 0
  %214 = vmatpush1.bf16.msra.mxu0 %v170
  %215 = vmatprep.subr.bf16.mxu0 0
  %216 = vmatpush1.bf16.msra.mxu0 %v171
  %217 = vmatprep.subr.bf16.mxu0 0
  %218 = vmatpush1.bf16.msra.mxu0 %v172
  %219 = vmatprep.subr.bf16.mxu0 0
  %220 = vmatpush1.bf16.msra.mxu0 %v173
  %221 = vmatprep.subr.bf16.mxu0 0
  %222 = vmatpush1.bf16.msra.mxu0 %v174
  %223 = vmatprep.subr.bf16.mxu0 0
  %224 = vmatpush1.bf16.msra.mxu0 %v175
  %225 = vmatprep.subr.bf16.mxu0 0
  %226 = vmatpush1.bf16.msra.mxu0 %v176
  %227 = vmatprep.subr.bf16.mxu0 0
  %228 = vmatpush1.bf16.msra.mxu0 %v177
  %229 = vmatprep.subr.bf16.mxu0 0
  %230 = vmatpush1.bf16.msra.mxu0 %v178
  %231 = vmatprep.subr.bf16.mxu0 0
  %232 = vmatpush1.bf16.msra.mxu0 %v179
  %233 = vmatprep.subr.bf16.mxu0 0
  %234 = vmatpush1.bf16.msra.mxu0 %v180
  %235 = vmatprep.subr.bf16.mxu0 0
  %236 = vmatpush1.bf16.msra.mxu0 %v181
  %237 = vmatprep.subr.bf16.mxu0 0
  %238 = vmatpush1.bf16.msra.mxu0 %v182
  %239 = vmatprep.subr.bf16.mxu0 0
  %240 = vmatpush1.bf16.msra.mxu0 %v183
  %241 = vmatprep.subr.bf16.mxu0 0
  %242 = vmatpush1.bf16.msra.mxu0 %v184
  %243 = vmatprep.subr.bf16.mxu0 0
  %244 = vmatpush1.bf16.msra.mxu0 %v185
  %245 = vmatprep.mubr.bf16.mxu0 %v89
  %246 = vmatmul.mubr.bf16.gmra.mrb[0].mxu0 %v88
  %v247 = vpop.f32.mrb[0].mxu0
  %v248 = vadd.f32 0.0, %v247
  %v249 = vpop.f32.mrb[0].mxu0
  %v250 = vpop.f32.mrb[0].mxu0
  %v251 = vadd.f32 0.0, %v250
  %v252 = vpop.f32.mrb[0].mxu0
  %253 = vmatprep.mubr.bf16.mxu0 %v92
  %254 = vmatmul.mubr.bf16.gmra.mrb[0].mxu0 %v91
  %v255 = vpop.f32.mrb[0].mxu0
  %v256 = vadd.f32 0.0, %v255
  %v257 = vpop.f32.mrb[0].mxu0
  %v258 = vpop.f32.mrb[0].mxu0
  %v259 = vadd.f32 0.0, %v258
  %v260 = vpop.f32.mrb[0].mxu0
  %261 = vdwg.mxu0
  %262 = vmatprep.subr.bf16.mxu0 0
  %263 = vmatpush1.bf16.msra.mxu0 %v186
  %264 = vmatprep.subr.bf16.mxu0 0
  %265 = vmatpush1.bf16.msra.mxu0 %v187
  %266 = vmatprep.subr.bf16.mxu0 0
  %267 = vmatpush1.bf16.msra.mxu0 0
  %268 = vmatprep.subr.bf16.mxu0 0
  %269 = vmatpush1.bf16.msra.mxu0 0
  %270 = vmatprep.subr.bf16.mxu0 0
  %271 = vmatpush1.bf16.msra.mxu0 0
  %272 = vmatprep.subr.bf16.mxu0 0
  %273 = vmatpush1.bf16.msra.mxu0 0
  %274 = vmatprep.subr.bf16.mxu0 0
  %275 = vmatpush1.bf16.msra.mxu0 0
  %276 = vmatprep.subr.bf16.mxu0 0
  %277 = vmatpush1.bf16.msra.mxu0 0
  %278 = vmatprep.subr.bf16.mxu0 0
  %279 = vmatpush1.bf16.msra.mxu0 0
  %280 = vmatprep.subr.bf16.mxu0 0
  %281 = vmatpush1.bf16.msra.mxu0 0
  %282 = vmatprep.subr.bf16.mxu0 0
  %283 = vmatpush1.bf16.msra.mxu0 0
  %284 = vmatprep.subr.bf16.mxu0 0
  %285 = vmatpush1.bf16.msra.mxu0 0
  %286 = vmatprep.subr.bf16.mxu0 0
  %287 = vmatpush1.bf16.msra.mxu0 0
  %288 = vmatprep.subr.bf16.mxu0 0
  %289 = vmatpush1.bf16.msra.mxu0 0
  %290 = vmatprep.subr.bf16.mxu0 0
  %291 = vmatpush1.bf16.msra.mxu0 0
  %292 = vmatprep.subr.bf16.mxu0 0
  %293 = vmatpush1.bf16.msra.mxu0 0
  %294 = vmatprep.mubr.bf16.mxu0 0
  %295 = vmatmul.mubr.bf16.gmra.mrb[0].mxu0 %v208
  %v296 = vpop.f32.mrb[0].mxu0
  %v297 = vadd.f32 %v248, %v296
  %v298 = vpop.f32.mrb[0].mxu0
  %v299 = vpop.f32.mrb[0].mxu0
  %v300 = vadd.f32 %v251, %v299
  %v301 = vpop.f32.mrb[0].mxu0
  %302 = vmatprep.mubr.bf16.mxu0 0
  %303 = vmatmul.mubr.bf16.gmra.mrb[0].mxu0 %v211
  %v304 = vpop.f32.mrb[0].mxu0
  %v305 = vadd.f32 %v256, %v304
  %v306 = vpop.f32.mrb[0].mxu0
  %v307 = vpop.f32.mrb[0].mxu0
  %v308 = vadd.f32 %v259, %v307
  %v309 = vpop.f32.mrb[0].mxu0
  %310 = vdwg.mxu0
  %v311 = vadd.f32 %v64, %v297
  %v312 = vadd.f32 %v65, %v300
  %v313 = vadd.f32 %v66, %v305
  %v314 = vadd.f32 %v67, %v308
  %315 = vst [vmem:[#allocation2] sm:$0xff] %v311
  %316 = vst [vmem:[#allocation2 + $0x8] sm:$0xff] %v312
  %317 = vst [vmem:[#allocation2 + $0x10] sm:$0xff] %v313
  %318 = vst [vmem:[#allocation2 + $0x18] sm:$0xff] %v314
  // Predicated region
  $region14: #{fwd.79} parent=0 // pred_check
    %p319 = pneg %p12
  $region15: #{fwd.79} parent=0 // pred_check_branch
    %321 = sbr.rel (%p319) target = $region17
  $region16: #{fwd.79} parent=0 // pred_region
    %v322 = vld [vmem:[#allocation2] sm:$0xff]
    %v323 = vld [vmem:[#allocation2 + $0x8] sm:$0xff]
    %v324 = vld [vmem:[#allocation2 + $0x10] sm:$0xff]
    %v325 = vld [vmem:[#allocation2 + $0x18] sm:$0xff]
    %326 = vst.msk [vmem:[%s2] sm:$0xff] %vm206, %v322
    %327 = vst.msk [vmem:[%s2 + $0x8] sm:$0xff] %vm206, %v323
    %328 = vst.msk [vmem:[%s2 + $0x10] sm:$0xff] %vm206, %v324
    %329 = vst.msk [vmem:[%s2 + $0x18] sm:$0xff] %vm206, %v325
  $region17: #{fwd.79} parent=0 // pred_fallthru
    _
  // Predicated region
  $region18: #{fwd.79} parent=0 // pred_check
    _
  $region19: #{fwd.79} parent=0 // pred_check_branch
    %331 = sbr.rel (0) target = $region21
  $region20: #{fwd.79} parent=0 // pred_region
    _
  $region21: #{fwd.79} parent=0 // pred_fallthru
    _
  // Predicated region
  $region22: #{fwd.79} parent=0 // pred_check
    _
  $region23: #{fwd.79} parent=0 // pred_check_branch
    %333 = sbr.rel (0) target = $region25
  $region24: #{fwd.79} parent=0 // pred_region
    _
  $region25: #{fwd.79} parent=0 // pred_fallthru
    _

// kernel: fwd.84
$region0: #{fwd.84}
  #allocation0 [shape = 'u32[]', space=smem, size = 0x4, offset = 0x4, fixed_abs, tag = 'smem constant byte address 0x4 - core index']
  #allocation1 [shape = 'u32[144,128]{1,0:T(1,128)}', space=vmem, size = 0x12000, scoped, tag = 'internal scratch']
  %s0 = inlined_call_operand.vmem [shape: f32[32,32], index: 0, kind: input, shape index: {}]
  %s1 = inlined_call_operand.vmem [shape: f32[1,32], index: 1, kind: input, shape index: {}]
  %s2 = inlined_call_operand.vmem [shape: f32[1,32], index: 2, kind: input, shape index: {}]
  %s3 = inlined_call_operand.vmem [shape: f32[32,32], index: 3, kind: input, shape index: {}]
  %s4 = inlined_call_operand.vmem [shape: f32[32,32], index: 4, kind: output, shape index: {}]
  %s5 = sld [smem:[#allocation0]]
  $region26: #{fwd.84} parent=0
    _
  %s7 = ssub.s32 1, %s5
  %s8 = scalar_select 0, %s7, %s5
  // Predicated region
  $region2: #{fwd.84} parent=0 // pred_check
    _
  $region3: #{fwd.84} parent=0 // pred_check_branch
    %10 = sbr.rel (0) target = $region5
  $region4: #{fwd.84} parent=0 // pred_region
    _
  $region5: #{fwd.84} parent=0 // pred_fallthru
    _
  // Predicated region
  $region6: #{fwd.84} parent=0 // pred_check
    _
  $region7: #{fwd.84} parent=0 // pred_check_branch
    %12 = sbr.rel (0) target = $region9
  $region8: #{fwd.84} parent=0 // pred_region
    _
  $region9: #{fwd.84} parent=0 // pred_fallthru
    _
  // Predicated region
  $region10: #{fwd.84} parent=0 // pred_check
    _
  $region11: #{fwd.84} parent=0 // pred_check_branch
    %14 = sbr.rel (0) target = $region13
  $region12: #{fwd.84} parent=0 // pred_region
    _
  $region13: #{fwd.84} parent=0 // pred_fallthru
    _
  // Predicated region
  $region14: #{fwd.84} parent=0 // pred_check
    _
  $region15: #{fwd.84} parent=0 // pred_check_branch
    %16 = sbr.rel (0) target = $region17
  $region16: #{fwd.84} parent=0 // pred_region
    _
  $region17: #{fwd.84} parent=0 // pred_fallthru
    _
  %v17 = vld [vmem:[%s0] sm:$0xff]
  %v18 = vld [vmem:[%s0 + $0x8] sm:$0xff]
  %v19 = vld [vmem:[%s0 + $0x10] sm:$0xff]
  %v20 = vld [vmem:[%s0 + $0x18] sm:$0xff]
  %v21 = vld [vmem:[%s1] sm:$0x1]
  %v23 = vlaneseq
  %v24 = vshrl.u32 %v23, 7
  %v25 = vsub.s32 0, %v24
  %v26 = vrot.slane %v21, %v25
  %v28 = vmul.f32 %v17, %v26
  %v29 = vmul.f32 %v18, %v26
  %v30 = vmul.f32 %v19, %v26
  %v31 = vmul.f32 %v20, %v26
  %v32 = vld [vmem:[%s2] sm:$0x1]
  %v34 = vlaneseq
  %v35 = vshrl.u32 %v34, 7
  %v36 = vsub.s32 0, %v35
  %v37 = vrot.slane %v32, %v36
  %v39 = vadd.f32 %v28, %v37
  %v40 = vadd.f32 %v29, %v37
  %v41 = vadd.f32 %v30, %v37
  %v42 = vadd.f32 %v31, %v37
  %v43 = vld [vmem:[%s3] sm:$0xff]
  %v44 = vld [vmem:[%s3 + $0x8] sm:$0xff]
  %v45 = vld [vmem:[%s3 + $0x10] sm:$0xff]
  %v46 = vld [vmem:[%s3 + $0x18] sm:$0xff]
  %v47 = vadd.f32 %v39, %v43
  %v48 = vadd.f32 %v40, %v44
  %v49 = vadd.f32 %v41, %v45
  %v50 = vadd.f32 %v42, %v46
  %vm51 = vcmask 261120
  %52 = vst.msk [vmem:[%s4] sm:$0xff] %vm51, %v47
  %53 = vst.msk [vmem:[%s4 + $0x8] sm:$0xff] %vm51, %v48
  %54 = vst.msk [vmem:[%s4 + $0x10] sm:$0xff] %vm51, %v49
  %55 = vst.msk [vmem:[%s4 + $0x18] sm:$0xff] %vm51, %v50
  // Predicated region
  $region18: #{fwd.84} parent=0 // pred_check
    _
  $region19: #{fwd.84} parent=0 // pred_check_branch
    %57 = sbr.rel (0) target = $region21
  $region20: #{fwd.84} parent=0 // pred_region
    _
  $region21: #{fwd.84} parent=0 // pred_fallthru
    _
  // Predicated region
  $region22: #{fwd.84} parent=0 // pred_check
    _
  $region23: #{fwd.84} parent=0 // pred_check_branch
    %59 = sbr.rel (0) target = $region25
  $region24: #{fwd.84} parent=0 // pred_region
    _
  $region25: #{fwd.84} parent=0 // pred_fallthru
    _

// kernel: fwd.133
$region0: #{fwd.133}
  #allocation0 [shape = 'u32[]', space=smem, size = 0x4, offset = 0x4, fixed_abs, tag = 'smem constant byte address 0x4 - core index']
  #allocation1 [shape = 'u32[144,128]{1,0:T(1,128)}', space=vmem, size = 0x12000, scoped, tag = 'internal scratch']
  #allocation2 [shape = 'f32[32,128]{1,0:T(8,128)}', space=vmem, size = 0x4000, scoped, tag = 'scratch operand']
  %s0 = inlined_call_operand.vmem [shape: bf16[32,128], index: 0, kind: input, shape index: {}]
  %s1 = inlined_call_operand.vmem [shape: bf16[128,128], index: 1, kind: input, shape index: {}]
  %s2 = inlined_call_operand.vmem [shape: f32[32,64], index: 2, kind: output, shape index: {}]
  %s3 = sld [smem:[#allocation0]]
  $region26: #{fwd.133} parent=0
    _
  %s5 = ssub.s32 1, %s3
  %s6 = scalar_select 0, %s5, %s3
  // Predicated region
  $region2: #{fwd.133} parent=0 // pred_check
    _
  $region3: #{fwd.133} parent=0 // pred_check_branch
    %8 = sbr.rel (0) target = $region5
  $region4: #{fwd.133} parent=0 // pred_region
    _
  $region5: #{fwd.133} parent=0 // pred_fallthru
    _
  // Predicated region
  $region6: #{fwd.133} parent=0 // pred_check
    _
  $region7: #{fwd.133} parent=0 // pred_check_branch
    %10 = sbr.rel (0) target = $region9
  $region8: #{fwd.133} parent=0 // pred_region
    _
  $region9: #{fwd.133} parent=0 // pred_fallthru
    _
  %p12 = scmp.eq.s32.totalorder 0, 0
  // Predicated region
  $region10: #{fwd.133} parent=0 // pred_check
    %p13 = pneg %p12
  $region11: #{fwd.133} parent=0 // pred_check_branch
    %15 = sbr.rel (%p13) target = $region13
  $region12: #{fwd.133} parent=0 // pred_region
    %16 = vst [vmem:[#allocation2] sm:$0xff] 0.0
    %17 = vst [vmem:[#allocation2 + $0x8] sm:$0xff] 0.0
    %18 = vst [vmem:[#allocation2 + $0x10] sm:$0xff] 0.0
    %19 = vst [vmem:[#allocation2 + $0x18] sm:$0xff] 0.0
  $region13: #{fwd.133} parent=0 // pred_fallthru
    _
  %v20 = vld [vmem:[%s0] sm:$0xf]
  %v21 = vld [vmem:[%s0 + $0x4] sm:$0xf]
  %v22 = vld [vmem:[%s0 + $0x8] sm:$0xf]
  %v23 = vld [vmem:[%s0 + $0xc] sm:$0xf]
  %v24 = vld [vmem:[%s1] sm:$0xf]
  %v25 = vld [vmem:[%s1 + $0x4] sm:$0xf]
  %v26 = vld [vmem:[%s1 + $0x8] sm:$0xf]
  %v27 = vld [vmem:[%s1 + $0xc] sm:$0xf]
  %v28 = vld [vmem:[%s1 + $0x10] sm:$0xf]
  %v29 = vld [vmem:[%s1 + $0x14] sm:$0xf]
  %v30 = vld [vmem:[%s1 + $0x18] sm:$0xf]
  %v31 = vld [vmem:[%s1 + $0x1c] sm:$0xf]
  %v32 = vld [vmem:[%s1 + $0x20] sm:$0xf]
  %v33 = vld [vmem:[%s1 + $0x24] sm:$0xf]
  %v34 = vld [vmem:[%s1 + $0x28] sm:$0xf]
  %v35 = vld [vmem:[%s1 + $0x2c] sm:$0xf]
  %v36 = vld [vmem:[%s1 + $0x30] sm:$0xf]
  %v37 = vld [vmem:[%s1 + $0x34] sm:$0xf]
  %v38 = vld [vmem:[%s1 + $0x38] sm:$0xf]
  %v39 = vld [vmem:[%s1 + $0x3c] sm:$0xf]
  %v40 = vld [vmem:[#allocation2] sm:$0xff]
  %v41 = vld [vmem:[#allocation2 + $0x8] sm:$0xff]
  %v42 = vld [vmem:[#allocation2 + $0x10] sm:$0xff]
  %v43 = vld [vmem:[#allocation2 + $0x18] sm:$0xff]
  %v48 = vunpack.c.l.b16 %v20
  %v49 = vunpack.c.l.b16 %v21
  %v50 = vunpack.c.l.b16 %v22
  %v51 = vunpack.c.l.b16 %v23
  %v52 = vpack.c.b16 %v49, %v48
  %v53 = vpack.c.b16 %v51, %v50
  %v72 = vunpack.c.l.b16 %v24
  %v73 = vunpack.c.l.b16 %v25
  %v74 = vunpack.c.l.b16 %v26
  %v75 = vunpack.c.l.b16 %v27
  %v76 = vunpack.c.l.b16 %v28
  %v77 = vunpack.c.l.b16 %v29
  %v78 = vunpack.c.l.b16 %v30
  %v79 = vunpack.c.l.b16 %v31
  %v80 = vunpack.c.l.b16 %v32
  %v81 = vunpack.c.l.b16 %v33
  %v82 = vunpack.c.l.b16 %v34
  %v83 = vunpack.c.l.b16 %v35
  %v84 = vunpack.c.l.b16 %v36
  %v85 = vunpack.c.l.b16 %v37
  %v86 = vunpack.c.l.b16 %v38
  %v87 = vunpack.c.l.b16 %v39
  %v88 = vpack.c.b16 %v73, %v72
  %v89 = vpack.c.b16 %v75, %v74
  %v90 = vpack.c.b16 %v77, %v76
  %v91 = vpack.c.b16 %v79, %v78
  %v92 = vpack.c.b16 %v81, %v80
  %v93 = vpack.c.b16 %v83, %v82
  %v94 = vpack.c.b16 %v85, %v84
  %v95 = vpack.c.b16 %v87, %v86
  %104 = vmatprep.subr.bf16.mxu0 0
  %105 = vmatpush1.bf16.msra.mxu0 %v88
  %106 = vmatprep.subr.bf16.mxu0 0
  %107 = vmatpush1.bf16.msra.mxu0 %v89
  %108 = vmatprep.subr.bf16.mxu0 0
  %109 = vmatpush1.bf16.msra.mxu0 %v90
  %110 = vmatprep.subr.bf16.mxu0 0
  %111 = vmatpush1.bf16.msra.mxu0 %v91
  %112 = vmatprep.subr.bf16.mxu0 0
  %113 = vmatpush1.bf16.msra.mxu0 %v92
  %114 = vmatprep.subr.bf16.mxu0 0
  %115 = vmatpush1.bf16.msra.mxu0 %v93
  %116 = vmatprep.subr.bf16.mxu0 0
  %117 = vmatpush1.bf16.msra.mxu0 %v94
  %118 = vmatprep.subr.bf16.mxu0 0
  %119 = vmatpush1.bf16.msra.mxu0 %v95
  %120 = vmatprep.subr.bf16.mxu0 0
  %121 = vmatpush1.bf16.msra.mxu0 0
  %122 = vmatprep.subr.bf16.mxu0 0
  %123 = vmatpush1.bf16.msra.mxu0 0
  %124 = vmatprep.subr.bf16.mxu0 0
  %125 = vmatpush1.bf16.msra.mxu0 0
  %126 = vmatprep.subr.bf16.mxu0 0
  %127 = vmatpush1.bf16.msra.mxu0 0
  %128 = vmatprep.subr.bf16.mxu0 0
  %129 = vmatpush1.bf16.msra.mxu0 0
  %130 = vmatprep.subr.bf16.mxu0 0
  %131 = vmatpush1.bf16.msra.mxu0 0
  %132 = vmatprep.subr.bf16.mxu0 0
  %133 = vmatpush1.bf16.msra.mxu0 0
  %134 = vmatprep.subr.bf16.mxu0 0
  %135 = vmatpush1.bf16.msra.mxu0 0
  %136 = vmatprep.mubr.bf16.mxu0 0
  %137 = vmatmul.mubr.bf16.gmra.mrb[0].mxu0 %v52
  %v138 = vpop.f32.mrb[0].mxu0
  %v139 = vadd.f32 0.0, %v138
  %v140 = vpop.f32.mrb[0].mxu0
  %v141 = vpop.f32.mrb[0].mxu0
  %v142 = vadd.f32 0.0, %v141
  %v143 = vpop.f32.mrb[0].mxu0
  %144 = vmatprep.mubr.bf16.mxu0 0
  %145 = vmatmul.mubr.bf16.gmra.mrb[0].mxu0 %v53
  %v146 = vpop.f32.mrb[0].mxu0
  %v147 = vadd.f32 0.0, %v146
  %v148 = vpop.f32.mrb[0].mxu0
  %v149 = vpop.f32.mrb[0].mxu0
  %v150 = vadd.f32 0.0, %v149
  %v151 = vpop.f32.mrb[0].mxu0
  %152 = vdwg.mxu0
  %v153 = vadd.f32 %v40, %v139
  %v154 = vadd.f32 %v41, %v142
  %v155 = vadd.f32 %v42, %v147
  %v156 = vadd.f32 %v43, %v150
  %157 = vst [vmem:[#allocation2] sm:$0xff] %v153
  %158 = vst [vmem:[#allocation2 + $0x8] sm:$0xff] %v154
  %159 = vst [vmem:[#allocation2 + $0x10] sm:$0xff] %v155
  %160 = vst [vmem:[#allocation2 + $0x18] sm:$0xff] %v156
  // Predicated region
  $region14: #{fwd.133} parent=0 // pred_check
    %p161 = pneg %p12
  $region15: #{fwd.133} parent=0 // pred_check_branch
    %163 = sbr.rel (%p161) target = $region17
  $region16: #{fwd.133} parent=0 // pred_region
    %v164 = vld [vmem:[#allocation2] sm:$0xff]
    %v165 = vld [vmem:[#allocation2 + $0x8] sm:$0xff]
    %v166 = vld [vmem:[#allocation2 + $0x10] sm:$0xff]
    %v167 = vld [vmem:[#allocation2 + $0x18] sm:$0xff]
    %vm168 = vcmask 523264
    %169 = vst.msk [vmem:[%s2] sm:$0xff] %vm168, %v164
    %170 = vst.msk [vmem:[%s2 + $0x8] sm:$0xff] %vm168, %v165
    %171 = vst.msk [vmem:[%s2 + $0x10] sm:$0xff] %vm168, %v166
    %172 = vst.msk [vmem:[%s2 + $0x18] sm:$0xff] %vm168, %v167
  $region17: #{fwd.133} parent=0 // pred_fallthru
    _
  // Predicated region
  $region18: #{fwd.133} parent=0 // pred_check
    _
  $region19: #{fwd.133} parent=0 // pred_check_branch
    %174 = sbr.rel (0) target = $region21
  $region20: #{fwd.133} parent=0 // pred_region
    _
  $region21: #{fwd.133} parent=0 // pred_fallthru
    _
  // Predicated region
  $region22: #{fwd.133} parent=0 // pred_check
    _
  $region23: #{fwd.133} parent=0 // pred_check_branch
    %176 = sbr.rel (0) target = $region25
  $region24: #{fwd.133} parent=0 // pred_region
    _
  $region25: #{fwd.133} parent=0 // pred_fallthru
    _

// kernel: fwd.136
$region0: #{fwd.136}
  #allocation0 [shape = 'u32[]', space=smem, size = 0x4, offset = 0x4, fixed_abs, tag = 'smem constant byte address 0x4 - core index']
  #allocation1 [shape = 'u32[144,128]{1,0:T(1,128)}', space=vmem, size = 0x12000, scoped, tag = 'internal scratch']
  #allocation2 [shape = 'f32[128,128]{1,0:T(8,128)}', space=vmem, size = 0x10000, scoped, tag = 'scratch operand']
  %s0 = inlined_call_operand.vmem [shape: bf16[128,64], index: 0, kind: input, shape index: {}]
  %s1 = inlined_call_operand.vmem [shape: bf16[64,128], index: 1, kind: input, shape index: {}]
  %s2 = inlined_call_operand.vmem [shape: f32[128,32], index: 2, kind: output, shape index: {}]
  %s3 = sld [smem:[#allocation0]]
  $region26: #{fwd.136} parent=0
    _
  %s5 = ssub.s32 1, %s3
  %s6 = scalar_select 0, %s5, %s3
  // Predicated region
  $region2: #{fwd.136} parent=0 // pred_check
    _
  $region3: #{fwd.136} parent=0 // pred_check_branch
    %8 = sbr.rel (0) target = $region5
  $region4: #{fwd.136} parent=0 // pred_region
    _
  $region5: #{fwd.136} parent=0 // pred_fallthru
    _
  // Predicated region
  $region6: #{fwd.136} parent=0 // pred_check
    _
  $region7: #{fwd.136} parent=0 // pred_check_branch
    %10 = sbr.rel (0) target = $region9
  $region8: #{fwd.136} parent=0 // pred_region
    _
  $region9: #{fwd.136} parent=0 // pred_fallthru
    _
  %p12 = scmp.eq.s32.totalorder 0, 0
  // Predicated region
  $region10: #{fwd.136} parent=0 // pred_check
    %p13 = pneg %p12
  $region11: #{fwd.136} parent=0 // pred_check_branch
    %15 = sbr.rel (%p13) target = $region13
  $region12: #{fwd.136} parent=0 // pred_region
    %16 = vst [vmem:[#allocation2] sm:$0xff] 0.0
    %17 = vst [vmem:[#allocation2 + $0x8] sm:$0xff] 0.0
    %18 = vst [vmem:[#allocation2 + $0x10] sm:$0xff] 0.0
    %19 = vst [vmem:[#allocation2 + $0x18] sm:$0xff] 0.0
    %20 = vst [vmem:[#allocation2 + $0x20] sm:$0xff] 0.0
    %21 = vst [vmem:[#allocation2 + $0x28] sm:$0xff] 0.0
    %22 = vst [vmem:[#allocation2 + $0x30] sm:$0xff] 0.0
    %23 = vst [vmem:[#allocation2 + $0x38] sm:$0xff] 0.0
    %24 = vst [vmem:[#allocation2 + $0x40] sm:$0xff] 0.0
    %25 = vst [vmem:[#allocation2 + $0x48] sm:$0xff] 0.0
    %26 = vst [vmem:[#allocation2 + $0x50] sm:$0xff] 0.0
    %27 = vst [vmem:[#allocation2 + $0x58] sm:$0xff] 0.0
    %28 = vst [vmem:[#allocation2 + $0x60] sm:$0xff] 0.0
    %29 = vst [vmem:[#allocation2 + $0x68] sm:$0xff] 0.0
    %30 = vst [vmem:[#allocation2 + $0x70] sm:$0xff] 0.0
    %31 = vst [vmem:[#allocation2 + $0x78] sm:$0xff] 0.0
  $region13: #{fwd.136} parent=0 // pred_fallthru
    _
  %v32 = vld [vmem:[%s0] sm:$0xf]
  %v33 = vld [vmem:[%s0 + $0x4] sm:$0xf]
  %v34 = vld [vmem:[%s0 + $0x8] sm:$0xf]
  %v35 = vld [vmem:[%s0 + $0xc] sm:$0xf]
  %v36 = vld [vmem:[%s0 + $0x10] sm:$0xf]
  %v37 = vld [vmem:[%s0 + $0x14] sm:$0xf]
  %v38 = vld [vmem:[%s0 + $0x18] sm:$0xf]
  %v39 = vld [vmem:[%s0 + $0x1c] sm:$0xf]
  %v40 = vld [vmem:[%s0 + $0x20] sm:$0xf]
  %v41 = vld [vmem:[%s0 + $0x24] sm:$0xf]
  %v42 = vld [vmem:[%s0 + $0x28] sm:$0xf]
  %v43 = vld [vmem:[%s0 + $0x2c] sm:$0xf]
  %v44 = vld [vmem:[%s0 + $0x30] sm:$0xf]
  %v45 = vld [vmem:[%s0 + $0x34] sm:$0xf]
  %v46 = vld [vmem:[%s0 + $0x38] sm:$0xf]
  %v47 = vld [vmem:[%s0 + $0x3c] sm:$0xf]
  %v48 = vld [vmem:[%s1] sm:$0xf]
  %v49 = vld [vmem:[%s1 + $0x4] sm:$0xf]
  %v50 = vld [vmem:[%s1 + $0x8] sm:$0xf]
  %v51 = vld [vmem:[%s1 + $0xc] sm:$0xf]
  %v52 = vld [vmem:[%s1 + $0x10] sm:$0xf]
  %v53 = vld [vmem:[%s1 + $0x14] sm:$0xf]
  %v54 = vld [vmem:[%s1 + $0x18] sm:$0xf]
  %v55 = vld [vmem:[%s1 + $0x1c] sm:$0xf]
  %v56 = vld [vmem:[#allocation2] sm:$0xff]
  %v57 = vld [vmem:[#allocation2 + $0x8] sm:$0xff]
  %v58 = vld [vmem:[#allocation2 + $0x10] sm:$0xff]
  %v59 = vld [vmem:[#allocation2 + $0x18] sm:$0xff]
  %v60 = vld [vmem:[#allocation2 + $0x20] sm:$0xff]
  %v61 = vld [vmem:[#allocation2 + $0x28] sm:$0xff]
  %v62 = vld [vmem:[#allocation2 + $0x30] sm:$0xff]
  %v63 = vld [vmem:[#allocation2 + $0x38] sm:$0xff]
  %v64 = vld [vmem:[#allocation2 + $0x40] sm:$0xff]
  %v65 = vld [vmem:[#allocation2 + $0x48] sm:$0xff]
  %v66 = vld [vmem:[#allocation2 + $0x50] sm:$0xff]
  %v67 = vld [vmem:[#allocation2 + $0x58] sm:$0xff]
  %v68 = vld [vmem:[#allocation2 + $0x60] sm:$0xff]
  %v69 = vld [vmem:[#allocation2 + $0x68] sm:$0xff]
  %v70 = vld [vmem:[#allocation2 + $0x70] sm:$0xff]
  %v71 = vld [vmem:[#allocation2 + $0x78] sm:$0xff]
  %v88 = vunpack.c.l.b16 %v32
  %v89 = vunpack.c.l.b16 %v33
  %v90 = vunpack.c.l.b16 %v34
  %v91 = vunpack.c.l.b16 %v35
  %v92 = vunpack.c.l.b16 %v36
  %v93 = vunpack.c.l.b16 %v37
  %v94 = vunpack.c.l.b16 %v38
  %v95 = vunpack.c.l.b16 %v39
  %v96 = vunpack.c.l.b16 %v40
  %v97 = vunpack.c.l.b16 %v41
  %v98 = vunpack.c.l.b16 %v42
  %v99 = vunpack.c.l.b16 %v43
  %v100 = vunpack.c.l.b16 %v44
  %v101 = vunpack.c.l.b16 %v45
  %v102 = vunpack.c.l.b16 %v46
  %v103 = vunpack.c.l.b16 %v47
  %v104 = vpack.c.b16 %v89, %v88
  %v105 = vpack.c.b16 %v91, %v90
  %v106 = vpack.c.b16 %v93, %v92
  %v107 = vpack.c.b16 %v95, %v94
  %v108 = vpack.c.b16 %v97, %v96
  %v109 = vpack.c.b16 %v99, %v98
  %v110 = vpack.c.b16 %v101, %v100
  %v111 = vpack.c.b16 %v103, %v102
  %v120 = vunpack.c.l.b16 %v48
  %v121 = vunpack.c.l.b16 %v49
  %v122 = vunpack.c.l.b16 %v50
  %v123 = vunpack.c.l.b16 %v51
  %v124 = vunpack.c.l.b16 %v52
  %v125 = vunpack.c.l.b16 %v53
  %v126 = vunpack.c.l.b16 %v54
  %v127 = vunpack.c.l.b16 %v55
  %v128 = vpack.c.b16 %v121, %v120
  %v129 = vpack.c.b16 %v123, %v122
  %v130 = vpack.c.b16 %v125, %v124
  %v131 = vpack.c.b16 %v127, %v126
  %vm136 = vcmask 523264
  %v138 = vsel %vm136, %v104, 0
  %v141 = vsel %vm136, %v105, 0
  %v144 = vsel %vm136, %v106, 0
  %v147 = vsel %vm136, %v107, 0
  %v150 = vsel %vm136, %v108, 0
  %v153 = vsel %vm136, %v109, 0
  %v156 = vsel %vm136, %v110, 0
  %v159 = vsel %vm136, %v111, 0
  %161 = vmatprep.subr.bf16.mxu0 0
  %162 = vmatpush1.bf16.msra.mxu0 %v128
  %163 = vmatprep.subr.bf16.mxu0 0
  %164 = vmatpush1.bf16.msra.mxu0 %v129
  %165 = vmatprep.subr.bf16.mxu0 0
  %166 = vmatpush1.bf16.msra.mxu0 %v130
  %167 = vmatprep.subr.bf16.mxu0 0
  %168 = vmatpush1.bf16.msra.mxu0 %v131
  %169 = vmatprep.subr.bf16.mxu0 0
  %170 = vmatpush1.bf16.msra.mxu0 0
  %171 = vmatprep.subr.bf16.mxu0 0
  %172 = vmatpush1.bf16.msra.mxu0 0
  %173 = vmatprep.subr.bf16.mxu0 0
  %174 = vmatpush1.bf16.msra.mxu0 0
  %175 = vmatprep.subr.bf16.mxu0 0
  %176 = vmatpush1.bf16.msra.mxu0 0
  %177 = vmatprep.subr.bf16.mxu0 0
  %178 = vmatpush1.bf16.msra.mxu0 0
  %179 = vmatprep.subr.bf16.mxu0 0
  %180 = vmatpush1.bf16.msra.mxu0 0
  %181 = vmatprep.subr.bf16.mxu0 0
  %182 = vmatpush1.bf16.msra.mxu0 0
  %183 = vmatprep.subr.bf16.mxu0 0
  %184 = vmatpush1.bf16.msra.mxu0 0
  %185 = vmatprep.subr.bf16.mxu0 0
  %186 = vmatpush1.bf16.msra.mxu0 0
  %187 = vmatprep.subr.bf16.mxu0 0
  %188 = vmatpush1.bf16.msra.mxu0 0
  %189 = vmatprep.subr.bf16.mxu0 0
  %190 = vmatpush1.bf16.msra.mxu0 0
  %191 = vmatprep.subr.bf16.mxu0 0
  %192 = vmatpush1.bf16.msra.mxu0 0
  %193 = vmatprep.mubr.bf16.mxu0 0
  %194 = vmatmul.mubr.bf16.gmra.mrb[0].mxu0 %v138
  %v195 = vpop.f32.mrb[0].mxu0
  %v196 = vadd.f32 0.0, %v195
  %v197 = vpop.f32.mrb[0].mxu0
  %v198 = vpop.f32.mrb[0].mxu0
  %v199 = vadd.f32 0.0, %v198
  %v200 = vpop.f32.mrb[0].mxu0
  %201 = vmatprep.mubr.bf16.mxu0 0
  %202 = vmatmul.mubr.bf16.gmra.mrb[0].mxu0 %v141
  %v203 = vpop.f32.mrb[0].mxu0
  %v204 = vadd.f32 0.0, %v203
  %v205 = vpop.f32.mrb[0].mxu0
  %v206 = vpop.f32.mrb[0].mxu0
  %v207 = vadd.f32 0.0, %v206
  %v208 = vpop.f32.mrb[0].mxu0
  %209 = vmatprep.mubr.bf16.mxu0 0
  %210 = vmatmul.mubr.bf16.gmra.mrb[0].mxu0 %v144
  %v211 = vpop.f32.mrb[0].mxu0
  %v212 = vadd.f32 0.0, %v211
  %v213 = vpop.f32.mrb[0].mxu0
  %v214 = vpop.f32.mrb[0].mxu0
  %v215 = vadd.f32 0.0, %v214
  %v216 = vpop.f32.mrb[0].mxu0
  %217 = vmatprep.mubr.bf16.mxu0 0
  %218 = vmatmul.mubr.bf16.gmra.mrb[0].mxu0 %v147
  %v219 = vpop.f32.mrb[0].mxu0
  %v220 = vadd.f32 0.0, %v219
  %v221 = vpop.f32.mrb[0].mxu0
  %v222 = vpop.f32.mrb[0].mxu0
  %v223 = vadd.f32 0.0, %v222
  %v224 = vpop.f32.mrb[0].mxu0
  %225 = vmatprep.mubr.bf16.mxu0 0
  %226 = vmatmul.mubr.bf16.gmra.mrb[0].mxu0 %v150
  %v227 = vpop.f32.mrb[0].mxu0
  %v228 = vadd.f32 0.0, %v227
  %v229 = vpop.f32.mrb[0].mxu0
  %v230 = vpop.f32.mrb[0].mxu0
  %v231 = vadd.f32 0.0, %v230
  %v232 = vpop.f32.mrb[0].mxu0
  %233 = vmatprep.mubr.bf16.mxu0 0
  %234 = vmatmul.mubr.bf16.gmra.mrb[0].mxu0 %v153
  %v235 = vpop.f32.mrb[0].mxu0
  %v236 = vadd.f32 0.0, %v235
  %v237 = vpop.f32.mrb[0].mxu0
  %v238 = vpop.f32.mrb[0].mxu0
  %v239 = vadd.f32 0.0, %v238
  %v240 = vpop.f32.mrb[0].mxu0
  %241 = vmatprep.mubr.bf16.mxu0 0
  %242 = vmatmul.mubr.bf16.gmra.mrb[0].mxu0 %v156
  %v243 = vpop.f32.mrb[0].mxu0
  %v244 = vadd.f32 0.0, %v243
  %v245 = vpop.f32.mrb[0].mxu0
  %v246 = vpop.f32.mrb[0].mxu0
  %v247 = vadd.f32 0.0, %v246
  %v248 = vpop.f32.mrb[0].mxu0
  %249 = vmatprep.mubr.bf16.mxu0 0
  %250 = vmatmul.mubr.bf16.gmra.mrb[0].mxu0 %v159
  %v251 = vpop.f32.mrb[0].mxu0
  %v252 = vadd.f32 0.0, %v251
  %v253 = vpop.f32.mrb[0].mxu0
  %v254 = vpop.f32.mrb[0].mxu0
  %v255 = vadd.f32 0.0, %v254
  %v256 = vpop.f32.mrb[0].mxu0
  %257 = vdwg.mxu0
  %v258 = vadd.f32 %v56, %v196
  %v259 = vadd.f32 %v57, %v199
  %v260 = vadd.f32 %v58, %v204
  %v261 = vadd.f32 %v59, %v207
  %v262 = vadd.f32 %v60, %v212
  %v263 = vadd.f32 %v61, %v215
  %v264 = vadd.f32 %v62, %v220
  %v265 = vadd.f32 %v63, %v223
  %v266 = vadd.f32 %v64, %v228
  %v267 = vadd.f32 %v65, %v231
  %v268 = vadd.f32 %v66, %v236
  %v269 = vadd.f32 %v67, %v239
  %v270 = vadd.f32 %v68, %v244
  %v271 = vadd.f32 %v69, %v247
  %v272 = vadd.f32 %v70, %v252
  %v273 = vadd.f32 %v71, %v255
  %274 = vst [vmem:[#allocation2] sm:$0xff] %v258
  %275 = vst [vmem:[#allocation2 + $0x8] sm:$0xff] %v259
  %276 = vst [vmem:[#allocation2 + $0x10] sm:$0xff] %v260
  %277 = vst [vmem:[#allocation2 + $0x18] sm:$0xff] %v261
  %278 = vst [vmem:[#allocation2 + $0x20] sm:$0xff] %v262
  %279 = vst [vmem:[#allocation2 + $0x28] sm:$0xff] %v263
  %280 = vst [vmem:[#allocation2 + $0x30] sm:$0xff] %v264
  %281 = vst [vmem:[#allocation2 + $0x38] sm:$0xff] %v265
  %282 = vst [vmem:[#allocation2 + $0x40] sm:$0xff] %v266
  %283 = vst [vmem:[#allocation2 + $0x48] sm:$0xff] %v267
  %284 = vst [vmem:[#allocation2 + $0x50] sm:$0xff] %v268
  %285 = vst [vmem:[#allocation2 + $0x58] sm:$0xff] %v269
  %286 = vst [vmem:[#allocation2 + $0x60] sm:$0xff] %v270
  %287 = vst [vmem:[#allocation2 + $0x68] sm:$0xff] %v271
  %288 = vst [vmem:[#allocation2 + $0x70] sm:$0xff] %v272
  %289 = vst [vmem:[#allocation2 + $0x78] sm:$0xff] %v273
  // Predicated region
  $region14: #{fwd.136} parent=0 // pred_check
    %p290 = pneg %p12
  $region15: #{fwd.136} parent=0 // pred_check_branch
    %292 = sbr.rel (%p290) target = $region17
  $region16: #{fwd.136} parent=0 // pred_region
    %v293 = vld [vmem:[#allocation2] sm:$0xff]
    %v294 = vld [vmem:[#allocation2 + $0x8] sm:$0xff]
    %v295 = vld [vmem:[#allocation2 + $0x10] sm:$0xff]
    %v296 = vld [vmem:[#allocation2 + $0x18] sm:$0xff]
    %v297 = vld [vmem:[#allocation2 + $0x20] sm:$0xff]
    %v298 = vld [vmem:[#allocation2 + $0x28] sm:$0xff]
    %v299 = vld [vmem:[#allocation2 + $0x30] sm:$0xff]
    %v300 = vld [vmem:[#allocation2 + $0x38] sm:$0xff]
    %v301 = vld [vmem:[#allocation2 + $0x40] sm:$0xff]
    %v302 = vld [vmem:[#allocation2 + $0x48] sm:$0xff]
    %v303 = vld [vmem:[#allocation2 + $0x50] sm:$0xff]
    %v304 = vld [vmem:[#allocation2 + $0x58] sm:$0xff]
    %v305 = vld [vmem:[#allocation2 + $0x60] sm:$0xff]
    %v306 = vld [vmem:[#allocation2 + $0x68] sm:$0xff]
    %v307 = vld [vmem:[#allocation2 + $0x70] sm:$0xff]
    %v308 = vld [vmem:[#allocation2 + $0x78] sm:$0xff]
    %vm309 = vcmask 261120
    %310 = vst.msk [vmem:[%s2] sm:$0xff] %vm309, %v293
    %311 = vst.msk [vmem:[%s2 + $0x8] sm:$0xff] %vm309, %v294
    %312 = vst.msk [vmem:[%s2 + $0x10] sm:$0xff] %vm309, %v295
    %313 = vst.msk [vmem:[%s2 + $0x18] sm:$0xff] %vm309, %v296
    %314 = vst.msk [vmem:[%s2 + $0x20] sm:$0xff] %vm309, %v297
    %315 = vst.msk [vmem:[%s2 + $0x28] sm:$0xff] %vm309, %v298
    %316 = vst.msk [vmem:[%s2 + $0x30] sm:$0xff] %vm309, %v299
    %317 = vst.msk [vmem:[%s2 + $0x38] sm:$0xff] %vm309, %v300
    %318 = vst.msk [vmem:[%s2 + $0x40] sm:$0xff] %vm309, %v301
    %319 = vst.msk [vmem:[%s2 + $0x48] sm:$0xff] %vm309, %v302
    %320 = vst.msk [vmem:[%s2 + $0x50] sm:$0xff] %vm309, %v303
    %321 = vst.msk [vmem:[%s2 + $0x58] sm:$0xff] %vm309, %v304
    %322 = vst.msk [vmem:[%s2 + $0x60] sm:$0xff] %vm309, %v305
    %323 = vst.msk [vmem:[%s2 + $0x68] sm:$0xff] %vm309, %v306
    %324 = vst.msk [vmem:[%s2 + $0x70] sm:$0xff] %vm309, %v307
    %325 = vst.msk [vmem:[%s2 + $0x78] sm:$0xff] %vm309, %v308
  $region17: #{fwd.136} parent=0 // pred_fallthru
    _
  // Predicated region
  $region18: #{fwd.136} parent=0 // pred_check
    _
  $region19: #{fwd.136} parent=0 // pred_check_branch
    %327 = sbr.rel (0) target = $region21
  $region20: #{fwd.136} parent=0 // pred_region
    _
  $region21: #{fwd.136} parent=0 // pred_fallthru
    _
  // Predicated region
  $region22: #{fwd.136} parent=0 // pred_check
    _
  $region23: #{fwd.136} parent=0 // pred_check_branch
    %329 = sbr.rel (0) target = $region25
  $region24: #{fwd.136} parent=0 // pred_region
    _
  $region25: #{fwd.136} parent=0 // pred_fallthru
    _

// kernel: fwd.139
$region0: #{fwd.139}
  #allocation0 [shape = 'u32[]', space=smem, size = 0x4, offset = 0x4, fixed_abs, tag = 'smem constant byte address 0x4 - core index']
  #allocation1 [shape = 'u32[144,128]{1,0:T(1,128)}', space=vmem, size = 0x12000, scoped, tag = 'internal scratch']
  #allocation2 [shape = 'f32[512,128]{1,0:T(8,128)}', space=vmem, size = 0x40000, scoped, tag = 'scratch operand']
  %s0 = inlined_call_operand.vmem [shape: bf16[512,392], index: 0, kind: input, shape index: {}]
  %s1 = inlined_call_operand.vmem [shape: bf16[392,128], index: 1, kind: input, shape index: {}]
  %s2 = inlined_call_operand.vmem [shape: f32[1,128], index: 2, kind: input, shape index: {}]
  %s3 = inlined_call_operand.vmem [shape: f32[512,3], index: 3, kind: output, shape index: {}]
  %s4 = sld [smem:[#allocation0]]
  $region30: #{fwd.139} parent=0
    _
  %s6 = ssub.s32 1, %s4
  %s7 = scalar_select 0, %s6, %s4
  // Predicated region
  $region2: #{fwd.139} parent=0 // pred_check
    _
  $region3: #{fwd.139} parent=0 // pred_check_branch
    %9 = sbr.rel (0) target = $region5
  $region4: #{fwd.139} parent=0 // pred_region
    _
  $region5: #{fwd.139} parent=0 // pred_fallthru
    _
  // Predicated region
  $region6: #{fwd.139} parent=0 // pred_check
    _
  $region7: #{fwd.139} parent=0 // pred_check_branch
    %11 = sbr.rel (0) target = $region9
  $region8: #{fwd.139} parent=0 // pred_region
    _
  $region9: #{fwd.139} parent=0 // pred_fallthru
    _
  // Predicated region
  $region10: #{fwd.139} parent=0 // pred_check
    _
  $region11: #{fwd.139} parent=0 // pred_check_branch
    %13 = sbr.rel (0) target = $region13
  $region12: #{fwd.139} parent=0 // pred_region
    _
  $region13: #{fwd.139} parent=0 // pred_fallthru
    _
  %p15 = scmp.eq.s32.totalorder 0, 0
  // Predicated region
  $region14: #{fwd.139} parent=0 // pred_check
    %p16 = pneg %p15
  $region15: #{fwd.139} parent=0 // pred_check_branch
    %18 = sbr.rel (%p16) target = $region17
  $region16: #{fwd.139} parent=0 // pred_region
    %19 = vst [vmem:[#allocation2] sm:$0xff] 0.0
    %20 = vst [vmem:[#allocation2 + $0x8] sm:$0xff] 0.0
    %21 = vst [vmem:[#allocation2 + $0x10] sm:$0xff] 0.0
    %22 = vst [vmem:[#allocation2 + $0x18] sm:$0xff] 0.0
    %23 = vst [vmem:[#allocation2 + $0x20] sm:$0xff] 0.0
    %24 = vst [vmem:[#allocation2 + $0x28] sm:$0xff] 0.0
    %25 = vst [vmem:[#allocation2 + $0x30] sm:$0xff] 0.0
    %26 = vst [vmem:[#allocation2 + $0x38] sm:$0xff] 0.0
    %27 = vst [vmem:[#allocation2 + $0x40] sm:$0xff] 0.0
    %28 = vst [vmem:[#allocation2 + $0x48] sm:$0xff] 0.0
    %29 = vst [vmem:[#allocation2 + $0x50] sm:$0xff] 0.0
    %30 = vst [vmem:[#allocation2 + $0x58] sm:$0xff] 0.0
    %31 = vst [vmem:[#allocation2 + $0x60] sm:$0xff] 0.0
    %32 = vst [vmem:[#allocation2 + $0x68] sm:$0xff] 0.0
    %33 = vst [vmem:[#allocation2 + $0x70] sm:$0xff] 0.0
    %34 = vst [vmem:[#allocation2 + $0x78] sm:$0xff] 0.0
    %35 = vst [vmem:[#allocation2 + $0x80] sm:$0xff] 0.0
    %36 = vst [vmem:[#allocation2 + $0x88] sm:$0xff] 0.0
    %37 = vst [vmem:[#allocation2 + $0x90] sm:$0xff] 0.0
    %38 = vst [vmem:[#allocation2 + $0x98] sm:$0xff] 0.0
    %39 = vst [vmem:[#allocation2 + $0xa0] sm:$0xff] 0.0
    %40 = vst [vmem:[#allocation2 + $0xa8] sm:$0xff] 0.0
    %41 = vst [vmem:[#allocation2 + $0xb0] sm:$0xff] 0.0
    %42 = vst [vmem:[#allocation2 + $0xb8] sm:$0xff] 0.0
    %43 = vst [vmem:[#allocation2 + $0xc0] sm:$0xff] 0.0
    %44 = vst [vmem:[#allocation2 + $0xc8] sm:$0xff] 0.0
    %45 = vst [vmem:[#allocation2 + $0xd0] sm:$0xff] 0.0
    %46 = vst [vmem:[#allocation2 + $0xd8] sm:$0xff] 0.0
    %47 = vst [vmem:[#allocation2 + $0xe0] sm:$0xff] 0.0
    %48 = vst [vmem:[#allocation2 + $0xe8] sm:$0xff] 0.0
    %49 = vst [vmem:[#allocation2 + $0xf0] sm:$0xff] 0.0
    %50 = vst [vmem:[#allocation2 + $0xf8] sm:$0xff] 0.0
    %51 = vst [vmem:[#allocation2 + $0x100] sm:$0xff] 0.0
    %52 = vst [vmem:[#allocation2 + $0x108] sm:$0xff] 0.0
    %53 = vst [vmem:[#allocation2 + $0x110] sm:$0xff] 0.0
    %54 = vst [vmem:[#allocation2 + $0x118] sm:$0xff] 0.0
    %55 = vst [vmem:[#allocation2 + $0x120] sm:$0xff] 0.0
    %56 = vst [vmem:[#allocation2 + $0x128] sm:$0xff] 0.0
    %57 = vst [vmem:[#allocation2 + $0x130] sm:$0xff] 0.0
    %58 = vst [vmem:[#allocation2 + $0x138] sm:$0xff] 0.0
    %59 = vst [vmem:[#allocation2 + $0x140] sm:$0xff] 0.0
    %60 = vst [vmem:[#allocation2 + $0x148] sm:$0xff] 0.0
    %61 = vst [vmem:[#allocation2 + $0x150] sm:$0xff] 0.0
    %62 = vst [vmem:[#allocation2 + $0x158] sm:$0xff] 0.0
    %63 = vst [vmem:[#allocation2 + $0x160] sm:$0xff] 0.0
    %64 = vst [vmem:[#allocation2 + $0x168] sm:$0xff] 0.0
    %65 = vst [vmem:[#allocation2 + $0x170] sm:$0xff] 0.0
    %66 = vst [vmem:[#allocation2 + $0x178] sm:$0xff] 0.0
    %67 = vst [vmem:[#allocation2 + $0x180] sm:$0xff] 0.0
    %68 = vst [vmem:[#allocation2 + $0x188] sm:$0xff] 0.0
    %69 = vst [vmem:[#allocation2 + $0x190] sm:$0xff] 0.0
    %70 = vst [vmem:[#allocation2 + $0x198] sm:$0xff] 0.0
    %71 = vst [vmem:[#allocation2 + $0x1a0] sm:$0xff] 0.0
    %72 = vst [vmem:[#allocation2 + $0x1a8] sm:$0xff] 0.0
    %73 = vst [vmem:[#allocation2 + $0x1b0] sm:$0xff] 0.0
    %74 = vst [vmem:[#allocation2 + $0x1b8] sm:$0xff] 0.0
    %75 = vst [vmem:[#allocation2 + $0x1c0] sm:$0xff] 0.0
    %76 = vst [vmem:[#allocation2 + $0x1c8] sm:$0xff] 0.0
    %77 = vst [vmem:[#allocation2 + $0x1d0] sm:$0xff] 0.0
    %78 = vst [vmem:[#allocation2 + $0x1d8] sm:$0xff] 0.0
    %79 = vst [vmem:[#allocation2 + $0x1e0] sm:$0xff] 0.0
    %80 = vst [vmem:[#allocation2 + $0x1e8] sm:$0xff] 0.0
    %81 = vst [vmem:[#allocation2 + $0x1f0] sm:$0xff] 0.0
    %82 = vst [vmem:[#allocation2 + $0x1f8] sm:$0xff] 0.0
  $region17: #{fwd.139} parent=0 // pred_fallthru
    _
  %v83 = vld [vmem:[%s0] sm:$0xff]
  %v84 = vld [vmem:[%s0 + $0x8] sm:$0xff]
  %v85 = vld [vmem:[%s0 + $0x10] sm:$0xff]
  %v86 = vld [vmem:[%s0 + $0x18] sm:$0xff]
  %v87 = vld [vmem:[%s0 + $0x20] sm:$0xff]
  %v88 = vld [vmem:[%s0 + $0x28] sm:$0xff]
  %v89 = vld [vmem:[%s0 + $0x30] sm:$0xff]
  %v90 = vld [vmem:[%s0 + $0x38] sm:$0xff]
  %v91 = vld [vmem:[%s0 + $0x40] sm:$0xff]
  %v92 = vld [vmem:[%s0 + $0x48] sm:$0xff]
  %v93 = vld [vmem:[%s0 + $0x50] sm:$0xff]
  %v94 = vld [vmem:[%s0 + $0x58] sm:$0xff]
  %v95 = vld [vmem:[%s0 + $0x60] sm:$0xff]
  %v96 = vld [vmem:[%s0 + $0x68] sm:$0xff]
  %v97 = vld [vmem:[%s0 + $0x70] sm:$0xff]
  %v98 = vld [vmem:[%s0 + $0x78] sm:$0xff]
  %v99 = vld [vmem:[%s0 + $0x80] sm:$0xff]
  %v100 = vld [vmem:[%s0 + $0x88] sm:$0xff]
  %v101 = vld [vmem:[%s0 + $0x90] sm:$0xff]
  %v102 = vld [vmem:[%s0 + $0x98] sm:$0xff]
  %v103 = vld [vmem:[%s0 + $0xa0] sm:$0xff]
  %v104 = vld [vmem:[%s0 + $0xa8] sm:$0xff]
  %v105 = vld [vmem:[%s0 + $0xb0] sm:$0xff]
  %v106 = vld [vmem:[%s0 + $0xb8] sm:$0xff]
  %v107 = vld [vmem:[%s0 + $0xc0] sm:$0xff]
  %v108 = vld [vmem:[%s0 + $0xc8] sm:$0xff]
  %v109 = vld [vmem:[%s0 + $0xd0] sm:$0xff]
  %v110 = vld [vmem:[%s0 + $0xd8] sm:$0xff]
  %v111 = vld [vmem:[%s0 + $0xe0] sm:$0xff]
  %v112 = vld [vmem:[%s0 + $0xe8] sm:$0xff]
  %v113 = vld [vmem:[%s0 + $0xf0] sm:$0xff]
  %v114 = vld [vmem:[%s0 + $0xf8] sm:$0xff]
  %v115 = vld [vmem:[%s0 + $0x100] sm:$0xff]
  %v116 = vld [vmem:[%s0 + $0x108] sm:$0xff]
  %v117 = vld [vmem:[%s0 + $0x110] sm:$0xff]
  %v118 = vld [vmem:[%s0 + $0x118] sm:$0xff]
  %v119 = vld [vmem:[%s0 + $0x120] sm:$0xff]
  %v120 = vld [vmem:[%s0 + $0x128] sm:$0xff]
  %v121 = vld [vmem:[%s0 + $0x130] sm:$0xff]
  %v122 = vld [vmem:[%s0 + $0x138] sm:$0xff]
  %v123 = vld [vmem:[%s0 + $0x140] sm:$0xff]
  %v124 = vld [vmem:[%s0 + $0x148] sm:$0xff]
  %v125 = vld [vmem:[%s0 + $0x150] sm:$0xff]
  %v126 = vld [vmem:[%s0 + $0x158] sm:$0xff]
  %v127 = vld [vmem:[%s0 + $0x160] sm:$0xff]
  %v128 = vld [vmem:[%s0 + $0x168] sm:$0xff]
  %v129 = vld [vmem:[%s0 + $0x170] sm:$0xff]
  %v130 = vld [vmem:[%s0 + $0x178] sm:$0xff]
  %v131 = vld [vmem:[%s0 + $0x180] sm:$0xff]
  %v132 = vld [vmem:[%s0 + $0x188] sm:$0xff]
  %v133 = vld [vmem:[%s0 + $0x190] sm:$0xff]
  %v134 = vld [vmem:[%s0 + $0x198] sm:$0xff]
  %v135 = vld [vmem:[%s0 + $0x1a0] sm:$0xff]
  %v136 = vld [vmem:[%s0 + $0x1a8] sm:$0xff]
  %v137 = vld [vmem:[%s0 + $0x1b0] sm:$0xff]
  %v138 = vld [vmem:[%s0 + $0x1b8] sm:$0xff]
  %v139 = vld [vmem:[%s0 + $0x1c0] sm:$0xff]
  %v140 = vld [vmem:[%s0 + $0x1c8] sm:$0xff]
  %v141 = vld [vmem:[%s0 + $0x1d0] sm:$0xff]
  %v142 = vld [vmem:[%s0 + $0x1d8] sm:$0xff]
  %v143 = vld [vmem:[%s0 + $0x1e0] sm:$0xff]
  %v144 = vld [vmem:[%s0 + $0x1e8] sm:$0xff]
  %v145 = vld [vmem:[%s0 + $0x1f0] sm:$0xff]
  %v146 = vld [vmem:[%s0 + $0x1f8] sm:$0xff]
  %v147 = vld [vmem:[%s0 + $0x200] sm:$0xff]
  %v148 = vld [vmem:[%s0 + $0x208] sm:$0xff]
  %v149 = vld [vmem:[%s0 + $0x210] sm:$0xff]
  %v150 = vld [vmem:[%s0 + $0x218] sm:$0xff]
  %v151 = vld [vmem:[%s0 + $0x220] sm:$0xff]
  %v152 = vld [vmem:[%s0 + $0x228] sm:$0xff]
  %v153 = vld [vmem:[%s0 + $0x230] sm:$0xff]
  %v154 = vld [vmem:[%s0 + $0x238] sm:$0xff]
  %v155 = vld [vmem:[%s0 + $0x240] sm:$0xff]
  %v156 = vld [vmem:[%s0 + $0x248] sm:$0xff]
  %v157 = vld [vmem:[%s0 + $0x250] sm:$0xff]
  %v158 = vld [vmem:[%s0 + $0x258] sm:$0xff]
  %v159 = vld [vmem:[%s0 + $0x260] sm:$0xff]
  %v160 = vld [vmem:[%s0 + $0x268] sm:$0xff]
  %v161 = vld [vmem:[%s0 + $0x270] sm:$0xff]
  %v162 = vld [vmem:[%s0 + $0x278] sm:$0xff]
  %v163 = vld [vmem:[%s0 + $0x280] sm:$0xff]
  %v164 = vld [vmem:[%s0 + $0x288] sm:$0xff]
  %v165 = vld [vmem:[%s0 + $0x290] sm:$0xff]
  %v166 = vld [vmem:[%s0 + $0x298] sm:$0xff]
  %v167 = vld [vmem:[%s0 + $0x2a0] sm:$0xff]
  %v168 = vld [vmem:[%s0 + $0x2a8] sm:$0xff]
  %v169 = vld [vmem:[%s0 + $0x2b0] sm:$0xff]
  %v170 = vld [vmem:[%s0 + $0x2b8] sm:$0xff]
  %v171 = vld [vmem:[%s0 + $0x2c0] sm:$0xff]
  %v172 = vld [vmem:[%s0 + $0x2c8] sm:$0xff]
  %v173 = vld [vmem:[%s0 + $0x2d0] sm:$0xff]
  %v174 = vld [vmem:[%s0 + $0x2d8] sm:$0xff]
  %v175 = vld [vmem:[%s0 + $0x2e0] sm:$0xff]
  %v176 = vld [vmem:[%s0 + $0x2e8] sm:$0xff]
  %v177 = vld [vmem:[%s0 + $0x2f0] sm:$0xff]
  %v178 = vld [vmem:[%s0 + $0x2f8] sm:$0xff]
  %v179 = vld [vmem:[%s0 + $0x300] sm:$0xff]
  %v180 = vld [vmem:[%s0 + $0x308] sm:$0xff]
  %v181 = vld [vmem:[%s0 + $0x310] sm:$0xff]
  %v182 = vld [vmem:[%s0 + $0x318] sm:$0xff]
  %v183 = vld [vmem:[%s0 + $0x320] sm:$0xff]
  %v184 = vld [vmem:[%s0 + $0x328] sm:$0xff]
  %v185 = vld [vmem:[%s0 + $0x330] sm:$0xff]
  %v186 = vld [vmem:[%s0 + $0x338] sm:$0xff]
  %v187 = vld [vmem:[%s0 + $0x340] sm:$0xff]
  %v188 = vld [vmem:[%s0 + $0x348] sm:$0xff]
  %v189 = vld [vmem:[%s0 + $0x350] sm:$0xff]
  %v190 = vld [vmem:[%s0 + $0x358] sm:$0xff]
  %v191 = vld [vmem:[%s0 + $0x360] sm:$0xff]
  %v192 = vld [vmem:[%s0 + $0x368] sm:$0xff]
  %v193 = vld [vmem:[%s0 + $0x370] sm:$0xff]
  %v194 = vld [vmem:[%s0 + $0x378] sm:$0xff]
  %v195 = vld [vmem:[%s0 + $0x380] sm:$0xff]
  %v196 = vld [vmem:[%s0 + $0x388] sm:$0xff]
  %v197 = vld [vmem:[%s0 + $0x390] sm:$0xff]
  %v198 = vld [vmem:[%s0 + $0x398] sm:$0xff]
  %v199 = vld [vmem:[%s0 + $0x3a0] sm:$0xff]
  %v200 = vld [vmem:[%s0 + $0x3a8] sm:$0xff]
  %v201 = vld [vmem:[%s0 + $0x3b0] sm:$0xff]
  %v202 = vld [vmem:[%s0 + $0x3b8] sm:$0xff]
  %v203 = vld [vmem:[%s0 + $0x3c0] sm:$0xff]
  %v204 = vld [vmem:[%s0 + $0x3c8] sm:$0xff]
  %v205 = vld [vmem:[%s0 + $0x3d0] sm:$0xff]
  %v206 = vld [vmem:[%s0 + $0x3d8] sm:$0xff]
  %v207 = vld [vmem:[%s0 + $0x3e0] sm:$0xff]
  %v208 = vld [vmem:[%s0 + $0x3e8] sm:$0xff]
  %v209 = vld [vmem:[%s0 + $0x3f0] sm:$0xff]
  %v210 = vld [vmem:[%s0 + $0x3f8] sm:$0xff]
  %v211 = vld [vmem:[%s1] sm:$0xf]
  %v212 = vld [vmem:[%s1 + $0x4] sm:$0xf]
  %v213 = vld [vmem:[%s1 + $0x8] sm:$0xf]
  %v214 = vld [vmem:[%s1 + $0xc] sm:$0xf]
  %v215 = vld [vmem:[%s1 + $0x10] sm:$0xf]
  %v216 = vld [vmem:[%s1 + $0x14] sm:$0xf]
  %v217 = vld [vmem:[%s1 + $0x18] sm:$0xf]
  %v218 = vld [vmem:[%s1 + $0x1c] sm:$0xf]
  %v219 = vld [vmem:[%s1 + $0x20] sm:$0xf]
  %v220 = vld [vmem:[%s1 + $0x24] sm:$0xf]
  %v221 = vld [vmem:[%s1 + $0x28] sm:$0xf]
  %v222 = vld [vmem:[%s1 + $0x2c] sm:$0xf]
  %v223 = vld [vmem:[%s1 + $0x30] sm:$0xf]
  %v224 = vld [vmem:[%s1 + $0x34] sm:$0xf]
  %v225 = vld [vmem:[%s1 + $0x38] sm:$0xf]
  %v226 = vld [vmem:[%s1 + $0x3c] sm:$0xf]
  %v227 = vld [vmem:[%s1 + $0x40] sm:$0xf]
  %v228 = vld [vmem:[%s1 + $0x44] sm:$0xf]
  %v229 = vld [vmem:[%s1 + $0x48] sm:$0xf]
  %v230 = vld [vmem:[%s1 + $0x4c] sm:$0xf]
  %v231 = vld [vmem:[%s1 + $0x50] sm:$0xf]
  %v232 = vld [vmem:[%s1 + $0x54] sm:$0xf]
  %v233 = vld [vmem:[%s1 + $0x58] sm:$0xf]
  %v234 = vld [vmem:[%s1 + $0x5c] sm:$0xf]
  %v235 = vld [vmem:[%s1 + $0x60] sm:$0xf]
  %v236 = vld [vmem:[%s1 + $0x64] sm:$0xf]
  %v237 = vld [vmem:[%s1 + $0x68] sm:$0xf]
  %v238 = vld [vmem:[%s1 + $0x6c] sm:$0xf]
  %v239 = vld [vmem:[%s1 + $0x70] sm:$0xf]
  %v240 = vld [vmem:[%s1 + $0x74] sm:$0xf]
  %v241 = vld [vmem:[%s1 + $0x78] sm:$0xf]
  %v242 = vld [vmem:[%s1 + $0x7c] sm:$0xf]
  %v243 = vld [vmem:[%s1 + $0x80] sm:$0xf]
  %v244 = vld [vmem:[%s1 + $0x84] sm:$0xf]
  %v245 = vld [vmem:[%s1 + $0x88] sm:$0xf]
  %v246 = vld [vmem:[%s1 + $0x8c] sm:$0xf]
  %v247 = vld [vmem:[%s1 + $0x90] sm:$0xf]
  %v248 = vld [vmem:[%s1 + $0x94] sm:$0xf]
  %v249 = vld [vmem:[%s1 + $0x98] sm:$0xf]
  %v250 = vld [vmem:[%s1 + $0x9c] sm:$0xf]
  %v251 = vld [vmem:[%s1 + $0xa0] sm:$0xf]
  %v252 = vld [vmem:[%s1 + $0xa4] sm:$0xf]
  %v253 = vld [vmem:[%s1 + $0xa8] sm:$0xf]
  %v254 = vld [vmem:[%s1 + $0xac] sm:$0xf]
  %v255 = vld [vmem:[%s1 + $0xb0] sm:$0xf]
  %v256 = vld [vmem:[%s1 + $0xb4] sm:$0xf]
  %v257 = vld [vmem:[%s1 + $0xb8] sm:$0xf]
  %v258 = vld [vmem:[%s1 + $0xbc] sm:$0xf]
  %v259 = vld [vmem:[%s1 + $0xc0] sm:$0xf]
  %v260 = vld [vmem:[#allocation2] sm:$0xff]
  %v261 = vld [vmem:[#allocation2 + $0x8] sm:$0xff]
  %v262 = vld [vmem:[#allocation2 + $0x10] sm:$0xff]
  %v263 = vld [vmem:[#allocation2 + $0x18] sm:$0xff]
  %v264 = vld [vmem:[#allocation2 + $0x20] sm:$0xff]
  %v265 = vld [vmem:[#allocation2 + $0x28] sm:$0xff]
  %v266 = vld [vmem:[#allocation2 + $0x30] sm:$0xff]
  %v267 = vld [vmem:[#allocation2 + $0x38] sm:$0xff]
  %v268 = vld [vmem:[#allocation2 + $0x40] sm:$0xff]
  %v269 = vld [vmem:[#allocation2 + $0x48] sm:$0xff]
  %v270 = vld [vmem:[#allocation2 + $0x50] sm:$0xff]
  %v271 = vld [vmem:[#allocation2 + $0x58] sm:$0xff]
  %v272 = vld [vmem:[#allocation2 + $0x60] sm:$0xff]
  %v273 = vld [vmem:[#allocation2 + $0x68] sm:$0xff]
  %v274 = vld [vmem:[#allocation2 + $0x70] sm:$0xff]
  %v275 = vld [vmem:[#allocation2 + $0x78] sm:$0xff]
  %v276 = vld [vmem:[#allocation2 + $0x80] sm:$0xff]
  %v277 = vld [vmem:[#allocation2 + $0x88] sm:$0xff]
  %v278 = vld [vmem:[#allocation2 + $0x90] sm:$0xff]
  %v279 = vld [vmem:[#allocation2 + $0x98] sm:$0xff]
  %v280 = vld [vmem:[#allocation2 + $0xa0] sm:$0xff]
  %v281 = vld [vmem:[#allocation2 + $0xa8] sm:$0xff]
  %v282 = vld [vmem:[#allocation2 + $0xb0] sm:$0xff]
  %v283 = vld [vmem:[#allocation2 + $0xb8] sm:$0xff]
  %v284 = vld [vmem:[#allocation2 + $0xc0] sm:$0xff]
  %v285 = vld [vmem:[#allocation2 + $0xc8] sm:$0xff]
  %v286 = vld [vmem:[#allocation2 + $0xd0] sm:$0xff]
  %v287 = vld [vmem:[#allocation2 + $0xd8] sm:$0xff]
  %v288 = vld [vmem:[#allocation2 + $0xe0] sm:$0xff]
  %v289 = vld [vmem:[#allocation2 + $0xe8] sm:$0xff]
  %v290 = vld [vmem:[#allocation2 + $0xf0] sm:$0xff]
  %v291 = vld [vmem:[#allocation2 + $0xf8] sm:$0xff]
  %v292 = vld [vmem:[#allocation2 + $0x100] sm:$0xff]
  %v293 = vld [vmem:[#allocation2 + $0x108] sm:$0xff]
  %v294 = vld [vmem:[#allocation2 + $0x110] sm:$0xff]
  %v295 = vld [vmem:[#allocation2 + $0x118] sm:$0xff]
  %v296 = vld [vmem:[#allocation2 + $0x120] sm:$0xff]
  %v297 = vld [vmem:[#allocation2 + $0x128] sm:$0xff]
  %v298 = vld [vmem:[#allocation2 + $0x130] sm:$0xff]
  %v299 = vld [vmem:[#allocation2 + $0x138] sm:$0xff]
  %v300 = vld [vmem:[#allocation2 + $0x140] sm:$0xff]
  %v301 = vld [vmem:[#allocation2 + $0x148] sm:$0xff]
  %v302 = vld [vmem:[#allocation2 + $0x150] sm:$0xff]
  %v303 = vld [vmem:[#allocation2 + $0x158] sm:$0xff]
  %v304 = vld [vmem:[#allocation2 + $0x160] sm:$0xff]
  %v305 = vld [vmem:[#allocation2 + $0x168] sm:$0xff]
  %v306 = vld [vmem:[#allocation2 + $0x170] sm:$0xff]
  %v307 = vld [vmem:[#allocation2 + $0x178] sm:$0xff]
  %v308 = vld [vmem:[#allocation2 + $0x180] sm:$0xff]
  %v309 = vld [vmem:[#allocation2 + $0x188] sm:$0xff]
  %v310 = vld [vmem:[#allocation2 + $0x190] sm:$0xff]
  %v311 = vld [vmem:[#allocation2 + $0x198] sm:$0xff]
  %v312 = vld [vmem:[#allocation2 + $0x1a0] sm:$0xff]
  %v313 = vld [vmem:[#allocation2 + $0x1a8] sm:$0xff]
  %v314 = vld [vmem:[#allocation2 + $0x1b0] sm:$0xff]
  %v315 = vld [vmem:[#allocation2 + $0x1b8] sm:$0xff]
  %v316 = vld [vmem:[#allocation2 + $0x1c0] sm:$0xff]
  %v317 = vld [vmem:[#allocation2 + $0x1c8] sm:$0xff]
  %v318 = vld [vmem:[#allocation2 + $0x1d0] sm:$0xff]
  %v319 = vld [vmem:[#allocation2 + $0x1d8] sm:$0xff]
  %v320 = vld [vmem:[#allocation2 + $0x1e0] sm:$0xff]
  %v321 = vld [vmem:[#allocation2 + $0x1e8] sm:$0xff]
  %v322 = vld [vmem:[#allocation2 + $0x1f0] sm:$0xff]
  %v323 = vld [vmem:[#allocation2 + $0x1f8] sm:$0xff]
  %v452 = vunpack.c.l.b16 %v83
  %v453 = vunpack.c.h.b16 %v83
  %v454 = vunpack.c.l.b16 %v84
  %v455 = vunpack.c.h.b16 %v84
  %v456 = vunpack.c.l.b16 %v85
  %v457 = vunpack.c.h.b16 %v85
  %v458 = vunpack.c.l.b16 %v86
  %v459 = vunpack.c.h.b16 %v86
  %v460 = vunpack.c.l.b16 %v87
  %v461 = vunpack.c.h.b16 %v87
  %v462 = vunpack.c.l.b16 %v88
  %v463 = vunpack.c.h.b16 %v88
  %v464 = vunpack.c.l.b16 %v89
  %v465 = vunpack.c.h.b16 %v89
  %v466 = vunpack.c.l.b16 %v90
  %v467 = vunpack.c.h.b16 %v90
  %v468 = vunpack.c.l.b16 %v91
  %v469 = vunpack.c.h.b16 %v91
  %v470 = vunpack.c.l.b16 %v92
  %v471 = vunpack.c.h.b16 %v92
  %v472 = vunpack.c.l.b16 %v93
  %v473 = vunpack.c.h.b16 %v93
  %v474 = vunpack.c.l.b16 %v94
  %v475 = vunpack.c.h.b16 %v94
  %v476 = vunpack.c.l.b16 %v95
  %v477 = vunpack.c.h.b16 %v95
  %v478 = vunpack.c.l.b16 %v96
  %v479 = vunpack.c.h.b16 %v96
  %v480 = vunpack.c.l.b16 %v97
  %v481 = vunpack.c.h.b16 %v97
  %v482 = vunpack.c.l.b16 %v98
  %v483 = vunpack.c.h.b16 %v98
  %v484 = vunpack.c.l.b16 %v99
  %v485 = vunpack.c.h.b16 %v99
  %v486 = vunpack.c.l.b16 %v100
  %v487 = vunpack.c.h.b16 %v100
  %v488 = vunpack.c.l.b16 %v101
  %v489 = vunpack.c.h.b16 %v101
  %v490 = vunpack.c.l.b16 %v102
  %v491 = vunpack.c.h.b16 %v102
  %v492 = vunpack.c.l.b16 %v103
  %v493 = vunpack.c.h.b16 %v103
  %v494 = vunpack.c.l.b16 %v104
  %v495 = vunpack.c.h.b16 %v104
  %v496 = vunpack.c.l.b16 %v105
  %v497 = vunpack.c.h.b16 %v105
  %v498 = vunpack.c.l.b16 %v106
  %v499 = vunpack.c.h.b16 %v106
  %v500 = vunpack.c.l.b16 %v107
  %v501 = vunpack.c.h.b16 %v107
  %v502 = vunpack.c.l.b16 %v108
  %v503 = vunpack.c.h.b16 %v108
  %v504 = vunpack.c.l.b16 %v109
  %v505 = vunpack.c.h.b16 %v109
  %v506 = vunpack.c.l.b16 %v110
  %v507 = vunpack.c.h.b16 %v110
  %v508 = vunpack.c.l.b16 %v111
  %v509 = vunpack.c.h.b16 %v111
  %v510 = vunpack.c.l.b16 %v112
  %v511 = vunpack.c.h.b16 %v112
  %v512 = vunpack.c.l.b16 %v113
  %v513 = vunpack.c.h.b16 %v113
  %v514 = vunpack.c.l.b16 %v114
  %v515 = vunpack.c.h.b16 %v114
  %v516 = vunpack.c.l.b16 %v115
  %v517 = vunpack.c.h.b16 %v115
  %v518 = vunpack.c.l.b16 %v116
  %v519 = vunpack.c.h.b16 %v116
  %v520 = vunpack.c.l.b16 %v117
  %v521 = vunpack.c.h.b16 %v117
  %v522 = vunpack.c.l.b16 %v118
  %v523 = vunpack.c.h.b16 %v118
  %v524 = vunpack.c.l.b16 %v119
  %v525 = vunpack.c.h.b16 %v119
  %v526 = vunpack.c.l.b16 %v120
  %v527 = vunpack.c.h.b16 %v120
  %v528 = vunpack.c.l.b16 %v121
  %v529 = vunpack.c.h.b16 %v121
  %v530 = vunpack.c.l.b16 %v122
  %v531 = vunpack.c.h.b16 %v122
  %v532 = vunpack.c.l.b16 %v123
  %v533 = vunpack.c.h.b16 %v123
  %v534 = vunpack.c.l.b16 %v124
  %v535 = vunpack.c.h.b16 %v124
  %v536 = vunpack.c.l.b16 %v125
  %v537 = vunpack.c.h.b16 %v125
  %v538 = vunpack.c.l.b16 %v126
  %v539 = vunpack.c.h.b16 %v126
  %v540 = vunpack.c.l.b16 %v127
  %v541 = vunpack.c.h.b16 %v127
  %v542 = vunpack.c.l.b16 %v128
  %v543 = vunpack.c.h.b16 %v128
  %v544 = vunpack.c.l.b16 %v129
  %v545 = vunpack.c.h.b16 %v129
  %v546 = vunpack.c.l.b16 %v130
  %v547 = vunpack.c.h.b16 %v130
  %v548 = vunpack.c.l.b16 %v131
  %v549 = vunpack.c.h.b16 %v131
  %v550 = vunpack.c.l.b16 %v132
  %v551 = vunpack.c.h.b16 %v132
  %v552 = vunpack.c.l.b16 %v133
  %v553 = vunpack.c.h.b16 %v133
  %v554 = vunpack.c.l.b16 %v134
  %v555 = vunpack.c.h.b16 %v134
  %v556 = vunpack.c.l.b16 %v135
  %v557 = vunpack.c.h.b16 %v135
  %v558 = vunpack.c.l.b16 %v136
  %v559 = vunpack.c.h.b16 %v136
  %v560 = vunpack.c.l.b16 %v137
  %v561 = vunpack.c.h.b16 %v137
  %v562 = vunpack.c.l.b16 %v138
  %v563 = vunpack.c.h.b16 %v138
  %v564 = vunpack.c.l.b16 %v139
  %v565 = vunpack.c.h.b16 %v139
  %v566 = vunpack.c.l.b16 %v140
  %v567 = vunpack.c.h.b16 %v140
  %v568 = vunpack.c.l.b16 %v141
  %v569 = vunpack.c.h.b16 %v141
  %v570 = vunpack.c.l.b16 %v142
  %v571 = vunpack.c.h.b16 %v142
  %v572 = vunpack.c.l.b16 %v143
  %v573 = vunpack.c.h.b16 %v143
  %v574 = vunpack.c.l.b16 %v144
  %v575 = vunpack.c.h.b16 %v144
  %v576 = vunpack.c.l.b16 %v145
  %v577 = vunpack.c.h.b16 %v145
  %v578 = vunpack.c.l.b16 %v146
  %v579 = vunpack.c.h.b16 %v146
  %v580 = vunpack.c.l.b16 %v147
  %v581 = vunpack.c.h.b16 %v147
  %v582 = vunpack.c.l.b16 %v148
  %v583 = vunpack.c.h.b16 %v148
  %v584 = vunpack.c.l.b16 %v149
  %v585 = vunpack.c.h.b16 %v149
  %v586 = vunpack.c.l.b16 %v150
  %v587 = vunpack.c.h.b16 %v150
  %v588 = vunpack.c.l.b16 %v151
  %v589 = vunpack.c.h.b16 %v151
  %v590 = vunpack.c.l.b16 %v152
  %v591 = vunpack.c.h.b16 %v152
  %v592 = vunpack.c.l.b16 %v153
  %v593 = vunpack.c.h.b16 %v153
  %v594 = vunpack.c.l.b16 %v154
  %v595 = vunpack.c.h.b16 %v154
  %v596 = vunpack.c.l.b16 %v155
  %v597 = vunpack.c.h.b16 %v155
  %v598 = vunpack.c.l.b16 %v156
  %v599 = vunpack.c.h.b16 %v156
  %v600 = vunpack.c.l.b16 %v157
  %v601 = vunpack.c.h.b16 %v157
  %v602 = vunpack.c.l.b16 %v158
  %v603 = vunpack.c.h.b16 %v158
  %v604 = vunpack.c.l.b16 %v159
  %v605 = vunpack.c.h.b16 %v159
  %v606 = vunpack.c.l.b16 %v160
  %v607 = vunpack.c.h.b16 %v160
  %v608 = vunpack.c.l.b16 %v161
  %v609 = vunpack.c.h.b16 %v161
  %v610 = vunpack.c.l.b16 %v162
  %v611 = vunpack.c.h.b16 %v162
  %v612 = vunpack.c.l.b16 %v163
  %v613 = vunpack.c.h.b16 %v163
  %v614 = vunpack.c.l.b16 %v164
  %v615 = vunpack.c.h.b16 %v164
  %v616 = vunpack.c.l.b16 %v165
  %v617 = vunpack.c.h.b16 %v165
  %v618 = vunpack.c.l.b16 %v166
  %v619 = vunpack.c.h.b16 %v166
  %v620 = vunpack.c.l.b16 %v167
  %v621 = vunpack.c.h.b16 %v167
  %v622 = vunpack.c.l.b16 %v168
  %v623 = vunpack.c.h.b16 %v168
  %v624 = vunpack.c.l.b16 %v169
  %v625 = vunpack.c.h.b16 %v169
  %v626 = vunpack.c.l.b16 %v170
  %v627 = vunpack.c.h.b16 %v170
  %v628 = vunpack.c.l.b16 %v171
  %v629 = vunpack.c.h.b16 %v171
  %v630 = vunpack.c.l.b16 %v172
  %v631 = vunpack.c.h.b16 %v172
  %v632 = vunpack.c.l.b16 %v173
  %v633 = vunpack.c.h.b16 %v173
  %v634 = vunpack.c.l.b16 %v174
  %v635 = vunpack.c.h.b16 %v174
  %v636 = vunpack.c.l.b16 %v175
  %v637 = vunpack.c.h.b16 %v175
  %v638 = vunpack.c.l.b16 %v176
  %v639 = vunpack.c.h.b16 %v176
  %v640 = vunpack.c.l.b16 %v177
  %v641 = vunpack.c.h.b16 %v177
  %v642 = vunpack.c.l.b16 %v178
  %v643 = vunpack.c.h.b16 %v178
  %v644 = vunpack.c.l.b16 %v179
  %v645 = vunpack.c.h.b16 %v179
  %v646 = vunpack.c.l.b16 %v180
  %v647 = vunpack.c.h.b16 %v180
  %v648 = vunpack.c.l.b16 %v181
  %v649 = vunpack.c.h.b16 %v181
  %v650 = vunpack.c.l.b16 %v182
  %v651 = vunpack.c.h.b16 %v182
  %v652 = vunpack.c.l.b16 %v183
  %v653 = vunpack.c.h.b16 %v183
  %v654 = vunpack.c.l.b16 %v184
  %v655 = vunpack.c.h.b16 %v184
  %v656 = vunpack.c.l.b16 %v185
  %v657 = vunpack.c.h.b16 %v185
  %v658 = vunpack.c.l.b16 %v186
  %v659 = vunpack.c.h.b16 %v186
  %v660 = vunpack.c.l.b16 %v187
  %v661 = vunpack.c.h.b16 %v187
  %v662 = vunpack.c.l.b16 %v188
  %v663 = vunpack.c.h.b16 %v188
  %v664 = vunpack.c.l.b16 %v189
  %v665 = vunpack.c.h.b16 %v189
  %v666 = vunpack.c.l.b16 %v190
  %v667 = vunpack.c.h.b16 %v190
  %v668 = vunpack.c.l.b16 %v191
  %v669 = vunpack.c.h.b16 %v191
  %v670 = vunpack.c.l.b16 %v192
  %v671 = vunpack.c.h.b16 %v192
  %v672 = vunpack.c.l.b16 %v193
  %v673 = vunpack.c.h.b16 %v193
  %v674 = vunpack.c.l.b16 %v194
  %v675 = vunpack.c.h.b16 %v194
  %v676 = vunpack.c.l.b16 %v195
  %v677 = vunpack.c.h.b16 %v195
  %v678 = vunpack.c.l.b16 %v196
  %v679 = vunpack.c.h.b16 %v196
  %v680 = vunpack.c.l.b16 %v197
  %v681 = vunpack.c.h.b16 %v197
  %v682 = vunpack.c.l.b16 %v198
  %v683 = vunpack.c.h.b16 %v198
  %v684 = vunpack.c.l.b16 %v199
  %v685 = vunpack.c.h.b16 %v199
  %v686 = vunpack.c.l.b16 %v200
  %v687 = vunpack.c.h.b16 %v200
  %v688 = vunpack.c.l.b16 %v201
  %v689 = vunpack.c.h.b16 %v201
  %v690 = vunpack.c.l.b16 %v202
  %v691 = vunpack.c.h.b16 %v202
  %v692 = vunpack.c.l.b16 %v203
  %v693 = vunpack.c.h.b16 %v203
  %v694 = vunpack.c.l.b16 %v204
  %v695 = vunpack.c.h.b16 %v204
  %v696 = vunpack.c.l.b16 %v205
  %v697 = vunpack.c.h.b16 %v205
  %v698 = vunpack.c.l.b16 %v206
  %v699 = vunpack.c.h.b16 %v206
  %v700 = vunpack.c.l.b16 %v207
  %v701 = vunpack.c.h.b16 %v207
  %v702 = vunpack.c.l.b16 %v208
  %v703 = vunpack.c.h.b16 %v208
  %v704 = vunpack.c.l.b16 %v209
  %v705 = vunpack.c.h.b16 %v209
  %v706 = vunpack.c.l.b16 %v210
  %v707 = vunpack.c.h.b16 %v210
  %v708 = vpack.c.b16 %v456, %v452
  %v709 = vpack.c.b16 %v457, %v453
  %v710 = vpack.c.b16 %v458, %v454
  %v711 = vpack.c.b16 %v459, %v455
  %v712 = vpack.c.b16 %v464, %v460
  %v713 = vpack.c.b16 %v465, %v461
  %v714 = vpack.c.b16 %v466, %v462
  %v715 = vpack.c.b16 %v467, %v463
  %v716 = vpack.c.b16 %v472, %v468
  %v717 = vpack.c.b16 %v473, %v469
  %v718 = vpack.c.b16 %v474, %v470
  %v719 = vpack.c.b16 %v475, %v471
  %v720 = vpack.c.b16 %v480, %v476
  %v721 = vpack.c.b16 %v481, %v477
  %v722 = vpack.c.b16 %v482, %v478
  %v723 = vpack.c.b16 %v483, %v479
  %v724 = vpack.c.b16 %v488, %v484
  %v725 = vpack.c.b16 %v489, %v485
  %v726 = vpack.c.b16 %v490, %v486
  %v727 = vpack.c.b16 %v491, %v487
  %v728 = vpack.c.b16 %v496, %v492
  %v729 = vpack.c.b16 %v497, %v493
  %v730 = vpack.c.b16 %v498, %v494
  %v731 = vpack.c.b16 %v499, %v495
  %v732 = vpack.c.b16 %v504, %v500
  %v733 = vpack.c.b16 %v505, %v501
  %v734 = vpack.c.b16 %v506, %v502
  %v735 = vpack.c.b16 %v507, %v503
  %v736 = vpack.c.b16 %v512, %v508
  %v737 = vpack.c.b16 %v513, %v509
  %v738 = vpack.c.b16 %v514, %v510
  %v739 = vpack.c.b16 %v515, %v511
  %v740 = vpack.c.b16 %v520, %v516
  %v741 = vpack.c.b16 %v521, %v517
  %v742 = vpack.c.b16 %v522, %v518
  %v743 = vpack.c.b16 %v523, %v519
  %v744 = vpack.c.b16 %v528, %v524
  %v745 = vpack.c.b16 %v529, %v525
  %v746 = vpack.c.b16 %v530, %v526
  %v747 = vpack.c.b16 %v531, %v527
  %v748 = vpack.c.b16 %v536, %v532
  %v749 = vpack.c.b16 %v537, %v533
  %v750 = vpack.c.b16 %v538, %v534
  %v751 = vpack.c.b16 %v539, %v535
  %v752 = vpack.c.b16 %v544, %v540
  %v753 = vpack.c.b16 %v545, %v541
  %v754 = vpack.c.b16 %v546, %v542
  %v755 = vpack.c.b16 %v547, %v543
  %v756 = vpack.c.b16 %v552, %v548
  %v757 = vpack.c.b16 %v553, %v549
  %v758 = vpack.c.b16 %v554, %v550
  %v759 = vpack.c.b16 %v555, %v551
  %v760 = vpack.c.b16 %v560, %v556
  %v761 = vpack.c.b16 %v561, %v557
  %v762 = vpack.c.b16 %v562, %v558
  %v763 = vpack.c.b16 %v563, %v559
  %v764 = vpack.c.b16 %v568, %v564
  %v765 = vpack.c.b16 %v569, %v565
  %v766 = vpack.c.b16 %v570, %v566
  %v767 = vpack.c.b16 %v571, %v567
  %v768 = vpack.c.b16 %v576, %v572
  %v769 = vpack.c.b16 %v577, %v573
  %v770 = vpack.c.b16 %v578, %v574
  %v771 = vpack.c.b16 %v579, %v575
  %v772 = vpack.c.b16 %v584, %v580
  %v773 = vpack.c.b16 %v585, %v581
  %v774 = vpack.c.b16 %v586, %v582
  %v775 = vpack.c.b16 %v587, %v583
  %v776 = vpack.c.b16 %v592, %v588
  %v777 = vpack.c.b16 %v593, %v589
  %v778 = vpack.c.b16 %v594, %v590
  %v779 = vpack.c.b16 %v595, %v591
  %v780 = vpack.c.b16 %v600, %v596
  %v781 = vpack.c.b16 %v601, %v597
  %v782 = vpack.c.b16 %v602, %v598
  %v783 = vpack.c.b16 %v603, %v599
  %v784 = vpack.c.b16 %v608, %v604
  %v785 = vpack.c.b16 %v609, %v605
  %v786 = vpack.c.b16 %v610, %v606
  %v787 = vpack.c.b16 %v611, %v607
  %v788 = vpack.c.b16 %v616, %v612
  %v789 = vpack.c.b16 %v617, %v613
  %v790 = vpack.c.b16 %v618, %v614
  %v791 = vpack.c.b16 %v619, %v615
  %v792 = vpack.c.b16 %v624, %v620
  %v793 = vpack.c.b16 %v625, %v621
  %v794 = vpack.c.b16 %v626, %v622
  %v795 = vpack.c.b16 %v627, %v623
  %v796 = vpack.c.b16 %v632, %v628
  %v797 = vpack.c.b16 %v633, %v629
  %v798 = vpack.c.b16 %v634, %v630
  %v799 = vpack.c.b16 %v635, %v631
  %v800 = vpack.c.b16 %v640, %v636
  %v801 = vpack.c.b16 %v641, %v637
  %v802 = vpack.c.b16 %v642, %v638
  %v803 = vpack.c.b16 %v643, %v639
  %v804 = vpack.c.b16 %v648, %v644
  %v805 = vpack.c.b16 %v649, %v645
  %v806 = vpack.c.b16 %v650, %v646
  %v807 = vpack.c.b16 %v651, %v647
  %v808 = vpack.c.b16 %v656, %v652
  %v809 = vpack.c.b16 %v657, %v653
  %v810 = vpack.c.b16 %v658, %v654
  %v811 = vpack.c.b16 %v659, %v655
  %v812 = vpack.c.b16 %v664, %v660
  %v813 = vpack.c.b16 %v665, %v661
  %v814 = vpack.c.b16 %v666, %v662
  %v815 = vpack.c.b16 %v667, %v663
  %v816 = vpack.c.b16 %v672, %v668
  %v817 = vpack.c.b16 %v673, %v669
  %v818 = vpack.c.b16 %v674, %v670
  %v819 = vpack.c.b16 %v675, %v671
  %v820 = vpack.c.b16 %v680, %v676
  %v821 = vpack.c.b16 %v681, %v677
  %v822 = vpack.c.b16 %v682, %v678
  %v823 = vpack.c.b16 %v683, %v679
  %v824 = vpack.c.b16 %v688, %v684
  %v825 = vpack.c.b16 %v689, %v685
  %v826 = vpack.c.b16 %v690, %v686
  %v827 = vpack.c.b16 %v691, %v687
  %v828 = vpack.c.b16 %v696, %v692
  %v829 = vpack.c.b16 %v697, %v693
  %v830 = vpack.c.b16 %v698, %v694
  %v831 = vpack.c.b16 %v699, %v695
  %v832 = vpack.c.b16 %v704, %v700
  %v833 = vpack.c.b16 %v705, %v701
  %v834 = vpack.c.b16 %v706, %v702
  %v835 = vpack.c.b16 %v707, %v703
  %v981 = vunpack.c.l.b16 %v211
  %v982 = vunpack.c.l.b16 %v212
  %v983 = vunpack.c.l.b16 %v213
  %v984 = vunpack.c.l.b16 %v214
  %v985 = vunpack.c.l.b16 %v215
  %v986 = vunpack.c.l.b16 %v216
  %v987 = vunpack.c.l.b16 %v217
  %v988 = vunpack.c.l.b16 %v218
  %v989 = vunpack.c.l.b16 %v219
  %v990 = vunpack.c.l.b16 %v220
  %v991 = vunpack.c.l.b16 %v221
  %v992 = vunpack.c.l.b16 %v222
  %v993 = vunpack.c.l.b16 %v223
  %v994 = vunpack.c.l.b16 %v224
  %v995 = vunpack.c.l.b16 %v225
  %v996 = vunpack.c.l.b16 %v226
  %v997 = vunpack.c.l.b16 %v227
  %v998 = vunpack.c.l.b16 %v228
  %v999 = vunpack.c.l.b16 %v229
  %v1000 = vunpack.c.l.b16 %v230
  %v1001 = vunpack.c.l.b16 %v231
  %v1002 = vunpack.c.l.b16 %v232
  %v1003 = vunpack.c.l.b16 %v233
  %v1004 = vunpack.c.l.b16 %v234
  %v1005 = vunpack.c.l.b16 %v235
  %v1006 = vunpack.c.l.b16 %v236
  %v1007 = vunpack.c.l.b16 %v237
  %v1008 = vunpack.c.l.b16 %v238
  %v1009 = vunpack.c.l.b16 %v239
  %v1010 = vunpack.c.l.b16 %v240
  %v1011 = vunpack.c.l.b16 %v241
  %v1012 = vunpack.c.l.b16 %v242
  %v1013 = vunpack.c.l.b16 %v243
  %v1014 = vunpack.c.l.b16 %v244
  %v1015 = vunpack.c.l.b16 %v245
  %v1016 = vunpack.c.l.b16 %v246
  %v1017 = vunpack.c.l.b16 %v247
  %v1018 = vunpack.c.l.b16 %v248
  %v1019 = vunpack.c.l.b16 %v249
  %v1020 = vunpack.c.l.b16 %v250
  %v1021 = vunpack.c.l.b16 %v251
  %v1022 = vunpack.c.l.b16 %v252
  %v1023 = vunpack.c.l.b16 %v253
  %v1024 = vunpack.c.l.b16 %v254
  %v1025 = vunpack.c.l.b16 %v255
  %v1026 = vunpack.c.l.b16 %v256
  %v1027 = vunpack.c.l.b16 %v257
  %v1028 = vunpack.c.l.b16 %v258
  %v1029 = vunpack.c.l.b16 %v259
  %v1030 = vpack.c.b16 %v982, %v981
  %v1031 = vpack.c.b16 %v984, %v983
  %v1032 = vpack.c.b16 %v986, %v985
  %v1033 = vpack.c.b16 %v988, %v987
  %v1034 = vpack.c.b16 %v990, %v989
  %v1035 = vpack.c.b16 %v992, %v991
  %v1036 = vpack.c.b16 %v994, %v993
  %v1037 = vpack.c.b16 %v996, %v995
  %v1038 = vpack.c.b16 %v998, %v997
  %v1039 = vpack.c.b16 %v1000, %v999
  %v1040 = vpack.c.b16 %v1002, %v1001
  %v1041 = vpack.c.b16 %v1004, %v1003
  %v1042 = vpack.c.b16 %v1006, %v1005
  %v1043 = vpack.c.b16 %v1008, %v1007
  %v1044 = vpack.c.b16 %v1010, %v1009
  %v1045 = vpack.c.b16 %v1012, %v1011
  %v1046 = vpack.c.b16 %v1014, %v1013
  %v1047 = vpack.c.b16 %v1016, %v1015
  %v1048 = vpack.c.b16 %v1018, %v1017
  %v1049 = vpack.c.b16 %v1020, %v1019
  %v1050 = vpack.c.b16 %v1022, %v1021
  %v1051 = vpack.c.b16 %v1024, %v1023
  %v1052 = vpack.c.b16 %v1026, %v1025
  %v1053 = vpack.c.b16 %v1028, %v1027
  %v1054 = vpack.c.b16 %v1029, %v1029
  %vm1079 = vcmask 64512
  %v1081 = vsel %vm1079, %v711, 0
  %v1084 = vsel %vm1079, %v715, 0
  %v1087 = vsel %vm1079, %v719, 0
  %v1090 = vsel %vm1079, %v723, 0
  %v1093 = vsel %vm1079, %v727, 0
  %v1096 = vsel %vm1079, %v731, 0
  %v1099 = vsel %vm1079, %v735, 0
  %v1102 = vsel %vm1079, %v739, 0
  %v1105 = vsel %vm1079, %v743, 0
  %v1108 = vsel %vm1079, %v747, 0
  %v1111 = vsel %vm1079, %v751, 0
  %v1114 = vsel %vm1079, %v755, 0
  %v1117 = vsel %vm1079, %v759, 0
  %v1120 = vsel %vm1079, %v763, 0
  %v1123 = vsel %vm1079, %v767, 0
  %v1126 = vsel %vm1079, %v771, 0
  %v1129 = vsel %vm1079, %v775, 0
  %v1132 = vsel %vm1079, %v779, 0
  %v1135 = vsel %vm1079, %v783, 0
  %v1138 = vsel %vm1079, %v787, 0
  %v1141 = vsel %vm1079, %v791, 0
  %v1144 = vsel %vm1079, %v795, 0
  %v1147 = vsel %vm1079, %v799, 0
  %v1150 = vsel %vm1079, %v803, 0
  %v1153 = vsel %vm1079, %v807, 0
  %v1156 = vsel %vm1079, %v811, 0
  %v1159 = vsel %vm1079, %v815, 0
  %v1162 = vsel %vm1079, %v819, 0
  %v1165 = vsel %vm1079, %v823, 0
  %v1168 = vsel %vm1079, %v827, 0
  %v1171 = vsel %vm1079, %v831, 0
  %v1174 = vsel %vm1079, %v835, 0
  %vm1176 = vcmask 1043456
  %v1178 = vsel %vm1176, %v1054, 0
  %1180 = vmatprep.subr.bf16.mxu0 0
  %1181 = vmatpush1.bf16.msra.mxu0 %v1030
  %1182 = vmatprep.subr.bf16.mxu0 0
  %1183 = vmatpush1.bf16.msra.mxu0 %v1031
  %1184 = vmatprep.subr.bf16.mxu0 0
  %1185 = vmatpush1.bf16.msra.mxu0 %v1032
  %1186 = vmatprep.subr.bf16.mxu0 0
  %1187 = vmatpush1.bf16.msra.mxu0 %v1033
  %1188 = vmatprep.subr.bf16.mxu0 0
  %1189 = vmatpush1.bf16.msra.mxu0 %v1034
  %1190 = vmatprep.subr.bf16.mxu0 0
  %1191 = vmatpush1.bf16.msra.mxu0 %v1035
  %1192 = vmatprep.subr.bf16.mxu0 0
  %1193 = vmatpush1.bf16.msra.mxu0 %v1036
  %1194 = vmatprep.subr.bf16.mxu0 0
  %1195 = vmatpush1.bf16.msra.mxu0 %v1037
  %1196 = vmatprep.subr.bf16.mxu0 0
  %1197 = vmatpush1.bf16.msra.mxu0 %v1038
  %1198 = vmatprep.subr.bf16.mxu0 0
  %1199 = vmatpush1.bf16.msra.mxu0 %v1039
  %1200 = vmatprep.subr.bf16.mxu0 0
  %1201 = vmatpush1.bf16.msra.mxu0 %v1040
  %1202 = vmatprep.subr.bf16.mxu0 0
  %1203 = vmatpush1.bf16.msra.mxu0 %v1041
  %1204 = vmatprep.subr.bf16.mxu0 0
  %1205 = vmatpush1.bf16.msra.mxu0 %v1042
  %1206 = vmatprep.subr.bf16.mxu0 0
  %1207 = vmatpush1.bf16.msra.mxu0 %v1043
  %1208 = vmatprep.subr.bf16.mxu0 0
  %1209 = vmatpush1.bf16.msra.mxu0 %v1044
  %1210 = vmatprep.subr.bf16.mxu0 0
  %1211 = vmatpush1.bf16.msra.mxu0 %v1045
  %1212 = vmatprep.mubr.bf16.mxu0 %v709
  %1213 = vmatmul.mubr.bf16.gmra.mrb[0].mxu0 %v708
  %v1214 = vpop.f32.mrb[0].mxu0
  %v1215 = vadd.f32 0.0, %v1214
  %v1216 = vpop.f32.mrb[0].mxu0
  %v1217 = vpop.f32.mrb[0].mxu0
  %v1218 = vadd.f32 0.0, %v1217
  %v1219 = vpop.f32.mrb[0].mxu0
  %1220 = vmatprep.mubr.bf16.mxu0 %v713
  %1221 = vmatmul.mubr.bf16.gmra.mrb[0].mxu0 %v712
  %v1222 = vpop.f32.mrb[0].mxu0
  %v1223 = vadd.f32 0.0, %v1222
  %v1224 = vpop.f32.mrb[0].mxu0
  %v1225 = vpop.f32.mrb[0].mxu0
  %v1226 = vadd.f32 0.0, %v1225
  %v1227 = vpop.f32.mrb[0].mxu0
  %1228 = vmatprep.mubr.bf16.mxu0 %v717
  %1229 = vmatmul.mubr.bf16.gmra.mrb[0].mxu0 %v716
  %v1230 = vpop.f32.mrb[0].mxu0
  %v1231 = vadd.f32 0.0, %v1230
  %v1232 = vpop.f32.mrb[0].mxu0
  %v1233 = vpop.f32.mrb[0].mxu0
  %v1234 = vadd.f32 0.0, %v1233
  %v1235 = vpop.f32.mrb[0].mxu0
  %1236 = vmatprep.mubr.bf16.mxu0 %v721
  %1237 = vmatmul.mubr.bf16.gmra.mrb[0].mxu0 %v720
  %v1238 = vpop.f32.mrb[0].mxu0
  %v1239 = vadd.f32 0.0, %v1238
  %v1240 = vpop.f32.mrb[0].mxu0
  %v1241 = vpop.f32.mrb[0].mxu0
  %v1242 = vadd.f32 0.0, %v1241
  %v1243 = vpop.f32.mrb[0].mxu0
  %1244 = vmatprep.mubr.bf16.mxu0 %v725
  %1245 = vmatmul.mubr.bf16.gmra.mrb[0].mxu0 %v724
  %v1246 = vpop.f32.mrb[0].mxu0
  %v1247 = vadd.f32 0.0, %v1246
  %v1248 = vpop.f32.mrb[0].mxu0
  %v1249 = vpop.f32.mrb[0].mxu0
  %v1250 = vadd.f32 0.0, %v1249
  %v1251 = vpop.f32.mrb[0].mxu0
  %1252 = vmatprep.mubr.bf16.mxu0 %v729
  %1253 = vmatmul.mubr.bf16.gmra.mrb[0].mxu0 %v728
  %v1254 = vpop.f32.mrb[0].mxu0
  %v1255 = vadd.f32 0.0, %v1254
  %v1256 = vpop.f32.mrb[0].mxu0
  %v1257 = vpop.f32.mrb[0].mxu0
  %v1258 = vadd.f32 0.0, %v1257
  %v1259 = vpop.f32.mrb[0].mxu0
  %1260 = vmatprep.mubr.bf16.mxu0 %v733
  %1261 = vmatmul.mubr.bf16.gmra.mrb[0].mxu0 %v732
  %v1262 = vpop.f32.mrb[0].mxu0
  %v1263 = vadd.f32 0.0, %v1262
  %v1264 = vpop.f32.mrb[0].mxu0
  %v1265 = vpop.f32.mrb[0].mxu0
  %v1266 = vadd.f32 0.0, %v1265
  %v1267 = vpop.f32.mrb[0].mxu0
  %1268 = vmatprep.mubr.bf16.mxu0 %v737
  %1269 = vmatmul.mubr.bf16.gmra.mrb[0].mxu0 %v736
  %v1270 = vpop.f32.mrb[0].mxu0
  %v1271 = vadd.f32 0.0, %v1270
  %v1272 = vpop.f32.mrb[0].mxu0
  %v1273 = vpop.f32.mrb[0].mxu0
  %v1274 = vadd.f32 0.0, %v1273
  %v1275 = vpop.f32.mrb[0].mxu0
  %1276 = vmatprep.mubr.bf16.mxu0 %v741
  %1277 = vmatmul.mubr.bf16.gmra.mrb[0].mxu0 %v740
  %v1278 = vpop.f32.mrb[0].mxu0
  %v1279 = vadd.f32 0.0, %v1278
  %v1280 = vpop.f32.mrb[0].mxu0
  %v1281 = vpop.f32.mrb[0].mxu0
  %v1282 = vadd.f32 0.0, %v1281
  %v1283 = vpop.f32.mrb[0].mxu0
  %1284 = vmatprep.mubr.bf16.mxu0 %v745
  %1285 = vmatmul.mubr.bf16.gmra.mrb[0].mxu0 %v744
  %v1286 = vpop.f32.mrb[0].mxu0
  %v1287 = vadd.f32 0.0, %v1286
  %v1288 = vpop.f32.mrb[0].mxu0
  %v1289 = vpop.f32.mrb[0].mxu0
  %v1290 = vadd.f32 0.0, %v1289
  %v1291 = vpop.f32.mrb[0].mxu0
  %1292 = vmatprep.mubr.bf16.mxu0 %v749
  %1293 = vmatmul.mubr.bf16.gmra.mrb[0].mxu0 %v748
  %v1294 = vpop.f32.mrb[0].mxu0
  %v1295 = vadd.f32 0.0, %v1294
  %v1296 = vpop.f32.mrb[0].mxu0
  %v1297 = vpop.f32.mrb[0].mxu0
  %v1298 = vadd.f32 0.0, %v1297
  %v1299 = vpop.f32.mrb[0].mxu0
  %1300 = vmatprep.mubr.bf16.mxu0 %v753
  %1301 = vmatmul.mubr.bf16.gmra.mrb[0].mxu0 %v752
  %v1302 = vpop.f32.mrb[0].mxu0
  %v1303 = vadd.f32 0.0, %v1302
  %v1304 = vpop.f32.mrb[0].mxu0
  %v1305 = vpop.f32.mrb[0].mxu0
  %v1306 = vadd.f32 0.0, %v1305
  %v1307 = vpop.f32.mrb[0].mxu0
  %1308 = vmatprep.mubr.bf16.mxu0 %v757
  %1309 = vmatmul.mubr.bf16.gmra.mrb[0].mxu0 %v756
  %v1310 = vpop.f32.mrb[0].mxu0
  %v1311 = vadd.f32 0.0, %v1310
  %v1312 = vpop.f32.mrb[0].mxu0
  %v1313 = vpop.f32.mrb[0].mxu0
  %v1314 = vadd.f32 0.0, %v1313
  %v1315 = vpop.f32.mrb[0].mxu0
  %1316 = vmatprep.mubr.bf16.mxu0 %v761
  %1317 = vmatmul.mubr.bf16.gmra.mrb[0].mxu0 %v760
  %v1318 = vpop.f32.mrb[0].mxu0
  %v1319 = vadd.f32 0.0, %v1318
  %v1320 = vpop.f32.mrb[0].mxu0
  %v1321 = vpop.f32.mrb[0].mxu0
  %v1322 = vadd.f32 0.0, %v1321
  %v1323 = vpop.f32.mrb[0].mxu0
  %1324 = vmatprep.mubr.bf16.mxu0 %v765
  %1325 = vmatmul.mubr.bf16.gmra.mrb[0].mxu0 %v764
  %v1326 = vpop.f32.mrb[0].mxu0
  %v1327 = vadd.f32 0.0, %v1326
  %v1328 = vpop.f32.mrb[0].mxu0
  %v1329 = vpop.f32.mrb[0].mxu0
  %v1330 = vadd.f32 0.0, %v1329
  %v1331 = vpop.f32.mrb[0].mxu0
  %1332 = vmatprep.mubr.bf16.mxu0 %v769
  %1333 = vmatmul.mubr.bf16.gmra.mrb[0].mxu0 %v768
  %v1334 = vpop.f32.mrb[0].mxu0
  %v1335 = vadd.f32 0.0, %v1334
  %v1336 = vpop.f32.mrb[0].mxu0
  %v1337 = vpop.f32.mrb[0].mxu0
  %v1338 = vadd.f32 0.0, %v1337
  %v1339 = vpop.f32.mrb[0].mxu0
  %1340 = vmatprep.mubr.bf16.mxu0 %v773
  %1341 = vmatmul.mubr.bf16.gmra.mrb[0].mxu0 %v772
  %v1342 = vpop.f32.mrb[0].mxu0
  %v1343 = vadd.f32 0.0, %v1342
  %v1344 = vpop.f32.mrb[0].mxu0
  %v1345 = vpop.f32.mrb[0].mxu0
  %v1346 = vadd.f32 0.0, %v1345
  %v1347 = vpop.f32.mrb[0].mxu0
  %1348 = vmatprep.mubr.bf16.mxu0 %v777
  %1349 = vmatmul.mubr.bf16.gmra.mrb[0].mxu0 %v776
  %v1350 = vpop.f32.mrb[0].mxu0
  %v1351 = vadd.f32 0.0, %v1350
  %v1352 = vpop.f32.mrb[0].mxu0
  %v1353 = vpop.f32.mrb[0].mxu0
  %v1354 = vadd.f32 0.0, %v1353
  %v1355 = vpop.f32.mrb[0].mxu0
  %1356 = vmatprep.mubr.bf16.mxu0 %v781
  %1357 = vmatmul.mubr.bf16.gmra.mrb[0].mxu0 %v780
  %v1358 = vpop.f32.mrb[0].mxu0
  %v1359 = vadd.f32 0.0, %v1358
  %v1360 = vpop.f32.mrb[0].mxu0
  %v1361 = vpop.f32.mrb[0].mxu0
  %v1362 = vadd.f32 0.0, %v1361
  %v1363 = vpop.f32.mrb[0].mxu0
  %1364 = vmatprep.mubr.bf16.mxu0 %v785
  %1365 = vmatmul.mubr.bf16.gmra.mrb[0].mxu0 %v784
  %v1366 = vpop.f32.mrb[0].mxu0
  %v1367 = vadd.f32 0.0, %v1366
  %v1368 = vpop.f32.mrb[0].mxu0
  %v1369 = vpop.f32.mrb[0].mxu0
  %v1370 = vadd.f32 0.0, %v1369
  %v1371 = vpop.f32.mrb[0].mxu0
  %1372 = vmatprep.mubr.bf16.mxu0 %v789
  %1373 = vmatmul.mubr.bf16.gmra.mrb[0].mxu0 %v788
  %v1374 = vpop.f32.mrb[0].mxu0
  %v1375 = vadd.f32 0.0, %v1374
  %v1376 = vpop.f32.mrb[0].mxu0
  %v1377 = vpop.f32.mrb[0].mxu0
  %v1378 = vadd.f32 0.0, %v1377
  %v1379 = vpop.f32.mrb[0].mxu0
  %1380 = vmatprep.mubr.bf16.mxu0 %v793
  %1381 = vmatmul.mubr.bf16.gmra.mrb[0].mxu0 %v792
  %v1382 = vpop.f32.mrb[0].mxu0
  %v1383 = vadd.f32 0.0, %v1382
  %v1384 = vpop.f32.mrb[0].mxu0
  %v1385 = vpop.f32.mrb[0].mxu0
  %v1386 = vadd.f32 0.0, %v1385
  %v1387 = vpop.f32.mrb[0].mxu0
  %1388 = vmatprep.mubr.bf16.mxu0 %v797
  %1389 = vmatmul.mubr.bf16.gmra.mrb[0].mxu0 %v796
  %v1390 = vpop.f32.mrb[0].mxu0
  %v1391 = vadd.f32 0.0, %v1390
  %v1392 = vpop.f32.mrb[0].mxu0
  %v1393 = vpop.f32.mrb[0].mxu0
  %v1394 = vadd.f32 0.0, %v1393
  %v1395 = vpop.f32.mrb[0].mxu0
  %1396 = vmatprep.mubr.bf16.mxu0 %v801
  %1397 = vmatmul.mubr.bf16.gmra.mrb[0].mxu0 %v800
  %v1398 = vpop.f32.mrb[0].mxu0
  %v1399 = vadd.f32 0.0, %v1398
  %v1400 = vpop.f32.mrb[0].mxu0
  %v1401 = vpop.f32.mrb[0].mxu0
  %v1402 = vadd.f32 0.0, %v1401
  %v1403 = vpop.f32.mrb[0].mxu0
  %1404 = vmatprep.mubr.bf16.mxu0 %v805
  %1405 = vmatmul.mubr.bf16.gmra.mrb[0].mxu0 %v804
  %v1406 = vpop.f32.mrb[0].mxu0
  %v1407 = vadd.f32 0.0, %v1406
  %v1408 = vpop.f32.mrb[0].mxu0
  %v1409 = vpop.f32.mrb[0].mxu0
  %v1410 = vadd.f32 0.0, %v1409
  %v1411 = vpop.f32.mrb[0].mxu0
  %1412 = vmatprep.mubr.bf16.mxu0 %v809
  %1413 = vmatmul.mubr.bf16.gmra.mrb[0].mxu0 %v808
  %v1414 = vpop.f32.mrb[0].mxu0
  %v1415 = vadd.f32 0.0, %v1414
  %v1416 = vpop.f32.mrb[0].mxu0
  %v1417 = vpop.f32.mrb[0].mxu0
  %v1418 = vadd.f32 0.0, %v1417
  %v1419 = vpop.f32.mrb[0].mxu0
  %1420 = vmatprep.mubr.bf16.mxu0 %v813
  %1421 = vmatmul.mubr.bf16.gmra.mrb[0].mxu0 %v812
  %v1422 = vpop.f32.mrb[0].mxu0
  %v1423 = vadd.f32 0.0, %v1422
  %v1424 = vpop.f32.mrb[0].mxu0
  %v1425 = vpop.f32.mrb[0].mxu0
  %v1426 = vadd.f32 0.0, %v1425
  %v1427 = vpop.f32.mrb[0].mxu0
  %1428 = vmatprep.mubr.bf16.mxu0 %v817
  %1429 = vmatmul.mubr.bf16.gmra.mrb[0].mxu0 %v816
  %v1430 = vpop.f32.mrb[0].mxu0
  %v1431 = vadd.f32 0.0, %v1430
  %v1432 = vpop.f32.mrb[0].mxu0
  %v1433 = vpop.f32.mrb[0].mxu0
  %v1434 = vadd.f32 0.0, %v1433
  %v1435 = vpop.f32.mrb[0].mxu0
  %1436 = vmatprep.mubr.bf16.mxu0 %v821
  %1437 = vmatmul.mubr.bf16.gmra.mrb[0].mxu0 %v820
  %v1438 = vpop.f32.mrb[0].mxu0
  %v1439 = vadd.f32 0.0, %v1438
  %v1440 = vpop.f32.mrb[0].mxu0
  %v1441 = vpop.f32.mrb[0].mxu0
  %v1442 = vadd.f32 0.0, %v1441
  %v1443 = vpop.f32.mrb[0].mxu0
  %1444 = vmatprep.mubr.bf16.mxu0 %v825
  %1445 = vmatmul.mubr.bf16.gmra.mrb[0].mxu0 %v824
  %v1446 = vpop.f32.mrb[0].mxu0
  %v1447 = vadd.f32 0.0, %v1446
  %v1448 = vpop.f32.mrb[0].mxu0
  %v1449 = vpop.f32.mrb[0].mxu0
  %v1450 = vadd.f32 0.0, %v1449
  %v1451 = vpop.f32.mrb[0].mxu0
  %1452 = vmatprep.mubr.bf16.mxu0 %v829
  %1453 = vmatmul.mubr.bf16.gmra.mrb[0].mxu0 %v828
  %v1454 = vpop.f32.mrb[0].mxu0
  %v1455 = vadd.f32 0.0, %v1454
  %v1456 = vpop.f32.mrb[0].mxu0
  %v1457 = vpop.f32.mrb[0].mxu0
  %v1458 = vadd.f32 0.0, %v1457
  %v1459 = vpop.f32.mrb[0].mxu0
  %1460 = vmatprep.mubr.bf16.mxu0 %v833
  %1461 = vmatmul.mubr.bf16.gmra.mrb[0].mxu0 %v832
  %v1462 = vpop.f32.mrb[0].mxu0
  %v1463 = vadd.f32 0.0, %v1462
  %v1464 = vpop.f32.mrb[0].mxu0
  %v1465 = vpop.f32.mrb[0].mxu0
  %v1466 = vadd.f32 0.0, %v1465
  %v1467 = vpop.f32.mrb[0].mxu0
  %1468 = vdwg.mxu0
  %1469 = vmatprep.subr.bf16.mxu0 0
  %1470 = vmatpush1.bf16.msra.mxu0 %v1046
  %1471 = vmatprep.subr.bf16.mxu0 0
  %1472 = vmatpush1.bf16.msra.mxu0 %v1047
  %1473 = vmatprep.subr.bf16.mxu0 0
  %1474 = vmatpush1.bf16.msra.mxu0 %v1048
  %1475 = vmatprep.subr.bf16.mxu0 0
  %1476 = vmatpush1.bf16.msra.mxu0 %v1049
  %1477 = vmatprep.subr.bf16.mxu0 0
  %1478 = vmatpush1.bf16.msra.mxu0 %v1050
  %1479 = vmatprep.subr.bf16.mxu0 0
  %1480 = vmatpush1.bf16.msra.mxu0 %v1051
  %1481 = vmatprep.subr.bf16.mxu0 0
  %1482 = vmatpush1.bf16.msra.mxu0 %v1052
  %1483 = vmatprep.subr.bf16.mxu0 0
  %1484 = vmatpush1.bf16.msra.mxu0 %v1053
  %1485 = vmatprep.subr.bf16.mxu0 0
  %1486 = vmatpush1.bf16.msra.mxu0 %v1178
  %1487 = vmatprep.subr.bf16.mxu0 0
  %1488 = vmatpush1.bf16.msra.mxu0 0
  %1489 = vmatprep.subr.bf16.mxu0 0
  %1490 = vmatpush1.bf16.msra.mxu0 0
  %1491 = vmatprep.subr.bf16.mxu0 0
  %1492 = vmatpush1.bf16.msra.mxu0 0
  %1493 = vmatprep.subr.bf16.mxu0 0
  %1494 = vmatpush1.bf16.msra.mxu0 0
  %1495 = vmatprep.subr.bf16.mxu0 0
  %1496 = vmatpush1.bf16.msra.mxu0 0
  %1497 = vmatprep.subr.bf16.mxu0 0
  %1498 = vmatpush1.bf16.msra.mxu0 0
  %1499 = vmatprep.subr.bf16.mxu0 0
  %1500 = vmatpush1.bf16.msra.mxu0 0
  %1501 = vmatprep.mubr.bf16.mxu0 %v1081
  %1502 = vmatmul.mubr.bf16.gmra.mrb[0].mxu0 %v710
  %v1503 = vpop.f32.mrb[0].mxu0
  %v1504 = vadd.f32 %v1215, %v1503
  %v1505 = vpop.f32.mrb[0].mxu0
  %v1506 = vpop.f32.mrb[0].mxu0
  %v1507 = vadd.f32 %v1218, %v1506
  %v1508 = vpop.f32.mrb[0].mxu0
  %1509 = vmatprep.mubr.bf16.mxu0 %v1084
  %1510 = vmatmul.mubr.bf16.gmra.mrb[0].mxu0 %v714
  %v1511 = vpop.f32.mrb[0].mxu0
  %v1512 = vadd.f32 %v1223, %v1511
  %v1513 = vpop.f32.mrb[0].mxu0
  %v1514 = vpop.f32.mrb[0].mxu0
  %v1515 = vadd.f32 %v1226, %v1514
  %v1516 = vpop.f32.mrb[0].mxu0
  %1517 = vmatprep.mubr.bf16.mxu0 %v1087
  %1518 = vmatmul.mubr.bf16.gmra.mrb[0].mxu0 %v718
  %v1519 = vpop.f32.mrb[0].mxu0
  %v1520 = vadd.f32 %v1231, %v1519
  %v1521 = vpop.f32.mrb[0].mxu0
  %v1522 = vpop.f32.mrb[0].mxu0
  %v1523 = vadd.f32 %v1234, %v1522
  %v1524 = vpop.f32.mrb[0].mxu0
  %1525 = vmatprep.mubr.bf16.mxu0 %v1090
  %1526 = vmatmul.mubr.bf16.gmra.mrb[0].mxu0 %v722
  %v1527 = vpop.f32.mrb[0].mxu0
  %v1528 = vadd.f32 %v1239, %v1527
  %v1529 = vpop.f32.mrb[0].mxu0
  %v1530 = vpop.f32.mrb[0].mxu0
  %v1531 = vadd.f32 %v1242, %v1530
  %v1532 = vpop.f32.mrb[0].mxu0
  %1533 = vmatprep.mubr.bf16.mxu0 %v1093
  %1534 = vmatmul.mubr.bf16.gmra.mrb[0].mxu0 %v726
  %v1535 = vpop.f32.mrb[0].mxu0
  %v1536 = vadd.f32 %v1247, %v1535
  %v1537 = vpop.f32.mrb[0].mxu0
  %v1538 = vpop.f32.mrb[0].mxu0
  %v1539 = vadd.f32 %v1250, %v1538
  %v1540 = vpop.f32.mrb[0].mxu0
  %1541 = vmatprep.mubr.bf16.mxu0 %v1096
  %1542 = vmatmul.mubr.bf16.gmra.mrb[0].mxu0 %v730
  %v1543 = vpop.f32.mrb[0].mxu0
  %v1544 = vadd.f32 %v1255, %v1543
  %v1545 = vpop.f32.mrb[0].mxu0
  %v1546 = vpop.f32.mrb[0].mxu0
  %v1547 = vadd.f32 %v1258, %v1546
  %v1548 = vpop.f32.mrb[0].mxu0
  %1549 = vmatprep.mubr.bf16.mxu0 %v1099
  %1550 = vmatmul.mubr.bf16.gmra.mrb[0].mxu0 %v734
  %v1551 = vpop.f32.mrb[0].mxu0
  %v1552 = vadd.f32 %v1263, %v1551
  %v1553 = vpop.f32.mrb[0].mxu0
  %v1554 = vpop.f32.mrb[0].mxu0
  %v1555 = vadd.f32 %v1266, %v1554
  %v1556 = vpop.f32.mrb[0].mxu0
  %1557 = vmatprep.mubr.bf16.mxu0 %v1102
  %1558 = vmatmul.mubr.bf16.gmra.mrb[0].mxu0 %v738
  %v1559 = vpop.f32.mrb[0].mxu0
  %v1560 = vadd.f32 %v1271, %v1559
  %v1561 = vpop.f32.mrb[0].mxu0
  %v1562 = vpop.f32.mrb[0].mxu0
  %v1563 = vadd.f32 %v1274, %v1562
  %v1564 = vpop.f32.mrb[0].mxu0
  %1565 = vmatprep.mubr.bf16.mxu0 %v1105
  %1566 = vmatmul.mubr.bf16.gmra.mrb[0].mxu0 %v742
  %v1567 = vpop.f32.mrb[0].mxu0
  %v1568 = vadd.f32 %v1279, %v1567
  %v1569 = vpop.f32.mrb[0].mxu0
  %v1570 = vpop.f32.mrb[0].mxu0
  %v1571 = vadd.f32 %v1282, %v1570
  %v1572 = vpop.f32.mrb[0].mxu0
  %1573 = vmatprep.mubr.bf16.mxu0 %v1108
  %1574 = vmatmul.mubr.bf16.gmra.mrb[0].mxu0 %v746
  %v1575 = vpop.f32.mrb[0].mxu0
  %v1576 = vadd.f32 %v1287, %v1575
  %v1577 = vpop.f32.mrb[0].mxu0
  %v1578 = vpop.f32.mrb[0].mxu0
  %v1579 = vadd.f32 %v1290, %v1578
  %v1580 = vpop.f32.mrb[0].mxu0
  %1581 = vmatprep.mubr.bf16.mxu0 %v1111
  %1582 = vmatmul.mubr.bf16.gmra.mrb[0].mxu0 %v750
  %v1583 = vpop.f32.mrb[0].mxu0
  %v1584 = vadd.f32 %v1295, %v1583
  %v1585 = vpop.f32.mrb[0].mxu0
  %v1586 = vpop.f32.mrb[0].mxu0
  %v1587 = vadd.f32 %v1298, %v1586
  %v1588 = vpop.f32.mrb[0].mxu0
  %1589 = vmatprep.mubr.bf16.mxu0 %v1114
  %1590 = vmatmul.mubr.bf16.gmra.mrb[0].mxu0 %v754
  %v1591 = vpop.f32.mrb[0].mxu0
  %v1592 = vadd.f32 %v1303, %v1591
  %v1593 = vpop.f32.mrb[0].mxu0
  %v1594 = vpop.f32.mrb[0].mxu0
  %v1595 = vadd.f32 %v1306, %v1594
  %v1596 = vpop.f32.mrb[0].mxu0
  %1597 = vmatprep.mubr.bf16.mxu0 %v1117
  %1598 = vmatmul.mubr.bf16.gmra.mrb[0].mxu0 %v758
  %v1599 = vpop.f32.mrb[0].mxu0
  %v1600 = vadd.f32 %v1311, %v1599
  %v1601 = vpop.f32.mrb[0].mxu0
  %v1602 = vpop.f32.mrb[0].mxu0
  %v1603 = vadd.f32 %v1314, %v1602
  %v1604 = vpop.f32.mrb[0].mxu0
  %1605 = vmatprep.mubr.bf16.mxu0 %v1120
  %1606 = vmatmul.mubr.bf16.gmra.mrb[0].mxu0 %v762
  %v1607 = vpop.f32.mrb[0].mxu0
  %v1608 = vadd.f32 %v1319, %v1607
  %v1609 = vpop.f32.mrb[0].mxu0
  %v1610 = vpop.f32.mrb[0].mxu0
  %v1611 = vadd.f32 %v1322, %v1610
  %v1612 = vpop.f32.mrb[0].mxu0
  %1613 = vmatprep.mubr.bf16.mxu0 %v1123
  %1614 = vmatmul.mubr.bf16.gmra.mrb[0].mxu0 %v766
  %v1615 = vpop.f32.mrb[0].mxu0
  %v1616 = vadd.f32 %v1327, %v1615
  %v1617 = vpop.f32.mrb[0].mxu0
  %v1618 = vpop.f32.mrb[0].mxu0
  %v1619 = vadd.f32 %v1330, %v1618
  %v1620 = vpop.f32.mrb[0].mxu0
  %1621 = vmatprep.mubr.bf16.mxu0 %v1126
  %1622 = vmatmul.mubr.bf16.gmra.mrb[0].mxu0 %v770
  %v1623 = vpop.f32.mrb[0].mxu0
  %v1624 = vadd.f32 %v1335, %v1623
  %v1625 = vpop.f32.mrb[0].mxu0
  %v1626 = vpop.f32.mrb[0].mxu0
  %v1627 = vadd.f32 %v1338, %v1626
  %v1628 = vpop.f32.mrb[0].mxu0
  %1629 = vmatprep.mubr.bf16.mxu0 %v1129
  %1630 = vmatmul.mubr.bf16.gmra.mrb[0].mxu0 %v774
  %v1631 = vpop.f32.mrb[0].mxu0
  %v1632 = vadd.f32 %v1343, %v1631
  %v1633 = vpop.f32.mrb[0].mxu0
  %v1634 = vpop.f32.mrb[0].mxu0
  %v1635 = vadd.f32 %v1346, %v1634
  %v1636 = vpop.f32.mrb[0].mxu0
  %1637 = vmatprep.mubr.bf16.mxu0 %v1132
  %1638 = vmatmul.mubr.bf16.gmra.mrb[0].mxu0 %v778
  %v1639 = vpop.f32.mrb[0].mxu0
  %v1640 = vadd.f32 %v1351, %v1639
  %v1641 = vpop.f32.mrb[0].mxu0
  %v1642 = vpop.f32.mrb[0].mxu0
  %v1643 = vadd.f32 %v1354, %v1642
  %v1644 = vpop.f32.mrb[0].mxu0
  %1645 = vmatprep.mubr.bf16.mxu0 %v1135
  %1646 = vmatmul.mubr.bf16.gmra.mrb[0].mxu0 %v782
  %v1647 = vpop.f32.mrb[0].mxu0
  %v1648 = vadd.f32 %v1359, %v1647
  %v1649 = vpop.f32.mrb[0].mxu0
  %v1650 = vpop.f32.mrb[0].mxu0
  %v1651 = vadd.f32 %v1362, %v1650
  %v1652 = vpop.f32.mrb[0].mxu0
  %1653 = vmatprep.mubr.bf16.mxu0 %v1138
  %1654 = vmatmul.mubr.bf16.gmra.mrb[0].mxu0 %v786
  %v1655 = vpop.f32.mrb[0].mxu0
  %v1656 = vadd.f32 %v1367, %v1655
  %v1657 = vpop.f32.mrb[0].mxu0
  %v1658 = vpop.f32.mrb[0].mxu0
  %v1659 = vadd.f32 %v1370, %v1658
  %v1660 = vpop.f32.mrb[0].mxu0
  %1661 = vmatprep.mubr.bf16.mxu0 %v1141
  %1662 = vmatmul.mubr.bf16.gmra.mrb[0].mxu0 %v790
  %v1663 = vpop.f32.mrb[0].mxu0
  %v1664 = vadd.f32 %v1375, %v1663
  %v1665 = vpop.f32.mrb[0].mxu0
  %v1666 = vpop.f32.mrb[0].mxu0
  %v1667 = vadd.f32 %v1378, %v1666
  %v1668 = vpop.f32.mrb[0].mxu0
  %1669 = vmatprep.mubr.bf16.mxu0 %v1144
  %1670 = vmatmul.mubr.bf16.gmra.mrb[0].mxu0 %v794
  %v1671 = vpop.f32.mrb[0].mxu0
  %v1672 = vadd.f32 %v1383, %v1671
  %v1673 = vpop.f32.mrb[0].mxu0
  %v1674 = vpop.f32.mrb[0].mxu0
  %v1675 = vadd.f32 %v1386, %v1674
  %v1676 = vpop.f32.mrb[0].mxu0
  %1677 = vmatprep.mubr.bf16.mxu0 %v1147
  %1678 = vmatmul.mubr.bf16.gmra.mrb[0].mxu0 %v798
  %v1679 = vpop.f32.mrb[0].mxu0
  %v1680 = vadd.f32 %v1391, %v1679
  %v1681 = vpop.f32.mrb[0].mxu0
  %v1682 = vpop.f32.mrb[0].mxu0
  %v1683 = vadd.f32 %v1394, %v1682
  %v1684 = vpop.f32.mrb[0].mxu0
  %1685 = vmatprep.mubr.bf16.mxu0 %v1150
  %1686 = vmatmul.mubr.bf16.gmra.mrb[0].mxu0 %v802
  %v1687 = vpop.f32.mrb[0].mxu0
  %v1688 = vadd.f32 %v1399, %v1687
  %v1689 = vpop.f32.mrb[0].mxu0
  %v1690 = vpop.f32.mrb[0].mxu0
  %v1691 = vadd.f32 %v1402, %v1690
  %v1692 = vpop.f32.mrb[0].mxu0
  %1693 = vmatprep.mubr.bf16.mxu0 %v1153
  %1694 = vmatmul.mubr.bf16.gmra.mrb[0].mxu0 %v806
  %v1695 = vpop.f32.mrb[0].mxu0
  %v1696 = vadd.f32 %v1407, %v1695
  %v1697 = vpop.f32.mrb[0].mxu0
  %v1698 = vpop.f32.mrb[0].mxu0
  %v1699 = vadd.f32 %v1410, %v1698
  %v1700 = vpop.f32.mrb[0].mxu0
  %1701 = vmatprep.mubr.bf16.mxu0 %v1156
  %1702 = vmatmul.mubr.bf16.gmra.mrb[0].mxu0 %v810
  %v1703 = vpop.f32.mrb[0].mxu0
  %v1704 = vadd.f32 %v1415, %v1703
  %v1705 = vpop.f32.mrb[0].mxu0
  %v1706 = vpop.f32.mrb[0].mxu0
  %v1707 = vadd.f32 %v1418, %v1706
  %v1708 = vpop.f32.mrb[0].mxu0
  %1709 = vmatprep.mubr.bf16.mxu0 %v1159
  %1710 = vmatmul.mubr.bf16.gmra.mrb[0].mxu0 %v814
  %v1711 = vpop.f32.mrb[0].mxu0
  %v1712 = vadd.f32 %v1423, %v1711
  %v1713 = vpop.f32.mrb[0].mxu0
  %v1714 = vpop.f32.mrb[0].mxu0
  %v1715 = vadd.f32 %v1426, %v1714
  %v1716 = vpop.f32.mrb[0].mxu0
  %1717 = vmatprep.mubr.bf16.mxu0 %v1162
  %1718 = vmatmul.mubr.bf16.gmra.mrb[0].mxu0 %v818
  %v1719 = vpop.f32.mrb[0].mxu0
  %v1720 = vadd.f32 %v1431, %v1719
  %v1721 = vpop.f32.mrb[0].mxu0
  %v1722 = vpop.f32.mrb[0].mxu0
  %v1723 = vadd.f32 %v1434, %v1722
  %v1724 = vpop.f32.mrb[0].mxu0
  %1725 = vmatprep.mubr.bf16.mxu0 %v1165
  %1726 = vmatmul.mubr.bf16.gmra.mrb[0].mxu0 %v822
  %v1727 = vpop.f32.mrb[0].mxu0
  %v1728 = vadd.f32 %v1439, %v1727
  %v1729 = vpop.f32.mrb[0].mxu0
  %v1730 = vpop.f32.mrb[0].mxu0
  %v1731 = vadd.f32 %v1442, %v1730
  %v1732 = vpop.f32.mrb[0].mxu0
  %1733 = vmatprep.mubr.bf16.mxu0 %v1168
  %1734 = vmatmul.mubr.bf16.gmra.mrb[0].mxu0 %v826
  %v1735 = vpop.f32.mrb[0].mxu0
  %v1736 = vadd.f32 %v1447, %v1735
  %v1737 = vpop.f32.mrb[0].mxu0
  %v1738 = vpop.f32.mrb[0].mxu0
  %v1739 = vadd.f32 %v1450, %v1738
  %v1740 = vpop.f32.mrb[0].mxu0
  %1741 = vmatprep.mubr.bf16.mxu0 %v1171
  %1742 = vmatmul.mubr.bf16.gmra.mrb[0].mxu0 %v830
  %v1743 = vpop.f32.mrb[0].mxu0
  %v1744 = vadd.f32 %v1455, %v1743
  %v1745 = vpop.f32.mrb[0].mxu0
  %v1746 = vpop.f32.mrb[0].mxu0
  %v1747 = vadd.f32 %v1458, %v1746
  %v1748 = vpop.f32.mrb[0].mxu0
  %1749 = vmatprep.mubr.bf16.mxu0 %v1174
  %1750 = vmatmul.mubr.bf16.gmra.mrb[0].mxu0 %v834
  %v1751 = vpop.f32.mrb[0].mxu0
  %v1752 = vadd.f32 %v1463, %v1751
  %v1753 = vpop.f32.mrb[0].mxu0
  %v1754 = vpop.f32.mrb[0].mxu0
  %v1755 = vadd.f32 %v1466, %v1754
  %v1756 = vpop.f32.mrb[0].mxu0
  %1757 = vdwg.mxu0
  %v1758 = vadd.f32 %v260, %v1504
  %v1759 = vadd.f32 %v261, %v1507
  %v1760 = vadd.f32 %v262, %v1512
  %v1761 = vadd.f32 %v263, %v1515
  %v1762 = vadd.f32 %v264, %v1520
  %v1763 = vadd.f32 %v265, %v1523
  %v1764 = vadd.f32 %v266, %v1528
  %v1765 = vadd.f32 %v267, %v1531
  %v1766 = vadd.f32 %v268, %v1536
  %v1767 = vadd.f32 %v269, %v1539
  %v1768 = vadd.f32 %v270, %v1544
  %v1769 = vadd.f32 %v271, %v1547
  %v1770 = vadd.f32 %v272, %v1552
  %v1771 = vadd.f32 %v273, %v1555
  %v1772 = vadd.f32 %v274, %v1560
  %v1773 = vadd.f32 %v275, %v1563
  %v1774 = vadd.f32 %v276, %v1568
  %v1775 = vadd.f32 %v277, %v1571
  %v1776 = vadd.f32 %v278, %v1576
  %v1777 = vadd.f32 %v279, %v1579
  %v1778 = vadd.f32 %v280, %v1584
  %v1779 = vadd.f32 %v281, %v1587
  %v1780 = vadd.f32 %v282, %v1592
  %v1781 = vadd.f32 %v283, %v1595
  %v1782 = vadd.f32 %v284, %v1600
  %v1783 = vadd.f32 %v285, %v1603
  %v1784 = vadd.f32 %v286, %v1608
  %v1785 = vadd.f32 %v287, %v1611
  %v1786 = vadd.f32 %v288, %v1616
  %v1787 = vadd.f32 %v289, %v1619
  %v1788 = vadd.f32 %v290, %v1624
  %v1789 = vadd.f32 %v291, %v1627
  %v1790 = vadd.f32 %v292, %v1632
  %v1791 = vadd.f32 %v293, %v1635
  %v1792 = vadd.f32 %v294, %v1640
  %v1793 = vadd.f32 %v295, %v1643
  %v1794 = vadd.f32 %v296, %v1648
  %v1795 = vadd.f32 %v297, %v1651
  %v1796 = vadd.f32 %v298, %v1656
  %v1797 = vadd.f32 %v299, %v1659
  %v1798 = vadd.f32 %v300, %v1664
  %v1799 = vadd.f32 %v301, %v1667
  %v1800 = vadd.f32 %v302, %v1672
  %v1801 = vadd.f32 %v303, %v1675
  %v1802 = vadd.f32 %v304, %v1680
  %v1803 = vadd.f32 %v305, %v1683
  %v1804 = vadd.f32 %v306, %v1688
  %v1805 = vadd.f32 %v307, %v1691
  %v1806 = vadd.f32 %v308, %v1696
  %v1807 = vadd.f32 %v309, %v1699
  %v1808 = vadd.f32 %v310, %v1704
  %v1809 = vadd.f32 %v311, %v1707
  %v1810 = vadd.f32 %v312, %v1712
  %v1811 = vadd.f32 %v313, %v1715
  %v1812 = vadd.f32 %v314, %v1720
  %v1813 = vadd.f32 %v315, %v1723
  %v1814 = vadd.f32 %v316, %v1728
  %v1815 = vadd.f32 %v317, %v1731
  %v1816 = vadd.f32 %v318, %v1736
  %v1817 = vadd.f32 %v319, %v1739
  %v1818 = vadd.f32 %v320, %v1744
  %v1819 = vadd.f32 %v321, %v1747
  %v1820 = vadd.f32 %v322, %v1752
  %v1821 = vadd.f32 %v323, %v1755
  %1822 = vst [vmem:[#allocation2] sm:$0xff] %v1758
  %1823 = vst [vmem:[#allocation2 + $0x8] sm:$0xff] %v1759
  %1824 = vst [vmem:[#allocation2 + $0x10] sm:$0xff] %v1760
  %1825 = vst [vmem:[#allocation2 + $0x18] sm:$0xff] %v1761
  %1826 = vst [vmem:[#allocation2 + $0x20] sm:$0xff] %v1762
  %1827 = vst [vmem:[#allocation2 + $0x28] sm:$0xff] %v1763
  %1828 = vst [vmem:[#allocation2 + $0x30] sm:$0xff] %v1764
  %1829 = vst [vmem:[#allocation2 + $0x38] sm:$0xff] %v1765
  %1830 = vst [vmem:[#allocation2 + $0x40] sm:$0xff] %v1766
  %1831 = vst [vmem:[#allocation2 + $0x48] sm:$0xff] %v1767
  %1832 = vst [vmem:[#allocation2 + $0x50] sm:$0xff] %v1768
  %1833 = vst [vmem:[#allocation2 + $0x58] sm:$0xff] %v1769
  %1834 = vst [vmem:[#allocation2 + $0x60] sm:$0xff] %v1770
  %1835 = vst [vmem:[#allocation2 + $0x68] sm:$0xff] %v1771
  %1836 = vst [vmem:[#allocation2 + $0x70] sm:$0xff] %v1772
  %1837 = vst [vmem:[#allocation2 + $0x78] sm:$0xff] %v1773
  %1838 = vst [vmem:[#allocation2 + $0x80] sm:$0xff] %v1774
  %1839 = vst [vmem:[#allocation2 + $0x88] sm:$0xff] %v1775
  %1840 = vst [vmem:[#allocation2 + $0x90] sm:$0xff] %v1776
  %1841 = vst [vmem:[#allocation2 + $0x98] sm:$0xff] %v1777
  %1842 = vst [vmem:[#allocation2 + $0xa0] sm:$0xff] %v1778
  %1843 = vst [vmem:[#allocation2 + $0xa8] sm:$0xff] %v1779
  %1844 = vst [vmem:[#allocation2 + $0xb0] sm:$0xff] %v1780
  %1845 = vst [vmem:[#allocation2 + $0xb8] sm:$0xff] %v1781
  %1846 = vst [vmem:[#allocation2 + $0xc0] sm:$0xff] %v1782
  %1847 = vst [vmem:[#allocation2 + $0xc8] sm:$0xff] %v1783
  %1848 = vst [vmem:[#allocation2 + $0xd0] sm:$0xff] %v1784
  %1849 = vst [vmem:[#allocation2 + $0xd8] sm:$0xff] %v1785
  %1850 = vst [vmem:[#allocation2 + $0xe0] sm:$0xff] %v1786
  %1851 = vst [vmem:[#allocation2 + $0xe8] sm:$0xff] %v1787
  %1852 = vst [vmem:[#allocation2 + $0xf0] sm:$0xff] %v1788
  %1853 = vst [vmem:[#allocation2 + $0xf8] sm:$0xff] %v1789
  %1854 = vst [vmem:[#allocation2 + $0x100] sm:$0xff] %v1790
  %1855 = vst [vmem:[#allocation2 + $0x108] sm:$0xff] %v1791
  %1856 = vst [vmem:[#allocation2 + $0x110] sm:$0xff] %v1792
  %1857 = vst [vmem:[#allocation2 + $0x118] sm:$0xff] %v1793
  %1858 = vst [vmem:[#allocation2 + $0x120] sm:$0xff] %v1794
  %1859 = vst [vmem:[#allocation2 + $0x128] sm:$0xff] %v1795
  %1860 = vst [vmem:[#allocation2 + $0x130] sm:$0xff] %v1796
  %1861 = vst [vmem:[#allocation2 + $0x138] sm:$0xff] %v1797
  %1862 = vst [vmem:[#allocation2 + $0x140] sm:$0xff] %v1798
  %1863 = vst [vmem:[#allocation2 + $0x148] sm:$0xff] %v1799
  %1864 = vst [vmem:[#allocation2 + $0x150] sm:$0xff] %v1800
  %1865 = vst [vmem:[#allocation2 + $0x158] sm:$0xff] %v1801
  %1866 = vst [vmem:[#allocation2 + $0x160] sm:$0xff] %v1802
  %1867 = vst [vmem:[#allocation2 + $0x168] sm:$0xff] %v1803
  %1868 = vst [vmem:[#allocation2 + $0x170] sm:$0xff] %v1804
  %1869 = vst [vmem:[#allocation2 + $0x178] sm:$0xff] %v1805
  %1870 = vst [vmem:[#allocation2 + $0x180] sm:$0xff] %v1806
  %1871 = vst [vmem:[#allocation2 + $0x188] sm:$0xff] %v1807
  %1872 = vst [vmem:[#allocation2 + $0x190] sm:$0xff] %v1808
  %1873 = vst [vmem:[#allocation2 + $0x198] sm:$0xff] %v1809
  %1874 = vst [vmem:[#allocation2 + $0x1a0] sm:$0xff] %v1810
  %1875 = vst [vmem:[#allocation2 + $0x1a8] sm:$0xff] %v1811
  %1876 = vst [vmem:[#allocation2 + $0x1b0] sm:$0xff] %v1812
  %1877 = vst [vmem:[#allocation2 + $0x1b8] sm:$0xff] %v1813
  %1878 = vst [vmem:[#allocation2 + $0x1c0] sm:$0xff] %v1814
  %1879 = vst [vmem:[#allocation2 + $0x1c8] sm:$0xff] %v1815
  %1880 = vst [vmem:[#allocation2 + $0x1d0] sm:$0xff] %v1816
  %1881 = vst [vmem:[#allocation2 + $0x1d8] sm:$0xff] %v1817
  %1882 = vst [vmem:[#allocation2 + $0x1e0] sm:$0xff] %v1818
  %1883 = vst [vmem:[#allocation2 + $0x1e8] sm:$0xff] %v1819
  %1884 = vst [vmem:[#allocation2 + $0x1f0] sm:$0xff] %v1820
  %1885 = vst [vmem:[#allocation2 + $0x1f8] sm:$0xff] %v1821
  // Predicated region
  $region18: #{fwd.139} parent=0 // pred_check
    %p1886 = pneg %p15
  $region19: #{fwd.139} parent=0 // pred_check_branch
    %1888 = sbr.rel (%p1886) target = $region21
  $region20: #{fwd.139} parent=0 // pred_region
    %v1889 = vld [vmem:[#allocation2] sm:$0xff]
    %v1890 = vld [vmem:[#allocation2 + $0x8] sm:$0xff]
    %v1891 = vld [vmem:[#allocation2 + $0x10] sm:$0xff]
    %v1892 = vld [vmem:[#allocation2 + $0x18] sm:$0xff]
    %v1893 = vld [vmem:[#allocation2 + $0x20] sm:$0xff]
    %v1894 = vld [vmem:[#allocation2 + $0x28] sm:$0xff]
    %v1895 = vld [vmem:[#allocation2 + $0x30] sm:$0xff]
    %v1896 = vld [vmem:[#allocation2 + $0x38] sm:$0xff]
    %v1897 = vld [vmem:[#allocation2 + $0x40] sm:$0xff]
    %v1898 = vld [vmem:[#allocation2 + $0x48] sm:$0xff]
    %v1899 = vld [vmem:[#allocation2 + $0x50] sm:$0xff]
    %v1900 = vld [vmem:[#allocation2 + $0x58] sm:$0xff]
    %v1901 = vld [vmem:[#allocation2 + $0x60] sm:$0xff]
    %v1902 = vld [vmem:[#allocation2 + $0x68] sm:$0xff]
    %v1903 = vld [vmem:[#allocation2 + $0x70] sm:$0xff]
    %v1904 = vld [vmem:[#allocation2 + $0x78] sm:$0xff]
    %v1905 = vld [vmem:[#allocation2 + $0x80] sm:$0xff]
    %v1906 = vld [vmem:[#allocation2 + $0x88] sm:$0xff]
    %v1907 = vld [vmem:[#allocation2 + $0x90] sm:$0xff]
    %v1908 = vld [vmem:[#allocation2 + $0x98] sm:$0xff]
    %v1909 = vld [vmem:[#allocation2 + $0xa0] sm:$0xff]
    %v1910 = vld [vmem:[#allocation2 + $0xa8] sm:$0xff]
    %v1911 = vld [vmem:[#allocation2 + $0xb0] sm:$0xff]
    %v1912 = vld [vmem:[#allocation2 + $0xb8] sm:$0xff]
    %v1913 = vld [vmem:[#allocation2 + $0xc0] sm:$0xff]
    %v1914 = vld [vmem:[#allocation2 + $0xc8] sm:$0xff]
    %v1915 = vld [vmem:[#allocation2 + $0xd0] sm:$0xff]
    %v1916 = vld [vmem:[#allocation2 + $0xd8] sm:$0xff]
    %v1917 = vld [vmem:[#allocation2 + $0xe0] sm:$0xff]
    %v1918 = vld [vmem:[#allocation2 + $0xe8] sm:$0xff]
    %v1919 = vld [vmem:[#allocation2 + $0xf0] sm:$0xff]
    %v1920 = vld [vmem:[#allocation2 + $0xf8] sm:$0xff]
    %v1921 = vld [vmem:[#allocation2 + $0x100] sm:$0xff]
    %v1922 = vld [vmem:[#allocation2 + $0x108] sm:$0xff]
    %v1923 = vld [vmem:[#allocation2 + $0x110] sm:$0xff]
    %v1924 = vld [vmem:[#allocation2 + $0x118] sm:$0xff]
    %v1925 = vld [vmem:[#allocation2 + $0x120] sm:$0xff]
    %v1926 = vld [vmem:[#allocation2 + $0x128] sm:$0xff]
    %v1927 = vld [vmem:[#allocation2 + $0x130] sm:$0xff]
    %v1928 = vld [vmem:[#allocation2 + $0x138] sm:$0xff]
    %v1929 = vld [vmem:[#allocation2 + $0x140] sm:$0xff]
    %v1930 = vld [vmem:[#allocation2 + $0x148] sm:$0xff]
    %v1931 = vld [vmem:[#allocation2 + $0x150] sm:$0xff]
    %v1932 = vld [vmem:[#allocation2 + $0x158] sm:$0xff]
    %v1933 = vld [vmem:[#allocation2 + $0x160] sm:$0xff]
    %v1934 = vld [vmem:[#allocation2 + $0x168] sm:$0xff]
    %v1935 = vld [vmem:[#allocation2 + $0x170] sm:$0xff]
    %v1936 = vld [vmem:[#allocation2 + $0x178] sm:$0xff]
    %v1937 = vld [vmem:[#allocation2 + $0x180] sm:$0xff]
    %v1938 = vld [vmem:[#allocation2 + $0x188] sm:$0xff]
    %v1939 = vld [vmem:[#allocation2 + $0x190] sm:$0xff]
    %v1940 = vld [vmem:[#allocation2 + $0x198] sm:$0xff]
    %v1941 = vld [vmem:[#allocation2 + $0x1a0] sm:$0xff]
    %v1942 = vld [vmem:[#allocation2 + $0x1a8] sm:$0xff]
    %v1943 = vld [vmem:[#allocation2 + $0x1b0] sm:$0xff]
    %v1944 = vld [vmem:[#allocation2 + $0x1b8] sm:$0xff]
    %v1945 = vld [vmem:[#allocation2 + $0x1c0] sm:$0xff]
    %v1946 = vld [vmem:[#allocation2 + $0x1c8] sm:$0xff]
    %v1947 = vld [vmem:[#allocation2 + $0x1d0] sm:$0xff]
    %v1948 = vld [vmem:[#allocation2 + $0x1d8] sm:$0xff]
    %v1949 = vld [vmem:[#allocation2 + $0x1e0] sm:$0xff]
    %v1950 = vld [vmem:[#allocation2 + $0x1e8] sm:$0xff]
    %v1951 = vld [vmem:[#allocation2 + $0x1f0] sm:$0xff]
    %v1952 = vld [vmem:[#allocation2 + $0x1f8] sm:$0xff]
    %v1953 = vld [vmem:[%s2] sm:$0x1]
    %v1955 = vlaneseq
    %v1956 = vshrl.u32 %v1955, 7
    %v1957 = vsub.s32 0, %v1956
    %v1958 = vrot.slane %v1953, %v1957
    %v1960 = vadd.f32 %v1889, %v1958
    %v1961 = vadd.f32 %v1890, %v1958
    %v1962 = vadd.f32 %v1891, %v1958
    %v1963 = vadd.f32 %v1892, %v1958
    %v1964 = vadd.f32 %v1893, %v1958
    %v1965 = vadd.f32 %v1894, %v1958
    %v1966 = vadd.f32 %v1895, %v1958
    %v1967 = vadd.f32 %v1896, %v1958
    %v1968 = vadd.f32 %v1897, %v1958
    %v1969 = vadd.f32 %v1898, %v1958
    %v1970 = vadd.f32 %v1899, %v1958
    %v1971 = vadd.f32 %v1900, %v1958
    %v1972 = vadd.f32 %v1901, %v1958
    %v1973 = vadd.f32 %v1902, %v1958
    %v1974 = vadd.f32 %v1903, %v1958
    %v1975 = vadd.f32 %v1904, %v1958
    %v1976 = vadd.f32 %v1905, %v1958
    %v1977 = vadd.f32 %v1906, %v1958
    %v1978 = vadd.f32 %v1907, %v1958
    %v1979 = vadd.f32 %v1908, %v1958
    %v1980 = vadd.f32 %v1909, %v1958
    %v1981 = vadd.f32 %v1910, %v1958
    %v1982 = vadd.f32 %v1911, %v1958
    %v1983 = vadd.f32 %v1912, %v1958
    %v1984 = vadd.f32 %v1913, %v1958
    %v1985 = vadd.f32 %v1914, %v1958
    %v1986 = vadd.f32 %v1915, %v1958
    %v1987 = vadd.f32 %v1916, %v1958
    %v1988 = vadd.f32 %v1917, %v1958
    %v1989 = vadd.f32 %v1918, %v1958
    %v1990 = vadd.f32 %v1919, %v1958
    %v1991 = vadd.f32 %v1920, %v1958
    %v1992 = vadd.f32 %v1921, %v1958
    %v1993 = vadd.f32 %v1922, %v1958
    %v1994 = vadd.f32 %v1923, %v1958
    %v1995 = vadd.f32 %v1924, %v1958
    %v1996 = vadd.f32 %v1925, %v1958
    %v1997 = vadd.f32 %v1926, %v1958
    %v1998 = vadd.f32 %v1927, %v1958
    %v1999 = vadd.f32 %v1928, %v1958
    %v2000 = vadd.f32 %v1929, %v1958
    %v2001 = vadd.f32 %v1930, %v1958
    %v2002 = vadd.f32 %v1931, %v1958
    %v2003 = vadd.f32 %v1932, %v1958
    %v2004 = vadd.f32 %v1933, %v1958
    %v2005 = vadd.f32 %v1934, %v1958
    %v2006 = vadd.f32 %v1935, %v1958
    %v2007 = vadd.f32 %v1936, %v1958
    %v2008 = vadd.f32 %v1937, %v1958
    %v2009 = vadd.f32 %v1938, %v1958
    %v2010 = vadd.f32 %v1939, %v1958
    %v2011 = vadd.f32 %v1940, %v1958
    %v2012 = vadd.f32 %v1941, %v1958
    %v2013 = vadd.f32 %v1942, %v1958
    %v2014 = vadd.f32 %v1943, %v1958
    %v2015 = vadd.f32 %v1944, %v1958
    %v2016 = vadd.f32 %v1945, %v1958
    %v2017 = vadd.f32 %v1946, %v1958
    %v2018 = vadd.f32 %v1947, %v1958
    %v2019 = vadd.f32 %v1948, %v1958
    %v2020 = vadd.f32 %v1949, %v1958
    %v2021 = vadd.f32 %v1950, %v1958
    %v2022 = vadd.f32 %v1951, %v1958
    %v2023 = vadd.f32 %v1952, %v1958
    %v2024 = vtanh.pop %v1960
    %v2025 = vtanh.pop %v1961
    %v2026 = vtanh.pop %v1962
    %v2027 = vtanh.pop %v1963
    %v2028 = vtanh.pop %v1964
    %v2029 = vtanh.pop %v1965
    %v2030 = vtanh.pop %v1966
    %v2031 = vtanh.pop %v1967
    %v2032 = vtanh.pop %v1968
    %v2033 = vtanh.pop %v1969
    %v2034 = vtanh.pop %v1970
    %v2035 = vtanh.pop %v1971
    %v2036 = vtanh.pop %v1972
    %v2037 = vtanh.pop %v1973
    %v2038 = vtanh.pop %v1974
    %v2039 = vtanh.pop %v1975
    %v2040 = vtanh.pop %v1976
    %v2041 = vtanh.pop %v1977
    %v2042 = vtanh.pop %v1978
    %v2043 = vtanh.pop %v1979
    %v2044 = vtanh.pop %v1980
    %v2045 = vtanh.pop %v1981
    %v2046 = vtanh.pop %v1982
    %v2047 = vtanh.pop %v1983
    %v2048 = vtanh.pop %v1984
    %v2049 = vtanh.pop %v1985
    %v2050 = vtanh.pop %v1986
    %v2051 = vtanh.pop %v1987
    %v2052 = vtanh.pop %v1988
    %v2053 = vtanh.pop %v1989
    %v2054 = vtanh.pop %v1990
    %v2055 = vtanh.pop %v1991
    %v2056 = vtanh.pop %v1992
    %v2057 = vtanh.pop %v1993
    %v2058 = vtanh.pop %v1994
    %v2059 = vtanh.pop %v1995
    %v2060 = vtanh.pop %v1996
    %v2061 = vtanh.pop %v1997
    %v2062 = vtanh.pop %v1998
    %v2063 = vtanh.pop %v1999
    %v2064 = vtanh.pop %v2000
    %v2065 = vtanh.pop %v2001
    %v2066 = vtanh.pop %v2002
    %v2067 = vtanh.pop %v2003
    %v2068 = vtanh.pop %v2004
    %v2069 = vtanh.pop %v2005
    %v2070 = vtanh.pop %v2006
    %v2071 = vtanh.pop %v2007
    %v2072 = vtanh.pop %v2008
    %v2073 = vtanh.pop %v2009
    %v2074 = vtanh.pop %v2010
    %v2075 = vtanh.pop %v2011
    %v2076 = vtanh.pop %v2012
    %v2077 = vtanh.pop %v2013
    %v2078 = vtanh.pop %v2014
    %v2079 = vtanh.pop %v2015
    %v2080 = vtanh.pop %v2016
    %v2081 = vtanh.pop %v2017
    %v2082 = vtanh.pop %v2018
    %v2083 = vtanh.pop %v2019
    %v2084 = vtanh.pop %v2020
    %v2085 = vtanh.pop %v2021
    %v2086 = vtanh.pop %v2022
    %v2087 = vtanh.pop %v2023
    %vm2088 = vcmask 23552
    %2089 = vst.msk [vmem:[%s3] sm:$0xff] %vm2088, %v2024
    %2090 = vst.msk [vmem:[%s3 + $0x8] sm:$0xff] %vm2088, %v2025
    %2091 = vst.msk [vmem:[%s3 + $0x10] sm:$0xff] %vm2088, %v2026
    %2092 = vst.msk [vmem:[%s3 + $0x18] sm:$0xff] %vm2088, %v2027
    %2093 = vst.msk [vmem:[%s3 + $0x20] sm:$0xff] %vm2088, %v2028
    %2094 = vst.msk [vmem:[%s3 + $0x28] sm:$0xff] %vm2088, %v2029
    %2095 = vst.msk [vmem:[%s3 + $0x30] sm:$0xff] %vm2088, %v2030
    %2096 = vst.msk [vmem:[%s3 + $0x38] sm:$0xff] %vm2088, %v2031
    %2097 = vst.msk [vmem:[%s3 + $0x40] sm:$0xff] %vm2088, %v2032
    %2098 = vst.msk [vmem:[%s3 + $0x48] sm:$0xff] %vm2088, %v2033
    %2099 = vst.msk [vmem:[%s3 + $0x50] sm:$0xff] %vm2088, %v2034
    %2100 = vst.msk [vmem:[%s3 + $0x58] sm:$0xff] %vm2088, %v2035
    %2101 = vst.msk [vmem:[%s3 + $0x60] sm:$0xff] %vm2088, %v2036
    %2102 = vst.msk [vmem:[%s3 + $0x68] sm:$0xff] %vm2088, %v2037
    %2103 = vst.msk [vmem:[%s3 + $0x70] sm:$0xff] %vm2088, %v2038
    %2104 = vst.msk [vmem:[%s3 + $0x78] sm:$0xff] %vm2088, %v2039
    %2105 = vst.msk [vmem:[%s3 + $0x80] sm:$0xff] %vm2088, %v2040
    %2106 = vst.msk [vmem:[%s3 + $0x88] sm:$0xff] %vm2088, %v2041
    %2107 = vst.msk [vmem:[%s3 + $0x90] sm:$0xff] %vm2088, %v2042
    %2108 = vst.msk [vmem:[%s3 + $0x98] sm:$0xff] %vm2088, %v2043
    %2109 = vst.msk [vmem:[%s3 + $0xa0] sm:$0xff] %vm2088, %v2044
    %2110 = vst.msk [vmem:[%s3 + $0xa8] sm:$0xff] %vm2088, %v2045
    %2111 = vst.msk [vmem:[%s3 + $0xb0] sm:$0xff] %vm2088, %v2046
    %2112 = vst.msk [vmem:[%s3 + $0xb8] sm:$0xff] %vm2088, %v2047
    %2113 = vst.msk [vmem:[%s3 + $0xc0] sm:$0xff] %vm2088, %v2048
    %2114 = vst.msk [vmem:[%s3 + $0xc8] sm:$0xff] %vm2088, %v2049
    %2115 = vst.msk [vmem:[%s3 + $0xd0] sm:$0xff] %vm2088, %v2050
    %2116 = vst.msk [vmem:[%s3 + $0xd8] sm:$0xff] %vm2088, %v2051
    %2117 = vst.msk [vmem:[%s3 + $0xe0] sm:$0xff] %vm2088, %v2052
    %2118 = vst.msk [vmem:[%s3 + $0xe8] sm:$0xff] %vm2088, %v2053
    %2119 = vst.msk [vmem:[%s3 + $0xf0] sm:$0xff] %vm2088, %v2054
    %2120 = vst.msk [vmem:[%s3 + $0xf8] sm:$0xff] %vm2088, %v2055
    %2121 = vst.msk [vmem:[%s3 + $0x100] sm:$0xff] %vm2088, %v2056
    %2122 = vst.msk [vmem:[%s3 + $0x108] sm:$0xff] %vm2088, %v2057
    %2123 = vst.msk [vmem:[%s3 + $0x110] sm:$0xff] %vm2088, %v2058
    %2124 = vst.msk [vmem:[%s3 + $0x118] sm:$0xff] %vm2088, %v2059
    %2125 = vst.msk [vmem:[%s3 + $0x120] sm:$0xff] %vm2088, %v2060
    %2126 = vst.msk [vmem:[%s3 + $0x128] sm:$0xff] %vm2088, %v2061
    %2127 = vst.msk [vmem:[%s3 + $0x130] sm:$0xff] %vm2088, %v2062
    %2128 = vst.msk [vmem:[%s3 + $0x138] sm:$0xff] %vm2088, %v2063
    %2129 = vst.msk [vmem:[%s3 + $0x140] sm:$0xff] %vm2088, %v2064
    %2130 = vst.msk [vmem:[%s3 + $0x148] sm:$0xff] %vm2088, %v2065
    %2131 = vst.msk [vmem:[%s3 + $0x150] sm:$0xff] %vm2088, %v2066
    %2132 = vst.msk [vmem:[%s3 + $0x158] sm:$0xff] %vm2088, %v2067
    %2133 = vst.msk [vmem:[%s3 + $0x160] sm:$0xff] %vm2088, %v2068
    %2134 = vst.msk [vmem:[%s3 + $0x168] sm:$0xff] %vm2088, %v2069
    %2135 = vst.msk [vmem:[%s3 + $0x170] sm:$0xff] %vm2088, %v2070
    %2136 = vst.msk [vmem:[%s3 + $0x178] sm:$0xff] %vm2088, %v2071
    %2137 = vst.msk [vmem:[%s3 + $0x180] sm:$0xff] %vm2088, %v2072
    %2138 = vst.msk [vmem:[%s3 + $0x188] sm:$0xff] %vm2088, %v2073
    %2139 = vst.msk [vmem:[%s3 + $0x190] sm:$0xff] %vm2088, %v2074
    %2140 = vst.msk [vmem:[%s3 + $0x198] sm:$0xff] %vm2088, %v2075
    %2141 = vst.msk [vmem:[%s3 + $0x1a0] sm:$0xff] %vm2088, %v2076
    %2142 = vst.msk [vmem:[%s3 + $0x1a8] sm:$0xff] %vm2088, %v2077
    %2143 = vst.msk [vmem:[%s3 + $0x1b0] sm:$0xff] %vm2088, %v2078
    %2144 = vst.msk [vmem:[%s3 + $0x1b8] sm:$0xff] %vm2088, %v2079
    %2145 = vst.msk [vmem:[%s3 + $0x1c0] sm:$0xff] %vm2088, %v2080
    %2146 = vst.msk [vmem:[%s3 + $0x1c8] sm:$0xff] %vm2088, %v2081
    %2147 = vst.msk [vmem:[%s3 + $0x1d0] sm:$0xff] %vm2088, %v2082
    %2148 = vst.msk [vmem:[%s3 + $0x1d8] sm:$0xff] %vm2088, %v2083
    %2149 = vst.msk [vmem:[%s3 + $0x1e0] sm:$0xff] %vm2088, %v2084
    %2150 = vst.msk [vmem:[%s3 + $0x1e8] sm:$0xff] %vm2088, %v2085
    %2151 = vst.msk [vmem:[%s3 + $0x1f0] sm:$0xff] %vm2088, %v2086
    %2152 = vst.msk [vmem:[%s3 + $0x1f8] sm:$0xff] %vm2088, %v2087
  $region21: #{fwd.139} parent=0 // pred_fallthru
    _
  // Predicated region
  $region22: #{fwd.139} parent=0 // pred_check
    _
  $region23: #{fwd.139} parent=0 // pred_check_branch
    %2154 = sbr.rel (0) target = $region25
  $region24: #{fwd.139} parent=0 // pred_region
    _
  $region25: #{fwd.139} parent=0 // pred_fallthru
    _
  // Predicated region
  $region26: #{fwd.139} parent=0 // pred_check
    _
  $region27: #{fwd.139} parent=0 // pred_check_branch
    %2156 = sbr.rel (0) target = $region29
  $region28: #{fwd.139} parent=0 // pred_region
    _
  $region29: #{fwd.139} parent=0 // pred_fallthru
    _

</llo_original>
